<compile_context>
chip_gen: v7x
topology: tpu7x:2x2x1
jax: 0.10.0
libtpu: 0.0.40
codegen_flags: <defaults>
</compile_context>

<pallas_src>
import jax
import jax.numpy as jnp
from jax.experimental import pallas as pl
from jax.experimental.pallas import tpu as pltpu

# Problem sizes (synthetic, consistent with the module: in=4, out=8, depth=4)
B, C_IN, H, W = 2, 4, 16, 16
C_OUT = 8
DEPTH = 4
C_MID = C_OUT // 2
D_MAX = 2 * DEPTH                 # largest dilation (== its padding)
N_ROWS = B * H * W                # 512
K_IM2COL = DEPTH * 9 * C_IN       # 144
C_MID_ALL = DEPTH * C_MID         # 16
BN_EPS = 1e-5
_INV_SQRT2 = 0.7071067811865476


def _mdb_kernel(xpad_ref, w3_ref, gamma_ref, beta_ref, w1f_ref, bfold_ref, out_ref):
    """Single invocation: whole MultiDilationBlock forward."""
    # ---- im2col over ALL branches: 36 static shifted windows ---------------
    cols = []
    for i in range(DEPTH):
        d = 2 * (i + 1)                         # dilation of branch i
        for ky in range(3):
            for kx in range(3):
                oy = D_MAX + (ky - 1) * d       # static offsets into padded input
                ox = D_MAX + (kx - 1) * d
                cols.append(xpad_ref[:, pl.ds(oy, H), pl.ds(ox, W), :])
    patches = jnp.concatenate(cols, axis=-1)            # (B,H,W,144)
    patches = patches.reshape(N_ROWS, K_IM2COL)         # (512,144) minor dim kept

    # ---- all 4 dilated 3x3 convs as one MXU matmul (block-diag weights) ----
    y = jnp.dot(patches.astype(jnp.bfloat16), w3_ref[...],
                preferred_element_type=jnp.float32)     # (512,16) f32
    # conv bias b3 omitted: exactly cancelled by training-mode BN mean subtraction.

    # ---- BatchNorm2d (training-mode batch stats), single pass, gamma folded -
    mean = jnp.mean(y, axis=0, keepdims=True)                       # (1,16)
    var = jnp.mean(y * y, axis=0, keepdims=True) - mean * mean      # (1,16)
    scale = gamma_ref[...] * jax.lax.rsqrt(var + BN_EPS)
    shift = beta_ref[...] - mean * scale
    y = y * scale + shift

    # ---- exact GELU (erf form, matches nn.GELU() default) -------------------
    y = 0.5 * y * (1.0 + jax.lax.erf(y * _INV_SQRT2))

    # ---- fused (branch 1x1 -> concat -> final 1x1): one (512,16)@(16,8) -----
    acc = jnp.dot(y.astype(jnp.bfloat16), w1f_ref[...],
                  preferred_element_type=jnp.float32)   # (512,8) f32
    acc = acc + bfold_ref[...]                          # folded biases (1,8)

    # ---- lane-dense store: (512,8) -> (32,16,8) -> lane concat -> (32,128) --
    acc3 = acc.reshape(B * H, W, C_OUT)                 # leading-dim split only
    out_ref[...] = jnp.concatenate([acc3[:, w, :] for w in range(W)], axis=-1)


def init_params(key):
    ks = jax.random.split(key, 8)
    return dict(
        w3=0.2 * jax.random.normal(ks[0], (DEPTH, 3, 3, C_IN, C_MID), jnp.float32),
        b3=0.1 * jax.random.normal(ks[1], (DEPTH, C_MID), jnp.float32),
        gamma=1.0 + 0.1 * jax.random.normal(ks[2], (DEPTH, C_MID), jnp.float32),
        beta=0.1 * jax.random.normal(ks[3], (DEPTH, C_MID), jnp.float32),
        w1=0.2 * jax.random.normal(ks[4], (DEPTH, C_MID, C_OUT), jnp.float32),
        b1=0.1 * jax.random.normal(ks[5], (DEPTH, C_OUT), jnp.float32),
        wf=0.2 * jax.random.normal(ks[6], (DEPTH, C_OUT, C_OUT), jnp.float32),
        bf=0.1 * jax.random.normal(ks[7], (1, C_OUT), jnp.float32),
    )


@jax.jit
def multi_dilation_block(x_nchw, p):
    x = jnp.transpose(x_nchw, (0, 2, 3, 1)).astype(jnp.float32)   # NCHW -> NHWC
    xpad = jnp.pad(x, ((0, 0), (D_MAX, D_MAX), (D_MAX, D_MAX), (0, 0)))

    # --- host-side (exact) weight folding ------------------------------------
    # Block-diagonal conv weights: rows (branch,tap,cin), cols (branch,cmid).
    w3f = p['w3'].reshape(DEPTH, 9 * C_IN, C_MID)
    w3bd = jnp.zeros((K_IM2COL, C_MID_ALL), jnp.float32)
    for i in range(DEPTH):
        w3bd = w3bd.at[i * 9 * C_IN:(i + 1) * 9 * C_IN,
                       i * C_MID:(i + 1) * C_MID].set(w3f[i])
    w3bd = w3bd.astype(jnp.bfloat16)
    # b3 intentionally not shipped (cancelled by training-mode BatchNorm mean).
    gamma_all = p['gamma'].reshape(1, C_MID_ALL)
    beta_all = p['beta'].reshape(1, C_MID_ALL)
    # Fold branch 1x1 into the final 1x1: W1f[i] = w1[i] @ wf[i], stacked (16,8).
    w1f = jnp.einsum('dmc,dco->dmo', p['w1'], p['wf'])
    w1f = w1f.reshape(C_MID_ALL, C_OUT).astype(jnp.bfloat16)
    bfold = jnp.einsum('dc,dco->o', p['b1'], p['wf'])[None, :] + p['bf']   # (1,8)

    def full_spec(shape):
        n = len(shape)
        return pl.BlockSpec(shape, lambda i, _n=n: (0,) * _n)

    args = (xpad, w3bd, gamma_all, beta_all, w1f, bfold)
    out2d = pl.pallas_call(
        _mdb_kernel,
        out_shape=jax.ShapeDtypeStruct((B * H, W * C_OUT), jnp.float32),
        grid=(1,),
        in_specs=[full_spec(a.shape) for a in args],
        out_specs=pl.BlockSpec((B * H, W * C_OUT), lambda i: (0, 0)),
        compiler_params=pltpu.CompilerParams(dimension_semantics=("arbitrary",)),
    )(*args)

    out_nhwc = out2d.reshape(B, H, W, C_OUT)
    return jnp.transpose(out_nhwc, (0, 3, 1, 2))                  # NHWC -> NCHW


def reference(x_nchw, p):
    """Pure-JAX reference (same math as the PyTorch forward, training-mode BN)."""
    x = jnp.transpose(x_nchw, (0, 2, 3, 1)).astype(jnp.float32)
    acc = jnp.zeros((B, H, W, C_OUT), jnp.float32)
    for i in range(DEPTH):
        d = 2 * (i + 1)
        y = jax.lax.conv_general_dilated(
            x, p['w3'][i], window_strides=(1, 1),
            padding=[(d, d), (d, d)], rhs_dilation=(d, d),
            dimension_numbers=('NHWC', 'HWIO', 'NHWC'))
        y = y + p['b3'][i]
        mean = jnp.mean(y, axis=(0, 1, 2))
        var = jnp.mean((y - mean) ** 2, axis=(0, 1, 2))
        y = (y - mean) * jax.lax.rsqrt(var + BN_EPS)
        y = y * p['gamma'][i] + p['beta'][i]
        y = 0.5 * y * (1.0 + jax.lax.erf(y * _INV_SQRT2))
        z = jnp.einsum('bhwc,cd->bhwd', y, p['w1'][i]) + p['b1'][i]
        acc = acc + jnp.einsum('bhwc,cd->bhwd', z, p['wf'][i])
    acc = acc + p['bf'][0]
    return jnp.transpose(acc, (0, 3, 1, 2))


if __name__ == "__main__":
    key = jax.random.PRNGKey(0)
    kx, kp = jax.random.split(key)
    x = jax.random.normal(kx, (B, C_IN, H, W), jnp.float32)
    params = init_params(kp)

    out = jax.block_until_ready(multi_dilation_block(x, params))
    ref = jax.block_until_ready(reference(x, params))

    assert out.shape == (B, C_OUT, H, W)
    assert bool(jnp.allclose(out, ref, atol=2e-2, rtol=2e-2))
    print("KERNEL_OK")
</pallas_src>

<mosaic_0001>
module attributes {stable_mosaic.version = 11 : i64} {
  func.func @_mdb_kernel(%arg0: i32, %arg1: memref<2x32x32x4xf32, #tpu.memory_space<vmem>>, %arg2: memref<144x16xbf16, #tpu.memory_space<vmem>>, %arg3: memref<1x16xf32, #tpu.memory_space<vmem>>, %arg4: memref<1x16xf32, #tpu.memory_space<vmem>>, %arg5: memref<16x8xbf16, #tpu.memory_space<vmem>>, %arg6: memref<1x8xf32, #tpu.memory_space<vmem>>, %arg7: memref<32x128xf32, #tpu.memory_space<vmem>>) attributes {dimension_semantics = [#tpu.dimension_semantics<arbitrary>], iteration_bounds = array<i64: 1>, scalar_prefetch = 0 : i64, scratch_operands = 0 : i64, tpu.core_type = #tpu.core_type<tc>, window_params = [{pipeline_mode = #tpu.pipeline_mode<synchronous>, transform_indices = @transform_0, window_bounds = array<i64: 2, 32, 32, 4>}, {pipeline_mode = #tpu.pipeline_mode<synchronous>, transform_indices = @transform_1, window_bounds = array<i64: 144, 16>}, {pipeline_mode = #tpu.pipeline_mode<synchronous>, transform_indices = @transform_2, window_bounds = array<i64: 1, 16>}, {pipeline_mode = #tpu.pipeline_mode<synchronous>, transform_indices = @transform_3, window_bounds = array<i64: 1, 16>}, {pipeline_mode = #tpu.pipeline_mode<synchronous>, transform_indices = @transform_4, window_bounds = array<i64: 16, 8>}, {pipeline_mode = #tpu.pipeline_mode<synchronous>, transform_indices = @transform_5, window_bounds = array<i64: 1, 8>}, {pipeline_mode = #tpu.pipeline_mode<synchronous>, transform_indices = @transform_6, window_bounds = array<i64: 32, 128>}]} {
    %c0 = arith.constant 0 : index
    %c6 = arith.constant 6 : index
    %c6_0 = arith.constant 6 : index
    %c0_1 = arith.constant 0 : index
    %0 = vector.load %arg1[%c0, %c6, %c6_0, %c0_1] : memref<2x32x32x4xf32, #tpu.memory_space<vmem>>, vector<2x16x16x4xf32>
    %c0_2 = arith.constant 0 : index
    %c6_3 = arith.constant 6 : index
    %c8 = arith.constant 8 : index
    %c0_4 = arith.constant 0 : index
    %1 = vector.load %arg1[%c0_2, %c6_3, %c8, %c0_4] : memref<2x32x32x4xf32, #tpu.memory_space<vmem>>, vector<2x16x16x4xf32>
    %c0_5 = arith.constant 0 : index
    %c6_6 = arith.constant 6 : index
    %c10 = arith.constant 10 : index
    %c0_7 = arith.constant 0 : index
    %2 = vector.load %arg1[%c0_5, %c6_6, %c10, %c0_7] : memref<2x32x32x4xf32, #tpu.memory_space<vmem>>, vector<2x16x16x4xf32>
    %c0_8 = arith.constant 0 : index
    %c8_9 = arith.constant 8 : index
    %c6_10 = arith.constant 6 : index
    %c0_11 = arith.constant 0 : index
    %3 = vector.load %arg1[%c0_8, %c8_9, %c6_10, %c0_11] : memref<2x32x32x4xf32, #tpu.memory_space<vmem>>, vector<2x16x16x4xf32>
    %c0_12 = arith.constant 0 : index
    %c8_13 = arith.constant 8 : index
    %c8_14 = arith.constant 8 : index
    %c0_15 = arith.constant 0 : index
    %4 = vector.load %arg1[%c0_12, %c8_13, %c8_14, %c0_15] : memref<2x32x32x4xf32, #tpu.memory_space<vmem>>, vector<2x16x16x4xf32>
    %c0_16 = arith.constant 0 : index
    %c8_17 = arith.constant 8 : index
    %c10_18 = arith.constant 10 : index
    %c0_19 = arith.constant 0 : index
    %5 = vector.load %arg1[%c0_16, %c8_17, %c10_18, %c0_19] : memref<2x32x32x4xf32, #tpu.memory_space<vmem>>, vector<2x16x16x4xf32>
    %c0_20 = arith.constant 0 : index
    %c10_21 = arith.constant 10 : index
    %c6_22 = arith.constant 6 : index
    %c0_23 = arith.constant 0 : index
    %6 = vector.load %arg1[%c0_20, %c10_21, %c6_22, %c0_23] : memref<2x32x32x4xf32, #tpu.memory_space<vmem>>, vector<2x16x16x4xf32>
    %c0_24 = arith.constant 0 : index
    %c10_25 = arith.constant 10 : index
    %c8_26 = arith.constant 8 : index
    %c0_27 = arith.constant 0 : index
    %7 = vector.load %arg1[%c0_24, %c10_25, %c8_26, %c0_27] : memref<2x32x32x4xf32, #tpu.memory_space<vmem>>, vector<2x16x16x4xf32>
    %c0_28 = arith.constant 0 : index
    %c10_29 = arith.constant 10 : index
    %c10_30 = arith.constant 10 : index
    %c0_31 = arith.constant 0 : index
    %8 = vector.load %arg1[%c0_28, %c10_29, %c10_30, %c0_31] : memref<2x32x32x4xf32, #tpu.memory_space<vmem>>, vector<2x16x16x4xf32>
    %c0_32 = arith.constant 0 : index
    %c4 = arith.constant 4 : index
    %c4_33 = arith.constant 4 : index
    %c0_34 = arith.constant 0 : index
    %9 = vector.load %arg1[%c0_32, %c4, %c4_33, %c0_34] : memref<2x32x32x4xf32, #tpu.memory_space<vmem>>, vector<2x16x16x4xf32>
    %c0_35 = arith.constant 0 : index
    %c4_36 = arith.constant 4 : index
    %c8_37 = arith.constant 8 : index
    %c0_38 = arith.constant 0 : index
    %10 = vector.load %arg1[%c0_35, %c4_36, %c8_37, %c0_38] : memref<2x32x32x4xf32, #tpu.memory_space<vmem>>, vector<2x16x16x4xf32>
    %c0_39 = arith.constant 0 : index
    %c4_40 = arith.constant 4 : index
    %c12 = arith.constant 12 : index
    %c0_41 = arith.constant 0 : index
    %11 = vector.load %arg1[%c0_39, %c4_40, %c12, %c0_41] : memref<2x32x32x4xf32, #tpu.memory_space<vmem>>, vector<2x16x16x4xf32>
    %c0_42 = arith.constant 0 : index
    %c8_43 = arith.constant 8 : index
    %c4_44 = arith.constant 4 : index
    %c0_45 = arith.constant 0 : index
    %12 = vector.load %arg1[%c0_42, %c8_43, %c4_44, %c0_45] : memref<2x32x32x4xf32, #tpu.memory_space<vmem>>, vector<2x16x16x4xf32>
    %c0_46 = arith.constant 0 : index
    %c8_47 = arith.constant 8 : index
    %c8_48 = arith.constant 8 : index
    %c0_49 = arith.constant 0 : index
    %13 = vector.load %arg1[%c0_46, %c8_47, %c8_48, %c0_49] : memref<2x32x32x4xf32, #tpu.memory_space<vmem>>, vector<2x16x16x4xf32>
    %c0_50 = arith.constant 0 : index
    %c8_51 = arith.constant 8 : index
    %c12_52 = arith.constant 12 : index
    %c0_53 = arith.constant 0 : index
    %14 = vector.load %arg1[%c0_50, %c8_51, %c12_52, %c0_53] : memref<2x32x32x4xf32, #tpu.memory_space<vmem>>, vector<2x16x16x4xf32>
    %c0_54 = arith.constant 0 : index
    %c12_55 = arith.constant 12 : index
    %c4_56 = arith.constant 4 : index
    %c0_57 = arith.constant 0 : index
    %15 = vector.load %arg1[%c0_54, %c12_55, %c4_56, %c0_57] : memref<2x32x32x4xf32, #tpu.memory_space<vmem>>, vector<2x16x16x4xf32>
    %c0_58 = arith.constant 0 : index
    %c12_59 = arith.constant 12 : index
    %c8_60 = arith.constant 8 : index
    %c0_61 = arith.constant 0 : index
    %16 = vector.load %arg1[%c0_58, %c12_59, %c8_60, %c0_61] : memref<2x32x32x4xf32, #tpu.memory_space<vmem>>, vector<2x16x16x4xf32>
    %c0_62 = arith.constant 0 : index
    %c12_63 = arith.constant 12 : index
    %c12_64 = arith.constant 12 : index
    %c0_65 = arith.constant 0 : index
    %17 = vector.load %arg1[%c0_62, %c12_63, %c12_64, %c0_65] : memref<2x32x32x4xf32, #tpu.memory_space<vmem>>, vector<2x16x16x4xf32>
    %c0_66 = arith.constant 0 : index
    %c2 = arith.constant 2 : index
    %c2_67 = arith.constant 2 : index
    %c0_68 = arith.constant 0 : index
    %18 = vector.load %arg1[%c0_66, %c2, %c2_67, %c0_68] : memref<2x32x32x4xf32, #tpu.memory_space<vmem>>, vector<2x16x16x4xf32>
    %c0_69 = arith.constant 0 : index
    %c2_70 = arith.constant 2 : index
    %c8_71 = arith.constant 8 : index
    %c0_72 = arith.constant 0 : index
    %19 = vector.load %arg1[%c0_69, %c2_70, %c8_71, %c0_72] : memref<2x32x32x4xf32, #tpu.memory_space<vmem>>, vector<2x16x16x4xf32>
    %c0_73 = arith.constant 0 : index
    %c2_74 = arith.constant 2 : index
    %c14 = arith.constant 14 : index
    %c0_75 = arith.constant 0 : index
    %20 = vector.load %arg1[%c0_73, %c2_74, %c14, %c0_75] : memref<2x32x32x4xf32, #tpu.memory_space<vmem>>, vector<2x16x16x4xf32>
    %c0_76 = arith.constant 0 : index
    %c8_77 = arith.constant 8 : index
    %c2_78 = arith.constant 2 : index
    %c0_79 = arith.constant 0 : index
    %21 = vector.load %arg1[%c0_76, %c8_77, %c2_78, %c0_79] : memref<2x32x32x4xf32, #tpu.memory_space<vmem>>, vector<2x16x16x4xf32>
    %c0_80 = arith.constant 0 : index
    %c8_81 = arith.constant 8 : index
    %c8_82 = arith.constant 8 : index
    %c0_83 = arith.constant 0 : index
    %22 = vector.load %arg1[%c0_80, %c8_81, %c8_82, %c0_83] : memref<2x32x32x4xf32, #tpu.memory_space<vmem>>, vector<2x16x16x4xf32>
    %c0_84 = arith.constant 0 : index
    %c8_85 = arith.constant 8 : index
    %c14_86 = arith.constant 14 : index
    %c0_87 = arith.constant 0 : index
    %23 = vector.load %arg1[%c0_84, %c8_85, %c14_86, %c0_87] : memref<2x32x32x4xf32, #tpu.memory_space<vmem>>, vector<2x16x16x4xf32>
    %c0_88 = arith.constant 0 : index
    %c14_89 = arith.constant 14 : index
    %c2_90 = arith.constant 2 : index
    %c0_91 = arith.constant 0 : index
    %24 = vector.load %arg1[%c0_88, %c14_89, %c2_90, %c0_91] : memref<2x32x32x4xf32, #tpu.memory_space<vmem>>, vector<2x16x16x4xf32>
    %c0_92 = arith.constant 0 : index
    %c14_93 = arith.constant 14 : index
    %c8_94 = arith.constant 8 : index
    %c0_95 = arith.constant 0 : index
    %25 = vector.load %arg1[%c0_92, %c14_93, %c8_94, %c0_95] : memref<2x32x32x4xf32, #tpu.memory_space<vmem>>, vector<2x16x16x4xf32>
    %c0_96 = arith.constant 0 : index
    %c14_97 = arith.constant 14 : index
    %c14_98 = arith.constant 14 : index
    %c0_99 = arith.constant 0 : index
    %26 = vector.load %arg1[%c0_96, %c14_97, %c14_98, %c0_99] : memref<2x32x32x4xf32, #tpu.memory_space<vmem>>, vector<2x16x16x4xf32>
    %c0_100 = arith.constant 0 : index
    %c0_101 = arith.constant 0 : index
    %c0_102 = arith.constant 0 : index
    %c0_103 = arith.constant 0 : index
    %27 = vector.load %arg1[%c0_100, %c0_101, %c0_102, %c0_103] : memref<2x32x32x4xf32, #tpu.memory_space<vmem>>, vector<2x16x16x4xf32>
    %c0_104 = arith.constant 0 : index
    %c0_105 = arith.constant 0 : index
    %c8_106 = arith.constant 8 : index
    %c0_107 = arith.constant 0 : index
    %28 = vector.load %arg1[%c0_104, %c0_105, %c8_106, %c0_107] : memref<2x32x32x4xf32, #tpu.memory_space<vmem>>, vector<2x16x16x4xf32>
    %c0_108 = arith.constant 0 : index
    %c0_109 = arith.constant 0 : index
    %c16 = arith.constant 16 : index
    %c0_110 = arith.constant 0 : index
    %29 = vector.load %arg1[%c0_108, %c0_109, %c16, %c0_110] : memref<2x32x32x4xf32, #tpu.memory_space<vmem>>, vector<2x16x16x4xf32>
    %c0_111 = arith.constant 0 : index
    %c8_112 = arith.constant 8 : index
    %c0_113 = arith.constant 0 : index
    %c0_114 = arith.constant 0 : index
    %30 = vector.load %arg1[%c0_111, %c8_112, %c0_113, %c0_114] : memref<2x32x32x4xf32, #tpu.memory_space<vmem>>, vector<2x16x16x4xf32>
    %c0_115 = arith.constant 0 : index
    %c8_116 = arith.constant 8 : index
    %c8_117 = arith.constant 8 : index
    %c0_118 = arith.constant 0 : index
    %31 = vector.load %arg1[%c0_115, %c8_116, %c8_117, %c0_118] : memref<2x32x32x4xf32, #tpu.memory_space<vmem>>, vector<2x16x16x4xf32>
    %c0_119 = arith.constant 0 : index
    %c8_120 = arith.constant 8 : index
    %c16_121 = arith.constant 16 : index
    %c0_122 = arith.constant 0 : index
    %32 = vector.load %arg1[%c0_119, %c8_120, %c16_121, %c0_122] : memref<2x32x32x4xf32, #tpu.memory_space<vmem>>, vector<2x16x16x4xf32>
    %c0_123 = arith.constant 0 : index
    %c16_124 = arith.constant 16 : index
    %c0_125 = arith.constant 0 : index
    %c0_126 = arith.constant 0 : index
    %33 = vector.load %arg1[%c0_123, %c16_124, %c0_125, %c0_126] : memref<2x32x32x4xf32, #tpu.memory_space<vmem>>, vector<2x16x16x4xf32>
    %c0_127 = arith.constant 0 : index
    %c16_128 = arith.constant 16 : index
    %c8_129 = arith.constant 8 : index
    %c0_130 = arith.constant 0 : index
    %34 = vector.load %arg1[%c0_127, %c16_128, %c8_129, %c0_130] : memref<2x32x32x4xf32, #tpu.memory_space<vmem>>, vector<2x16x16x4xf32>
    %c0_131 = arith.constant 0 : index
    %c16_132 = arith.constant 16 : index
    %c16_133 = arith.constant 16 : index
    %c0_134 = arith.constant 0 : index
    %35 = vector.load %arg1[%c0_131, %c16_132, %c16_133, %c0_134] : memref<2x32x32x4xf32, #tpu.memory_space<vmem>>, vector<2x16x16x4xf32>
    %36 = tpu.concatenate %0, %1, %2, %3, %4, %5, %6, %7, %8, %9, %10, %11, %12, %13, %14, %15 in 3 : vector<2x16x16x4xf32>, vector<2x16x16x4xf32>, vector<2x16x16x4xf32>, vector<2x16x16x4xf32>, vector<2x16x16x4xf32>, vector<2x16x16x4xf32>, vector<2x16x16x4xf32>, vector<2x16x16x4xf32>, vector<2x16x16x4xf32>, vector<2x16x16x4xf32>, vector<2x16x16x4xf32>, vector<2x16x16x4xf32>, vector<2x16x16x4xf32>, vector<2x16x16x4xf32>, vector<2x16x16x4xf32>, vector<2x16x16x4xf32> -> vector<2x16x16x64xf32>
    %37 = tpu.concatenate %16, %17, %18, %19, %20, %21, %22, %23, %24, %25, %26, %27, %28, %29, %30, %31 in 3 : vector<2x16x16x4xf32>, vector<2x16x16x4xf32>, vector<2x16x16x4xf32>, vector<2x16x16x4xf32>, vector<2x16x16x4xf32>, vector<2x16x16x4xf32>, vector<2x16x16x4xf32>, vector<2x16x16x4xf32>, vector<2x16x16x4xf32>, vector<2x16x16x4xf32>, vector<2x16x16x4xf32>, vector<2x16x16x4xf32>, vector<2x16x16x4xf32>, vector<2x16x16x4xf32>, vector<2x16x16x4xf32>, vector<2x16x16x4xf32> -> vector<2x16x16x64xf32>
    %38 = tpu.concatenate %32, %33, %34, %35 in 3 : vector<2x16x16x4xf32>, vector<2x16x16x4xf32>, vector<2x16x16x4xf32>, vector<2x16x16x4xf32> -> vector<2x16x16x16xf32>
    %39 = tpu.concatenate %36, %37, %38 in 3 : vector<2x16x16x64xf32>, vector<2x16x16x64xf32>, vector<2x16x16x16xf32> -> vector<2x16x16x144xf32>
    %40 = vector.shape_cast %39 : vector<2x16x16x144xf32> to vector<512x144xf32>
    %41 = arith.truncf %40 : vector<512x144xf32> to vector<512x144xbf16>
    %c0_135 = arith.constant 0 : index
    %c0_136 = arith.constant 0 : index
    %42 = vector.load %arg2[%c0_135, %c0_136] : memref<144x16xbf16, #tpu.memory_space<vmem>>, vector<144x16xbf16>
    %cst = arith.constant dense<0.000000e+00> : vector<512x16xf32>
    %43 = tpu.matmul %41, %42, %cst {dimension_numbers = #tpu.dot_dimension_numbers<[1], [0], [0], [1], [0, 0, 1, 1], [], []>} : vector<512x144xbf16>, vector<144x16xbf16>, vector<512x16xf32> -> vector<512x16xf32>
    %cst_137 = arith.constant dense<0.000000e+00> : vector<16xf32>
    %44 = vector.multi_reduction <add>, %43, %cst_137 [0] : vector<512x16xf32> to vector<16xf32>
    %45 = vector.shape_cast %44 : vector<16xf32> to vector<1x16xf32>
    %cst_138 = arith.constant 5.120000e+02 : f32
    %46 = vector.broadcast %cst_138 : f32 to vector<1x16xf32>
    %47 = arith.divf %45, %46 : vector<1x16xf32>
    %48 = arith.mulf %43, %43 : vector<512x16xf32>
    %cst_139 = arith.constant dense<0.000000e+00> : vector<16xf32>
    %49 = vector.multi_reduction <add>, %48, %cst_139 [0] : vector<512x16xf32> to vector<16xf32>
    %50 = vector.shape_cast %49 : vector<16xf32> to vector<1x16xf32>
    %cst_140 = arith.constant 5.120000e+02 : f32
    %51 = vector.broadcast %cst_140 : f32 to vector<1x16xf32>
    %52 = arith.divf %50, %51 : vector<1x16xf32>
    %53 = arith.mulf %47, %47 : vector<1x16xf32>
    %54 = arith.subf %52, %53 : vector<1x16xf32>
    %c0_141 = arith.constant 0 : index
    %c0_142 = arith.constant 0 : index
    %55 = vector.load %arg3[%c0_141, %c0_142] : memref<1x16xf32, #tpu.memory_space<vmem>>, vector<1x16xf32>
    %cst_143 = arith.constant 9.99999974E-6 : f32
    %56 = vector.broadcast %cst_143 : f32 to vector<1x16xf32>
    %57 = arith.addf %54, %56 : vector<1x16xf32>
    %58 = math.rsqrt %57 : vector<1x16xf32>
    %59 = arith.mulf %55, %58 : vector<1x16xf32>
    %c0_144 = arith.constant 0 : index
    %c0_145 = arith.constant 0 : index
    %60 = vector.load %arg4[%c0_144, %c0_145] : memref<1x16xf32, #tpu.memory_space<vmem>>, vector<1x16xf32>
    %61 = arith.mulf %47, %59 : vector<1x16xf32>
    %62 = arith.subf %60, %61 : vector<1x16xf32>
    %63 = vector.broadcast %59 : vector<1x16xf32> to vector<512x16xf32>
    %64 = arith.mulf %43, %63 : vector<512x16xf32>
    %65 = vector.broadcast %62 : vector<1x16xf32> to vector<512x16xf32>
    %66 = arith.addf %64, %65 : vector<512x16xf32>
    %cst_146 = arith.constant 5.000000e-01 : f32
    %67 = vector.broadcast %cst_146 : f32 to vector<512x16xf32>
    %68 = arith.mulf %67, %66 : vector<512x16xf32>
    %cst_147 = arith.constant 0.707106769 : f32
    %69 = vector.broadcast %cst_147 : f32 to vector<512x16xf32>
    %70 = arith.mulf %66, %69 : vector<512x16xf32>
    %71 = math.erf %70 : vector<512x16xf32>
    %cst_148 = arith.constant 1.000000e+00 : f32
    %72 = vector.broadcast %cst_148 : f32 to vector<512x16xf32>
    %73 = arith.addf %72, %71 : vector<512x16xf32>
    %74 = arith.mulf %68, %73 : vector<512x16xf32>
    %75 = arith.truncf %74 : vector<512x16xf32> to vector<512x16xbf16>
    %c0_149 = arith.constant 0 : index
    %c0_150 = arith.constant 0 : index
    %76 = vector.load %arg5[%c0_149, %c0_150] : memref<16x8xbf16, #tpu.memory_space<vmem>>, vector<16x8xbf16>
    %cst_151 = arith.constant dense<0.000000e+00> : vector<512x8xf32>
    %77 = tpu.matmul %75, %76, %cst_151 {dimension_numbers = #tpu.dot_dimension_numbers<[1], [0], [0], [1], [0, 0, 1, 1], [], []>} : vector<512x16xbf16>, vector<16x8xbf16>, vector<512x8xf32> -> vector<512x8xf32>
    %c0_152 = arith.constant 0 : index
    %c0_153 = arith.constant 0 : index
    %78 = vector.load %arg6[%c0_152, %c0_153] : memref<1x8xf32, #tpu.memory_space<vmem>>, vector<1x8xf32>
    %79 = vector.broadcast %78 : vector<1x8xf32> to vector<512x8xf32>
    %80 = arith.addf %77, %79 : vector<512x8xf32>
    %81 = vector.shape_cast %80 : vector<512x8xf32> to vector<32x16x8xf32>
    %82 = vector.extract_strided_slice %81 {offsets = [0, 0, 0], sizes = [32, 1, 8], strides = [1, 1, 1]} : vector<32x16x8xf32> to vector<32x1x8xf32>
    %83 = vector.shape_cast %82 : vector<32x1x8xf32> to vector<32x8xf32>
    %84 = vector.extract_strided_slice %81 {offsets = [0, 1, 0], sizes = [32, 1, 8], strides = [1, 1, 1]} : vector<32x16x8xf32> to vector<32x1x8xf32>
    %85 = vector.shape_cast %84 : vector<32x1x8xf32> to vector<32x8xf32>
    %86 = vector.extract_strided_slice %81 {offsets = [0, 2, 0], sizes = [32, 1, 8], strides = [1, 1, 1]} : vector<32x16x8xf32> to vector<32x1x8xf32>
    %87 = vector.shape_cast %86 : vector<32x1x8xf32> to vector<32x8xf32>
    %88 = vector.extract_strided_slice %81 {offsets = [0, 3, 0], sizes = [32, 1, 8], strides = [1, 1, 1]} : vector<32x16x8xf32> to vector<32x1x8xf32>
    %89 = vector.shape_cast %88 : vector<32x1x8xf32> to vector<32x8xf32>
    %90 = vector.extract_strided_slice %81 {offsets = [0, 4, 0], sizes = [32, 1, 8], strides = [1, 1, 1]} : vector<32x16x8xf32> to vector<32x1x8xf32>
    %91 = vector.shape_cast %90 : vector<32x1x8xf32> to vector<32x8xf32>
    %92 = vector.extract_strided_slice %81 {offsets = [0, 5, 0], sizes = [32, 1, 8], strides = [1, 1, 1]} : vector<32x16x8xf32> to vector<32x1x8xf32>
    %93 = vector.shape_cast %92 : vector<32x1x8xf32> to vector<32x8xf32>
    %94 = vector.extract_strided_slice %81 {offsets = [0, 6, 0], sizes = [32, 1, 8], strides = [1, 1, 1]} : vector<32x16x8xf32> to vector<32x1x8xf32>
    %95 = vector.shape_cast %94 : vector<32x1x8xf32> to vector<32x8xf32>
    %96 = vector.extract_strided_slice %81 {offsets = [0, 7, 0], sizes = [32, 1, 8], strides = [1, 1, 1]} : vector<32x16x8xf32> to vector<32x1x8xf32>
    %97 = vector.shape_cast %96 : vector<32x1x8xf32> to vector<32x8xf32>
    %98 = vector.extract_strided_slice %81 {offsets = [0, 8, 0], sizes = [32, 1, 8], strides = [1, 1, 1]} : vector<32x16x8xf32> to vector<32x1x8xf32>
    %99 = vector.shape_cast %98 : vector<32x1x8xf32> to vector<32x8xf32>
    %100 = vector.extract_strided_slice %81 {offsets = [0, 9, 0], sizes = [32, 1, 8], strides = [1, 1, 1]} : vector<32x16x8xf32> to vector<32x1x8xf32>
    %101 = vector.shape_cast %100 : vector<32x1x8xf32> to vector<32x8xf32>
    %102 = vector.extract_strided_slice %81 {offsets = [0, 10, 0], sizes = [32, 1, 8], strides = [1, 1, 1]} : vector<32x16x8xf32> to vector<32x1x8xf32>
    %103 = vector.shape_cast %102 : vector<32x1x8xf32> to vector<32x8xf32>
    %104 = vector.extract_strided_slice %81 {offsets = [0, 11, 0], sizes = [32, 1, 8], strides = [1, 1, 1]} : vector<32x16x8xf32> to vector<32x1x8xf32>
    %105 = vector.shape_cast %104 : vector<32x1x8xf32> to vector<32x8xf32>
    %106 = vector.extract_strided_slice %81 {offsets = [0, 12, 0], sizes = [32, 1, 8], strides = [1, 1, 1]} : vector<32x16x8xf32> to vector<32x1x8xf32>
    %107 = vector.shape_cast %106 : vector<32x1x8xf32> to vector<32x8xf32>
    %108 = vector.extract_strided_slice %81 {offsets = [0, 13, 0], sizes = [32, 1, 8], strides = [1, 1, 1]} : vector<32x16x8xf32> to vector<32x1x8xf32>
    %109 = vector.shape_cast %108 : vector<32x1x8xf32> to vector<32x8xf32>
    %110 = vector.extract_strided_slice %81 {offsets = [0, 14, 0], sizes = [32, 1, 8], strides = [1, 1, 1]} : vector<32x16x8xf32> to vector<32x1x8xf32>
    %111 = vector.shape_cast %110 : vector<32x1x8xf32> to vector<32x8xf32>
    %112 = vector.extract_strided_slice %81 {offsets = [0, 15, 0], sizes = [32, 1, 8], strides = [1, 1, 1]} : vector<32x16x8xf32> to vector<32x1x8xf32>
    %113 = vector.shape_cast %112 : vector<32x1x8xf32> to vector<32x8xf32>
    %114 = tpu.concatenate %83, %85, %87, %89, %91, %93, %95, %97, %99, %101, %103, %105, %107, %109, %111, %113 in 1 : vector<32x8xf32>, vector<32x8xf32>, vector<32x8xf32>, vector<32x8xf32>, vector<32x8xf32>, vector<32x8xf32>, vector<32x8xf32>, vector<32x8xf32>, vector<32x8xf32>, vector<32x8xf32>, vector<32x8xf32>, vector<32x8xf32>, vector<32x8xf32>, vector<32x8xf32>, vector<32x8xf32>, vector<32x8xf32> -> vector<32x128xf32>
    %c0_154 = arith.constant 0 : index
    %c0_155 = arith.constant 0 : index
    %115 = vector.load %arg7[%c0_154, %c0_155] : memref<32x128xf32, #tpu.memory_space<vmem>>, vector<32x128xf32>
    tpu.vector_store %arg7[%c0_154, %c0_155], %114 {strides = array<i32>} : memref<32x128xf32, #tpu.memory_space<vmem>>, vector<32x128xf32>,
    return
  }
  func.func @transform_0(%arg0: i32) -> (i32, i32, i32, i32) {
    %c0_i32 = arith.constant 0 : i32
    %c0_i32_0 = arith.constant 0 : i32
    %c0_i32_1 = arith.constant 0 : i32
    %c0_i32_2 = arith.constant 0 : i32
    %c0_i32_3 = arith.constant 0 : i32
    return %c0_i32, %c0_i32_0, %c0_i32_1, %c0_i32_2 : i32, i32, i32, i32
  }
  func.func @transform_1(%arg0: i32) -> (i32, i32) {
    %c0_i32 = arith.constant 0 : i32
    %c0_i32_0 = arith.constant 0 : i32
    %c0_i32_1 = arith.constant 0 : i32
    return %c0_i32, %c0_i32_0 : i32, i32
  }
  func.func @transform_2(%arg0: i32) -> (i32, i32) {
    %c0_i32 = arith.constant 0 : i32
    %c0_i32_0 = arith.constant 0 : i32
    %c0_i32_1 = arith.constant 0 : i32
    return %c0_i32, %c0_i32_0 : i32, i32
  }
  func.func @transform_3(%arg0: i32) -> (i32, i32) {
    %c0_i32 = arith.constant 0 : i32
    %c0_i32_0 = arith.constant 0 : i32
    %c0_i32_1 = arith.constant 0 : i32
    return %c0_i32, %c0_i32_0 : i32, i32
  }
  func.func @transform_4(%arg0: i32) -> (i32, i32) {
    %c0_i32 = arith.constant 0 : i32
    %c0_i32_0 = arith.constant 0 : i32
    %c0_i32_1 = arith.constant 0 : i32
    return %c0_i32, %c0_i32_0 : i32, i32
  }
  func.func @transform_5(%arg0: i32) -> (i32, i32) {
    %c0_i32 = arith.constant 0 : i32
    %c0_i32_0 = arith.constant 0 : i32
    %c0_i32_1 = arith.constant 0 : i32
    return %c0_i32, %c0_i32_0 : i32, i32
  }
  func.func @transform_6(%arg0: i32) -> (i32, i32) {
    %c0_i32 = arith.constant 0 : i32
    %c0_i32_0 = arith.constant 0 : i32
    %c0_i32_1 = arith.constant 0 : i32
    return %c0_i32, %c0_i32_0 : i32, i32
  }
}

</mosaic_0001>

<llo_original>
// kernel: multi_dilation_block.1
$region0: #{multi_dilation_block.1}
  #allocation0 [shape = 'u32[]', space=smem, size = 0x4, offset = 0x4, fixed_abs, tag = 'smem constant byte address 0x4 - core index']
  #allocation1 [shape = 'u32[144,128]{1,0:T(1,128)}', space=vmem, size = 0x12000, scoped, tag = 'internal scratch']
  %s0 = inlined_call_operand.vmem [shape: f32[2,32,32,4], index: 0, kind: input, shape index: {}]
  %s1 = inlined_call_operand.vmem [shape: bf16[144,16], index: 1, kind: input, shape index: {}]
  %s2 = inlined_call_operand.vmem [shape: f32[1,16], index: 2, kind: input, shape index: {}]
  %s3 = inlined_call_operand.vmem [shape: f32[1,16], index: 3, kind: input, shape index: {}]
  %s4 = inlined_call_operand.vmem [shape: bf16[16,8], index: 4, kind: input, shape index: {}]
  %s5 = inlined_call_operand.vmem [shape: f32[1,8], index: 5, kind: input, shape index: {}]
  %s6 = inlined_call_operand.vmem [shape: f32[32,128], index: 6, kind: output, shape index: {}]
  %s7 = sld [smem:[#allocation0]]
  $region34: #{multi_dilation_block.1} parent=0
    _
  %s9 = ssub.s32 1, %s7
  %s10 = scalar_select 0, %s9, %s7
  // Predicated region
  $region2: #{multi_dilation_block.1} parent=0 // pred_check
    _
  $region3: #{multi_dilation_block.1} parent=0 // pred_check_branch
    %12 = sbr.rel (0) target = $region5
  $region4: #{multi_dilation_block.1} parent=0 // pred_region
    _
  $region5: #{multi_dilation_block.1} parent=0 // pred_fallthru
    _
  // Predicated region
  $region6: #{multi_dilation_block.1} parent=0 // pred_check
    _
  $region7: #{multi_dilation_block.1} parent=0 // pred_check_branch
    %14 = sbr.rel (0) target = $region9
  $region8: #{multi_dilation_block.1} parent=0 // pred_region
    _
  $region9: #{multi_dilation_block.1} parent=0 // pred_fallthru
    _
  // Predicated region
  $region10: #{multi_dilation_block.1} parent=0 // pred_check
    _
  $region11: #{multi_dilation_block.1} parent=0 // pred_check_branch
    %16 = sbr.rel (0) target = $region13
  $region12: #{multi_dilation_block.1} parent=0 // pred_region
    _
  $region13: #{multi_dilation_block.1} parent=0 // pred_fallthru
    _
  // Predicated region
  $region14: #{multi_dilation_block.1} parent=0 // pred_check
    _
  $region15: #{multi_dilation_block.1} parent=0 // pred_check_branch
    %18 = sbr.rel (0) target = $region17
  $region16: #{multi_dilation_block.1} parent=0 // pred_region
    _
  $region17: #{multi_dilation_block.1} parent=0 // pred_fallthru
    _
  // Predicated region
  $region18: #{multi_dilation_block.1} parent=0 // pred_check
    _
  $region19: #{multi_dilation_block.1} parent=0 // pred_check_branch
    %20 = sbr.rel (0) target = $region21
  $region20: #{multi_dilation_block.1} parent=0 // pred_region
    _
  $region21: #{multi_dilation_block.1} parent=0 // pred_fallthru
    _
  // Predicated region
  $region22: #{multi_dilation_block.1} parent=0 // pred_check
    _
  $region23: #{multi_dilation_block.1} parent=0 // pred_check_branch
    %22 = sbr.rel (0) target = $region25
  $region24: #{multi_dilation_block.1} parent=0 // pred_region
    _
  $region25: #{multi_dilation_block.1} parent=0 // pred_fallthru
    _
  %s24 = scalar_lea.vmem %s0, 192
  %v25 = vld [vmem:[%s24 + $0x6] sm:$0xff]
  %v26 = vld [vmem:[%s24 + $0xe] sm:$0xff]
  %v27 = vld [vmem:[%s24 + $0x26] sm:$0xff]
  %v28 = vld [vmem:[%s24 + $0x2e] sm:$0xff]
  %v29 = vld [vmem:[%s24 + $0x46] sm:$0xff]
  %v30 = vld [vmem:[%s24 + $0x4e] sm:$0xff]
  %v31 = vld [vmem:[%s24 + $0x66] sm:$0xff]
  %v32 = vld [vmem:[%s24 + $0x6e] sm:$0xff]
  %v33 = vld [vmem:[%s24 + $0x86] sm:$0xff]
  %v34 = vld [vmem:[%s24 + $0x8e] sm:$0xff]
  %v35 = vld [vmem:[%s24 + $0xa6] sm:$0xff]
  %v36 = vld [vmem:[%s24 + $0xae] sm:$0xff]
  %v37 = vld [vmem:[%s24 + $0xc6] sm:$0xff]
  %v38 = vld [vmem:[%s24 + $0xce] sm:$0xff]
  %v39 = vld [vmem:[%s24 + $0xe6] sm:$0xff]
  %v40 = vld [vmem:[%s24 + $0xee] sm:$0xff]
  %v41 = vld [vmem:[%s24 + $0x106] sm:$0xff]
  %v42 = vld [vmem:[%s24 + $0x10e] sm:$0xff]
  %v43 = vld [vmem:[%s24 + $0x126] sm:$0xff]
  %v44 = vld [vmem:[%s24 + $0x12e] sm:$0xff]
  %v45 = vld [vmem:[%s24 + $0x146] sm:$0xff]
  %v46 = vld [vmem:[%s24 + $0x14e] sm:$0xff]
  %v47 = vld [vmem:[%s24 + $0x166] sm:$0xff]
  %v48 = vld [vmem:[%s24 + $0x16e] sm:$0xff]
  %v49 = vld [vmem:[%s24 + $0x186] sm:$0xff]
  %v50 = vld [vmem:[%s24 + $0x18e] sm:$0xff]
  %v51 = vld [vmem:[%s24 + $0x1a6] sm:$0xff]
  %v52 = vld [vmem:[%s24 + $0x1ae] sm:$0xff]
  %v53 = vld [vmem:[%s24 + $0x1c6] sm:$0xff]
  %v54 = vld [vmem:[%s24 + $0x1ce] sm:$0xff]
  %v55 = vld [vmem:[%s24 + $0x1e6] sm:$0xff]
  %v56 = vld [vmem:[%s24 + $0x1ee] sm:$0xff]
  %v57 = vld [vmem:[%s24 + $0x406] sm:$0xff]
  %v58 = vld [vmem:[%s24 + $0x40e] sm:$0xff]
  %v59 = vld [vmem:[%s24 + $0x426] sm:$0xff]
  %v60 = vld [vmem:[%s24 + $0x42e] sm:$0xff]
  %v61 = vld [vmem:[%s24 + $0x446] sm:$0xff]
  %v62 = vld [vmem:[%s24 + $0x44e] sm:$0xff]
  %v63 = vld [vmem:[%s24 + $0x466] sm:$0xff]
  %v64 = vld [vmem:[%s24 + $0x46e] sm:$0xff]
  %v65 = vld [vmem:[%s24 + $0x486] sm:$0xff]
  %v66 = vld [vmem:[%s24 + $0x48e] sm:$0xff]
  %v67 = vld [vmem:[%s24 + $0x4a6] sm:$0xff]
  %v68 = vld [vmem:[%s24 + $0x4ae] sm:$0xff]
  %v69 = vld [vmem:[%s24 + $0x4c6] sm:$0xff]
  %v70 = vld [vmem:[%s24 + $0x4ce] sm:$0xff]
  %v71 = vld [vmem:[%s24 + $0x4e6] sm:$0xff]
  %v72 = vld [vmem:[%s24 + $0x4ee] sm:$0xff]
  %v73 = vld [vmem:[%s24 + $0x506] sm:$0xff]
  %v74 = vld [vmem:[%s24 + $0x50e] sm:$0xff]
  %v75 = vld [vmem:[%s24 + $0x526] sm:$0xff]
  %v76 = vld [vmem:[%s24 + $0x52e] sm:$0xff]
  %v77 = vld [vmem:[%s24 + $0x546] sm:$0xff]
  %v78 = vld [vmem:[%s24 + $0x54e] sm:$0xff]
  %v79 = vld [vmem:[%s24 + $0x566] sm:$0xff]
  %v80 = vld [vmem:[%s24 + $0x56e] sm:$0xff]
  %v81 = vld [vmem:[%s24 + $0x586] sm:$0xff]
  %v82 = vld [vmem:[%s24 + $0x58e] sm:$0xff]
  %v83 = vld [vmem:[%s24 + $0x5a6] sm:$0xff]
  %v84 = vld [vmem:[%s24 + $0x5ae] sm:$0xff]
  %v85 = vld [vmem:[%s24 + $0x5c6] sm:$0xff]
  %v86 = vld [vmem:[%s24 + $0x5ce] sm:$0xff]
  %v87 = vld [vmem:[%s24 + $0x5e6] sm:$0xff]
  %v88 = vld [vmem:[%s24 + $0x5ee] sm:$0xff]
  %v89 = vld [vmem:[%s24 + $0x8] sm:$0xff]
  %v90 = vld [vmem:[%s24 + $0x10] sm:$0xff]
  %v91 = vld [vmem:[%s24 + $0x28] sm:$0xff]
  %v92 = vld [vmem:[%s24 + $0x30] sm:$0xff]
  %v93 = vld [vmem:[%s24 + $0x48] sm:$0xff]
  %v94 = vld [vmem:[%s24 + $0x50] sm:$0xff]
  %v95 = vld [vmem:[%s24 + $0x68] sm:$0xff]
  %v96 = vld [vmem:[%s24 + $0x70] sm:$0xff]
  %v97 = vld [vmem:[%s24 + $0x88] sm:$0xff]
  %v98 = vld [vmem:[%s24 + $0x90] sm:$0xff]
  %v99 = vld [vmem:[%s24 + $0xa8] sm:$0xff]
  %v100 = vld [vmem:[%s24 + $0xb0] sm:$0xff]
  %v101 = vld [vmem:[%s24 + $0xc8] sm:$0xff]
  %v102 = vld [vmem:[%s24 + $0xd0] sm:$0xff]
  %v103 = vld [vmem:[%s24 + $0xe8] sm:$0xff]
  %v104 = vld [vmem:[%s24 + $0xf0] sm:$0xff]
  %v105 = vld [vmem:[%s24 + $0x108] sm:$0xff]
  %v106 = vld [vmem:[%s24 + $0x110] sm:$0xff]
  %v107 = vld [vmem:[%s24 + $0x128] sm:$0xff]
  %v108 = vld [vmem:[%s24 + $0x130] sm:$0xff]
  %v109 = vld [vmem:[%s24 + $0x148] sm:$0xff]
  %v110 = vld [vmem:[%s24 + $0x150] sm:$0xff]
  %v111 = vld [vmem:[%s24 + $0x168] sm:$0xff]
  %v112 = vld [vmem:[%s24 + $0x170] sm:$0xff]
  %v113 = vld [vmem:[%s24 + $0x188] sm:$0xff]
  %v114 = vld [vmem:[%s24 + $0x190] sm:$0xff]
  %v115 = vld [vmem:[%s24 + $0x1a8] sm:$0xff]
  %v116 = vld [vmem:[%s24 + $0x1b0] sm:$0xff]
  %v117 = vld [vmem:[%s24 + $0x1c8] sm:$0xff]
  %v118 = vld [vmem:[%s24 + $0x1d0] sm:$0xff]
  %v119 = vld [vmem:[%s24 + $0x1e8] sm:$0xff]
  %v120 = vld [vmem:[%s24 + $0x1f0] sm:$0xff]
  %v121 = vld [vmem:[%s24 + $0x408] sm:$0xff]
  %v122 = vld [vmem:[%s24 + $0x410] sm:$0xff]
  %v123 = vld [vmem:[%s24 + $0x428] sm:$0xff]
  %v124 = vld [vmem:[%s24 + $0x430] sm:$0xff]
  %v125 = vld [vmem:[%s24 + $0x448] sm:$0xff]
  %v126 = vld [vmem:[%s24 + $0x450] sm:$0xff]
  %v127 = vld [vmem:[%s24 + $0x468] sm:$0xff]
  %v128 = vld [vmem:[%s24 + $0x470] sm:$0xff]
  %v129 = vld [vmem:[%s24 + $0x488] sm:$0xff]
  %v130 = vld [vmem:[%s24 + $0x490] sm:$0xff]
  %v131 = vld [vmem:[%s24 + $0x4a8] sm:$0xff]
  %v132 = vld [vmem:[%s24 + $0x4b0] sm:$0xff]
  %v133 = vld [vmem:[%s24 + $0x4c8] sm:$0xff]
  %v134 = vld [vmem:[%s24 + $0x4d0] sm:$0xff]
  %v135 = vld [vmem:[%s24 + $0x4e8] sm:$0xff]
  %v136 = vld [vmem:[%s24 + $0x4f0] sm:$0xff]
  %v137 = vld [vmem:[%s24 + $0x508] sm:$0xff]
  %v138 = vld [vmem:[%s24 + $0x510] sm:$0xff]
  %v139 = vld [vmem:[%s24 + $0x528] sm:$0xff]
  %v140 = vld [vmem:[%s24 + $0x530] sm:$0xff]
  %v141 = vld [vmem:[%s24 + $0x548] sm:$0xff]
  %v142 = vld [vmem:[%s24 + $0x550] sm:$0xff]
  %v143 = vld [vmem:[%s24 + $0x568] sm:$0xff]
  %v144 = vld [vmem:[%s24 + $0x570] sm:$0xff]
  %v145 = vld [vmem:[%s24 + $0x588] sm:$0xff]
  %v146 = vld [vmem:[%s24 + $0x590] sm:$0xff]
  %v147 = vld [vmem:[%s24 + $0x5a8] sm:$0xff]
  %v148 = vld [vmem:[%s24 + $0x5b0] sm:$0xff]
  %v149 = vld [vmem:[%s24 + $0x5c8] sm:$0xff]
  %v150 = vld [vmem:[%s24 + $0x5d0] sm:$0xff]
  %v151 = vld [vmem:[%s24 + $0x5e8] sm:$0xff]
  %v152 = vld [vmem:[%s24 + $0x5f0] sm:$0xff]
  %v153 = vld [vmem:[%s24 + $0xa] sm:$0xff]
  %v154 = vld [vmem:[%s24 + $0x12] sm:$0xff]
  %v155 = vld [vmem:[%s24 + $0x2a] sm:$0xff]
  %v156 = vld [vmem:[%s24 + $0x32] sm:$0xff]
  %v157 = vld [vmem:[%s24 + $0x4a] sm:$0xff]
  %v158 = vld [vmem:[%s24 + $0x52] sm:$0xff]
  %v159 = vld [vmem:[%s24 + $0x6a] sm:$0xff]
  %v160 = vld [vmem:[%s24 + $0x72] sm:$0xff]
  %v161 = vld [vmem:[%s24 + $0x8a] sm:$0xff]
  %v162 = vld [vmem:[%s24 + $0x92] sm:$0xff]
  %v163 = vld [vmem:[%s24 + $0xaa] sm:$0xff]
  %v164 = vld [vmem:[%s24 + $0xb2] sm:$0xff]
  %v165 = vld [vmem:[%s24 + $0xca] sm:$0xff]
  %v166 = vld [vmem:[%s24 + $0xd2] sm:$0xff]
  %v167 = vld [vmem:[%s24 + $0xea] sm:$0xff]
  %v168 = vld [vmem:[%s24 + $0xf2] sm:$0xff]
  %v169 = vld [vmem:[%s24 + $0x10a] sm:$0xff]
  %v170 = vld [vmem:[%s24 + $0x112] sm:$0xff]
  %v171 = vld [vmem:[%s24 + $0x12a] sm:$0xff]
  %v172 = vld [vmem:[%s24 + $0x132] sm:$0xff]
  %v173 = vld [vmem:[%s24 + $0x14a] sm:$0xff]
  %v174 = vld [vmem:[%s24 + $0x152] sm:$0xff]
  %v175 = vld [vmem:[%s24 + $0x16a] sm:$0xff]
  %v176 = vld [vmem:[%s24 + $0x172] sm:$0xff]
  %v177 = vld [vmem:[%s24 + $0x18a] sm:$0xff]
  %v178 = vld [vmem:[%s24 + $0x192] sm:$0xff]
  %v179 = vld [vmem:[%s24 + $0x1aa] sm:$0xff]
  %v180 = vld [vmem:[%s24 + $0x1b2] sm:$0xff]
  %v181 = vld [vmem:[%s24 + $0x1ca] sm:$0xff]
  %v182 = vld [vmem:[%s24 + $0x1d2] sm:$0xff]
  %v183 = vld [vmem:[%s24 + $0x1ea] sm:$0xff]
  %v184 = vld [vmem:[%s24 + $0x1f2] sm:$0xff]
  %v185 = vld [vmem:[%s24 + $0x40a] sm:$0xff]
  %v186 = vld [vmem:[%s24 + $0x412] sm:$0xff]
  %v187 = vld [vmem:[%s24 + $0x42a] sm:$0xff]
  %v188 = vld [vmem:[%s24 + $0x432] sm:$0xff]
  %v189 = vld [vmem:[%s24 + $0x44a] sm:$0xff]
  %v190 = vld [vmem:[%s24 + $0x452] sm:$0xff]
  %v191 = vld [vmem:[%s24 + $0x46a] sm:$0xff]
  %v192 = vld [vmem:[%s24 + $0x472] sm:$0xff]
  %v193 = vld [vmem:[%s24 + $0x48a] sm:$0xff]
  %v194 = vld [vmem:[%s24 + $0x492] sm:$0xff]
  %v195 = vld [vmem:[%s24 + $0x4aa] sm:$0xff]
  %v196 = vld [vmem:[%s24 + $0x4b2] sm:$0xff]
  %v197 = vld [vmem:[%s24 + $0x4ca] sm:$0xff]
  %v198 = vld [vmem:[%s24 + $0x4d2] sm:$0xff]
  %v199 = vld [vmem:[%s24 + $0x4ea] sm:$0xff]
  %v200 = vld [vmem:[%s24 + $0x4f2] sm:$0xff]
  %v201 = vld [vmem:[%s24 + $0x50a] sm:$0xff]
  %v202 = vld [vmem:[%s24 + $0x512] sm:$0xff]
  %v203 = vld [vmem:[%s24 + $0x52a] sm:$0xff]
  %v204 = vld [vmem:[%s24 + $0x532] sm:$0xff]
  %v205 = vld [vmem:[%s24 + $0x54a] sm:$0xff]
  %v206 = vld [vmem:[%s24 + $0x552] sm:$0xff]
  %v207 = vld [vmem:[%s24 + $0x56a] sm:$0xff]
  %v208 = vld [vmem:[%s24 + $0x572] sm:$0xff]
  %v209 = vld [vmem:[%s24 + $0x58a] sm:$0xff]
  %v210 = vld [vmem:[%s24 + $0x592] sm:$0xff]
  %v211 = vld [vmem:[%s24 + $0x5aa] sm:$0xff]
  %v212 = vld [vmem:[%s24 + $0x5b2] sm:$0xff]
  %v213 = vld [vmem:[%s24 + $0x5ca] sm:$0xff]
  %v214 = vld [vmem:[%s24 + $0x5d2] sm:$0xff]
  %v215 = vld [vmem:[%s24 + $0x5ea] sm:$0xff]
  %v216 = vld [vmem:[%s24 + $0x5f2] sm:$0xff]
  %s217 = scalar_lea.vmem %s0, 256
  %v218 = vld [vmem:[%s217 + $0x6] sm:$0xff]
  %v219 = vld [vmem:[%s217 + $0xe] sm:$0xff]
  %v220 = vld [vmem:[%s217 + $0x26] sm:$0xff]
  %v221 = vld [vmem:[%s217 + $0x2e] sm:$0xff]
  %v222 = vld [vmem:[%s217 + $0x46] sm:$0xff]
  %v223 = vld [vmem:[%s217 + $0x4e] sm:$0xff]
  %v224 = vld [vmem:[%s217 + $0x66] sm:$0xff]
  %v225 = vld [vmem:[%s217 + $0x6e] sm:$0xff]
  %v226 = vld [vmem:[%s217 + $0x86] sm:$0xff]
  %v227 = vld [vmem:[%s217 + $0x8e] sm:$0xff]
  %v228 = vld [vmem:[%s217 + $0xa6] sm:$0xff]
  %v229 = vld [vmem:[%s217 + $0xae] sm:$0xff]
  %v230 = vld [vmem:[%s217 + $0xc6] sm:$0xff]
  %v231 = vld [vmem:[%s217 + $0xce] sm:$0xff]
  %v232 = vld [vmem:[%s217 + $0xe6] sm:$0xff]
  %v233 = vld [vmem:[%s217 + $0xee] sm:$0xff]
  %v234 = vld [vmem:[%s217 + $0x106] sm:$0xff]
  %v235 = vld [vmem:[%s217 + $0x10e] sm:$0xff]
  %v236 = vld [vmem:[%s217 + $0x126] sm:$0xff]
  %v237 = vld [vmem:[%s217 + $0x12e] sm:$0xff]
  %v238 = vld [vmem:[%s217 + $0x146] sm:$0xff]
  %v239 = vld [vmem:[%s217 + $0x14e] sm:$0xff]
  %v240 = vld [vmem:[%s217 + $0x166] sm:$0xff]
  %v241 = vld [vmem:[%s217 + $0x16e] sm:$0xff]
  %v242 = vld [vmem:[%s217 + $0x186] sm:$0xff]
  %v243 = vld [vmem:[%s217 + $0x18e] sm:$0xff]
  %v244 = vld [vmem:[%s217 + $0x1a6] sm:$0xff]
  %v245 = vld [vmem:[%s217 + $0x1ae] sm:$0xff]
  %v246 = vld [vmem:[%s217 + $0x1c6] sm:$0xff]
  %v247 = vld [vmem:[%s217 + $0x1ce] sm:$0xff]
  %v248 = vld [vmem:[%s217 + $0x1e6] sm:$0xff]
  %v249 = vld [vmem:[%s217 + $0x1ee] sm:$0xff]
  %v250 = vld [vmem:[%s217 + $0x406] sm:$0xff]
  %v251 = vld [vmem:[%s217 + $0x40e] sm:$0xff]
  %v252 = vld [vmem:[%s217 + $0x426] sm:$0xff]
  %v253 = vld [vmem:[%s217 + $0x42e] sm:$0xff]
  %v254 = vld [vmem:[%s217 + $0x446] sm:$0xff]
  %v255 = vld [vmem:[%s217 + $0x44e] sm:$0xff]
  %v256 = vld [vmem:[%s217 + $0x466] sm:$0xff]
  %v257 = vld [vmem:[%s217 + $0x46e] sm:$0xff]
  %v258 = vld [vmem:[%s217 + $0x486] sm:$0xff]
  %v259 = vld [vmem:[%s217 + $0x48e] sm:$0xff]
  %v260 = vld [vmem:[%s217 + $0x4a6] sm:$0xff]
  %v261 = vld [vmem:[%s217 + $0x4ae] sm:$0xff]
  %v262 = vld [vmem:[%s217 + $0x4c6] sm:$0xff]
  %v263 = vld [vmem:[%s217 + $0x4ce] sm:$0xff]
  %v264 = vld [vmem:[%s217 + $0x4e6] sm:$0xff]
  %v265 = vld [vmem:[%s217 + $0x4ee] sm:$0xff]
  %v266 = vld [vmem:[%s217 + $0x506] sm:$0xff]
  %v267 = vld [vmem:[%s217 + $0x50e] sm:$0xff]
  %v268 = vld [vmem:[%s217 + $0x526] sm:$0xff]
  %v269 = vld [vmem:[%s217 + $0x52e] sm:$0xff]
  %v270 = vld [vmem:[%s217 + $0x546] sm:$0xff]
  %v271 = vld [vmem:[%s217 + $0x54e] sm:$0xff]
  %v272 = vld [vmem:[%s217 + $0x566] sm:$0xff]
  %v273 = vld [vmem:[%s217 + $0x56e] sm:$0xff]
  %v274 = vld [vmem:[%s217 + $0x586] sm:$0xff]
  %v275 = vld [vmem:[%s217 + $0x58e] sm:$0xff]
  %v276 = vld [vmem:[%s217 + $0x5a6] sm:$0xff]
  %v277 = vld [vmem:[%s217 + $0x5ae] sm:$0xff]
  %v278 = vld [vmem:[%s217 + $0x5c6] sm:$0xff]
  %v279 = vld [vmem:[%s217 + $0x5ce] sm:$0xff]
  %v280 = vld [vmem:[%s217 + $0x5e6] sm:$0xff]
  %v281 = vld [vmem:[%s217 + $0x5ee] sm:$0xff]
  %v282 = vld [vmem:[%s217 + $0x8] sm:$0xff]
  %v283 = vld [vmem:[%s217 + $0x10] sm:$0xff]
  %v284 = vld [vmem:[%s217 + $0x28] sm:$0xff]
  %v285 = vld [vmem:[%s217 + $0x30] sm:$0xff]
  %v286 = vld [vmem:[%s217 + $0x48] sm:$0xff]
  %v287 = vld [vmem:[%s217 + $0x50] sm:$0xff]
  %v288 = vld [vmem:[%s217 + $0x68] sm:$0xff]
  %v289 = vld [vmem:[%s217 + $0x70] sm:$0xff]
  %v290 = vld [vmem:[%s217 + $0x88] sm:$0xff]
  %v291 = vld [vmem:[%s217 + $0x90] sm:$0xff]
  %v292 = vld [vmem:[%s217 + $0xa8] sm:$0xff]
  %v293 = vld [vmem:[%s217 + $0xb0] sm:$0xff]
  %v294 = vld [vmem:[%s217 + $0xc8] sm:$0xff]
  %v295 = vld [vmem:[%s217 + $0xd0] sm:$0xff]
  %v296 = vld [vmem:[%s217 + $0xe8] sm:$0xff]
  %v297 = vld [vmem:[%s217 + $0xf0] sm:$0xff]
  %v298 = vld [vmem:[%s217 + $0x108] sm:$0xff]
  %v299 = vld [vmem:[%s217 + $0x110] sm:$0xff]
  %v300 = vld [vmem:[%s217 + $0x128] sm:$0xff]
  %v301 = vld [vmem:[%s217 + $0x130] sm:$0xff]
  %v302 = vld [vmem:[%s217 + $0x148] sm:$0xff]
  %v303 = vld [vmem:[%s217 + $0x150] sm:$0xff]
  %v304 = vld [vmem:[%s217 + $0x168] sm:$0xff]
  %v305 = vld [vmem:[%s217 + $0x170] sm:$0xff]
  %v306 = vld [vmem:[%s217 + $0x188] sm:$0xff]
  %v307 = vld [vmem:[%s217 + $0x190] sm:$0xff]
  %v308 = vld [vmem:[%s217 + $0x1a8] sm:$0xff]
  %v309 = vld [vmem:[%s217 + $0x1b0] sm:$0xff]
  %v310 = vld [vmem:[%s217 + $0x1c8] sm:$0xff]
  %v311 = vld [vmem:[%s217 + $0x1d0] sm:$0xff]
  %v312 = vld [vmem:[%s217 + $0x1e8] sm:$0xff]
  %v313 = vld [vmem:[%s217 + $0x1f0] sm:$0xff]
  %v314 = vld [vmem:[%s217 + $0x408] sm:$0xff]
  %v315 = vld [vmem:[%s217 + $0x410] sm:$0xff]
  %v316 = vld [vmem:[%s217 + $0x428] sm:$0xff]
  %v317 = vld [vmem:[%s217 + $0x430] sm:$0xff]
  %v318 = vld [vmem:[%s217 + $0x448] sm:$0xff]
  %v319 = vld [vmem:[%s217 + $0x450] sm:$0xff]
  %v320 = vld [vmem:[%s217 + $0x468] sm:$0xff]
  %v321 = vld [vmem:[%s217 + $0x470] sm:$0xff]
  %v322 = vld [vmem:[%s217 + $0x488] sm:$0xff]
  %v323 = vld [vmem:[%s217 + $0x490] sm:$0xff]
  %v324 = vld [vmem:[%s217 + $0x4a8] sm:$0xff]
  %v325 = vld [vmem:[%s217 + $0x4b0] sm:$0xff]
  %v326 = vld [vmem:[%s217 + $0x4c8] sm:$0xff]
  %v327 = vld [vmem:[%s217 + $0x4d0] sm:$0xff]
  %v328 = vld [vmem:[%s217 + $0x4e8] sm:$0xff]
  %v329 = vld [vmem:[%s217 + $0x4f0] sm:$0xff]
  %v330 = vld [vmem:[%s217 + $0x508] sm:$0xff]
  %v331 = vld [vmem:[%s217 + $0x510] sm:$0xff]
  %v332 = vld [vmem:[%s217 + $0x528] sm:$0xff]
  %v333 = vld [vmem:[%s217 + $0x530] sm:$0xff]
  %v334 = vld [vmem:[%s217 + $0x548] sm:$0xff]
  %v335 = vld [vmem:[%s217 + $0x550] sm:$0xff]
  %v336 = vld [vmem:[%s217 + $0x568] sm:$0xff]
  %v337 = vld [vmem:[%s217 + $0x570] sm:$0xff]
  %v338 = vld [vmem:[%s217 + $0x588] sm:$0xff]
  %v339 = vld [vmem:[%s217 + $0x590] sm:$0xff]
  %v340 = vld [vmem:[%s217 + $0x5a8] sm:$0xff]
  %v341 = vld [vmem:[%s217 + $0x5b0] sm:$0xff]
  %v342 = vld [vmem:[%s217 + $0x5c8] sm:$0xff]
  %v343 = vld [vmem:[%s217 + $0x5d0] sm:$0xff]
  %v344 = vld [vmem:[%s217 + $0x5e8] sm:$0xff]
  %v345 = vld [vmem:[%s217 + $0x5f0] sm:$0xff]
  %v346 = vld [vmem:[%s217 + $0xa] sm:$0xff]
  %v347 = vld [vmem:[%s217 + $0x12] sm:$0xff]
  %v348 = vld [vmem:[%s217 + $0x2a] sm:$0xff]
  %v349 = vld [vmem:[%s217 + $0x32] sm:$0xff]
  %v350 = vld [vmem:[%s217 + $0x4a] sm:$0xff]
  %v351 = vld [vmem:[%s217 + $0x52] sm:$0xff]
  %v352 = vld [vmem:[%s217 + $0x6a] sm:$0xff]
  %v353 = vld [vmem:[%s217 + $0x72] sm:$0xff]
  %v354 = vld [vmem:[%s217 + $0x8a] sm:$0xff]
  %v355 = vld [vmem:[%s217 + $0x92] sm:$0xff]
  %v356 = vld [vmem:[%s217 + $0xaa] sm:$0xff]
  %v357 = vld [vmem:[%s217 + $0xb2] sm:$0xff]
  %v358 = vld [vmem:[%s217 + $0xca] sm:$0xff]
  %v359 = vld [vmem:[%s217 + $0xd2] sm:$0xff]
  %v360 = vld [vmem:[%s217 + $0xea] sm:$0xff]
  %v361 = vld [vmem:[%s217 + $0xf2] sm:$0xff]
  %v362 = vld [vmem:[%s217 + $0x10a] sm:$0xff]
  %v363 = vld [vmem:[%s217 + $0x112] sm:$0xff]
  %v364 = vld [vmem:[%s217 + $0x12a] sm:$0xff]
  %v365 = vld [vmem:[%s217 + $0x132] sm:$0xff]
  %v366 = vld [vmem:[%s217 + $0x14a] sm:$0xff]
  %v367 = vld [vmem:[%s217 + $0x152] sm:$0xff]
  %v368 = vld [vmem:[%s217 + $0x16a] sm:$0xff]
  %v369 = vld [vmem:[%s217 + $0x172] sm:$0xff]
  %v370 = vld [vmem:[%s217 + $0x18a] sm:$0xff]
  %v371 = vld [vmem:[%s217 + $0x192] sm:$0xff]
  %v372 = vld [vmem:[%s217 + $0x1aa] sm:$0xff]
  %v373 = vld [vmem:[%s217 + $0x1b2] sm:$0xff]
  %v374 = vld [vmem:[%s217 + $0x1ca] sm:$0xff]
  %v375 = vld [vmem:[%s217 + $0x1d2] sm:$0xff]
  %v376 = vld [vmem:[%s217 + $0x1ea] sm:$0xff]
  %v377 = vld [vmem:[%s217 + $0x1f2] sm:$0xff]
  %v378 = vld [vmem:[%s217 + $0x40a] sm:$0xff]
  %v379 = vld [vmem:[%s217 + $0x412] sm:$0xff]
  %v380 = vld [vmem:[%s217 + $0x42a] sm:$0xff]
  %v381 = vld [vmem:[%s217 + $0x432] sm:$0xff]
  %v382 = vld [vmem:[%s217 + $0x44a] sm:$0xff]
  %v383 = vld [vmem:[%s217 + $0x452] sm:$0xff]
  %v384 = vld [vmem:[%s217 + $0x46a] sm:$0xff]
  %v385 = vld [vmem:[%s217 + $0x472] sm:$0xff]
  %v386 = vld [vmem:[%s217 + $0x48a] sm:$0xff]
  %v387 = vld [vmem:[%s217 + $0x492] sm:$0xff]
  %v388 = vld [vmem:[%s217 + $0x4aa] sm:$0xff]
  %v389 = vld [vmem:[%s217 + $0x4b2] sm:$0xff]
  %v390 = vld [vmem:[%s217 + $0x4ca] sm:$0xff]
  %v391 = vld [vmem:[%s217 + $0x4d2] sm:$0xff]
  %v392 = vld [vmem:[%s217 + $0x4ea] sm:$0xff]
  %v393 = vld [vmem:[%s217 + $0x4f2] sm:$0xff]
  %v394 = vld [vmem:[%s217 + $0x50a] sm:$0xff]
  %v395 = vld [vmem:[%s217 + $0x512] sm:$0xff]
  %v396 = vld [vmem:[%s217 + $0x52a] sm:$0xff]
  %v397 = vld [vmem:[%s217 + $0x532] sm:$0xff]
  %v398 = vld [vmem:[%s217 + $0x54a] sm:$0xff]
  %v399 = vld [vmem:[%s217 + $0x552] sm:$0xff]
  %v400 = vld [vmem:[%s217 + $0x56a] sm:$0xff]
  %v401 = vld [vmem:[%s217 + $0x572] sm:$0xff]
  %v402 = vld [vmem:[%s217 + $0x58a] sm:$0xff]
  %v403 = vld [vmem:[%s217 + $0x592] sm:$0xff]
  %v404 = vld [vmem:[%s217 + $0x5aa] sm:$0xff]
  %v405 = vld [vmem:[%s217 + $0x5b2] sm:$0xff]
  %v406 = vld [vmem:[%s217 + $0x5ca] sm:$0xff]
  %v407 = vld [vmem:[%s217 + $0x5d2] sm:$0xff]
  %v408 = vld [vmem:[%s217 + $0x5ea] sm:$0xff]
  %v409 = vld [vmem:[%s217 + $0x5f2] sm:$0xff]
  %s410 = scalar_lea.vmem %s0, 320
  %v411 = vld [vmem:[%s410 + $0x6] sm:$0xff]
  %v412 = vld [vmem:[%s410 + $0xe] sm:$0xff]
  %v413 = vld [vmem:[%s410 + $0x26] sm:$0xff]
  %v414 = vld [vmem:[%s410 + $0x2e] sm:$0xff]
  %v415 = vld [vmem:[%s410 + $0x46] sm:$0xff]
  %v416 = vld [vmem:[%s410 + $0x4e] sm:$0xff]
  %v417 = vld [vmem:[%s410 + $0x66] sm:$0xff]
  %v418 = vld [vmem:[%s410 + $0x6e] sm:$0xff]
  %v419 = vld [vmem:[%s410 + $0x86] sm:$0xff]
  %v420 = vld [vmem:[%s410 + $0x8e] sm:$0xff]
  %v421 = vld [vmem:[%s410 + $0xa6] sm:$0xff]
  %v422 = vld [vmem:[%s410 + $0xae] sm:$0xff]
  %v423 = vld [vmem:[%s410 + $0xc6] sm:$0xff]
  %v424 = vld [vmem:[%s410 + $0xce] sm:$0xff]
  %v425 = vld [vmem:[%s410 + $0xe6] sm:$0xff]
  %v426 = vld [vmem:[%s410 + $0xee] sm:$0xff]
  %v427 = vld [vmem:[%s410 + $0x106] sm:$0xff]
  %v428 = vld [vmem:[%s410 + $0x10e] sm:$0xff]
  %v429 = vld [vmem:[%s410 + $0x126] sm:$0xff]
  %v430 = vld [vmem:[%s410 + $0x12e] sm:$0xff]
  %v431 = vld [vmem:[%s410 + $0x146] sm:$0xff]
  %v432 = vld [vmem:[%s410 + $0x14e] sm:$0xff]
  %v433 = vld [vmem:[%s410 + $0x166] sm:$0xff]
  %v434 = vld [vmem:[%s410 + $0x16e] sm:$0xff]
  %v435 = vld [vmem:[%s410 + $0x186] sm:$0xff]
  %v436 = vld [vmem:[%s410 + $0x18e] sm:$0xff]
  %v437 = vld [vmem:[%s410 + $0x1a6] sm:$0xff]
  %v438 = vld [vmem:[%s410 + $0x1ae] sm:$0xff]
  %v439 = vld [vmem:[%s410 + $0x1c6] sm:$0xff]
  %v440 = vld [vmem:[%s410 + $0x1ce] sm:$0xff]
  %v441 = vld [vmem:[%s410 + $0x1e6] sm:$0xff]
  %v442 = vld [vmem:[%s410 + $0x1ee] sm:$0xff]
  %v443 = vld [vmem:[%s410 + $0x406] sm:$0xff]
  %v444 = vld [vmem:[%s410 + $0x40e] sm:$0xff]
  %v445 = vld [vmem:[%s410 + $0x426] sm:$0xff]
  %v446 = vld [vmem:[%s410 + $0x42e] sm:$0xff]
  %v447 = vld [vmem:[%s410 + $0x446] sm:$0xff]
  %v448 = vld [vmem:[%s410 + $0x44e] sm:$0xff]
  %v449 = vld [vmem:[%s410 + $0x466] sm:$0xff]
  %v450 = vld [vmem:[%s410 + $0x46e] sm:$0xff]
  %v451 = vld [vmem:[%s410 + $0x486] sm:$0xff]
  %v452 = vld [vmem:[%s410 + $0x48e] sm:$0xff]
  %v453 = vld [vmem:[%s410 + $0x4a6] sm:$0xff]
  %v454 = vld [vmem:[%s410 + $0x4ae] sm:$0xff]
  %v455 = vld [vmem:[%s410 + $0x4c6] sm:$0xff]
  %v456 = vld [vmem:[%s410 + $0x4ce] sm:$0xff]
  %v457 = vld [vmem:[%s410 + $0x4e6] sm:$0xff]
  %v458 = vld [vmem:[%s410 + $0x4ee] sm:$0xff]
  %v459 = vld [vmem:[%s410 + $0x506] sm:$0xff]
  %v460 = vld [vmem:[%s410 + $0x50e] sm:$0xff]
  %v461 = vld [vmem:[%s410 + $0x526] sm:$0xff]
  %v462 = vld [vmem:[%s410 + $0x52e] sm:$0xff]
  %v463 = vld [vmem:[%s410 + $0x546] sm:$0xff]
  %v464 = vld [vmem:[%s410 + $0x54e] sm:$0xff]
  %v465 = vld [vmem:[%s410 + $0x566] sm:$0xff]
  %v466 = vld [vmem:[%s410 + $0x56e] sm:$0xff]
  %v467 = vld [vmem:[%s410 + $0x586] sm:$0xff]
  %v468 = vld [vmem:[%s410 + $0x58e] sm:$0xff]
  %v469 = vld [vmem:[%s410 + $0x5a6] sm:$0xff]
  %v470 = vld [vmem:[%s410 + $0x5ae] sm:$0xff]
  %v471 = vld [vmem:[%s410 + $0x5c6] sm:$0xff]
  %v472 = vld [vmem:[%s410 + $0x5ce] sm:$0xff]
  %v473 = vld [vmem:[%s410 + $0x5e6] sm:$0xff]
  %v474 = vld [vmem:[%s410 + $0x5ee] sm:$0xff]
  %v475 = vld [vmem:[%s410 + $0x8] sm:$0xff]
  %v476 = vld [vmem:[%s410 + $0x10] sm:$0xff]
  %v477 = vld [vmem:[%s410 + $0x28] sm:$0xff]
  %v478 = vld [vmem:[%s410 + $0x30] sm:$0xff]
  %v479 = vld [vmem:[%s410 + $0x48] sm:$0xff]
  %v480 = vld [vmem:[%s410 + $0x50] sm:$0xff]
  %v481 = vld [vmem:[%s410 + $0x68] sm:$0xff]
  %v482 = vld [vmem:[%s410 + $0x70] sm:$0xff]
  %v483 = vld [vmem:[%s410 + $0x88] sm:$0xff]
  %v484 = vld [vmem:[%s410 + $0x90] sm:$0xff]
  %v485 = vld [vmem:[%s410 + $0xa8] sm:$0xff]
  %v486 = vld [vmem:[%s410 + $0xb0] sm:$0xff]
  %v487 = vld [vmem:[%s410 + $0xc8] sm:$0xff]
  %v488 = vld [vmem:[%s410 + $0xd0] sm:$0xff]
  %v489 = vld [vmem:[%s410 + $0xe8] sm:$0xff]
  %v490 = vld [vmem:[%s410 + $0xf0] sm:$0xff]
  %v491 = vld [vmem:[%s410 + $0x108] sm:$0xff]
  %v492 = vld [vmem:[%s410 + $0x110] sm:$0xff]
  %v493 = vld [vmem:[%s410 + $0x128] sm:$0xff]
  %v494 = vld [vmem:[%s410 + $0x130] sm:$0xff]
  %v495 = vld [vmem:[%s410 + $0x148] sm:$0xff]
  %v496 = vld [vmem:[%s410 + $0x150] sm:$0xff]
  %v497 = vld [vmem:[%s410 + $0x168] sm:$0xff]
  %v498 = vld [vmem:[%s410 + $0x170] sm:$0xff]
  %v499 = vld [vmem:[%s410 + $0x188] sm:$0xff]
  %v500 = vld [vmem:[%s410 + $0x190] sm:$0xff]
  %v501 = vld [vmem:[%s410 + $0x1a8] sm:$0xff]
  %v502 = vld [vmem:[%s410 + $0x1b0] sm:$0xff]
  %v503 = vld [vmem:[%s410 + $0x1c8] sm:$0xff]
  %v504 = vld [vmem:[%s410 + $0x1d0] sm:$0xff]
  %v505 = vld [vmem:[%s410 + $0x1e8] sm:$0xff]
  %v506 = vld [vmem:[%s410 + $0x1f0] sm:$0xff]
  %v507 = vld [vmem:[%s410 + $0x408] sm:$0xff]
  %v508 = vld [vmem:[%s410 + $0x410] sm:$0xff]
  %v509 = vld [vmem:[%s410 + $0x428] sm:$0xff]
  %v510 = vld [vmem:[%s410 + $0x430] sm:$0xff]
  %v511 = vld [vmem:[%s410 + $0x448] sm:$0xff]
  %v512 = vld [vmem:[%s410 + $0x450] sm:$0xff]
  %v513 = vld [vmem:[%s410 + $0x468] sm:$0xff]
  %v514 = vld [vmem:[%s410 + $0x470] sm:$0xff]
  %v515 = vld [vmem:[%s410 + $0x488] sm:$0xff]
  %v516 = vld [vmem:[%s410 + $0x490] sm:$0xff]
  %v517 = vld [vmem:[%s410 + $0x4a8] sm:$0xff]
  %v518 = vld [vmem:[%s410 + $0x4b0] sm:$0xff]
  %v519 = vld [vmem:[%s410 + $0x4c8] sm:$0xff]
  %v520 = vld [vmem:[%s410 + $0x4d0] sm:$0xff]
  %v521 = vld [vmem:[%s410 + $0x4e8] sm:$0xff]
  %v522 = vld [vmem:[%s410 + $0x4f0] sm:$0xff]
  %v523 = vld [vmem:[%s410 + $0x508] sm:$0xff]
  %v524 = vld [vmem:[%s410 + $0x510] sm:$0xff]
  %v525 = vld [vmem:[%s410 + $0x528] sm:$0xff]
  %v526 = vld [vmem:[%s410 + $0x530] sm:$0xff]
  %v527 = vld [vmem:[%s410 + $0x548] sm:$0xff]
  %v528 = vld [vmem:[%s410 + $0x550] sm:$0xff]
  %v529 = vld [vmem:[%s410 + $0x568] sm:$0xff]
  %v530 = vld [vmem:[%s410 + $0x570] sm:$0xff]
  %v531 = vld [vmem:[%s410 + $0x588] sm:$0xff]
  %v532 = vld [vmem:[%s410 + $0x590] sm:$0xff]
  %v533 = vld [vmem:[%s410 + $0x5a8] sm:$0xff]
  %v534 = vld [vmem:[%s410 + $0x5b0] sm:$0xff]
  %v535 = vld [vmem:[%s410 + $0x5c8] sm:$0xff]
  %v536 = vld [vmem:[%s410 + $0x5d0] sm:$0xff]
  %v537 = vld [vmem:[%s410 + $0x5e8] sm:$0xff]
  %v538 = vld [vmem:[%s410 + $0x5f0] sm:$0xff]
  %v539 = vld [vmem:[%s410 + $0xa] sm:$0xff]
  %v540 = vld [vmem:[%s410 + $0x12] sm:$0xff]
  %v541 = vld [vmem:[%s410 + $0x2a] sm:$0xff]
  %v542 = vld [vmem:[%s410 + $0x32] sm:$0xff]
  %v543 = vld [vmem:[%s410 + $0x4a] sm:$0xff]
  %v544 = vld [vmem:[%s410 + $0x52] sm:$0xff]
  %v545 = vld [vmem:[%s410 + $0x6a] sm:$0xff]
  %v546 = vld [vmem:[%s410 + $0x72] sm:$0xff]
  %v547 = vld [vmem:[%s410 + $0x8a] sm:$0xff]
  %v548 = vld [vmem:[%s410 + $0x92] sm:$0xff]
  %v549 = vld [vmem:[%s410 + $0xaa] sm:$0xff]
  %v550 = vld [vmem:[%s410 + $0xb2] sm:$0xff]
  %v551 = vld [vmem:[%s410 + $0xca] sm:$0xff]
  %v552 = vld [vmem:[%s410 + $0xd2] sm:$0xff]
  %v553 = vld [vmem:[%s410 + $0xea] sm:$0xff]
  %v554 = vld [vmem:[%s410 + $0xf2] sm:$0xff]
  %v555 = vld [vmem:[%s410 + $0x10a] sm:$0xff]
  %v556 = vld [vmem:[%s410 + $0x112] sm:$0xff]
  %v557 = vld [vmem:[%s410 + $0x12a] sm:$0xff]
  %v558 = vld [vmem:[%s410 + $0x132] sm:$0xff]
  %v559 = vld [vmem:[%s410 + $0x14a] sm:$0xff]
  %v560 = vld [vmem:[%s410 + $0x152] sm:$0xff]
  %v561 = vld [vmem:[%s410 + $0x16a] sm:$0xff]
  %v562 = vld [vmem:[%s410 + $0x172] sm:$0xff]
  %v563 = vld [vmem:[%s410 + $0x18a] sm:$0xff]
  %v564 = vld [vmem:[%s410 + $0x192] sm:$0xff]
  %v565 = vld [vmem:[%s410 + $0x1aa] sm:$0xff]
  %v566 = vld [vmem:[%s410 + $0x1b2] sm:$0xff]
  %v567 = vld [vmem:[%s410 + $0x1ca] sm:$0xff]
  %v568 = vld [vmem:[%s410 + $0x1d2] sm:$0xff]
  %v569 = vld [vmem:[%s410 + $0x1ea] sm:$0xff]
  %v570 = vld [vmem:[%s410 + $0x1f2] sm:$0xff]
  %v571 = vld [vmem:[%s410 + $0x40a] sm:$0xff]
  %v572 = vld [vmem:[%s410 + $0x412] sm:$0xff]
  %v573 = vld [vmem:[%s410 + $0x42a] sm:$0xff]
  %v574 = vld [vmem:[%s410 + $0x432] sm:$0xff]
  %v575 = vld [vmem:[%s410 + $0x44a] sm:$0xff]
  %v576 = vld [vmem:[%s410 + $0x452] sm:$0xff]
  %v577 = vld [vmem:[%s410 + $0x46a] sm:$0xff]
  %v578 = vld [vmem:[%s410 + $0x472] sm:$0xff]
  %v579 = vld [vmem:[%s410 + $0x48a] sm:$0xff]
  %v580 = vld [vmem:[%s410 + $0x492] sm:$0xff]
  %v581 = vld [vmem:[%s410 + $0x4aa] sm:$0xff]
  %v582 = vld [vmem:[%s410 + $0x4b2] sm:$0xff]
  %v583 = vld [vmem:[%s410 + $0x4ca] sm:$0xff]
  %v584 = vld [vmem:[%s410 + $0x4d2] sm:$0xff]
  %v585 = vld [vmem:[%s410 + $0x4ea] sm:$0xff]
  %v586 = vld [vmem:[%s410 + $0x4f2] sm:$0xff]
  %v587 = vld [vmem:[%s410 + $0x50a] sm:$0xff]
  %v588 = vld [vmem:[%s410 + $0x512] sm:$0xff]
  %v589 = vld [vmem:[%s410 + $0x52a] sm:$0xff]
  %v590 = vld [vmem:[%s410 + $0x532] sm:$0xff]
  %v591 = vld [vmem:[%s410 + $0x54a] sm:$0xff]
  %v592 = vld [vmem:[%s410 + $0x552] sm:$0xff]
  %v593 = vld [vmem:[%s410 + $0x56a] sm:$0xff]
  %v594 = vld [vmem:[%s410 + $0x572] sm:$0xff]
  %v595 = vld [vmem:[%s410 + $0x58a] sm:$0xff]
  %v596 = vld [vmem:[%s410 + $0x592] sm:$0xff]
  %v597 = vld [vmem:[%s410 + $0x5aa] sm:$0xff]
  %v598 = vld [vmem:[%s410 + $0x5b2] sm:$0xff]
  %v599 = vld [vmem:[%s410 + $0x5ca] sm:$0xff]
  %v600 = vld [vmem:[%s410 + $0x5d2] sm:$0xff]
  %v601 = vld [vmem:[%s410 + $0x5ea] sm:$0xff]
  %v602 = vld [vmem:[%s410 + $0x5f2] sm:$0xff]
  %s603 = scalar_lea.vmem %s0, 128
  %v604 = vld [vmem:[%s603 + $0x4] sm:$0xff]
  %v605 = vld [vmem:[%s603 + $0xc] sm:$0xff]
  %v606 = vld [vmem:[%s603 + $0x24] sm:$0xff]
  %v607 = vld [vmem:[%s603 + $0x2c] sm:$0xff]
  %v608 = vld [vmem:[%s603 + $0x44] sm:$0xff]
  %v609 = vld [vmem:[%s603 + $0x4c] sm:$0xff]
  %v610 = vld [vmem:[%s603 + $0x64] sm:$0xff]
  %v611 = vld [vmem:[%s603 + $0x6c] sm:$0xff]
  %v612 = vld [vmem:[%s603 + $0x84] sm:$0xff]
  %v613 = vld [vmem:[%s603 + $0x8c] sm:$0xff]
  %v614 = vld [vmem:[%s603 + $0xa4] sm:$0xff]
  %v615 = vld [vmem:[%s603 + $0xac] sm:$0xff]
  %v616 = vld [vmem:[%s603 + $0xc4] sm:$0xff]
  %v617 = vld [vmem:[%s603 + $0xcc] sm:$0xff]
  %v618 = vld [vmem:[%s603 + $0xe4] sm:$0xff]
  %v619 = vld [vmem:[%s603 + $0xec] sm:$0xff]
  %v620 = vld [vmem:[%s603 + $0x104] sm:$0xff]
  %v621 = vld [vmem:[%s603 + $0x10c] sm:$0xff]
  %v622 = vld [vmem:[%s603 + $0x124] sm:$0xff]
  %v623 = vld [vmem:[%s603 + $0x12c] sm:$0xff]
  %v624 = vld [vmem:[%s603 + $0x144] sm:$0xff]
  %v625 = vld [vmem:[%s603 + $0x14c] sm:$0xff]
  %v626 = vld [vmem:[%s603 + $0x164] sm:$0xff]
  %v627 = vld [vmem:[%s603 + $0x16c] sm:$0xff]
  %v628 = vld [vmem:[%s603 + $0x184] sm:$0xff]
  %v629 = vld [vmem:[%s603 + $0x18c] sm:$0xff]
  %v630 = vld [vmem:[%s603 + $0x1a4] sm:$0xff]
  %v631 = vld [vmem:[%s603 + $0x1ac] sm:$0xff]
  %v632 = vld [vmem:[%s603 + $0x1c4] sm:$0xff]
  %v633 = vld [vmem:[%s603 + $0x1cc] sm:$0xff]
  %v634 = vld [vmem:[%s603 + $0x1e4] sm:$0xff]
  %v635 = vld [vmem:[%s603 + $0x1ec] sm:$0xff]
  %v636 = vld [vmem:[%s603 + $0x404] sm:$0xff]
  %v637 = vld [vmem:[%s603 + $0x40c] sm:$0xff]
  %v638 = vld [vmem:[%s603 + $0x424] sm:$0xff]
  %v639 = vld [vmem:[%s603 + $0x42c] sm:$0xff]
  %v640 = vld [vmem:[%s603 + $0x444] sm:$0xff]
  %v641 = vld [vmem:[%s603 + $0x44c] sm:$0xff]
  %v642 = vld [vmem:[%s603 + $0x464] sm:$0xff]
  %v643 = vld [vmem:[%s603 + $0x46c] sm:$0xff]
  %v644 = vld [vmem:[%s603 + $0x484] sm:$0xff]
  %v645 = vld [vmem:[%s603 + $0x48c] sm:$0xff]
  %v646 = vld [vmem:[%s603 + $0x4a4] sm:$0xff]
  %v647 = vld [vmem:[%s603 + $0x4ac] sm:$0xff]
  %v648 = vld [vmem:[%s603 + $0x4c4] sm:$0xff]
  %v649 = vld [vmem:[%s603 + $0x4cc] sm:$0xff]
  %v650 = vld [vmem:[%s603 + $0x4e4] sm:$0xff]
  %v651 = vld [vmem:[%s603 + $0x4ec] sm:$0xff]
  %v652 = vld [vmem:[%s603 + $0x504] sm:$0xff]
  %v653 = vld [vmem:[%s603 + $0x50c] sm:$0xff]
  %v654 = vld [vmem:[%s603 + $0x524] sm:$0xff]
  %v655 = vld [vmem:[%s603 + $0x52c] sm:$0xff]
  %v656 = vld [vmem:[%s603 + $0x544] sm:$0xff]
  %v657 = vld [vmem:[%s603 + $0x54c] sm:$0xff]
  %v658 = vld [vmem:[%s603 + $0x564] sm:$0xff]
  %v659 = vld [vmem:[%s603 + $0x56c] sm:$0xff]
  %v660 = vld [vmem:[%s603 + $0x584] sm:$0xff]
  %v661 = vld [vmem:[%s603 + $0x58c] sm:$0xff]
  %v662 = vld [vmem:[%s603 + $0x5a4] sm:$0xff]
  %v663 = vld [vmem:[%s603 + $0x5ac] sm:$0xff]
  %v664 = vld [vmem:[%s603 + $0x5c4] sm:$0xff]
  %v665 = vld [vmem:[%s603 + $0x5cc] sm:$0xff]
  %v666 = vld [vmem:[%s603 + $0x5e4] sm:$0xff]
  %v667 = vld [vmem:[%s603 + $0x5ec] sm:$0xff]
  %v668 = vld [vmem:[%s603 + $0x8] sm:$0xff]
  %v669 = vld [vmem:[%s603 + $0x10] sm:$0xff]
  %v670 = vld [vmem:[%s603 + $0x28] sm:$0xff]
  %v671 = vld [vmem:[%s603 + $0x30] sm:$0xff]
  %v672 = vld [vmem:[%s603 + $0x48] sm:$0xff]
  %v673 = vld [vmem:[%s603 + $0x50] sm:$0xff]
  %v674 = vld [vmem:[%s603 + $0x68] sm:$0xff]
  %v675 = vld [vmem:[%s603 + $0x70] sm:$0xff]
  %v676 = vld [vmem:[%s603 + $0x88] sm:$0xff]
  %v677 = vld [vmem:[%s603 + $0x90] sm:$0xff]
  %v678 = vld [vmem:[%s603 + $0xa8] sm:$0xff]
  %v679 = vld [vmem:[%s603 + $0xb0] sm:$0xff]
  %v680 = vld [vmem:[%s603 + $0xc8] sm:$0xff]
  %v681 = vld [vmem:[%s603 + $0xd0] sm:$0xff]
  %v682 = vld [vmem:[%s603 + $0xe8] sm:$0xff]
  %v683 = vld [vmem:[%s603 + $0xf0] sm:$0xff]
  %v684 = vld [vmem:[%s603 + $0x108] sm:$0xff]
  %v685 = vld [vmem:[%s603 + $0x110] sm:$0xff]
  %v686 = vld [vmem:[%s603 + $0x128] sm:$0xff]
  %v687 = vld [vmem:[%s603 + $0x130] sm:$0xff]
  %v688 = vld [vmem:[%s603 + $0x148] sm:$0xff]
  %v689 = vld [vmem:[%s603 + $0x150] sm:$0xff]
  %v690 = vld [vmem:[%s603 + $0x168] sm:$0xff]
  %v691 = vld [vmem:[%s603 + $0x170] sm:$0xff]
  %v692 = vld [vmem:[%s603 + $0x188] sm:$0xff]
  %v693 = vld [vmem:[%s603 + $0x190] sm:$0xff]
  %v694 = vld [vmem:[%s603 + $0x1a8] sm:$0xff]
  %v695 = vld [vmem:[%s603 + $0x1b0] sm:$0xff]
  %v696 = vld [vmem:[%s603 + $0x1c8] sm:$0xff]
  %v697 = vld [vmem:[%s603 + $0x1d0] sm:$0xff]
  %v698 = vld [vmem:[%s603 + $0x1e8] sm:$0xff]
  %v699 = vld [vmem:[%s603 + $0x1f0] sm:$0xff]
  %v700 = vld [vmem:[%s603 + $0x408] sm:$0xff]
  %v701 = vld [vmem:[%s603 + $0x410] sm:$0xff]
  %v702 = vld [vmem:[%s603 + $0x428] sm:$0xff]
  %v703 = vld [vmem:[%s603 + $0x430] sm:$0xff]
  %v704 = vld [vmem:[%s603 + $0x448] sm:$0xff]
  %v705 = vld [vmem:[%s603 + $0x450] sm:$0xff]
  %v706 = vld [vmem:[%s603 + $0x468] sm:$0xff]
  %v707 = vld [vmem:[%s603 + $0x470] sm:$0xff]
  %v708 = vld [vmem:[%s603 + $0x488] sm:$0xff]
  %v709 = vld [vmem:[%s603 + $0x490] sm:$0xff]
  %v710 = vld [vmem:[%s603 + $0x4a8] sm:$0xff]
  %v711 = vld [vmem:[%s603 + $0x4b0] sm:$0xff]
  %v712 = vld [vmem:[%s603 + $0x4c8] sm:$0xff]
  %v713 = vld [vmem:[%s603 + $0x4d0] sm:$0xff]
  %v714 = vld [vmem:[%s603 + $0x4e8] sm:$0xff]
  %v715 = vld [vmem:[%s603 + $0x4f0] sm:$0xff]
  %v716 = vld [vmem:[%s603 + $0x508] sm:$0xff]
  %v717 = vld [vmem:[%s603 + $0x510] sm:$0xff]
  %v718 = vld [vmem:[%s603 + $0x528] sm:$0xff]
  %v719 = vld [vmem:[%s603 + $0x530] sm:$0xff]
  %v720 = vld [vmem:[%s603 + $0x548] sm:$0xff]
  %v721 = vld [vmem:[%s603 + $0x550] sm:$0xff]
  %v722 = vld [vmem:[%s603 + $0x568] sm:$0xff]
  %v723 = vld [vmem:[%s603 + $0x570] sm:$0xff]
  %v724 = vld [vmem:[%s603 + $0x588] sm:$0xff]
  %v725 = vld [vmem:[%s603 + $0x590] sm:$0xff]
  %v726 = vld [vmem:[%s603 + $0x5a8] sm:$0xff]
  %v727 = vld [vmem:[%s603 + $0x5b0] sm:$0xff]
  %v728 = vld [vmem:[%s603 + $0x5c8] sm:$0xff]
  %v729 = vld [vmem:[%s603 + $0x5d0] sm:$0xff]
  %v730 = vld [vmem:[%s603 + $0x5e8] sm:$0xff]
  %v731 = vld [vmem:[%s603 + $0x5f0] sm:$0xff]
  %v732 = vld [vmem:[%s603 + $0x14] sm:$0xff]
  %v733 = vld [vmem:[%s603 + $0x34] sm:$0xff]
  %v734 = vld [vmem:[%s603 + $0x54] sm:$0xff]
  %v735 = vld [vmem:[%s603 + $0x74] sm:$0xff]
  %v736 = vld [vmem:[%s603 + $0x94] sm:$0xff]
  %v737 = vld [vmem:[%s603 + $0xb4] sm:$0xff]
  %v738 = vld [vmem:[%s603 + $0xd4] sm:$0xff]
  %v739 = vld [vmem:[%s603 + $0xf4] sm:$0xff]
  %v740 = vld [vmem:[%s603 + $0x114] sm:$0xff]
  %v741 = vld [vmem:[%s603 + $0x134] sm:$0xff]
  %v742 = vld [vmem:[%s603 + $0x154] sm:$0xff]
  %v743 = vld [vmem:[%s603 + $0x174] sm:$0xff]
  %v744 = vld [vmem:[%s603 + $0x194] sm:$0xff]
  %v745 = vld [vmem:[%s603 + $0x1b4] sm:$0xff]
  %v746 = vld [vmem:[%s603 + $0x1d4] sm:$0xff]
  %v747 = vld [vmem:[%s603 + $0x1f4] sm:$0xff]
  %v748 = vld [vmem:[%s603 + $0x414] sm:$0xff]
  %v749 = vld [vmem:[%s603 + $0x434] sm:$0xff]
  %v750 = vld [vmem:[%s603 + $0x454] sm:$0xff]
  %v751 = vld [vmem:[%s603 + $0x474] sm:$0xff]
  %v752 = vld [vmem:[%s603 + $0x494] sm:$0xff]
  %v753 = vld [vmem:[%s603 + $0x4b4] sm:$0xff]
  %v754 = vld [vmem:[%s603 + $0x4d4] sm:$0xff]
  %v755 = vld [vmem:[%s603 + $0x4f4] sm:$0xff]
  %v756 = vld [vmem:[%s603 + $0x514] sm:$0xff]
  %v757 = vld [vmem:[%s603 + $0x534] sm:$0xff]
  %v758 = vld [vmem:[%s603 + $0x554] sm:$0xff]
  %v759 = vld [vmem:[%s603 + $0x574] sm:$0xff]
  %v760 = vld [vmem:[%s603 + $0x594] sm:$0xff]
  %v761 = vld [vmem:[%s603 + $0x5b4] sm:$0xff]
  %v762 = vld [vmem:[%s603 + $0x5d4] sm:$0xff]
  %v763 = vld [vmem:[%s603 + $0x5f4] sm:$0xff]
  %v764 = vld [vmem:[%s217 + $0x4] sm:$0xff]
  %v765 = vld [vmem:[%s217 + $0xc] sm:$0xff]
  %v766 = vld [vmem:[%s217 + $0x24] sm:$0xff]
  %v767 = vld [vmem:[%s217 + $0x2c] sm:$0xff]
  %v768 = vld [vmem:[%s217 + $0x44] sm:$0xff]
  %v769 = vld [vmem:[%s217 + $0x4c] sm:$0xff]
  %v770 = vld [vmem:[%s217 + $0x64] sm:$0xff]
  %v771 = vld [vmem:[%s217 + $0x6c] sm:$0xff]
  %v772 = vld [vmem:[%s217 + $0x84] sm:$0xff]
  %v773 = vld [vmem:[%s217 + $0x8c] sm:$0xff]
  %v774 = vld [vmem:[%s217 + $0xa4] sm:$0xff]
  %v775 = vld [vmem:[%s217 + $0xac] sm:$0xff]
  %v776 = vld [vmem:[%s217 + $0xc4] sm:$0xff]
  %v777 = vld [vmem:[%s217 + $0xcc] sm:$0xff]
  %v778 = vld [vmem:[%s217 + $0xe4] sm:$0xff]
  %v779 = vld [vmem:[%s217 + $0xec] sm:$0xff]
  %v780 = vld [vmem:[%s217 + $0x104] sm:$0xff]
  %v781 = vld [vmem:[%s217 + $0x10c] sm:$0xff]
  %v782 = vld [vmem:[%s217 + $0x124] sm:$0xff]
  %v783 = vld [vmem:[%s217 + $0x12c] sm:$0xff]
  %v784 = vld [vmem:[%s217 + $0x144] sm:$0xff]
  %v785 = vld [vmem:[%s217 + $0x14c] sm:$0xff]
  %v786 = vld [vmem:[%s217 + $0x164] sm:$0xff]
  %v787 = vld [vmem:[%s217 + $0x16c] sm:$0xff]
  %v788 = vld [vmem:[%s217 + $0x184] sm:$0xff]
  %v789 = vld [vmem:[%s217 + $0x18c] sm:$0xff]
  %v790 = vld [vmem:[%s217 + $0x1a4] sm:$0xff]
  %v791 = vld [vmem:[%s217 + $0x1ac] sm:$0xff]
  %v792 = vld [vmem:[%s217 + $0x1c4] sm:$0xff]
  %v793 = vld [vmem:[%s217 + $0x1cc] sm:$0xff]
  %v794 = vld [vmem:[%s217 + $0x1e4] sm:$0xff]
  %v795 = vld [vmem:[%s217 + $0x1ec] sm:$0xff]
  %v796 = vld [vmem:[%s217 + $0x404] sm:$0xff]
  %v797 = vld [vmem:[%s217 + $0x40c] sm:$0xff]
  %v798 = vld [vmem:[%s217 + $0x424] sm:$0xff]
  %v799 = vld [vmem:[%s217 + $0x42c] sm:$0xff]
  %v800 = vld [vmem:[%s217 + $0x444] sm:$0xff]
  %v801 = vld [vmem:[%s217 + $0x44c] sm:$0xff]
  %v802 = vld [vmem:[%s217 + $0x464] sm:$0xff]
  %v803 = vld [vmem:[%s217 + $0x46c] sm:$0xff]
  %v804 = vld [vmem:[%s217 + $0x484] sm:$0xff]
  %v805 = vld [vmem:[%s217 + $0x48c] sm:$0xff]
  %v806 = vld [vmem:[%s217 + $0x4a4] sm:$0xff]
  %v807 = vld [vmem:[%s217 + $0x4ac] sm:$0xff]
  %v808 = vld [vmem:[%s217 + $0x4c4] sm:$0xff]
  %v809 = vld [vmem:[%s217 + $0x4cc] sm:$0xff]
  %v810 = vld [vmem:[%s217 + $0x4e4] sm:$0xff]
  %v811 = vld [vmem:[%s217 + $0x4ec] sm:$0xff]
  %v812 = vld [vmem:[%s217 + $0x504] sm:$0xff]
  %v813 = vld [vmem:[%s217 + $0x50c] sm:$0xff]
  %v814 = vld [vmem:[%s217 + $0x524] sm:$0xff]
  %v815 = vld [vmem:[%s217 + $0x52c] sm:$0xff]
  %v816 = vld [vmem:[%s217 + $0x544] sm:$0xff]
  %v817 = vld [vmem:[%s217 + $0x54c] sm:$0xff]
  %v818 = vld [vmem:[%s217 + $0x564] sm:$0xff]
  %v819 = vld [vmem:[%s217 + $0x56c] sm:$0xff]
  %v820 = vld [vmem:[%s217 + $0x584] sm:$0xff]
  %v821 = vld [vmem:[%s217 + $0x58c] sm:$0xff]
  %v822 = vld [vmem:[%s217 + $0x5a4] sm:$0xff]
  %v823 = vld [vmem:[%s217 + $0x5ac] sm:$0xff]
  %v824 = vld [vmem:[%s217 + $0x5c4] sm:$0xff]
  %v825 = vld [vmem:[%s217 + $0x5cc] sm:$0xff]
  %v826 = vld [vmem:[%s217 + $0x5e4] sm:$0xff]
  %v827 = vld [vmem:[%s217 + $0x5ec] sm:$0xff]
  %v828 = vld [vmem:[%s217 + $0x14] sm:$0xff]
  %v829 = vld [vmem:[%s217 + $0x34] sm:$0xff]
  %v830 = vld [vmem:[%s217 + $0x54] sm:$0xff]
  %v831 = vld [vmem:[%s217 + $0x74] sm:$0xff]
  %v832 = vld [vmem:[%s217 + $0x94] sm:$0xff]
  %v833 = vld [vmem:[%s217 + $0xb4] sm:$0xff]
  %v834 = vld [vmem:[%s217 + $0xd4] sm:$0xff]
  %v835 = vld [vmem:[%s217 + $0xf4] sm:$0xff]
  %v836 = vld [vmem:[%s217 + $0x114] sm:$0xff]
  %v837 = vld [vmem:[%s217 + $0x134] sm:$0xff]
  %v838 = vld [vmem:[%s217 + $0x154] sm:$0xff]
  %v839 = vld [vmem:[%s217 + $0x174] sm:$0xff]
  %v840 = vld [vmem:[%s217 + $0x194] sm:$0xff]
  %v841 = vld [vmem:[%s217 + $0x1b4] sm:$0xff]
  %v842 = vld [vmem:[%s217 + $0x1d4] sm:$0xff]
  %v843 = vld [vmem:[%s217 + $0x1f4] sm:$0xff]
  %v844 = vld [vmem:[%s217 + $0x414] sm:$0xff]
  %v845 = vld [vmem:[%s217 + $0x434] sm:$0xff]
  %v846 = vld [vmem:[%s217 + $0x454] sm:$0xff]
  %v847 = vld [vmem:[%s217 + $0x474] sm:$0xff]
  %v848 = vld [vmem:[%s217 + $0x494] sm:$0xff]
  %v849 = vld [vmem:[%s217 + $0x4b4] sm:$0xff]
  %v850 = vld [vmem:[%s217 + $0x4d4] sm:$0xff]
  %v851 = vld [vmem:[%s217 + $0x4f4] sm:$0xff]
  %v852 = vld [vmem:[%s217 + $0x514] sm:$0xff]
  %v853 = vld [vmem:[%s217 + $0x534] sm:$0xff]
  %v854 = vld [vmem:[%s217 + $0x554] sm:$0xff]
  %v855 = vld [vmem:[%s217 + $0x574] sm:$0xff]
  %v856 = vld [vmem:[%s217 + $0x594] sm:$0xff]
  %v857 = vld [vmem:[%s217 + $0x5b4] sm:$0xff]
  %v858 = vld [vmem:[%s217 + $0x5d4] sm:$0xff]
  %v859 = vld [vmem:[%s217 + $0x5f4] sm:$0xff]
  %s860 = scalar_lea.vmem %s0, 384
  %v861 = vld [vmem:[%s860 + $0x4] sm:$0xff]
  %v862 = vld [vmem:[%s860 + $0xc] sm:$0xff]
  %v863 = vld [vmem:[%s860 + $0x24] sm:$0xff]
  %v864 = vld [vmem:[%s860 + $0x2c] sm:$0xff]
  %v865 = vld [vmem:[%s860 + $0x44] sm:$0xff]
  %v866 = vld [vmem:[%s860 + $0x4c] sm:$0xff]
  %v867 = vld [vmem:[%s860 + $0x64] sm:$0xff]
  %v868 = vld [vmem:[%s860 + $0x6c] sm:$0xff]
  %v869 = vld [vmem:[%s860 + $0x84] sm:$0xff]
  %v870 = vld [vmem:[%s860 + $0x8c] sm:$0xff]
  %v871 = vld [vmem:[%s860 + $0xa4] sm:$0xff]
  %v872 = vld [vmem:[%s860 + $0xac] sm:$0xff]
  %v873 = vld [vmem:[%s860 + $0xc4] sm:$0xff]
  %v874 = vld [vmem:[%s860 + $0xcc] sm:$0xff]
  %v875 = vld [vmem:[%s860 + $0xe4] sm:$0xff]
  %v876 = vld [vmem:[%s860 + $0xec] sm:$0xff]
  %v877 = vld [vmem:[%s860 + $0x104] sm:$0xff]
  %v878 = vld [vmem:[%s860 + $0x10c] sm:$0xff]
  %v879 = vld [vmem:[%s860 + $0x124] sm:$0xff]
  %v880 = vld [vmem:[%s860 + $0x12c] sm:$0xff]
  %v881 = vld [vmem:[%s860 + $0x144] sm:$0xff]
  %v882 = vld [vmem:[%s860 + $0x14c] sm:$0xff]
  %v883 = vld [vmem:[%s860 + $0x164] sm:$0xff]
  %v884 = vld [vmem:[%s860 + $0x16c] sm:$0xff]
  %v885 = vld [vmem:[%s860 + $0x184] sm:$0xff]
  %v886 = vld [vmem:[%s860 + $0x18c] sm:$0xff]
  %v887 = vld [vmem:[%s860 + $0x1a4] sm:$0xff]
  %v888 = vld [vmem:[%s860 + $0x1ac] sm:$0xff]
  %v889 = vld [vmem:[%s860 + $0x1c4] sm:$0xff]
  %v890 = vld [vmem:[%s860 + $0x1cc] sm:$0xff]
  %v891 = vld [vmem:[%s860 + $0x1e4] sm:$0xff]
  %v892 = vld [vmem:[%s860 + $0x1ec] sm:$0xff]
  %v893 = vld [vmem:[%s860 + $0x404] sm:$0xff]
  %v894 = vld [vmem:[%s860 + $0x40c] sm:$0xff]
  %v895 = vld [vmem:[%s860 + $0x424] sm:$0xff]
  %v896 = vld [vmem:[%s860 + $0x42c] sm:$0xff]
  %v897 = vld [vmem:[%s860 + $0x444] sm:$0xff]
  %v898 = vld [vmem:[%s860 + $0x44c] sm:$0xff]
  %v899 = vld [vmem:[%s860 + $0x464] sm:$0xff]
  %v900 = vld [vmem:[%s860 + $0x46c] sm:$0xff]
  %v901 = vld [vmem:[%s860 + $0x484] sm:$0xff]
  %v902 = vld [vmem:[%s860 + $0x48c] sm:$0xff]
  %v903 = vld [vmem:[%s860 + $0x4a4] sm:$0xff]
  %v904 = vld [vmem:[%s860 + $0x4ac] sm:$0xff]
  %v905 = vld [vmem:[%s860 + $0x4c4] sm:$0xff]
  %v906 = vld [vmem:[%s860 + $0x4cc] sm:$0xff]
  %v907 = vld [vmem:[%s860 + $0x4e4] sm:$0xff]
  %v908 = vld [vmem:[%s860 + $0x4ec] sm:$0xff]
  %v909 = vld [vmem:[%s860 + $0x504] sm:$0xff]
  %v910 = vld [vmem:[%s860 + $0x50c] sm:$0xff]
  %v911 = vld [vmem:[%s860 + $0x524] sm:$0xff]
  %v912 = vld [vmem:[%s860 + $0x52c] sm:$0xff]
  %v913 = vld [vmem:[%s860 + $0x544] sm:$0xff]
  %v914 = vld [vmem:[%s860 + $0x54c] sm:$0xff]
  %v915 = vld [vmem:[%s860 + $0x564] sm:$0xff]
  %v916 = vld [vmem:[%s860 + $0x56c] sm:$0xff]
  %v917 = vld [vmem:[%s860 + $0x584] sm:$0xff]
  %v918 = vld [vmem:[%s860 + $0x58c] sm:$0xff]
  %v919 = vld [vmem:[%s860 + $0x5a4] sm:$0xff]
  %v920 = vld [vmem:[%s860 + $0x5ac] sm:$0xff]
  %v921 = vld [vmem:[%s860 + $0x5c4] sm:$0xff]
  %v922 = vld [vmem:[%s860 + $0x5cc] sm:$0xff]
  %v923 = vld [vmem:[%s860 + $0x5e4] sm:$0xff]
  %v924 = vld [vmem:[%s860 + $0x5ec] sm:$0xff]
  %v925 = vld [vmem:[%s860 + $0x8] sm:$0xff]
  %v926 = vld [vmem:[%s860 + $0x10] sm:$0xff]
  %v927 = vld [vmem:[%s860 + $0x28] sm:$0xff]
  %v928 = vld [vmem:[%s860 + $0x30] sm:$0xff]
  %v929 = vld [vmem:[%s860 + $0x48] sm:$0xff]
  %v930 = vld [vmem:[%s860 + $0x50] sm:$0xff]
  %v931 = vld [vmem:[%s860 + $0x68] sm:$0xff]
  %v932 = vld [vmem:[%s860 + $0x70] sm:$0xff]
  %v933 = vld [vmem:[%s860 + $0x88] sm:$0xff]
  %v934 = vld [vmem:[%s860 + $0x90] sm:$0xff]
  %v935 = vld [vmem:[%s860 + $0xa8] sm:$0xff]
  %v936 = vld [vmem:[%s860 + $0xb0] sm:$0xff]
  %v937 = vld [vmem:[%s860 + $0xc8] sm:$0xff]
  %v938 = vld [vmem:[%s860 + $0xd0] sm:$0xff]
  %v939 = vld [vmem:[%s860 + $0xe8] sm:$0xff]
  %v940 = vld [vmem:[%s860 + $0xf0] sm:$0xff]
  %v941 = vld [vmem:[%s860 + $0x108] sm:$0xff]
  %v942 = vld [vmem:[%s860 + $0x110] sm:$0xff]
  %v943 = vld [vmem:[%s860 + $0x128] sm:$0xff]
  %v944 = vld [vmem:[%s860 + $0x130] sm:$0xff]
  %v945 = vld [vmem:[%s860 + $0x148] sm:$0xff]
  %v946 = vld [vmem:[%s860 + $0x150] sm:$0xff]
  %v947 = vld [vmem:[%s860 + $0x168] sm:$0xff]
  %v948 = vld [vmem:[%s860 + $0x170] sm:$0xff]
  %v949 = vld [vmem:[%s860 + $0x188] sm:$0xff]
  %v950 = vld [vmem:[%s860 + $0x190] sm:$0xff]
  %v951 = vld [vmem:[%s860 + $0x1a8] sm:$0xff]
  %v952 = vld [vmem:[%s860 + $0x1b0] sm:$0xff]
  %v953 = vld [vmem:[%s860 + $0x1c8] sm:$0xff]
  %v954 = vld [vmem:[%s860 + $0x1d0] sm:$0xff]
  %v955 = vld [vmem:[%s860 + $0x1e8] sm:$0xff]
  %v956 = vld [vmem:[%s860 + $0x1f0] sm:$0xff]
  %v957 = vld [vmem:[%s860 + $0x408] sm:$0xff]
  %v958 = vld [vmem:[%s860 + $0x410] sm:$0xff]
  %v959 = vld [vmem:[%s860 + $0x428] sm:$0xff]
  %v960 = vld [vmem:[%s860 + $0x430] sm:$0xff]
  %v961 = vld [vmem:[%s860 + $0x448] sm:$0xff]
  %v962 = vld [vmem:[%s860 + $0x450] sm:$0xff]
  %v963 = vld [vmem:[%s860 + $0x468] sm:$0xff]
  %v964 = vld [vmem:[%s860 + $0x470] sm:$0xff]
  %v965 = vld [vmem:[%s860 + $0x488] sm:$0xff]
  %v966 = vld [vmem:[%s860 + $0x490] sm:$0xff]
  %v967 = vld [vmem:[%s860 + $0x4a8] sm:$0xff]
  %v968 = vld [vmem:[%s860 + $0x4b0] sm:$0xff]
  %v969 = vld [vmem:[%s860 + $0x4c8] sm:$0xff]
  %v970 = vld [vmem:[%s860 + $0x4d0] sm:$0xff]
  %v971 = vld [vmem:[%s860 + $0x4e8] sm:$0xff]
  %v972 = vld [vmem:[%s860 + $0x4f0] sm:$0xff]
  %v973 = vld [vmem:[%s860 + $0x508] sm:$0xff]
  %v974 = vld [vmem:[%s860 + $0x510] sm:$0xff]
  %v975 = vld [vmem:[%s860 + $0x528] sm:$0xff]
  %v976 = vld [vmem:[%s860 + $0x530] sm:$0xff]
  %v977 = vld [vmem:[%s860 + $0x548] sm:$0xff]
  %v978 = vld [vmem:[%s860 + $0x550] sm:$0xff]
  %v979 = vld [vmem:[%s860 + $0x568] sm:$0xff]
  %v980 = vld [vmem:[%s860 + $0x570] sm:$0xff]
  %v981 = vld [vmem:[%s860 + $0x588] sm:$0xff]
  %v982 = vld [vmem:[%s860 + $0x590] sm:$0xff]
  %v983 = vld [vmem:[%s860 + $0x5a8] sm:$0xff]
  %v984 = vld [vmem:[%s860 + $0x5b0] sm:$0xff]
  %v985 = vld [vmem:[%s860 + $0x5c8] sm:$0xff]
  %v986 = vld [vmem:[%s860 + $0x5d0] sm:$0xff]
  %v987 = vld [vmem:[%s860 + $0x5e8] sm:$0xff]
  %v988 = vld [vmem:[%s860 + $0x5f0] sm:$0xff]
  %v989 = vld [vmem:[%s860 + $0x14] sm:$0xff]
  %v990 = vld [vmem:[%s860 + $0x34] sm:$0xff]
  %v991 = vld [vmem:[%s860 + $0x54] sm:$0xff]
  %v992 = vld [vmem:[%s860 + $0x74] sm:$0xff]
  %v993 = vld [vmem:[%s860 + $0x94] sm:$0xff]
  %v994 = vld [vmem:[%s860 + $0xb4] sm:$0xff]
  %v995 = vld [vmem:[%s860 + $0xd4] sm:$0xff]
  %v996 = vld [vmem:[%s860 + $0xf4] sm:$0xff]
  %v997 = vld [vmem:[%s860 + $0x114] sm:$0xff]
  %v998 = vld [vmem:[%s860 + $0x134] sm:$0xff]
  %v999 = vld [vmem:[%s860 + $0x154] sm:$0xff]
  %v1000 = vld [vmem:[%s860 + $0x174] sm:$0xff]
  %v1001 = vld [vmem:[%s860 + $0x194] sm:$0xff]
  %v1002 = vld [vmem:[%s860 + $0x1b4] sm:$0xff]
  %v1003 = vld [vmem:[%s860 + $0x1d4] sm:$0xff]
  %v1004 = vld [vmem:[%s860 + $0x1f4] sm:$0xff]
  %v1005 = vld [vmem:[%s860 + $0x414] sm:$0xff]
  %v1006 = vld [vmem:[%s860 + $0x434] sm:$0xff]
  %v1007 = vld [vmem:[%s860 + $0x454] sm:$0xff]
  %v1008 = vld [vmem:[%s860 + $0x474] sm:$0xff]
  %v1009 = vld [vmem:[%s860 + $0x494] sm:$0xff]
  %v1010 = vld [vmem:[%s860 + $0x4b4] sm:$0xff]
  %v1011 = vld [vmem:[%s860 + $0x4d4] sm:$0xff]
  %v1012 = vld [vmem:[%s860 + $0x4f4] sm:$0xff]
  %v1013 = vld [vmem:[%s860 + $0x514] sm:$0xff]
  %v1014 = vld [vmem:[%s860 + $0x534] sm:$0xff]
  %v1015 = vld [vmem:[%s860 + $0x554] sm:$0xff]
  %v1016 = vld [vmem:[%s860 + $0x574] sm:$0xff]
  %v1017 = vld [vmem:[%s860 + $0x594] sm:$0xff]
  %v1018 = vld [vmem:[%s860 + $0x5b4] sm:$0xff]
  %v1019 = vld [vmem:[%s860 + $0x5d4] sm:$0xff]
  %v1020 = vld [vmem:[%s860 + $0x5f4] sm:$0xff]
  %s1021 = scalar_lea.vmem %s0, 64
  %v1022 = vld [vmem:[%s1021 + $0x2] sm:$0xff]
  %v1023 = vld [vmem:[%s1021 + $0xa] sm:$0xff]
  %v1024 = vld [vmem:[%s1021 + $0x22] sm:$0xff]
  %v1025 = vld [vmem:[%s1021 + $0x2a] sm:$0xff]
  %v1026 = vld [vmem:[%s1021 + $0x42] sm:$0xff]
  %v1027 = vld [vmem:[%s1021 + $0x4a] sm:$0xff]
  %v1028 = vld [vmem:[%s1021 + $0x62] sm:$0xff]
  %v1029 = vld [vmem:[%s1021 + $0x6a] sm:$0xff]
  %v1030 = vld [vmem:[%s1021 + $0x82] sm:$0xff]
  %v1031 = vld [vmem:[%s1021 + $0x8a] sm:$0xff]
  %v1032 = vld [vmem:[%s1021 + $0xa2] sm:$0xff]
  %v1033 = vld [vmem:[%s1021 + $0xaa] sm:$0xff]
  %v1034 = vld [vmem:[%s1021 + $0xc2] sm:$0xff]
  %v1035 = vld [vmem:[%s1021 + $0xca] sm:$0xff]
  %v1036 = vld [vmem:[%s1021 + $0xe2] sm:$0xff]
  %v1037 = vld [vmem:[%s1021 + $0xea] sm:$0xff]
  %v1038 = vld [vmem:[%s1021 + $0x102] sm:$0xff]
  %v1039 = vld [vmem:[%s1021 + $0x10a] sm:$0xff]
  %v1040 = vld [vmem:[%s1021 + $0x122] sm:$0xff]
  %v1041 = vld [vmem:[%s1021 + $0x12a] sm:$0xff]
  %v1042 = vld [vmem:[%s1021 + $0x142] sm:$0xff]
  %v1043 = vld [vmem:[%s1021 + $0x14a] sm:$0xff]
  %v1044 = vld [vmem:[%s1021 + $0x162] sm:$0xff]
  %v1045 = vld [vmem:[%s1021 + $0x16a] sm:$0xff]
  %v1046 = vld [vmem:[%s1021 + $0x182] sm:$0xff]
  %v1047 = vld [vmem:[%s1021 + $0x18a] sm:$0xff]
  %v1048 = vld [vmem:[%s1021 + $0x1a2] sm:$0xff]
  %v1049 = vld [vmem:[%s1021 + $0x1aa] sm:$0xff]
  %v1050 = vld [vmem:[%s1021 + $0x1c2] sm:$0xff]
  %v1051 = vld [vmem:[%s1021 + $0x1ca] sm:$0xff]
  %v1052 = vld [vmem:[%s1021 + $0x1e2] sm:$0xff]
  %v1053 = vld [vmem:[%s1021 + $0x1ea] sm:$0xff]
  %v1054 = vld [vmem:[%s1021 + $0x402] sm:$0xff]
  %v1055 = vld [vmem:[%s1021 + $0x40a] sm:$0xff]
  %v1056 = vld [vmem:[%s1021 + $0x422] sm:$0xff]
  %v1057 = vld [vmem:[%s1021 + $0x42a] sm:$0xff]
  %v1058 = vld [vmem:[%s1021 + $0x442] sm:$0xff]
  %v1059 = vld [vmem:[%s1021 + $0x44a] sm:$0xff]
  %v1060 = vld [vmem:[%s1021 + $0x462] sm:$0xff]
  %v1061 = vld [vmem:[%s1021 + $0x46a] sm:$0xff]
  %v1062 = vld [vmem:[%s1021 + $0x482] sm:$0xff]
  %v1063 = vld [vmem:[%s1021 + $0x48a] sm:$0xff]
  %v1064 = vld [vmem:[%s1021 + $0x4a2] sm:$0xff]
  %v1065 = vld [vmem:[%s1021 + $0x4aa] sm:$0xff]
  %v1066 = vld [vmem:[%s1021 + $0x4c2] sm:$0xff]
  %v1067 = vld [vmem:[%s1021 + $0x4ca] sm:$0xff]
  %v1068 = vld [vmem:[%s1021 + $0x4e2] sm:$0xff]
  %v1069 = vld [vmem:[%s1021 + $0x4ea] sm:$0xff]
  %v1070 = vld [vmem:[%s1021 + $0x502] sm:$0xff]
  %v1071 = vld [vmem:[%s1021 + $0x50a] sm:$0xff]
  %v1072 = vld [vmem:[%s1021 + $0x522] sm:$0xff]
  %v1073 = vld [vmem:[%s1021 + $0x52a] sm:$0xff]
  %v1074 = vld [vmem:[%s1021 + $0x542] sm:$0xff]
  %v1075 = vld [vmem:[%s1021 + $0x54a] sm:$0xff]
  %v1076 = vld [vmem:[%s1021 + $0x562] sm:$0xff]
  %v1077 = vld [vmem:[%s1021 + $0x56a] sm:$0xff]
  %v1078 = vld [vmem:[%s1021 + $0x582] sm:$0xff]
  %v1079 = vld [vmem:[%s1021 + $0x58a] sm:$0xff]
  %v1080 = vld [vmem:[%s1021 + $0x5a2] sm:$0xff]
  %v1081 = vld [vmem:[%s1021 + $0x5aa] sm:$0xff]
  %v1082 = vld [vmem:[%s1021 + $0x5c2] sm:$0xff]
  %v1083 = vld [vmem:[%s1021 + $0x5ca] sm:$0xff]
  %v1084 = vld [vmem:[%s1021 + $0x5e2] sm:$0xff]
  %v1085 = vld [vmem:[%s1021 + $0x5ea] sm:$0xff]
  %v1086 = vld [vmem:[%s1021 + $0x8] sm:$0xff]
  %v1087 = vld [vmem:[%s1021 + $0x10] sm:$0xff]
  %v1088 = vld [vmem:[%s1021 + $0x28] sm:$0xff]
  %v1089 = vld [vmem:[%s1021 + $0x30] sm:$0xff]
  %v1090 = vld [vmem:[%s1021 + $0x48] sm:$0xff]
  %v1091 = vld [vmem:[%s1021 + $0x50] sm:$0xff]
  %v1092 = vld [vmem:[%s1021 + $0x68] sm:$0xff]
  %v1093 = vld [vmem:[%s1021 + $0x70] sm:$0xff]
  %v1094 = vld [vmem:[%s1021 + $0x88] sm:$0xff]
  %v1095 = vld [vmem:[%s1021 + $0x90] sm:$0xff]
  %v1096 = vld [vmem:[%s1021 + $0xa8] sm:$0xff]
  %v1097 = vld [vmem:[%s1021 + $0xb0] sm:$0xff]
  %v1098 = vld [vmem:[%s1021 + $0xc8] sm:$0xff]
  %v1099 = vld [vmem:[%s1021 + $0xd0] sm:$0xff]
  %v1100 = vld [vmem:[%s1021 + $0xe8] sm:$0xff]
  %v1101 = vld [vmem:[%s1021 + $0xf0] sm:$0xff]
  %v1102 = vld [vmem:[%s1021 + $0x108] sm:$0xff]
  %v1103 = vld [vmem:[%s1021 + $0x110] sm:$0xff]
  %v1104 = vld [vmem:[%s1021 + $0x128] sm:$0xff]
  %v1105 = vld [vmem:[%s1021 + $0x130] sm:$0xff]
  %v1106 = vld [vmem:[%s1021 + $0x148] sm:$0xff]
  %v1107 = vld [vmem:[%s1021 + $0x150] sm:$0xff]
  %v1108 = vld [vmem:[%s1021 + $0x168] sm:$0xff]
  %v1109 = vld [vmem:[%s1021 + $0x170] sm:$0xff]
  %v1110 = vld [vmem:[%s1021 + $0x188] sm:$0xff]
  %v1111 = vld [vmem:[%s1021 + $0x190] sm:$0xff]
  %v1112 = vld [vmem:[%s1021 + $0x1a8] sm:$0xff]
  %v1113 = vld [vmem:[%s1021 + $0x1b0] sm:$0xff]
  %v1114 = vld [vmem:[%s1021 + $0x1c8] sm:$0xff]
  %v1115 = vld [vmem:[%s1021 + $0x1d0] sm:$0xff]
  %v1116 = vld [vmem:[%s1021 + $0x1e8] sm:$0xff]
  %v1117 = vld [vmem:[%s1021 + $0x1f0] sm:$0xff]
  %v1118 = vld [vmem:[%s1021 + $0x408] sm:$0xff]
  %v1119 = vld [vmem:[%s1021 + $0x410] sm:$0xff]
  %v1120 = vld [vmem:[%s1021 + $0x428] sm:$0xff]
  %v1121 = vld [vmem:[%s1021 + $0x430] sm:$0xff]
  %v1122 = vld [vmem:[%s1021 + $0x448] sm:$0xff]
  %v1123 = vld [vmem:[%s1021 + $0x450] sm:$0xff]
  %v1124 = vld [vmem:[%s1021 + $0x468] sm:$0xff]
  %v1125 = vld [vmem:[%s1021 + $0x470] sm:$0xff]
  %v1126 = vld [vmem:[%s1021 + $0x488] sm:$0xff]
  %v1127 = vld [vmem:[%s1021 + $0x490] sm:$0xff]
  %v1128 = vld [vmem:[%s1021 + $0x4a8] sm:$0xff]
  %v1129 = vld [vmem:[%s1021 + $0x4b0] sm:$0xff]
  %v1130 = vld [vmem:[%s1021 + $0x4c8] sm:$0xff]
  %v1131 = vld [vmem:[%s1021 + $0x4d0] sm:$0xff]
  %v1132 = vld [vmem:[%s1021 + $0x4e8] sm:$0xff]
  %v1133 = vld [vmem:[%s1021 + $0x4f0] sm:$0xff]
  %v1134 = vld [vmem:[%s1021 + $0x508] sm:$0xff]
  %v1135 = vld [vmem:[%s1021 + $0x510] sm:$0xff]
  %v1136 = vld [vmem:[%s1021 + $0x528] sm:$0xff]
  %v1137 = vld [vmem:[%s1021 + $0x530] sm:$0xff]
  %v1138 = vld [vmem:[%s1021 + $0x548] sm:$0xff]
  %v1139 = vld [vmem:[%s1021 + $0x550] sm:$0xff]
  %v1140 = vld [vmem:[%s1021 + $0x568] sm:$0xff]
  %v1141 = vld [vmem:[%s1021 + $0x570] sm:$0xff]
  %v1142 = vld [vmem:[%s1021 + $0x588] sm:$0xff]
  %v1143 = vld [vmem:[%s1021 + $0x590] sm:$0xff]
  %v1144 = vld [vmem:[%s1021 + $0x5a8] sm:$0xff]
  %v1145 = vld [vmem:[%s1021 + $0x5b0] sm:$0xff]
  %v1146 = vld [vmem:[%s1021 + $0x5c8] sm:$0xff]
  %v1147 = vld [vmem:[%s1021 + $0x5d0] sm:$0xff]
  %v1148 = vld [vmem:[%s1021 + $0x5e8] sm:$0xff]
  %v1149 = vld [vmem:[%s1021 + $0x5f0] sm:$0xff]
  %v1150 = vld [vmem:[%s1021 + $0xe] sm:$0xff]
  %v1151 = vld [vmem:[%s1021 + $0x16] sm:$0xff]
  %v1152 = vld [vmem:[%s1021 + $0x2e] sm:$0xff]
  %v1153 = vld [vmem:[%s1021 + $0x36] sm:$0xff]
  %v1154 = vld [vmem:[%s1021 + $0x4e] sm:$0xff]
  %v1155 = vld [vmem:[%s1021 + $0x56] sm:$0xff]
  %v1156 = vld [vmem:[%s1021 + $0x6e] sm:$0xff]
  %v1157 = vld [vmem:[%s1021 + $0x76] sm:$0xff]
  %v1158 = vld [vmem:[%s1021 + $0x8e] sm:$0xff]
  %v1159 = vld [vmem:[%s1021 + $0x96] sm:$0xff]
  %v1160 = vld [vmem:[%s1021 + $0xae] sm:$0xff]
  %v1161 = vld [vmem:[%s1021 + $0xb6] sm:$0xff]
  %v1162 = vld [vmem:[%s1021 + $0xce] sm:$0xff]
  %v1163 = vld [vmem:[%s1021 + $0xd6] sm:$0xff]
  %v1164 = vld [vmem:[%s1021 + $0xee] sm:$0xff]
  %v1165 = vld [vmem:[%s1021 + $0xf6] sm:$0xff]
  %v1166 = vld [vmem:[%s1021 + $0x10e] sm:$0xff]
  %v1167 = vld [vmem:[%s1021 + $0x116] sm:$0xff]
  %v1168 = vld [vmem:[%s1021 + $0x12e] sm:$0xff]
  %v1169 = vld [vmem:[%s1021 + $0x136] sm:$0xff]
  %v1170 = vld [vmem:[%s1021 + $0x14e] sm:$0xff]
  %v1171 = vld [vmem:[%s1021 + $0x156] sm:$0xff]
  %v1172 = vld [vmem:[%s1021 + $0x16e] sm:$0xff]
  %v1173 = vld [vmem:[%s1021 + $0x176] sm:$0xff]
  %v1174 = vld [vmem:[%s1021 + $0x18e] sm:$0xff]
  %v1175 = vld [vmem:[%s1021 + $0x196] sm:$0xff]
  %v1176 = vld [vmem:[%s1021 + $0x1ae] sm:$0xff]
  %v1177 = vld [vmem:[%s1021 + $0x1b6] sm:$0xff]
  %v1178 = vld [vmem:[%s1021 + $0x1ce] sm:$0xff]
  %v1179 = vld [vmem:[%s1021 + $0x1d6] sm:$0xff]
  %v1180 = vld [vmem:[%s1021 + $0x1ee] sm:$0xff]
  %v1181 = vld [vmem:[%s1021 + $0x1f6] sm:$0xff]
  %v1182 = vld [vmem:[%s1021 + $0x40e] sm:$0xff]
  %v1183 = vld [vmem:[%s1021 + $0x416] sm:$0xff]
  %v1184 = vld [vmem:[%s1021 + $0x42e] sm:$0xff]
  %v1185 = vld [vmem:[%s1021 + $0x436] sm:$0xff]
  %v1186 = vld [vmem:[%s1021 + $0x44e] sm:$0xff]
  %v1187 = vld [vmem:[%s1021 + $0x456] sm:$0xff]
  %v1188 = vld [vmem:[%s1021 + $0x46e] sm:$0xff]
  %v1189 = vld [vmem:[%s1021 + $0x476] sm:$0xff]
  %v1190 = vld [vmem:[%s1021 + $0x48e] sm:$0xff]
  %v1191 = vld [vmem:[%s1021 + $0x496] sm:$0xff]
  %v1192 = vld [vmem:[%s1021 + $0x4ae] sm:$0xff]
  %v1193 = vld [vmem:[%s1021 + $0x4b6] sm:$0xff]
  %v1194 = vld [vmem:[%s1021 + $0x4ce] sm:$0xff]
  %v1195 = vld [vmem:[%s1021 + $0x4d6] sm:$0xff]
  %v1196 = vld [vmem:[%s1021 + $0x4ee] sm:$0xff]
  %v1197 = vld [vmem:[%s1021 + $0x4f6] sm:$0xff]
  %v1198 = vld [vmem:[%s1021 + $0x50e] sm:$0xff]
  %v1199 = vld [vmem:[%s1021 + $0x516] sm:$0xff]
  %v1200 = vld [vmem:[%s1021 + $0x52e] sm:$0xff]
  %v1201 = vld [vmem:[%s1021 + $0x536] sm:$0xff]
  %v1202 = vld [vmem:[%s1021 + $0x54e] sm:$0xff]
  %v1203 = vld [vmem:[%s1021 + $0x556] sm:$0xff]
  %v1204 = vld [vmem:[%s1021 + $0x56e] sm:$0xff]
  %v1205 = vld [vmem:[%s1021 + $0x576] sm:$0xff]
  %v1206 = vld [vmem:[%s1021 + $0x58e] sm:$0xff]
  %v1207 = vld [vmem:[%s1021 + $0x596] sm:$0xff]
  %v1208 = vld [vmem:[%s1021 + $0x5ae] sm:$0xff]
  %v1209 = vld [vmem:[%s1021 + $0x5b6] sm:$0xff]
  %v1210 = vld [vmem:[%s1021 + $0x5ce] sm:$0xff]
  %v1211 = vld [vmem:[%s1021 + $0x5d6] sm:$0xff]
  %v1212 = vld [vmem:[%s1021 + $0x5ee] sm:$0xff]
  %v1213 = vld [vmem:[%s1021 + $0x5f6] sm:$0xff]
  %v1214 = vld [vmem:[%s217 + $0x2] sm:$0xff]
  %v1215 = vld [vmem:[%s217 + $0x22] sm:$0xff]
  %v1216 = vld [vmem:[%s217 + $0x42] sm:$0xff]
  %v1217 = vld [vmem:[%s217 + $0x62] sm:$0xff]
  %v1218 = vld [vmem:[%s217 + $0x82] sm:$0xff]
  %v1219 = vld [vmem:[%s217 + $0xa2] sm:$0xff]
  %v1220 = vld [vmem:[%s217 + $0xc2] sm:$0xff]
  %v1221 = vld [vmem:[%s217 + $0xe2] sm:$0xff]
  %v1222 = vld [vmem:[%s217 + $0x102] sm:$0xff]
  %v1223 = vld [vmem:[%s217 + $0x122] sm:$0xff]
  %v1224 = vld [vmem:[%s217 + $0x142] sm:$0xff]
  %v1225 = vld [vmem:[%s217 + $0x162] sm:$0xff]
  %v1226 = vld [vmem:[%s217 + $0x182] sm:$0xff]
  %v1227 = vld [vmem:[%s217 + $0x1a2] sm:$0xff]
  %v1228 = vld [vmem:[%s217 + $0x1c2] sm:$0xff]
  %v1229 = vld [vmem:[%s217 + $0x1e2] sm:$0xff]
  %v1230 = vld [vmem:[%s217 + $0x402] sm:$0xff]
  %v1231 = vld [vmem:[%s217 + $0x422] sm:$0xff]
  %v1232 = vld [vmem:[%s217 + $0x442] sm:$0xff]
  %v1233 = vld [vmem:[%s217 + $0x462] sm:$0xff]
  %v1234 = vld [vmem:[%s217 + $0x482] sm:$0xff]
  %v1235 = vld [vmem:[%s217 + $0x4a2] sm:$0xff]
  %v1236 = vld [vmem:[%s217 + $0x4c2] sm:$0xff]
  %v1237 = vld [vmem:[%s217 + $0x4e2] sm:$0xff]
  %v1238 = vld [vmem:[%s217 + $0x502] sm:$0xff]
  %v1239 = vld [vmem:[%s217 + $0x522] sm:$0xff]
  %v1240 = vld [vmem:[%s217 + $0x542] sm:$0xff]
  %v1241 = vld [vmem:[%s217 + $0x562] sm:$0xff]
  %v1242 = vld [vmem:[%s217 + $0x582] sm:$0xff]
  %v1243 = vld [vmem:[%s217 + $0x5a2] sm:$0xff]
  %v1244 = vld [vmem:[%s217 + $0x5c2] sm:$0xff]
  %v1245 = vld [vmem:[%s217 + $0x5e2] sm:$0xff]
  %v1246 = vld [vmem:[%s217 + $0x16] sm:$0xff]
  %v1247 = vld [vmem:[%s217 + $0x36] sm:$0xff]
  %v1248 = vld [vmem:[%s217 + $0x56] sm:$0xff]
  %v1249 = vld [vmem:[%s217 + $0x76] sm:$0xff]
  %v1250 = vld [vmem:[%s217 + $0x96] sm:$0xff]
  %v1251 = vld [vmem:[%s217 + $0xb6] sm:$0xff]
  %v1252 = vld [vmem:[%s217 + $0xd6] sm:$0xff]
  %v1253 = vld [vmem:[%s217 + $0xf6] sm:$0xff]
  %v1254 = vld [vmem:[%s217 + $0x116] sm:$0xff]
  %v1255 = vld [vmem:[%s217 + $0x136] sm:$0xff]
  %v1256 = vld [vmem:[%s217 + $0x156] sm:$0xff]
  %v1257 = vld [vmem:[%s217 + $0x176] sm:$0xff]
  %v1258 = vld [vmem:[%s217 + $0x196] sm:$0xff]
  %v1259 = vld [vmem:[%s217 + $0x1b6] sm:$0xff]
  %v1260 = vld [vmem:[%s217 + $0x1d6] sm:$0xff]
  %v1261 = vld [vmem:[%s217 + $0x1f6] sm:$0xff]
  %v1262 = vld [vmem:[%s217 + $0x416] sm:$0xff]
  %v1263 = vld [vmem:[%s217 + $0x436] sm:$0xff]
  %v1264 = vld [vmem:[%s217 + $0x456] sm:$0xff]
  %v1265 = vld [vmem:[%s217 + $0x476] sm:$0xff]
  %v1266 = vld [vmem:[%s217 + $0x496] sm:$0xff]
  %v1267 = vld [vmem:[%s217 + $0x4b6] sm:$0xff]
  %v1268 = vld [vmem:[%s217 + $0x4d6] sm:$0xff]
  %v1269 = vld [vmem:[%s217 + $0x4f6] sm:$0xff]
  %v1270 = vld [vmem:[%s217 + $0x516] sm:$0xff]
  %v1271 = vld [vmem:[%s217 + $0x536] sm:$0xff]
  %v1272 = vld [vmem:[%s217 + $0x556] sm:$0xff]
  %v1273 = vld [vmem:[%s217 + $0x576] sm:$0xff]
  %v1274 = vld [vmem:[%s217 + $0x596] sm:$0xff]
  %v1275 = vld [vmem:[%s217 + $0x5b6] sm:$0xff]
  %v1276 = vld [vmem:[%s217 + $0x5d6] sm:$0xff]
  %v1277 = vld [vmem:[%s217 + $0x5f6] sm:$0xff]
  %s1278 = scalar_lea.vmem %s0, 448
  %v1279 = vld [vmem:[%s1278 + $0x2] sm:$0xff]
  %v1280 = vld [vmem:[%s1278 + $0xa] sm:$0xff]
  %v1281 = vld [vmem:[%s1278 + $0x22] sm:$0xff]
  %v1282 = vld [vmem:[%s1278 + $0x2a] sm:$0xff]
  %v1283 = vld [vmem:[%s1278 + $0x42] sm:$0xff]
  %v1284 = vld [vmem:[%s1278 + $0x4a] sm:$0xff]
  %v1285 = vld [vmem:[%s1278 + $0x62] sm:$0xff]
  %v1286 = vld [vmem:[%s1278 + $0x6a] sm:$0xff]
  %v1287 = vld [vmem:[%s1278 + $0x82] sm:$0xff]
  %v1288 = vld [vmem:[%s1278 + $0x8a] sm:$0xff]
  %v1289 = vld [vmem:[%s1278 + $0xa2] sm:$0xff]
  %v1290 = vld [vmem:[%s1278 + $0xaa] sm:$0xff]
  %v1291 = vld [vmem:[%s1278 + $0xc2] sm:$0xff]
  %v1292 = vld [vmem:[%s1278 + $0xca] sm:$0xff]
  %v1293 = vld [vmem:[%s1278 + $0xe2] sm:$0xff]
  %v1294 = vld [vmem:[%s1278 + $0xea] sm:$0xff]
  %v1295 = vld [vmem:[%s1278 + $0x102] sm:$0xff]
  %v1296 = vld [vmem:[%s1278 + $0x10a] sm:$0xff]
  %v1297 = vld [vmem:[%s1278 + $0x122] sm:$0xff]
  %v1298 = vld [vmem:[%s1278 + $0x12a] sm:$0xff]
  %v1299 = vld [vmem:[%s1278 + $0x142] sm:$0xff]
  %v1300 = vld [vmem:[%s1278 + $0x14a] sm:$0xff]
  %v1301 = vld [vmem:[%s1278 + $0x162] sm:$0xff]
  %v1302 = vld [vmem:[%s1278 + $0x16a] sm:$0xff]
  %v1303 = vld [vmem:[%s1278 + $0x182] sm:$0xff]
  %v1304 = vld [vmem:[%s1278 + $0x18a] sm:$0xff]
  %v1305 = vld [vmem:[%s1278 + $0x1a2] sm:$0xff]
  %v1306 = vld [vmem:[%s1278 + $0x1aa] sm:$0xff]
  %v1307 = vld [vmem:[%s1278 + $0x1c2] sm:$0xff]
  %v1308 = vld [vmem:[%s1278 + $0x1ca] sm:$0xff]
  %v1309 = vld [vmem:[%s1278 + $0x1e2] sm:$0xff]
  %v1310 = vld [vmem:[%s1278 + $0x1ea] sm:$0xff]
  %v1311 = vld [vmem:[%s1278 + $0x402] sm:$0xff]
  %v1312 = vld [vmem:[%s1278 + $0x40a] sm:$0xff]
  %v1313 = vld [vmem:[%s1278 + $0x422] sm:$0xff]
  %v1314 = vld [vmem:[%s1278 + $0x42a] sm:$0xff]
  %v1315 = vld [vmem:[%s1278 + $0x442] sm:$0xff]
  %v1316 = vld [vmem:[%s1278 + $0x44a] sm:$0xff]
  %v1317 = vld [vmem:[%s1278 + $0x462] sm:$0xff]
  %v1318 = vld [vmem:[%s1278 + $0x46a] sm:$0xff]
  %v1319 = vld [vmem:[%s1278 + $0x482] sm:$0xff]
  %v1320 = vld [vmem:[%s1278 + $0x48a] sm:$0xff]
  %v1321 = vld [vmem:[%s1278 + $0x4a2] sm:$0xff]
  %v1322 = vld [vmem:[%s1278 + $0x4aa] sm:$0xff]
  %v1323 = vld [vmem:[%s1278 + $0x4c2] sm:$0xff]
  %v1324 = vld [vmem:[%s1278 + $0x4ca] sm:$0xff]
  %v1325 = vld [vmem:[%s1278 + $0x4e2] sm:$0xff]
  %v1326 = vld [vmem:[%s1278 + $0x4ea] sm:$0xff]
  %v1327 = vld [vmem:[%s1278 + $0x502] sm:$0xff]
  %v1328 = vld [vmem:[%s1278 + $0x50a] sm:$0xff]
  %v1329 = vld [vmem:[%s1278 + $0x522] sm:$0xff]
  %v1330 = vld [vmem:[%s1278 + $0x52a] sm:$0xff]
  %v1331 = vld [vmem:[%s1278 + $0x542] sm:$0xff]
  %v1332 = vld [vmem:[%s1278 + $0x54a] sm:$0xff]
  %v1333 = vld [vmem:[%s1278 + $0x562] sm:$0xff]
  %v1334 = vld [vmem:[%s1278 + $0x56a] sm:$0xff]
  %v1335 = vld [vmem:[%s1278 + $0x582] sm:$0xff]
  %v1336 = vld [vmem:[%s1278 + $0x58a] sm:$0xff]
  %v1337 = vld [vmem:[%s1278 + $0x5a2] sm:$0xff]
  %v1338 = vld [vmem:[%s1278 + $0x5aa] sm:$0xff]
  %v1339 = vld [vmem:[%s1278 + $0x5c2] sm:$0xff]
  %v1340 = vld [vmem:[%s1278 + $0x5ca] sm:$0xff]
  %v1341 = vld [vmem:[%s1278 + $0x5e2] sm:$0xff]
  %v1342 = vld [vmem:[%s1278 + $0x5ea] sm:$0xff]
  %v1343 = vld [vmem:[%s1278 + $0x8] sm:$0xff]
  %v1344 = vld [vmem:[%s1278 + $0x10] sm:$0xff]
  %v1345 = vld [vmem:[%s1278 + $0x28] sm:$0xff]
  %v1346 = vld [vmem:[%s1278 + $0x30] sm:$0xff]
  %v1347 = vld [vmem:[%s1278 + $0x48] sm:$0xff]
  %v1348 = vld [vmem:[%s1278 + $0x50] sm:$0xff]
  %v1349 = vld [vmem:[%s1278 + $0x68] sm:$0xff]
  %v1350 = vld [vmem:[%s1278 + $0x70] sm:$0xff]
  %v1351 = vld [vmem:[%s1278 + $0x88] sm:$0xff]
  %v1352 = vld [vmem:[%s1278 + $0x90] sm:$0xff]
  %v1353 = vld [vmem:[%s1278 + $0xa8] sm:$0xff]
  %v1354 = vld [vmem:[%s1278 + $0xb0] sm:$0xff]
  %v1355 = vld [vmem:[%s1278 + $0xc8] sm:$0xff]
  %v1356 = vld [vmem:[%s1278 + $0xd0] sm:$0xff]
  %v1357 = vld [vmem:[%s1278 + $0xe8] sm:$0xff]
  %v1358 = vld [vmem:[%s1278 + $0xf0] sm:$0xff]
  %v1359 = vld [vmem:[%s1278 + $0x108] sm:$0xff]
  %v1360 = vld [vmem:[%s1278 + $0x110] sm:$0xff]
  %v1361 = vld [vmem:[%s1278 + $0x128] sm:$0xff]
  %v1362 = vld [vmem:[%s1278 + $0x130] sm:$0xff]
  %v1363 = vld [vmem:[%s1278 + $0x148] sm:$0xff]
  %v1364 = vld [vmem:[%s1278 + $0x150] sm:$0xff]
  %v1365 = vld [vmem:[%s1278 + $0x168] sm:$0xff]
  %v1366 = vld [vmem:[%s1278 + $0x170] sm:$0xff]
  %v1367 = vld [vmem:[%s1278 + $0x188] sm:$0xff]
  %v1368 = vld [vmem:[%s1278 + $0x190] sm:$0xff]
  %v1369 = vld [vmem:[%s1278 + $0x1a8] sm:$0xff]
  %v1370 = vld [vmem:[%s1278 + $0x1b0] sm:$0xff]
  %v1371 = vld [vmem:[%s1278 + $0x1c8] sm:$0xff]
  %v1372 = vld [vmem:[%s1278 + $0x1d0] sm:$0xff]
  %v1373 = vld [vmem:[%s1278 + $0x1e8] sm:$0xff]
  %v1374 = vld [vmem:[%s1278 + $0x1f0] sm:$0xff]
  %v1375 = vld [vmem:[%s1278 + $0x408] sm:$0xff]
  %v1376 = vld [vmem:[%s1278 + $0x410] sm:$0xff]
  %v1377 = vld [vmem:[%s1278 + $0x428] sm:$0xff]
  %v1378 = vld [vmem:[%s1278 + $0x430] sm:$0xff]
  %v1379 = vld [vmem:[%s1278 + $0x448] sm:$0xff]
  %v1380 = vld [vmem:[%s1278 + $0x450] sm:$0xff]
  %v1381 = vld [vmem:[%s1278 + $0x468] sm:$0xff]
  %v1382 = vld [vmem:[%s1278 + $0x470] sm:$0xff]
  %v1383 = vld [vmem:[%s1278 + $0x488] sm:$0xff]
  %v1384 = vld [vmem:[%s1278 + $0x490] sm:$0xff]
  %v1385 = vld [vmem:[%s1278 + $0x4a8] sm:$0xff]
  %v1386 = vld [vmem:[%s1278 + $0x4b0] sm:$0xff]
  %v1387 = vld [vmem:[%s1278 + $0x4c8] sm:$0xff]
  %v1388 = vld [vmem:[%s1278 + $0x4d0] sm:$0xff]
  %v1389 = vld [vmem:[%s1278 + $0x4e8] sm:$0xff]
  %v1390 = vld [vmem:[%s1278 + $0x4f0] sm:$0xff]
  %v1391 = vld [vmem:[%s1278 + $0x508] sm:$0xff]
  %v1392 = vld [vmem:[%s1278 + $0x510] sm:$0xff]
  %v1393 = vld [vmem:[%s1278 + $0x528] sm:$0xff]
  %v1394 = vld [vmem:[%s1278 + $0x530] sm:$0xff]
  %v1395 = vld [vmem:[%s1278 + $0x548] sm:$0xff]
  %v1396 = vld [vmem:[%s1278 + $0x550] sm:$0xff]
  %v1397 = vld [vmem:[%s1278 + $0x568] sm:$0xff]
  %v1398 = vld [vmem:[%s1278 + $0x570] sm:$0xff]
  %v1399 = vld [vmem:[%s1278 + $0x588] sm:$0xff]
  %v1400 = vld [vmem:[%s1278 + $0x590] sm:$0xff]
  %v1401 = vld [vmem:[%s1278 + $0x5a8] sm:$0xff]
  %v1402 = vld [vmem:[%s1278 + $0x5b0] sm:$0xff]
  %v1403 = vld [vmem:[%s1278 + $0x5c8] sm:$0xff]
  %v1404 = vld [vmem:[%s1278 + $0x5d0] sm:$0xff]
  %v1405 = vld [vmem:[%s1278 + $0x5e8] sm:$0xff]
  %v1406 = vld [vmem:[%s1278 + $0x5f0] sm:$0xff]
  %v1407 = vld [vmem:[%s1278 + $0xe] sm:$0xff]
  %v1408 = vld [vmem:[%s1278 + $0x16] sm:$0xff]
  %v1409 = vld [vmem:[%s1278 + $0x2e] sm:$0xff]
  %v1410 = vld [vmem:[%s1278 + $0x36] sm:$0xff]
  %v1411 = vld [vmem:[%s1278 + $0x4e] sm:$0xff]
  %v1412 = vld [vmem:[%s1278 + $0x56] sm:$0xff]
  %v1413 = vld [vmem:[%s1278 + $0x6e] sm:$0xff]
  %v1414 = vld [vmem:[%s1278 + $0x76] sm:$0xff]
  %v1415 = vld [vmem:[%s1278 + $0x8e] sm:$0xff]
  %v1416 = vld [vmem:[%s1278 + $0x96] sm:$0xff]
  %v1417 = vld [vmem:[%s1278 + $0xae] sm:$0xff]
  %v1418 = vld [vmem:[%s1278 + $0xb6] sm:$0xff]
  %v1419 = vld [vmem:[%s1278 + $0xce] sm:$0xff]
  %v1420 = vld [vmem:[%s1278 + $0xd6] sm:$0xff]
  %v1421 = vld [vmem:[%s1278 + $0xee] sm:$0xff]
  %v1422 = vld [vmem:[%s1278 + $0xf6] sm:$0xff]
  %v1423 = vld [vmem:[%s1278 + $0x10e] sm:$0xff]
  %v1424 = vld [vmem:[%s1278 + $0x116] sm:$0xff]
  %v1425 = vld [vmem:[%s1278 + $0x12e] sm:$0xff]
  %v1426 = vld [vmem:[%s1278 + $0x136] sm:$0xff]
  %v1427 = vld [vmem:[%s1278 + $0x14e] sm:$0xff]
  %v1428 = vld [vmem:[%s1278 + $0x156] sm:$0xff]
  %v1429 = vld [vmem:[%s1278 + $0x16e] sm:$0xff]
  %v1430 = vld [vmem:[%s1278 + $0x176] sm:$0xff]
  %v1431 = vld [vmem:[%s1278 + $0x18e] sm:$0xff]
  %v1432 = vld [vmem:[%s1278 + $0x196] sm:$0xff]
  %v1433 = vld [vmem:[%s1278 + $0x1ae] sm:$0xff]
  %v1434 = vld [vmem:[%s1278 + $0x1b6] sm:$0xff]
  %v1435 = vld [vmem:[%s1278 + $0x1ce] sm:$0xff]
  %v1436 = vld [vmem:[%s1278 + $0x1d6] sm:$0xff]
  %v1437 = vld [vmem:[%s1278 + $0x1ee] sm:$0xff]
  %v1438 = vld [vmem:[%s1278 + $0x1f6] sm:$0xff]
  %v1439 = vld [vmem:[%s1278 + $0x40e] sm:$0xff]
  %v1440 = vld [vmem:[%s1278 + $0x416] sm:$0xff]
  %v1441 = vld [vmem:[%s1278 + $0x42e] sm:$0xff]
  %v1442 = vld [vmem:[%s1278 + $0x436] sm:$0xff]
  %v1443 = vld [vmem:[%s1278 + $0x44e] sm:$0xff]
  %v1444 = vld [vmem:[%s1278 + $0x456] sm:$0xff]
  %v1445 = vld [vmem:[%s1278 + $0x46e] sm:$0xff]
  %v1446 = vld [vmem:[%s1278 + $0x476] sm:$0xff]
  %v1447 = vld [vmem:[%s1278 + $0x48e] sm:$0xff]
  %v1448 = vld [vmem:[%s1278 + $0x496] sm:$0xff]
  %v1449 = vld [vmem:[%s1278 + $0x4ae] sm:$0xff]
  %v1450 = vld [vmem:[%s1278 + $0x4b6] sm:$0xff]
  %v1451 = vld [vmem:[%s1278 + $0x4ce] sm:$0xff]
  %v1452 = vld [vmem:[%s1278 + $0x4d6] sm:$0xff]
  %v1453 = vld [vmem:[%s1278 + $0x4ee] sm:$0xff]
  %v1454 = vld [vmem:[%s1278 + $0x4f6] sm:$0xff]
  %v1455 = vld [vmem:[%s1278 + $0x50e] sm:$0xff]
  %v1456 = vld [vmem:[%s1278 + $0x516] sm:$0xff]
  %v1457 = vld [vmem:[%s1278 + $0x52e] sm:$0xff]
  %v1458 = vld [vmem:[%s1278 + $0x536] sm:$0xff]
  %v1459 = vld [vmem:[%s1278 + $0x54e] sm:$0xff]
  %v1460 = vld [vmem:[%s1278 + $0x556] sm:$0xff]
  %v1461 = vld [vmem:[%s1278 + $0x56e] sm:$0xff]
  %v1462 = vld [vmem:[%s1278 + $0x576] sm:$0xff]
  %v1463 = vld [vmem:[%s1278 + $0x58e] sm:$0xff]
  %v1464 = vld [vmem:[%s1278 + $0x596] sm:$0xff]
  %v1465 = vld [vmem:[%s1278 + $0x5ae] sm:$0xff]
  %v1466 = vld [vmem:[%s1278 + $0x5b6] sm:$0xff]
  %v1467 = vld [vmem:[%s1278 + $0x5ce] sm:$0xff]
  %v1468 = vld [vmem:[%s1278 + $0x5d6] sm:$0xff]
  %v1469 = vld [vmem:[%s1278 + $0x5ee] sm:$0xff]
  %v1470 = vld [vmem:[%s1278 + $0x5f6] sm:$0xff]
  %v1471 = vld [vmem:[%s0] sm:$0xff]
  %v1472 = vld [vmem:[%s0 + $0x8] sm:$0xff]
  %v1473 = vld [vmem:[%s0 + $0x20] sm:$0xff]
  %v1474 = vld [vmem:[%s0 + $0x28] sm:$0xff]
  %v1475 = vld [vmem:[%s0 + $0x40] sm:$0xff]
  %v1476 = vld [vmem:[%s0 + $0x48] sm:$0xff]
  %v1477 = vld [vmem:[%s0 + $0x60] sm:$0xff]
  %v1478 = vld [vmem:[%s0 + $0x68] sm:$0xff]
  %v1479 = vld [vmem:[%s0 + $0x80] sm:$0xff]
  %v1480 = vld [vmem:[%s0 + $0x88] sm:$0xff]
  %v1481 = vld [vmem:[%s0 + $0xa0] sm:$0xff]
  %v1482 = vld [vmem:[%s0 + $0xa8] sm:$0xff]
  %v1483 = vld [vmem:[%s0 + $0xc0] sm:$0xff]
  %v1484 = vld [vmem:[%s0 + $0xc8] sm:$0xff]
  %v1485 = vld [vmem:[%s0 + $0xe0] sm:$0xff]
  %v1486 = vld [vmem:[%s0 + $0xe8] sm:$0xff]
  %v1487 = vld [vmem:[%s0 + $0x100] sm:$0xff]
  %v1488 = vld [vmem:[%s0 + $0x108] sm:$0xff]
  %v1489 = vld [vmem:[%s0 + $0x120] sm:$0xff]
  %v1490 = vld [vmem:[%s0 + $0x128] sm:$0xff]
  %v1491 = vld [vmem:[%s0 + $0x140] sm:$0xff]
  %v1492 = vld [vmem:[%s0 + $0x148] sm:$0xff]
  %v1493 = vld [vmem:[%s0 + $0x160] sm:$0xff]
  %v1494 = vld [vmem:[%s0 + $0x168] sm:$0xff]
  %v1495 = vld [vmem:[%s0 + $0x180] sm:$0xff]
  %v1496 = vld [vmem:[%s0 + $0x188] sm:$0xff]
  %v1497 = vld [vmem:[%s0 + $0x1a0] sm:$0xff]
  %v1498 = vld [vmem:[%s0 + $0x1a8] sm:$0xff]
  %v1499 = vld [vmem:[%s0 + $0x1c0] sm:$0xff]
  %v1500 = vld [vmem:[%s0 + $0x1c8] sm:$0xff]
  %v1501 = vld [vmem:[%s0 + $0x1e0] sm:$0xff]
  %v1502 = vld [vmem:[%s0 + $0x1e8] sm:$0xff]
  %v1503 = vld [vmem:[%s0 + $0x400] sm:$0xff]
  %v1504 = vld [vmem:[%s0 + $0x408] sm:$0xff]
  %v1505 = vld [vmem:[%s0 + $0x420] sm:$0xff]
  %v1506 = vld [vmem:[%s0 + $0x428] sm:$0xff]
  %v1507 = vld [vmem:[%s0 + $0x440] sm:$0xff]
  %v1508 = vld [vmem:[%s0 + $0x448] sm:$0xff]
  %v1509 = vld [vmem:[%s0 + $0x460] sm:$0xff]
  %v1510 = vld [vmem:[%s0 + $0x468] sm:$0xff]
  %v1511 = vld [vmem:[%s0 + $0x480] sm:$0xff]
  %v1512 = vld [vmem:[%s0 + $0x488] sm:$0xff]
  %v1513 = vld [vmem:[%s0 + $0x4a0] sm:$0xff]
  %v1514 = vld [vmem:[%s0 + $0x4a8] sm:$0xff]
  %v1515 = vld [vmem:[%s0 + $0x4c0] sm:$0xff]
  %v1516 = vld [vmem:[%s0 + $0x4c8] sm:$0xff]
  %v1517 = vld [vmem:[%s0 + $0x4e0] sm:$0xff]
  %v1518 = vld [vmem:[%s0 + $0x4e8] sm:$0xff]
  %v1519 = vld [vmem:[%s0 + $0x500] sm:$0xff]
  %v1520 = vld [vmem:[%s0 + $0x508] sm:$0xff]
  %v1521 = vld [vmem:[%s0 + $0x520] sm:$0xff]
  %v1522 = vld [vmem:[%s0 + $0x528] sm:$0xff]
  %v1523 = vld [vmem:[%s0 + $0x540] sm:$0xff]
  %v1524 = vld [vmem:[%s0 + $0x548] sm:$0xff]
  %v1525 = vld [vmem:[%s0 + $0x560] sm:$0xff]
  %v1526 = vld [vmem:[%s0 + $0x568] sm:$0xff]
  %v1527 = vld [vmem:[%s0 + $0x580] sm:$0xff]
  %v1528 = vld [vmem:[%s0 + $0x588] sm:$0xff]
  %v1529 = vld [vmem:[%s0 + $0x5a0] sm:$0xff]
  %v1530 = vld [vmem:[%s0 + $0x5a8] sm:$0xff]
  %v1531 = vld [vmem:[%s0 + $0x5c0] sm:$0xff]
  %v1532 = vld [vmem:[%s0 + $0x5c8] sm:$0xff]
  %v1533 = vld [vmem:[%s0 + $0x5e0] sm:$0xff]
  %v1534 = vld [vmem:[%s0 + $0x5e8] sm:$0xff]
  %v1535 = vld [vmem:[%s0 + $0x10] sm:$0xff]
  %v1536 = vld [vmem:[%s0 + $0x30] sm:$0xff]
  %v1537 = vld [vmem:[%s0 + $0x50] sm:$0xff]
  %v1538 = vld [vmem:[%s0 + $0x70] sm:$0xff]
  %v1539 = vld [vmem:[%s0 + $0x90] sm:$0xff]
  %v1540 = vld [vmem:[%s0 + $0xb0] sm:$0xff]
  %v1541 = vld [vmem:[%s0 + $0xd0] sm:$0xff]
  %v1542 = vld [vmem:[%s0 + $0xf0] sm:$0xff]
  %v1543 = vld [vmem:[%s0 + $0x110] sm:$0xff]
  %v1544 = vld [vmem:[%s0 + $0x130] sm:$0xff]
  %v1545 = vld [vmem:[%s0 + $0x150] sm:$0xff]
  %v1546 = vld [vmem:[%s0 + $0x170] sm:$0xff]
  %v1547 = vld [vmem:[%s0 + $0x190] sm:$0xff]
  %v1548 = vld [vmem:[%s0 + $0x1b0] sm:$0xff]
  %v1549 = vld [vmem:[%s0 + $0x1d0] sm:$0xff]
  %v1550 = vld [vmem:[%s0 + $0x1f0] sm:$0xff]
  %v1551 = vld [vmem:[%s0 + $0x410] sm:$0xff]
  %v1552 = vld [vmem:[%s0 + $0x430] sm:$0xff]
  %v1553 = vld [vmem:[%s0 + $0x450] sm:$0xff]
  %v1554 = vld [vmem:[%s0 + $0x470] sm:$0xff]
  %v1555 = vld [vmem:[%s0 + $0x490] sm:$0xff]
  %v1556 = vld [vmem:[%s0 + $0x4b0] sm:$0xff]
  %v1557 = vld [vmem:[%s0 + $0x4d0] sm:$0xff]
  %v1558 = vld [vmem:[%s0 + $0x4f0] sm:$0xff]
  %v1559 = vld [vmem:[%s0 + $0x510] sm:$0xff]
  %v1560 = vld [vmem:[%s0 + $0x530] sm:$0xff]
  %v1561 = vld [vmem:[%s0 + $0x550] sm:$0xff]
  %v1562 = vld [vmem:[%s0 + $0x570] sm:$0xff]
  %v1563 = vld [vmem:[%s0 + $0x590] sm:$0xff]
  %v1564 = vld [vmem:[%s0 + $0x5b0] sm:$0xff]
  %v1565 = vld [vmem:[%s0 + $0x5d0] sm:$0xff]
  %v1566 = vld [vmem:[%s0 + $0x5f0] sm:$0xff]
  %v1567 = vld [vmem:[%s0 + $0x18] sm:$0xff]
  %v1568 = vld [vmem:[%s0 + $0x38] sm:$0xff]
  %v1569 = vld [vmem:[%s0 + $0x58] sm:$0xff]
  %v1570 = vld [vmem:[%s0 + $0x78] sm:$0xff]
  %v1571 = vld [vmem:[%s0 + $0x98] sm:$0xff]
  %v1572 = vld [vmem:[%s0 + $0xb8] sm:$0xff]
  %v1573 = vld [vmem:[%s0 + $0xd8] sm:$0xff]
  %v1574 = vld [vmem:[%s0 + $0xf8] sm:$0xff]
  %v1575 = vld [vmem:[%s0 + $0x118] sm:$0xff]
  %v1576 = vld [vmem:[%s0 + $0x138] sm:$0xff]
  %v1577 = vld [vmem:[%s0 + $0x158] sm:$0xff]
  %v1578 = vld [vmem:[%s0 + $0x178] sm:$0xff]
  %v1579 = vld [vmem:[%s0 + $0x198] sm:$0xff]
  %v1580 = vld [vmem:[%s0 + $0x1b8] sm:$0xff]
  %v1581 = vld [vmem:[%s0 + $0x1d8] sm:$0xff]
  %v1582 = vld [vmem:[%s0 + $0x1f8] sm:$0xff]
  %v1583 = vld [vmem:[%s0 + $0x418] sm:$0xff]
  %v1584 = vld [vmem:[%s0 + $0x438] sm:$0xff]
  %v1585 = vld [vmem:[%s0 + $0x458] sm:$0xff]
  %v1586 = vld [vmem:[%s0 + $0x478] sm:$0xff]
  %v1587 = vld [vmem:[%s0 + $0x498] sm:$0xff]
  %v1588 = vld [vmem:[%s0 + $0x4b8] sm:$0xff]
  %v1589 = vld [vmem:[%s0 + $0x4d8] sm:$0xff]
  %v1590 = vld [vmem:[%s0 + $0x4f8] sm:$0xff]
  %v1591 = vld [vmem:[%s0 + $0x518] sm:$0xff]
  %v1592 = vld [vmem:[%s0 + $0x538] sm:$0xff]
  %v1593 = vld [vmem:[%s0 + $0x558] sm:$0xff]
  %v1594 = vld [vmem:[%s0 + $0x578] sm:$0xff]
  %v1595 = vld [vmem:[%s0 + $0x598] sm:$0xff]
  %v1596 = vld [vmem:[%s0 + $0x5b8] sm:$0xff]
  %v1597 = vld [vmem:[%s0 + $0x5d8] sm:$0xff]
  %v1598 = vld [vmem:[%s0 + $0x5f8] sm:$0xff]
  %v1599 = vld [vmem:[%s217] sm:$0xff]
  %v1600 = vld [vmem:[%s217 + $0x20] sm:$0xff]
  %v1601 = vld [vmem:[%s217 + $0x40] sm:$0xff]
  %v1602 = vld [vmem:[%s217 + $0x60] sm:$0xff]
  %v1603 = vld [vmem:[%s217 + $0x80] sm:$0xff]
  %v1604 = vld [vmem:[%s217 + $0xa0] sm:$0xff]
  %v1605 = vld [vmem:[%s217 + $0xc0] sm:$0xff]
  %v1606 = vld [vmem:[%s217 + $0xe0] sm:$0xff]
  %v1607 = vld [vmem:[%s217 + $0x100] sm:$0xff]
  %v1608 = vld [vmem:[%s217 + $0x120] sm:$0xff]
  %v1609 = vld [vmem:[%s217 + $0x140] sm:$0xff]
  %v1610 = vld [vmem:[%s217 + $0x160] sm:$0xff]
  %v1611 = vld [vmem:[%s217 + $0x180] sm:$0xff]
  %v1612 = vld [vmem:[%s217 + $0x1a0] sm:$0xff]
  %v1613 = vld [vmem:[%s217 + $0x1c0] sm:$0xff]
  %v1614 = vld [vmem:[%s217 + $0x1e0] sm:$0xff]
  %v1615 = vld [vmem:[%s217 + $0x400] sm:$0xff]
  %v1616 = vld [vmem:[%s217 + $0x420] sm:$0xff]
  %v1617 = vld [vmem:[%s217 + $0x440] sm:$0xff]
  %v1618 = vld [vmem:[%s217 + $0x460] sm:$0xff]
  %v1619 = vld [vmem:[%s217 + $0x480] sm:$0xff]
  %v1620 = vld [vmem:[%s217 + $0x4a0] sm:$0xff]
  %v1621 = vld [vmem:[%s217 + $0x4c0] sm:$0xff]
  %v1622 = vld [vmem:[%s217 + $0x4e0] sm:$0xff]
  %v1623 = vld [vmem:[%s217 + $0x500] sm:$0xff]
  %v1624 = vld [vmem:[%s217 + $0x520] sm:$0xff]
  %v1625 = vld [vmem:[%s217 + $0x540] sm:$0xff]
  %v1626 = vld [vmem:[%s217 + $0x560] sm:$0xff]
  %v1627 = vld [vmem:[%s217 + $0x580] sm:$0xff]
  %v1628 = vld [vmem:[%s217 + $0x5a0] sm:$0xff]
  %v1629 = vld [vmem:[%s217 + $0x5c0] sm:$0xff]
  %v1630 = vld [vmem:[%s217 + $0x5e0] sm:$0xff]
  %v1631 = vld [vmem:[%s217 + $0x18] sm:$0xff]
  %v1632 = vld [vmem:[%s217 + $0x38] sm:$0xff]
  %v1633 = vld [vmem:[%s217 + $0x58] sm:$0xff]
  %v1634 = vld [vmem:[%s217 + $0x78] sm:$0xff]
  %v1635 = vld [vmem:[%s217 + $0x98] sm:$0xff]
  %v1636 = vld [vmem:[%s217 + $0xb8] sm:$0xff]
  %v1637 = vld [vmem:[%s217 + $0xd8] sm:$0xff]
  %v1638 = vld [vmem:[%s217 + $0xf8] sm:$0xff]
  %v1639 = vld [vmem:[%s217 + $0x118] sm:$0xff]
  %v1640 = vld [vmem:[%s217 + $0x138] sm:$0xff]
  %v1641 = vld [vmem:[%s217 + $0x158] sm:$0xff]
  %v1642 = vld [vmem:[%s217 + $0x178] sm:$0xff]
  %v1643 = vld [vmem:[%s217 + $0x198] sm:$0xff]
  %v1644 = vld [vmem:[%s217 + $0x1b8] sm:$0xff]
  %v1645 = vld [vmem:[%s217 + $0x1d8] sm:$0xff]
  %v1646 = vld [vmem:[%s217 + $0x1f8] sm:$0xff]
  %v1647 = vld [vmem:[%s217 + $0x418] sm:$0xff]
  %v1648 = vld [vmem:[%s217 + $0x438] sm:$0xff]
  %v1649 = vld [vmem:[%s217 + $0x458] sm:$0xff]
  %v1650 = vld [vmem:[%s217 + $0x478] sm:$0xff]
  %v1651 = vld [vmem:[%s217 + $0x498] sm:$0xff]
  %v1652 = vld [vmem:[%s217 + $0x4b8] sm:$0xff]
  %v1653 = vld [vmem:[%s217 + $0x4d8] sm:$0xff]
  %v1654 = vld [vmem:[%s217 + $0x4f8] sm:$0xff]
  %v1655 = vld [vmem:[%s217 + $0x518] sm:$0xff]
  %v1656 = vld [vmem:[%s217 + $0x538] sm:$0xff]
  %v1657 = vld [vmem:[%s217 + $0x558] sm:$0xff]
  %v1658 = vld [vmem:[%s217 + $0x578] sm:$0xff]
  %v1659 = vld [vmem:[%s217 + $0x598] sm:$0xff]
  %v1660 = vld [vmem:[%s217 + $0x5b8] sm:$0xff]
  %v1661 = vld [vmem:[%s217 + $0x5d8] sm:$0xff]
  %v1662 = vld [vmem:[%s217 + $0x5f8] sm:$0xff]
  %s1663 = scalar_lea.vmem %s0, 512
  %v1664 = vld [vmem:[%s1663] sm:$0xff]
  %v1665 = vld [vmem:[%s1663 + $0x8] sm:$0xff]
  %v1666 = vld [vmem:[%s1663 + $0x20] sm:$0xff]
  %v1667 = vld [vmem:[%s1663 + $0x28] sm:$0xff]
  %v1668 = vld [vmem:[%s1663 + $0x40] sm:$0xff]
  %v1669 = vld [vmem:[%s1663 + $0x48] sm:$0xff]
  %v1670 = vld [vmem:[%s1663 + $0x60] sm:$0xff]
  %v1671 = vld [vmem:[%s1663 + $0x68] sm:$0xff]
  %v1672 = vld [vmem:[%s1663 + $0x80] sm:$0xff]
  %v1673 = vld [vmem:[%s1663 + $0x88] sm:$0xff]
  %v1674 = vld [vmem:[%s1663 + $0xa0] sm:$0xff]
  %v1675 = vld [vmem:[%s1663 + $0xa8] sm:$0xff]
  %v1676 = vld [vmem:[%s1663 + $0xc0] sm:$0xff]
  %v1677 = vld [vmem:[%s1663 + $0xc8] sm:$0xff]
  %v1678 = vld [vmem:[%s1663 + $0xe0] sm:$0xff]
  %v1679 = vld [vmem:[%s1663 + $0xe8] sm:$0xff]
  %v1680 = vld [vmem:[%s1663 + $0x100] sm:$0xff]
  %v1681 = vld [vmem:[%s1663 + $0x108] sm:$0xff]
  %v1682 = vld [vmem:[%s1663 + $0x120] sm:$0xff]
  %v1683 = vld [vmem:[%s1663 + $0x128] sm:$0xff]
  %v1684 = vld [vmem:[%s1663 + $0x140] sm:$0xff]
  %v1685 = vld [vmem:[%s1663 + $0x148] sm:$0xff]
  %v1686 = vld [vmem:[%s1663 + $0x160] sm:$0xff]
  %v1687 = vld [vmem:[%s1663 + $0x168] sm:$0xff]
  %v1688 = vld [vmem:[%s1663 + $0x180] sm:$0xff]
  %v1689 = vld [vmem:[%s1663 + $0x188] sm:$0xff]
  %v1690 = vld [vmem:[%s1663 + $0x1a0] sm:$0xff]
  %v1691 = vld [vmem:[%s1663 + $0x1a8] sm:$0xff]
  %v1692 = vld [vmem:[%s1663 + $0x1c0] sm:$0xff]
  %v1693 = vld [vmem:[%s1663 + $0x1c8] sm:$0xff]
  %v1694 = vld [vmem:[%s1663 + $0x1e0] sm:$0xff]
  %v1695 = vld [vmem:[%s1663 + $0x1e8] sm:$0xff]
  %v1696 = vld [vmem:[%s1663 + $0x400] sm:$0xff]
  %v1697 = vld [vmem:[%s1663 + $0x408] sm:$0xff]
  %v1698 = vld [vmem:[%s1663 + $0x420] sm:$0xff]
  %v1699 = vld [vmem:[%s1663 + $0x428] sm:$0xff]
  %v1700 = vld [vmem:[%s1663 + $0x440] sm:$0xff]
  %v1701 = vld [vmem:[%s1663 + $0x448] sm:$0xff]
  %v1702 = vld [vmem:[%s1663 + $0x460] sm:$0xff]
  %v1703 = vld [vmem:[%s1663 + $0x468] sm:$0xff]
  %v1704 = vld [vmem:[%s1663 + $0x480] sm:$0xff]
  %v1705 = vld [vmem:[%s1663 + $0x488] sm:$0xff]
  %v1706 = vld [vmem:[%s1663 + $0x4a0] sm:$0xff]
  %v1707 = vld [vmem:[%s1663 + $0x4a8] sm:$0xff]
  %v1708 = vld [vmem:[%s1663 + $0x4c0] sm:$0xff]
  %v1709 = vld [vmem:[%s1663 + $0x4c8] sm:$0xff]
  %v1710 = vld [vmem:[%s1663 + $0x4e0] sm:$0xff]
  %v1711 = vld [vmem:[%s1663 + $0x4e8] sm:$0xff]
  %v1712 = vld [vmem:[%s1663 + $0x500] sm:$0xff]
  %v1713 = vld [vmem:[%s1663 + $0x508] sm:$0xff]
  %v1714 = vld [vmem:[%s1663 + $0x520] sm:$0xff]
  %v1715 = vld [vmem:[%s1663 + $0x528] sm:$0xff]
  %v1716 = vld [vmem:[%s1663 + $0x540] sm:$0xff]
  %v1717 = vld [vmem:[%s1663 + $0x548] sm:$0xff]
  %v1718 = vld [vmem:[%s1663 + $0x560] sm:$0xff]
  %v1719 = vld [vmem:[%s1663 + $0x568] sm:$0xff]
  %v1720 = vld [vmem:[%s1663 + $0x580] sm:$0xff]
  %v1721 = vld [vmem:[%s1663 + $0x588] sm:$0xff]
  %v1722 = vld [vmem:[%s1663 + $0x5a0] sm:$0xff]
  %v1723 = vld [vmem:[%s1663 + $0x5a8] sm:$0xff]
  %v1724 = vld [vmem:[%s1663 + $0x5c0] sm:$0xff]
  %v1725 = vld [vmem:[%s1663 + $0x5c8] sm:$0xff]
  %v1726 = vld [vmem:[%s1663 + $0x5e0] sm:$0xff]
  %v1727 = vld [vmem:[%s1663 + $0x5e8] sm:$0xff]
  %v1728 = vld [vmem:[%s1663 + $0x10] sm:$0xff]
  %v1729 = vld [vmem:[%s1663 + $0x30] sm:$0xff]
  %v1730 = vld [vmem:[%s1663 + $0x50] sm:$0xff]
  %v1731 = vld [vmem:[%s1663 + $0x70] sm:$0xff]
  %v1732 = vld [vmem:[%s1663 + $0x90] sm:$0xff]
  %v1733 = vld [vmem:[%s1663 + $0xb0] sm:$0xff]
  %v1734 = vld [vmem:[%s1663 + $0xd0] sm:$0xff]
  %v1735 = vld [vmem:[%s1663 + $0xf0] sm:$0xff]
  %v1736 = vld [vmem:[%s1663 + $0x110] sm:$0xff]
  %v1737 = vld [vmem:[%s1663 + $0x130] sm:$0xff]
  %v1738 = vld [vmem:[%s1663 + $0x150] sm:$0xff]
  %v1739 = vld [vmem:[%s1663 + $0x170] sm:$0xff]
  %v1740 = vld [vmem:[%s1663 + $0x190] sm:$0xff]
  %v1741 = vld [vmem:[%s1663 + $0x1b0] sm:$0xff]
  %v1742 = vld [vmem:[%s1663 + $0x1d0] sm:$0xff]
  %v1743 = vld [vmem:[%s1663 + $0x1f0] sm:$0xff]
  %v1744 = vld [vmem:[%s1663 + $0x410] sm:$0xff]
  %v1745 = vld [vmem:[%s1663 + $0x430] sm:$0xff]
  %v1746 = vld [vmem:[%s1663 + $0x450] sm:$0xff]
  %v1747 = vld [vmem:[%s1663 + $0x470] sm:$0xff]
  %v1748 = vld [vmem:[%s1663 + $0x490] sm:$0xff]
  %v1749 = vld [vmem:[%s1663 + $0x4b0] sm:$0xff]
  %v1750 = vld [vmem:[%s1663 + $0x4d0] sm:$0xff]
  %v1751 = vld [vmem:[%s1663 + $0x4f0] sm:$0xff]
  %v1752 = vld [vmem:[%s1663 + $0x510] sm:$0xff]
  %v1753 = vld [vmem:[%s1663 + $0x530] sm:$0xff]
  %v1754 = vld [vmem:[%s1663 + $0x550] sm:$0xff]
  %v1755 = vld [vmem:[%s1663 + $0x570] sm:$0xff]
  %v1756 = vld [vmem:[%s1663 + $0x590] sm:$0xff]
  %v1757 = vld [vmem:[%s1663 + $0x5b0] sm:$0xff]
  %v1758 = vld [vmem:[%s1663 + $0x5d0] sm:$0xff]
  %v1759 = vld [vmem:[%s1663 + $0x5f0] sm:$0xff]
  %v1760 = vld [vmem:[%s1663 + $0x18] sm:$0xff]
  %v1761 = vld [vmem:[%s1663 + $0x38] sm:$0xff]
  %v1762 = vld [vmem:[%s1663 + $0x58] sm:$0xff]
  %v1763 = vld [vmem:[%s1663 + $0x78] sm:$0xff]
  %v1764 = vld [vmem:[%s1663 + $0x98] sm:$0xff]
  %v1765 = vld [vmem:[%s1663 + $0xb8] sm:$0xff]
  %v1766 = vld [vmem:[%s1663 + $0xd8] sm:$0xff]
  %v1767 = vld [vmem:[%s1663 + $0xf8] sm:$0xff]
  %v1768 = vld [vmem:[%s1663 + $0x118] sm:$0xff]
  %v1769 = vld [vmem:[%s1663 + $0x138] sm:$0xff]
  %v1770 = vld [vmem:[%s1663 + $0x158] sm:$0xff]
  %v1771 = vld [vmem:[%s1663 + $0x178] sm:$0xff]
  %v1772 = vld [vmem:[%s1663 + $0x198] sm:$0xff]
  %v1773 = vld [vmem:[%s1663 + $0x1b8] sm:$0xff]
  %v1774 = vld [vmem:[%s1663 + $0x1d8] sm:$0xff]
  %v1775 = vld [vmem:[%s1663 + $0x1f8] sm:$0xff]
  %v1776 = vld [vmem:[%s1663 + $0x418] sm:$0xff]
  %v1777 = vld [vmem:[%s1663 + $0x438] sm:$0xff]
  %v1778 = vld [vmem:[%s1663 + $0x458] sm:$0xff]
  %v1779 = vld [vmem:[%s1663 + $0x478] sm:$0xff]
  %v1780 = vld [vmem:[%s1663 + $0x498] sm:$0xff]
  %v1781 = vld [vmem:[%s1663 + $0x4b8] sm:$0xff]
  %v1782 = vld [vmem:[%s1663 + $0x4d8] sm:$0xff]
  %v1783 = vld [vmem:[%s1663 + $0x4f8] sm:$0xff]
  %v1784 = vld [vmem:[%s1663 + $0x518] sm:$0xff]
  %v1785 = vld [vmem:[%s1663 + $0x538] sm:$0xff]
  %v1786 = vld [vmem:[%s1663 + $0x558] sm:$0xff]
  %v1787 = vld [vmem:[%s1663 + $0x578] sm:$0xff]
  %v1788 = vld [vmem:[%s1663 + $0x598] sm:$0xff]
  %v1789 = vld [vmem:[%s1663 + $0x5b8] sm:$0xff]
  %v1790 = vld [vmem:[%s1663 + $0x5d8] sm:$0xff]
  %v1791 = vld [vmem:[%s1663 + $0x5f8] sm:$0xff]
  %1856 = vrot.lane.b32.xlu0 %v89, 4
  %v1857 = vpop.permute.xlu0 %1856
  %1858 = vrot.lane.b32.xlu0 %v90, 4
  %v1859 = vpop.permute.xlu0 %1858
  %1860 = vrot.lane.b32.xlu0 %v91, 4
  %v1861 = vpop.permute.xlu0 %1860
  %1862 = vrot.lane.b32.xlu0 %v92, 4
  %v1863 = vpop.permute.xlu0 %1862
  %1864 = vrot.lane.b32.xlu0 %v93, 4
  %v1865 = vpop.permute.xlu0 %1864
  %1866 = vrot.lane.b32.xlu0 %v94, 4
  %v1867 = vpop.permute.xlu0 %1866
  %1868 = vrot.lane.b32.xlu0 %v95, 4
  %v1869 = vpop.permute.xlu0 %1868
  %1870 = vrot.lane.b32.xlu0 %v96, 4
  %v1871 = vpop.permute.xlu0 %1870
  %1872 = vrot.lane.b32.xlu0 %v97, 4
  %v1873 = vpop.permute.xlu0 %1872
  %1874 = vrot.lane.b32.xlu0 %v98, 4
  %v1875 = vpop.permute.xlu0 %1874
  %1876 = vrot.lane.b32.xlu0 %v99, 4
  %v1877 = vpop.permute.xlu0 %1876
  %1878 = vrot.lane.b32.xlu0 %v100, 4
  %v1879 = vpop.permute.xlu0 %1878
  %1880 = vrot.lane.b32.xlu0 %v101, 4
  %v1881 = vpop.permute.xlu0 %1880
  %1882 = vrot.lane.b32.xlu0 %v102, 4
  %v1883 = vpop.permute.xlu0 %1882
  %1884 = vrot.lane.b32.xlu0 %v103, 4
  %v1885 = vpop.permute.xlu0 %1884
  %1886 = vrot.lane.b32.xlu0 %v104, 4
  %v1887 = vpop.permute.xlu0 %1886
  %1888 = vrot.lane.b32.xlu0 %v105, 4
  %v1889 = vpop.permute.xlu0 %1888
  %1890 = vrot.lane.b32.xlu0 %v106, 4
  %v1891 = vpop.permute.xlu0 %1890
  %1892 = vrot.lane.b32.xlu0 %v107, 4
  %v1893 = vpop.permute.xlu0 %1892
  %1894 = vrot.lane.b32.xlu0 %v108, 4
  %v1895 = vpop.permute.xlu0 %1894
  %1896 = vrot.lane.b32.xlu0 %v109, 4
  %v1897 = vpop.permute.xlu0 %1896
  %1898 = vrot.lane.b32.xlu0 %v110, 4
  %v1899 = vpop.permute.xlu0 %1898
  %1900 = vrot.lane.b32.xlu0 %v111, 4
  %v1901 = vpop.permute.xlu0 %1900
  %1902 = vrot.lane.b32.xlu0 %v112, 4
  %v1903 = vpop.permute.xlu0 %1902
  %1904 = vrot.lane.b32.xlu0 %v113, 4
  %v1905 = vpop.permute.xlu0 %1904
  %1906 = vrot.lane.b32.xlu0 %v114, 4
  %v1907 = vpop.permute.xlu0 %1906
  %1908 = vrot.lane.b32.xlu0 %v115, 4
  %v1909 = vpop.permute.xlu0 %1908
  %1910 = vrot.lane.b32.xlu0 %v116, 4
  %v1911 = vpop.permute.xlu0 %1910
  %1912 = vrot.lane.b32.xlu0 %v117, 4
  %v1913 = vpop.permute.xlu0 %1912
  %1914 = vrot.lane.b32.xlu0 %v118, 4
  %v1915 = vpop.permute.xlu0 %1914
  %1916 = vrot.lane.b32.xlu0 %v119, 4
  %v1917 = vpop.permute.xlu0 %1916
  %1918 = vrot.lane.b32.xlu0 %v120, 4
  %v1919 = vpop.permute.xlu0 %1918
  %1920 = vrot.lane.b32.xlu0 %v121, 4
  %v1921 = vpop.permute.xlu0 %1920
  %1922 = vrot.lane.b32.xlu0 %v122, 4
  %v1923 = vpop.permute.xlu0 %1922
  %1924 = vrot.lane.b32.xlu0 %v123, 4
  %v1925 = vpop.permute.xlu0 %1924
  %1926 = vrot.lane.b32.xlu0 %v124, 4
  %v1927 = vpop.permute.xlu0 %1926
  %1928 = vrot.lane.b32.xlu0 %v125, 4
  %v1929 = vpop.permute.xlu0 %1928
  %1930 = vrot.lane.b32.xlu0 %v126, 4
  %v1931 = vpop.permute.xlu0 %1930
  %1932 = vrot.lane.b32.xlu0 %v127, 4
  %v1933 = vpop.permute.xlu0 %1932
  %1934 = vrot.lane.b32.xlu0 %v128, 4
  %v1935 = vpop.permute.xlu0 %1934
  %1936 = vrot.lane.b32.xlu0 %v129, 4
  %v1937 = vpop.permute.xlu0 %1936
  %1938 = vrot.lane.b32.xlu0 %v130, 4
  %v1939 = vpop.permute.xlu0 %1938
  %1940 = vrot.lane.b32.xlu0 %v131, 4
  %v1941 = vpop.permute.xlu0 %1940
  %1942 = vrot.lane.b32.xlu0 %v132, 4
  %v1943 = vpop.permute.xlu0 %1942
  %1944 = vrot.lane.b32.xlu0 %v133, 4
  %v1945 = vpop.permute.xlu0 %1944
  %1946 = vrot.lane.b32.xlu0 %v134, 4
  %v1947 = vpop.permute.xlu0 %1946
  %1948 = vrot.lane.b32.xlu0 %v135, 4
  %v1949 = vpop.permute.xlu0 %1948
  %1950 = vrot.lane.b32.xlu0 %v136, 4
  %v1951 = vpop.permute.xlu0 %1950
  %1952 = vrot.lane.b32.xlu0 %v137, 4
  %v1953 = vpop.permute.xlu0 %1952
  %1954 = vrot.lane.b32.xlu0 %v138, 4
  %v1955 = vpop.permute.xlu0 %1954
  %1956 = vrot.lane.b32.xlu0 %v139, 4
  %v1957 = vpop.permute.xlu0 %1956
  %1958 = vrot.lane.b32.xlu0 %v140, 4
  %v1959 = vpop.permute.xlu0 %1958
  %1960 = vrot.lane.b32.xlu0 %v141, 4
  %v1961 = vpop.permute.xlu0 %1960
  %1962 = vrot.lane.b32.xlu0 %v142, 4
  %v1963 = vpop.permute.xlu0 %1962
  %1964 = vrot.lane.b32.xlu0 %v143, 4
  %v1965 = vpop.permute.xlu0 %1964
  %1966 = vrot.lane.b32.xlu0 %v144, 4
  %v1967 = vpop.permute.xlu0 %1966
  %1968 = vrot.lane.b32.xlu0 %v145, 4
  %v1969 = vpop.permute.xlu0 %1968
  %1970 = vrot.lane.b32.xlu0 %v146, 4
  %v1971 = vpop.permute.xlu0 %1970
  %1972 = vrot.lane.b32.xlu0 %v147, 4
  %v1973 = vpop.permute.xlu0 %1972
  %1974 = vrot.lane.b32.xlu0 %v148, 4
  %v1975 = vpop.permute.xlu0 %1974
  %1976 = vrot.lane.b32.xlu0 %v149, 4
  %v1977 = vpop.permute.xlu0 %1976
  %1978 = vrot.lane.b32.xlu0 %v150, 4
  %v1979 = vpop.permute.xlu0 %1978
  %1980 = vrot.lane.b32.xlu0 %v151, 4
  %v1981 = vpop.permute.xlu0 %1980
  %1982 = vrot.lane.b32.xlu0 %v152, 4
  %v1983 = vpop.permute.xlu0 %1982
  %2112 = vrot.lane.b32.xlu0 %v153, 8
  %v2113 = vpop.permute.xlu0 %2112
  %2114 = vrot.lane.b32.xlu0 %v154, 8
  %v2115 = vpop.permute.xlu0 %2114
  %2116 = vrot.lane.b32.xlu0 %v155, 8
  %v2117 = vpop.permute.xlu0 %2116
  %2118 = vrot.lane.b32.xlu0 %v156, 8
  %v2119 = vpop.permute.xlu0 %2118
  %2120 = vrot.lane.b32.xlu0 %v157, 8
  %v2121 = vpop.permute.xlu0 %2120
  %2122 = vrot.lane.b32.xlu0 %v158, 8
  %v2123 = vpop.permute.xlu0 %2122
  %2124 = vrot.lane.b32.xlu0 %v159, 8
  %v2125 = vpop.permute.xlu0 %2124
  %2126 = vrot.lane.b32.xlu0 %v160, 8
  %v2127 = vpop.permute.xlu0 %2126
  %2128 = vrot.lane.b32.xlu0 %v161, 8
  %v2129 = vpop.permute.xlu0 %2128
  %2130 = vrot.lane.b32.xlu0 %v162, 8
  %v2131 = vpop.permute.xlu0 %2130
  %2132 = vrot.lane.b32.xlu0 %v163, 8
  %v2133 = vpop.permute.xlu0 %2132
  %2134 = vrot.lane.b32.xlu0 %v164, 8
  %v2135 = vpop.permute.xlu0 %2134
  %2136 = vrot.lane.b32.xlu0 %v165, 8
  %v2137 = vpop.permute.xlu0 %2136
  %2138 = vrot.lane.b32.xlu0 %v166, 8
  %v2139 = vpop.permute.xlu0 %2138
  %2140 = vrot.lane.b32.xlu0 %v167, 8
  %v2141 = vpop.permute.xlu0 %2140
  %2142 = vrot.lane.b32.xlu0 %v168, 8
  %v2143 = vpop.permute.xlu0 %2142
  %2144 = vrot.lane.b32.xlu0 %v169, 8
  %v2145 = vpop.permute.xlu0 %2144
  %2146 = vrot.lane.b32.xlu0 %v170, 8
  %v2147 = vpop.permute.xlu0 %2146
  %2148 = vrot.lane.b32.xlu0 %v171, 8
  %v2149 = vpop.permute.xlu0 %2148
  %2150 = vrot.lane.b32.xlu0 %v172, 8
  %v2151 = vpop.permute.xlu0 %2150
  %2152 = vrot.lane.b32.xlu0 %v173, 8
  %v2153 = vpop.permute.xlu0 %2152
  %2154 = vrot.lane.b32.xlu0 %v174, 8
  %v2155 = vpop.permute.xlu0 %2154
  %2156 = vrot.lane.b32.xlu0 %v175, 8
  %v2157 = vpop.permute.xlu0 %2156
  %2158 = vrot.lane.b32.xlu0 %v176, 8
  %v2159 = vpop.permute.xlu0 %2158
  %2160 = vrot.lane.b32.xlu0 %v177, 8
  %v2161 = vpop.permute.xlu0 %2160
  %2162 = vrot.lane.b32.xlu0 %v178, 8
  %v2163 = vpop.permute.xlu0 %2162
  %2164 = vrot.lane.b32.xlu0 %v179, 8
  %v2165 = vpop.permute.xlu0 %2164
  %2166 = vrot.lane.b32.xlu0 %v180, 8
  %v2167 = vpop.permute.xlu0 %2166
  %2168 = vrot.lane.b32.xlu0 %v181, 8
  %v2169 = vpop.permute.xlu0 %2168
  %2170 = vrot.lane.b32.xlu0 %v182, 8
  %v2171 = vpop.permute.xlu0 %2170
  %2172 = vrot.lane.b32.xlu0 %v183, 8
  %v2173 = vpop.permute.xlu0 %2172
  %2174 = vrot.lane.b32.xlu0 %v184, 8
  %v2175 = vpop.permute.xlu0 %2174
  %2176 = vrot.lane.b32.xlu0 %v185, 8
  %v2177 = vpop.permute.xlu0 %2176
  %2178 = vrot.lane.b32.xlu0 %v186, 8
  %v2179 = vpop.permute.xlu0 %2178
  %2180 = vrot.lane.b32.xlu0 %v187, 8
  %v2181 = vpop.permute.xlu0 %2180
  %2182 = vrot.lane.b32.xlu0 %v188, 8
  %v2183 = vpop.permute.xlu0 %2182
  %2184 = vrot.lane.b32.xlu0 %v189, 8
  %v2185 = vpop.permute.xlu0 %2184
  %2186 = vrot.lane.b32.xlu0 %v190, 8
  %v2187 = vpop.permute.xlu0 %2186
  %2188 = vrot.lane.b32.xlu0 %v191, 8
  %v2189 = vpop.permute.xlu0 %2188
  %2190 = vrot.lane.b32.xlu0 %v192, 8
  %v2191 = vpop.permute.xlu0 %2190
  %2192 = vrot.lane.b32.xlu0 %v193, 8
  %v2193 = vpop.permute.xlu0 %2192
  %2194 = vrot.lane.b32.xlu0 %v194, 8
  %v2195 = vpop.permute.xlu0 %2194
  %2196 = vrot.lane.b32.xlu0 %v195, 8
  %v2197 = vpop.permute.xlu0 %2196
  %2198 = vrot.lane.b32.xlu0 %v196, 8
  %v2199 = vpop.permute.xlu0 %2198
  %2200 = vrot.lane.b32.xlu0 %v197, 8
  %v2201 = vpop.permute.xlu0 %2200
  %2202 = vrot.lane.b32.xlu0 %v198, 8
  %v2203 = vpop.permute.xlu0 %2202
  %2204 = vrot.lane.b32.xlu0 %v199, 8
  %v2205 = vpop.permute.xlu0 %2204
  %2206 = vrot.lane.b32.xlu0 %v200, 8
  %v2207 = vpop.permute.xlu0 %2206
  %2208 = vrot.lane.b32.xlu0 %v201, 8
  %v2209 = vpop.permute.xlu0 %2208
  %2210 = vrot.lane.b32.xlu0 %v202, 8
  %v2211 = vpop.permute.xlu0 %2210
  %2212 = vrot.lane.b32.xlu0 %v203, 8
  %v2213 = vpop.permute.xlu0 %2212
  %2214 = vrot.lane.b32.xlu0 %v204, 8
  %v2215 = vpop.permute.xlu0 %2214
  %2216 = vrot.lane.b32.xlu0 %v205, 8
  %v2217 = vpop.permute.xlu0 %2216
  %2218 = vrot.lane.b32.xlu0 %v206, 8
  %v2219 = vpop.permute.xlu0 %2218
  %2220 = vrot.lane.b32.xlu0 %v207, 8
  %v2221 = vpop.permute.xlu0 %2220
  %2222 = vrot.lane.b32.xlu0 %v208, 8
  %v2223 = vpop.permute.xlu0 %2222
  %2224 = vrot.lane.b32.xlu0 %v209, 8
  %v2225 = vpop.permute.xlu0 %2224
  %2226 = vrot.lane.b32.xlu0 %v210, 8
  %v2227 = vpop.permute.xlu0 %2226
  %2228 = vrot.lane.b32.xlu0 %v211, 8
  %v2229 = vpop.permute.xlu0 %2228
  %2230 = vrot.lane.b32.xlu0 %v212, 8
  %v2231 = vpop.permute.xlu0 %2230
  %2232 = vrot.lane.b32.xlu0 %v213, 8
  %v2233 = vpop.permute.xlu0 %2232
  %2234 = vrot.lane.b32.xlu0 %v214, 8
  %v2235 = vpop.permute.xlu0 %2234
  %2236 = vrot.lane.b32.xlu0 %v215, 8
  %v2237 = vpop.permute.xlu0 %2236
  %2238 = vrot.lane.b32.xlu0 %v216, 8
  %v2239 = vpop.permute.xlu0 %2238
  %2368 = vrot.lane.b32.xlu0 %v218, 12
  %v2369 = vpop.permute.xlu0 %2368
  %2370 = vrot.lane.b32.xlu0 %v219, 12
  %v2371 = vpop.permute.xlu0 %2370
  %2372 = vrot.lane.b32.xlu0 %v220, 12
  %v2373 = vpop.permute.xlu0 %2372
  %2374 = vrot.lane.b32.xlu0 %v221, 12
  %v2375 = vpop.permute.xlu0 %2374
  %2376 = vrot.lane.b32.xlu0 %v222, 12
  %v2377 = vpop.permute.xlu0 %2376
  %2378 = vrot.lane.b32.xlu0 %v223, 12
  %v2379 = vpop.permute.xlu0 %2378
  %2380 = vrot.lane.b32.xlu0 %v224, 12
  %v2381 = vpop.permute.xlu0 %2380
  %2382 = vrot.lane.b32.xlu0 %v225, 12
  %v2383 = vpop.permute.xlu0 %2382
  %2384 = vrot.lane.b32.xlu0 %v226, 12
  %v2385 = vpop.permute.xlu0 %2384
  %2386 = vrot.lane.b32.xlu0 %v227, 12
  %v2387 = vpop.permute.xlu0 %2386
  %2388 = vrot.lane.b32.xlu0 %v228, 12
  %v2389 = vpop.permute.xlu0 %2388
  %2390 = vrot.lane.b32.xlu0 %v229, 12
  %v2391 = vpop.permute.xlu0 %2390
  %2392 = vrot.lane.b32.xlu0 %v230, 12
  %v2393 = vpop.permute.xlu0 %2392
  %2394 = vrot.lane.b32.xlu0 %v231, 12
  %v2395 = vpop.permute.xlu0 %2394
  %2396 = vrot.lane.b32.xlu0 %v232, 12
  %v2397 = vpop.permute.xlu0 %2396
  %2398 = vrot.lane.b32.xlu0 %v233, 12
  %v2399 = vpop.permute.xlu0 %2398
  %2400 = vrot.lane.b32.xlu0 %v234, 12
  %v2401 = vpop.permute.xlu0 %2400
  %2402 = vrot.lane.b32.xlu0 %v235, 12
  %v2403 = vpop.permute.xlu0 %2402
  %2404 = vrot.lane.b32.xlu0 %v236, 12
  %v2405 = vpop.permute.xlu0 %2404
  %2406 = vrot.lane.b32.xlu0 %v237, 12
  %v2407 = vpop.permute.xlu0 %2406
  %2408 = vrot.lane.b32.xlu0 %v238, 12
  %v2409 = vpop.permute.xlu0 %2408
  %2410 = vrot.lane.b32.xlu0 %v239, 12
  %v2411 = vpop.permute.xlu0 %2410
  %2412 = vrot.lane.b32.xlu0 %v240, 12
  %v2413 = vpop.permute.xlu0 %2412
  %2414 = vrot.lane.b32.xlu0 %v241, 12
  %v2415 = vpop.permute.xlu0 %2414
  %2416 = vrot.lane.b32.xlu0 %v242, 12
  %v2417 = vpop.permute.xlu0 %2416
  %2418 = vrot.lane.b32.xlu0 %v243, 12
  %v2419 = vpop.permute.xlu0 %2418
  %2420 = vrot.lane.b32.xlu0 %v244, 12
  %v2421 = vpop.permute.xlu0 %2420
  %2422 = vrot.lane.b32.xlu0 %v245, 12
  %v2423 = vpop.permute.xlu0 %2422
  %2424 = vrot.lane.b32.xlu0 %v246, 12
  %v2425 = vpop.permute.xlu0 %2424
  %2426 = vrot.lane.b32.xlu0 %v247, 12
  %v2427 = vpop.permute.xlu0 %2426
  %2428 = vrot.lane.b32.xlu0 %v248, 12
  %v2429 = vpop.permute.xlu0 %2428
  %2430 = vrot.lane.b32.xlu0 %v249, 12
  %v2431 = vpop.permute.xlu0 %2430
  %2432 = vrot.lane.b32.xlu0 %v250, 12
  %v2433 = vpop.permute.xlu0 %2432
  %2434 = vrot.lane.b32.xlu0 %v251, 12
  %v2435 = vpop.permute.xlu0 %2434
  %2436 = vrot.lane.b32.xlu0 %v252, 12
  %v2437 = vpop.permute.xlu0 %2436
  %2438 = vrot.lane.b32.xlu0 %v253, 12
  %v2439 = vpop.permute.xlu0 %2438
  %2440 = vrot.lane.b32.xlu0 %v254, 12
  %v2441 = vpop.permute.xlu0 %2440
  %2442 = vrot.lane.b32.xlu0 %v255, 12
  %v2443 = vpop.permute.xlu0 %2442
  %2444 = vrot.lane.b32.xlu0 %v256, 12
  %v2445 = vpop.permute.xlu0 %2444
  %2446 = vrot.lane.b32.xlu0 %v257, 12
  %v2447 = vpop.permute.xlu0 %2446
  %2448 = vrot.lane.b32.xlu0 %v258, 12
  %v2449 = vpop.permute.xlu0 %2448
  %2450 = vrot.lane.b32.xlu0 %v259, 12
  %v2451 = vpop.permute.xlu0 %2450
  %2452 = vrot.lane.b32.xlu0 %v260, 12
  %v2453 = vpop.permute.xlu0 %2452
  %2454 = vrot.lane.b32.xlu0 %v261, 12
  %v2455 = vpop.permute.xlu0 %2454
  %2456 = vrot.lane.b32.xlu0 %v262, 12
  %v2457 = vpop.permute.xlu0 %2456
  %2458 = vrot.lane.b32.xlu0 %v263, 12
  %v2459 = vpop.permute.xlu0 %2458
  %2460 = vrot.lane.b32.xlu0 %v264, 12
  %v2461 = vpop.permute.xlu0 %2460
  %2462 = vrot.lane.b32.xlu0 %v265, 12
  %v2463 = vpop.permute.xlu0 %2462
  %2464 = vrot.lane.b32.xlu0 %v266, 12
  %v2465 = vpop.permute.xlu0 %2464
  %2466 = vrot.lane.b32.xlu0 %v267, 12
  %v2467 = vpop.permute.xlu0 %2466
  %2468 = vrot.lane.b32.xlu0 %v268, 12
  %v2469 = vpop.permute.xlu0 %2468
  %2470 = vrot.lane.b32.xlu0 %v269, 12
  %v2471 = vpop.permute.xlu0 %2470
  %2472 = vrot.lane.b32.xlu0 %v270, 12
  %v2473 = vpop.permute.xlu0 %2472
  %2474 = vrot.lane.b32.xlu0 %v271, 12
  %v2475 = vpop.permute.xlu0 %2474
  %2476 = vrot.lane.b32.xlu0 %v272, 12
  %v2477 = vpop.permute.xlu0 %2476
  %2478 = vrot.lane.b32.xlu0 %v273, 12
  %v2479 = vpop.permute.xlu0 %2478
  %2480 = vrot.lane.b32.xlu0 %v274, 12
  %v2481 = vpop.permute.xlu0 %2480
  %2482 = vrot.lane.b32.xlu0 %v275, 12
  %v2483 = vpop.permute.xlu0 %2482
  %2484 = vrot.lane.b32.xlu0 %v276, 12
  %v2485 = vpop.permute.xlu0 %2484
  %2486 = vrot.lane.b32.xlu0 %v277, 12
  %v2487 = vpop.permute.xlu0 %2486
  %2488 = vrot.lane.b32.xlu0 %v278, 12
  %v2489 = vpop.permute.xlu0 %2488
  %2490 = vrot.lane.b32.xlu0 %v279, 12
  %v2491 = vpop.permute.xlu0 %2490
  %2492 = vrot.lane.b32.xlu0 %v280, 12
  %v2493 = vpop.permute.xlu0 %2492
  %2494 = vrot.lane.b32.xlu0 %v281, 12
  %v2495 = vpop.permute.xlu0 %2494
  %2624 = vrot.lane.b32.xlu0 %v282, 16
  %v2625 = vpop.permute.xlu0 %2624
  %2626 = vrot.lane.b32.xlu0 %v283, 16
  %v2627 = vpop.permute.xlu0 %2626
  %2628 = vrot.lane.b32.xlu0 %v284, 16
  %v2629 = vpop.permute.xlu0 %2628
  %2630 = vrot.lane.b32.xlu0 %v285, 16
  %v2631 = vpop.permute.xlu0 %2630
  %2632 = vrot.lane.b32.xlu0 %v286, 16
  %v2633 = vpop.permute.xlu0 %2632
  %2634 = vrot.lane.b32.xlu0 %v287, 16
  %v2635 = vpop.permute.xlu0 %2634
  %2636 = vrot.lane.b32.xlu0 %v288, 16
  %v2637 = vpop.permute.xlu0 %2636
  %2638 = vrot.lane.b32.xlu0 %v289, 16
  %v2639 = vpop.permute.xlu0 %2638
  %2640 = vrot.lane.b32.xlu0 %v290, 16
  %v2641 = vpop.permute.xlu0 %2640
  %2642 = vrot.lane.b32.xlu0 %v291, 16
  %v2643 = vpop.permute.xlu0 %2642
  %2644 = vrot.lane.b32.xlu0 %v292, 16
  %v2645 = vpop.permute.xlu0 %2644
  %2646 = vrot.lane.b32.xlu0 %v293, 16
  %v2647 = vpop.permute.xlu0 %2646
  %2648 = vrot.lane.b32.xlu0 %v294, 16
  %v2649 = vpop.permute.xlu0 %2648
  %2650 = vrot.lane.b32.xlu0 %v295, 16
  %v2651 = vpop.permute.xlu0 %2650
  %2652 = vrot.lane.b32.xlu0 %v296, 16
  %v2653 = vpop.permute.xlu0 %2652
  %2654 = vrot.lane.b32.xlu0 %v297, 16
  %v2655 = vpop.permute.xlu0 %2654
  %2656 = vrot.lane.b32.xlu0 %v298, 16
  %v2657 = vpop.permute.xlu0 %2656
  %2658 = vrot.lane.b32.xlu0 %v299, 16
  %v2659 = vpop.permute.xlu0 %2658
  %2660 = vrot.lane.b32.xlu0 %v300, 16
  %v2661 = vpop.permute.xlu0 %2660
  %2662 = vrot.lane.b32.xlu0 %v301, 16
  %v2663 = vpop.permute.xlu0 %2662
  %2664 = vrot.lane.b32.xlu0 %v302, 16
  %v2665 = vpop.permute.xlu0 %2664
  %2666 = vrot.lane.b32.xlu0 %v303, 16
  %v2667 = vpop.permute.xlu0 %2666
  %2668 = vrot.lane.b32.xlu0 %v304, 16
  %v2669 = vpop.permute.xlu0 %2668
  %2670 = vrot.lane.b32.xlu0 %v305, 16
  %v2671 = vpop.permute.xlu0 %2670
  %2672 = vrot.lane.b32.xlu0 %v306, 16
  %v2673 = vpop.permute.xlu0 %2672
  %2674 = vrot.lane.b32.xlu0 %v307, 16
  %v2675 = vpop.permute.xlu0 %2674
  %2676 = vrot.lane.b32.xlu0 %v308, 16
  %v2677 = vpop.permute.xlu0 %2676
  %2678 = vrot.lane.b32.xlu0 %v309, 16
  %v2679 = vpop.permute.xlu0 %2678
  %2680 = vrot.lane.b32.xlu0 %v310, 16
  %v2681 = vpop.permute.xlu0 %2680
  %2682 = vrot.lane.b32.xlu0 %v311, 16
  %v2683 = vpop.permute.xlu0 %2682
  %2684 = vrot.lane.b32.xlu0 %v312, 16
  %v2685 = vpop.permute.xlu0 %2684
  %2686 = vrot.lane.b32.xlu0 %v313, 16
  %v2687 = vpop.permute.xlu0 %2686
  %2688 = vrot.lane.b32.xlu0 %v314, 16
  %v2689 = vpop.permute.xlu0 %2688
  %2690 = vrot.lane.b32.xlu0 %v315, 16
  %v2691 = vpop.permute.xlu0 %2690
  %2692 = vrot.lane.b32.xlu0 %v316, 16
  %v2693 = vpop.permute.xlu0 %2692
  %2694 = vrot.lane.b32.xlu0 %v317, 16
  %v2695 = vpop.permute.xlu0 %2694
  %2696 = vrot.lane.b32.xlu0 %v318, 16
  %v2697 = vpop.permute.xlu0 %2696
  %2698 = vrot.lane.b32.xlu0 %v319, 16
  %v2699 = vpop.permute.xlu0 %2698
  %2700 = vrot.lane.b32.xlu0 %v320, 16
  %v2701 = vpop.permute.xlu0 %2700
  %2702 = vrot.lane.b32.xlu0 %v321, 16
  %v2703 = vpop.permute.xlu0 %2702
  %2704 = vrot.lane.b32.xlu0 %v322, 16
  %v2705 = vpop.permute.xlu0 %2704
  %2706 = vrot.lane.b32.xlu0 %v323, 16
  %v2707 = vpop.permute.xlu0 %2706
  %2708 = vrot.lane.b32.xlu0 %v324, 16
  %v2709 = vpop.permute.xlu0 %2708
  %2710 = vrot.lane.b32.xlu0 %v325, 16
  %v2711 = vpop.permute.xlu0 %2710
  %2712 = vrot.lane.b32.xlu0 %v326, 16
  %v2713 = vpop.permute.xlu0 %2712
  %2714 = vrot.lane.b32.xlu0 %v327, 16
  %v2715 = vpop.permute.xlu0 %2714
  %2716 = vrot.lane.b32.xlu0 %v328, 16
  %v2717 = vpop.permute.xlu0 %2716
  %2718 = vrot.lane.b32.xlu0 %v329, 16
  %v2719 = vpop.permute.xlu0 %2718
  %2720 = vrot.lane.b32.xlu0 %v330, 16
  %v2721 = vpop.permute.xlu0 %2720
  %2722 = vrot.lane.b32.xlu0 %v331, 16
  %v2723 = vpop.permute.xlu0 %2722
  %2724 = vrot.lane.b32.xlu0 %v332, 16
  %v2725 = vpop.permute.xlu0 %2724
  %2726 = vrot.lane.b32.xlu0 %v333, 16
  %v2727 = vpop.permute.xlu0 %2726
  %2728 = vrot.lane.b32.xlu0 %v334, 16
  %v2729 = vpop.permute.xlu0 %2728
  %2730 = vrot.lane.b32.xlu0 %v335, 16
  %v2731 = vpop.permute.xlu0 %2730
  %2732 = vrot.lane.b32.xlu0 %v336, 16
  %v2733 = vpop.permute.xlu0 %2732
  %2734 = vrot.lane.b32.xlu0 %v337, 16
  %v2735 = vpop.permute.xlu0 %2734
  %2736 = vrot.lane.b32.xlu0 %v338, 16
  %v2737 = vpop.permute.xlu0 %2736
  %2738 = vrot.lane.b32.xlu0 %v339, 16
  %v2739 = vpop.permute.xlu0 %2738
  %2740 = vrot.lane.b32.xlu0 %v340, 16
  %v2741 = vpop.permute.xlu0 %2740
  %2742 = vrot.lane.b32.xlu0 %v341, 16
  %v2743 = vpop.permute.xlu0 %2742
  %2744 = vrot.lane.b32.xlu0 %v342, 16
  %v2745 = vpop.permute.xlu0 %2744
  %2746 = vrot.lane.b32.xlu0 %v343, 16
  %v2747 = vpop.permute.xlu0 %2746
  %2748 = vrot.lane.b32.xlu0 %v344, 16
  %v2749 = vpop.permute.xlu0 %2748
  %2750 = vrot.lane.b32.xlu0 %v345, 16
  %v2751 = vpop.permute.xlu0 %2750
  %2880 = vrot.lane.b32.xlu0 %v346, 20
  %v2881 = vpop.permute.xlu0 %2880
  %2882 = vrot.lane.b32.xlu0 %v347, 20
  %v2883 = vpop.permute.xlu0 %2882
  %2884 = vrot.lane.b32.xlu0 %v348, 20
  %v2885 = vpop.permute.xlu0 %2884
  %2886 = vrot.lane.b32.xlu0 %v349, 20
  %v2887 = vpop.permute.xlu0 %2886
  %2888 = vrot.lane.b32.xlu0 %v350, 20
  %v2889 = vpop.permute.xlu0 %2888
  %2890 = vrot.lane.b32.xlu0 %v351, 20
  %v2891 = vpop.permute.xlu0 %2890
  %2892 = vrot.lane.b32.xlu0 %v352, 20
  %v2893 = vpop.permute.xlu0 %2892
  %2894 = vrot.lane.b32.xlu0 %v353, 20
  %v2895 = vpop.permute.xlu0 %2894
  %2896 = vrot.lane.b32.xlu0 %v354, 20
  %v2897 = vpop.permute.xlu0 %2896
  %2898 = vrot.lane.b32.xlu0 %v355, 20
  %v2899 = vpop.permute.xlu0 %2898
  %2900 = vrot.lane.b32.xlu0 %v356, 20
  %v2901 = vpop.permute.xlu0 %2900
  %2902 = vrot.lane.b32.xlu0 %v357, 20
  %v2903 = vpop.permute.xlu0 %2902
  %2904 = vrot.lane.b32.xlu0 %v358, 20
  %v2905 = vpop.permute.xlu0 %2904
  %2906 = vrot.lane.b32.xlu0 %v359, 20
  %v2907 = vpop.permute.xlu0 %2906
  %2908 = vrot.lane.b32.xlu0 %v360, 20
  %v2909 = vpop.permute.xlu0 %2908
  %2910 = vrot.lane.b32.xlu0 %v361, 20
  %v2911 = vpop.permute.xlu0 %2910
  %2912 = vrot.lane.b32.xlu0 %v362, 20
  %v2913 = vpop.permute.xlu0 %2912
  %2914 = vrot.lane.b32.xlu0 %v363, 20
  %v2915 = vpop.permute.xlu0 %2914
  %2916 = vrot.lane.b32.xlu0 %v364, 20
  %v2917 = vpop.permute.xlu0 %2916
  %2918 = vrot.lane.b32.xlu0 %v365, 20
  %v2919 = vpop.permute.xlu0 %2918
  %2920 = vrot.lane.b32.xlu0 %v366, 20
  %v2921 = vpop.permute.xlu0 %2920
  %2922 = vrot.lane.b32.xlu0 %v367, 20
  %v2923 = vpop.permute.xlu0 %2922
  %2924 = vrot.lane.b32.xlu0 %v368, 20
  %v2925 = vpop.permute.xlu0 %2924
  %2926 = vrot.lane.b32.xlu0 %v369, 20
  %v2927 = vpop.permute.xlu0 %2926
  %2928 = vrot.lane.b32.xlu0 %v370, 20
  %v2929 = vpop.permute.xlu0 %2928
  %2930 = vrot.lane.b32.xlu0 %v371, 20
  %v2931 = vpop.permute.xlu0 %2930
  %2932 = vrot.lane.b32.xlu0 %v372, 20
  %v2933 = vpop.permute.xlu0 %2932
  %2934 = vrot.lane.b32.xlu0 %v373, 20
  %v2935 = vpop.permute.xlu0 %2934
  %2936 = vrot.lane.b32.xlu0 %v374, 20
  %v2937 = vpop.permute.xlu0 %2936
  %2938 = vrot.lane.b32.xlu0 %v375, 20
  %v2939 = vpop.permute.xlu0 %2938
  %2940 = vrot.lane.b32.xlu0 %v376, 20
  %v2941 = vpop.permute.xlu0 %2940
  %2942 = vrot.lane.b32.xlu0 %v377, 20
  %v2943 = vpop.permute.xlu0 %2942
  %2944 = vrot.lane.b32.xlu0 %v378, 20
  %v2945 = vpop.permute.xlu0 %2944
  %2946 = vrot.lane.b32.xlu0 %v379, 20
  %v2947 = vpop.permute.xlu0 %2946
  %2948 = vrot.lane.b32.xlu0 %v380, 20
  %v2949 = vpop.permute.xlu0 %2948
  %2950 = vrot.lane.b32.xlu0 %v381, 20
  %v2951 = vpop.permute.xlu0 %2950
  %2952 = vrot.lane.b32.xlu0 %v382, 20
  %v2953 = vpop.permute.xlu0 %2952
  %2954 = vrot.lane.b32.xlu0 %v383, 20
  %v2955 = vpop.permute.xlu0 %2954
  %2956 = vrot.lane.b32.xlu0 %v384, 20
  %v2957 = vpop.permute.xlu0 %2956
  %2958 = vrot.lane.b32.xlu0 %v385, 20
  %v2959 = vpop.permute.xlu0 %2958
  %2960 = vrot.lane.b32.xlu0 %v386, 20
  %v2961 = vpop.permute.xlu0 %2960
  %2962 = vrot.lane.b32.xlu0 %v387, 20
  %v2963 = vpop.permute.xlu0 %2962
  %2964 = vrot.lane.b32.xlu0 %v388, 20
  %v2965 = vpop.permute.xlu0 %2964
  %2966 = vrot.lane.b32.xlu0 %v389, 20
  %v2967 = vpop.permute.xlu0 %2966
  %2968 = vrot.lane.b32.xlu0 %v390, 20
  %v2969 = vpop.permute.xlu0 %2968
  %2970 = vrot.lane.b32.xlu0 %v391, 20
  %v2971 = vpop.permute.xlu0 %2970
  %2972 = vrot.lane.b32.xlu0 %v392, 20
  %v2973 = vpop.permute.xlu0 %2972
  %2974 = vrot.lane.b32.xlu0 %v393, 20
  %v2975 = vpop.permute.xlu0 %2974
  %2976 = vrot.lane.b32.xlu0 %v394, 20
  %v2977 = vpop.permute.xlu0 %2976
  %2978 = vrot.lane.b32.xlu0 %v395, 20
  %v2979 = vpop.permute.xlu0 %2978
  %2980 = vrot.lane.b32.xlu0 %v396, 20
  %v2981 = vpop.permute.xlu0 %2980
  %2982 = vrot.lane.b32.xlu0 %v397, 20
  %v2983 = vpop.permute.xlu0 %2982
  %2984 = vrot.lane.b32.xlu0 %v398, 20
  %v2985 = vpop.permute.xlu0 %2984
  %2986 = vrot.lane.b32.xlu0 %v399, 20
  %v2987 = vpop.permute.xlu0 %2986
  %2988 = vrot.lane.b32.xlu0 %v400, 20
  %v2989 = vpop.permute.xlu0 %2988
  %2990 = vrot.lane.b32.xlu0 %v401, 20
  %v2991 = vpop.permute.xlu0 %2990
  %2992 = vrot.lane.b32.xlu0 %v402, 20
  %v2993 = vpop.permute.xlu0 %2992
  %2994 = vrot.lane.b32.xlu0 %v403, 20
  %v2995 = vpop.permute.xlu0 %2994
  %2996 = vrot.lane.b32.xlu0 %v404, 20
  %v2997 = vpop.permute.xlu0 %2996
  %2998 = vrot.lane.b32.xlu0 %v405, 20
  %v2999 = vpop.permute.xlu0 %2998
  %3000 = vrot.lane.b32.xlu0 %v406, 20
  %v3001 = vpop.permute.xlu0 %3000
  %3002 = vrot.lane.b32.xlu0 %v407, 20
  %v3003 = vpop.permute.xlu0 %3002
  %3004 = vrot.lane.b32.xlu0 %v408, 20
  %v3005 = vpop.permute.xlu0 %3004
  %3006 = vrot.lane.b32.xlu0 %v409, 20
  %v3007 = vpop.permute.xlu0 %3006
  %3136 = vrot.lane.b32.xlu0 %v411, 24
  %v3137 = vpop.permute.xlu0 %3136
  %3138 = vrot.lane.b32.xlu0 %v412, 24
  %v3139 = vpop.permute.xlu0 %3138
  %3140 = vrot.lane.b32.xlu0 %v413, 24
  %v3141 = vpop.permute.xlu0 %3140
  %3142 = vrot.lane.b32.xlu0 %v414, 24
  %v3143 = vpop.permute.xlu0 %3142
  %3144 = vrot.lane.b32.xlu0 %v415, 24
  %v3145 = vpop.permute.xlu0 %3144
  %3146 = vrot.lane.b32.xlu0 %v416, 24
  %v3147 = vpop.permute.xlu0 %3146
  %3148 = vrot.lane.b32.xlu0 %v417, 24
  %v3149 = vpop.permute.xlu0 %3148
  %3150 = vrot.lane.b32.xlu0 %v418, 24
  %v3151 = vpop.permute.xlu0 %3150
  %3152 = vrot.lane.b32.xlu0 %v419, 24
  %v3153 = vpop.permute.xlu0 %3152
  %3154 = vrot.lane.b32.xlu0 %v420, 24
  %v3155 = vpop.permute.xlu0 %3154
  %3156 = vrot.lane.b32.xlu0 %v421, 24
  %v3157 = vpop.permute.xlu0 %3156
  %3158 = vrot.lane.b32.xlu0 %v422, 24
  %v3159 = vpop.permute.xlu0 %3158
  %3160 = vrot.lane.b32.xlu0 %v423, 24
  %v3161 = vpop.permute.xlu0 %3160
  %3162 = vrot.lane.b32.xlu0 %v424, 24
  %v3163 = vpop.permute.xlu0 %3162
  %3164 = vrot.lane.b32.xlu0 %v425, 24
  %v3165 = vpop.permute.xlu0 %3164
  %3166 = vrot.lane.b32.xlu0 %v426, 24
  %v3167 = vpop.permute.xlu0 %3166
  %3168 = vrot.lane.b32.xlu0 %v427, 24
  %v3169 = vpop.permute.xlu0 %3168
  %3170 = vrot.lane.b32.xlu0 %v428, 24
  %v3171 = vpop.permute.xlu0 %3170
  %3172 = vrot.lane.b32.xlu0 %v429, 24
  %v3173 = vpop.permute.xlu0 %3172
  %3174 = vrot.lane.b32.xlu0 %v430, 24
  %v3175 = vpop.permute.xlu0 %3174
  %3176 = vrot.lane.b32.xlu0 %v431, 24
  %v3177 = vpop.permute.xlu0 %3176
  %3178 = vrot.lane.b32.xlu0 %v432, 24
  %v3179 = vpop.permute.xlu0 %3178
  %3180 = vrot.lane.b32.xlu0 %v433, 24
  %v3181 = vpop.permute.xlu0 %3180
  %3182 = vrot.lane.b32.xlu0 %v434, 24
  %v3183 = vpop.permute.xlu0 %3182
  %3184 = vrot.lane.b32.xlu0 %v435, 24
  %v3185 = vpop.permute.xlu0 %3184
  %3186 = vrot.lane.b32.xlu0 %v436, 24
  %v3187 = vpop.permute.xlu0 %3186
  %3188 = vrot.lane.b32.xlu0 %v437, 24
  %v3189 = vpop.permute.xlu0 %3188
  %3190 = vrot.lane.b32.xlu0 %v438, 24
  %v3191 = vpop.permute.xlu0 %3190
  %3192 = vrot.lane.b32.xlu0 %v439, 24
  %v3193 = vpop.permute.xlu0 %3192
  %3194 = vrot.lane.b32.xlu0 %v440, 24
  %v3195 = vpop.permute.xlu0 %3194
  %3196 = vrot.lane.b32.xlu0 %v441, 24
  %v3197 = vpop.permute.xlu0 %3196
  %3198 = vrot.lane.b32.xlu0 %v442, 24
  %v3199 = vpop.permute.xlu0 %3198
  %3200 = vrot.lane.b32.xlu0 %v443, 24
  %v3201 = vpop.permute.xlu0 %3200
  %3202 = vrot.lane.b32.xlu0 %v444, 24
  %v3203 = vpop.permute.xlu0 %3202
  %3204 = vrot.lane.b32.xlu0 %v445, 24
  %v3205 = vpop.permute.xlu0 %3204
  %3206 = vrot.lane.b32.xlu0 %v446, 24
  %v3207 = vpop.permute.xlu0 %3206
  %3208 = vrot.lane.b32.xlu0 %v447, 24
  %v3209 = vpop.permute.xlu0 %3208
  %3210 = vrot.lane.b32.xlu0 %v448, 24
  %v3211 = vpop.permute.xlu0 %3210
  %3212 = vrot.lane.b32.xlu0 %v449, 24
  %v3213 = vpop.permute.xlu0 %3212
  %3214 = vrot.lane.b32.xlu0 %v450, 24
  %v3215 = vpop.permute.xlu0 %3214
  %3216 = vrot.lane.b32.xlu0 %v451, 24
  %v3217 = vpop.permute.xlu0 %3216
  %3218 = vrot.lane.b32.xlu0 %v452, 24
  %v3219 = vpop.permute.xlu0 %3218
  %3220 = vrot.lane.b32.xlu0 %v453, 24
  %v3221 = vpop.permute.xlu0 %3220
  %3222 = vrot.lane.b32.xlu0 %v454, 24
  %v3223 = vpop.permute.xlu0 %3222
  %3224 = vrot.lane.b32.xlu0 %v455, 24
  %v3225 = vpop.permute.xlu0 %3224
  %3226 = vrot.lane.b32.xlu0 %v456, 24
  %v3227 = vpop.permute.xlu0 %3226
  %3228 = vrot.lane.b32.xlu0 %v457, 24
  %v3229 = vpop.permute.xlu0 %3228
  %3230 = vrot.lane.b32.xlu0 %v458, 24
  %v3231 = vpop.permute.xlu0 %3230
  %3232 = vrot.lane.b32.xlu0 %v459, 24
  %v3233 = vpop.permute.xlu0 %3232
  %3234 = vrot.lane.b32.xlu0 %v460, 24
  %v3235 = vpop.permute.xlu0 %3234
  %3236 = vrot.lane.b32.xlu0 %v461, 24
  %v3237 = vpop.permute.xlu0 %3236
  %3238 = vrot.lane.b32.xlu0 %v462, 24
  %v3239 = vpop.permute.xlu0 %3238
  %3240 = vrot.lane.b32.xlu0 %v463, 24
  %v3241 = vpop.permute.xlu0 %3240
  %3242 = vrot.lane.b32.xlu0 %v464, 24
  %v3243 = vpop.permute.xlu0 %3242
  %3244 = vrot.lane.b32.xlu0 %v465, 24
  %v3245 = vpop.permute.xlu0 %3244
  %3246 = vrot.lane.b32.xlu0 %v466, 24
  %v3247 = vpop.permute.xlu0 %3246
  %3248 = vrot.lane.b32.xlu0 %v467, 24
  %v3249 = vpop.permute.xlu0 %3248
  %3250 = vrot.lane.b32.xlu0 %v468, 24
  %v3251 = vpop.permute.xlu0 %3250
  %3252 = vrot.lane.b32.xlu0 %v469, 24
  %v3253 = vpop.permute.xlu0 %3252
  %3254 = vrot.lane.b32.xlu0 %v470, 24
  %v3255 = vpop.permute.xlu0 %3254
  %3256 = vrot.lane.b32.xlu0 %v471, 24
  %v3257 = vpop.permute.xlu0 %3256
  %3258 = vrot.lane.b32.xlu0 %v472, 24
  %v3259 = vpop.permute.xlu0 %3258
  %3260 = vrot.lane.b32.xlu0 %v473, 24
  %v3261 = vpop.permute.xlu0 %3260
  %3262 = vrot.lane.b32.xlu0 %v474, 24
  %v3263 = vpop.permute.xlu0 %3262
  %3392 = vrot.lane.b32.xlu0 %v475, 28
  %v3393 = vpop.permute.xlu0 %3392
  %3394 = vrot.lane.b32.xlu0 %v476, 28
  %v3395 = vpop.permute.xlu0 %3394
  %3396 = vrot.lane.b32.xlu0 %v477, 28
  %v3397 = vpop.permute.xlu0 %3396
  %3398 = vrot.lane.b32.xlu0 %v478, 28
  %v3399 = vpop.permute.xlu0 %3398
  %3400 = vrot.lane.b32.xlu0 %v479, 28
  %v3401 = vpop.permute.xlu0 %3400
  %3402 = vrot.lane.b32.xlu0 %v480, 28
  %v3403 = vpop.permute.xlu0 %3402
  %3404 = vrot.lane.b32.xlu0 %v481, 28
  %v3405 = vpop.permute.xlu0 %3404
  %3406 = vrot.lane.b32.xlu0 %v482, 28
  %v3407 = vpop.permute.xlu0 %3406
  %3408 = vrot.lane.b32.xlu0 %v483, 28
  %v3409 = vpop.permute.xlu0 %3408
  %3410 = vrot.lane.b32.xlu0 %v484, 28
  %v3411 = vpop.permute.xlu0 %3410
  %3412 = vrot.lane.b32.xlu0 %v485, 28
  %v3413 = vpop.permute.xlu0 %3412
  %3414 = vrot.lane.b32.xlu0 %v486, 28
  %v3415 = vpop.permute.xlu0 %3414
  %3416 = vrot.lane.b32.xlu0 %v487, 28
  %v3417 = vpop.permute.xlu0 %3416
  %3418 = vrot.lane.b32.xlu0 %v488, 28
  %v3419 = vpop.permute.xlu0 %3418
  %3420 = vrot.lane.b32.xlu0 %v489, 28
  %v3421 = vpop.permute.xlu0 %3420
  %3422 = vrot.lane.b32.xlu0 %v490, 28
  %v3423 = vpop.permute.xlu0 %3422
  %3424 = vrot.lane.b32.xlu0 %v491, 28
  %v3425 = vpop.permute.xlu0 %3424
  %3426 = vrot.lane.b32.xlu0 %v492, 28
  %v3427 = vpop.permute.xlu0 %3426
  %3428 = vrot.lane.b32.xlu0 %v493, 28
  %v3429 = vpop.permute.xlu0 %3428
  %3430 = vrot.lane.b32.xlu0 %v494, 28
  %v3431 = vpop.permute.xlu0 %3430
  %3432 = vrot.lane.b32.xlu0 %v495, 28
  %v3433 = vpop.permute.xlu0 %3432
  %3434 = vrot.lane.b32.xlu0 %v496, 28
  %v3435 = vpop.permute.xlu0 %3434
  %3436 = vrot.lane.b32.xlu0 %v497, 28
  %v3437 = vpop.permute.xlu0 %3436
  %3438 = vrot.lane.b32.xlu0 %v498, 28
  %v3439 = vpop.permute.xlu0 %3438
  %3440 = vrot.lane.b32.xlu0 %v499, 28
  %v3441 = vpop.permute.xlu0 %3440
  %3442 = vrot.lane.b32.xlu0 %v500, 28
  %v3443 = vpop.permute.xlu0 %3442
  %3444 = vrot.lane.b32.xlu0 %v501, 28
  %v3445 = vpop.permute.xlu0 %3444
  %3446 = vrot.lane.b32.xlu0 %v502, 28
  %v3447 = vpop.permute.xlu0 %3446
  %3448 = vrot.lane.b32.xlu0 %v503, 28
  %v3449 = vpop.permute.xlu0 %3448
  %3450 = vrot.lane.b32.xlu0 %v504, 28
  %v3451 = vpop.permute.xlu0 %3450
  %3452 = vrot.lane.b32.xlu0 %v505, 28
  %v3453 = vpop.permute.xlu0 %3452
  %3454 = vrot.lane.b32.xlu0 %v506, 28
  %v3455 = vpop.permute.xlu0 %3454
  %3456 = vrot.lane.b32.xlu0 %v507, 28
  %v3457 = vpop.permute.xlu0 %3456
  %3458 = vrot.lane.b32.xlu0 %v508, 28
  %v3459 = vpop.permute.xlu0 %3458
  %3460 = vrot.lane.b32.xlu0 %v509, 28
  %v3461 = vpop.permute.xlu0 %3460
  %3462 = vrot.lane.b32.xlu0 %v510, 28
  %v3463 = vpop.permute.xlu0 %3462
  %3464 = vrot.lane.b32.xlu0 %v511, 28
  %v3465 = vpop.permute.xlu0 %3464
  %3466 = vrot.lane.b32.xlu0 %v512, 28
  %v3467 = vpop.permute.xlu0 %3466
  %3468 = vrot.lane.b32.xlu0 %v513, 28
  %v3469 = vpop.permute.xlu0 %3468
  %3470 = vrot.lane.b32.xlu0 %v514, 28
  %v3471 = vpop.permute.xlu0 %3470
  %3472 = vrot.lane.b32.xlu0 %v515, 28
  %v3473 = vpop.permute.xlu0 %3472
  %3474 = vrot.lane.b32.xlu0 %v516, 28
  %v3475 = vpop.permute.xlu0 %3474
  %3476 = vrot.lane.b32.xlu0 %v517, 28
  %v3477 = vpop.permute.xlu0 %3476
  %3478 = vrot.lane.b32.xlu0 %v518, 28
  %v3479 = vpop.permute.xlu0 %3478
  %3480 = vrot.lane.b32.xlu0 %v519, 28
  %v3481 = vpop.permute.xlu0 %3480
  %3482 = vrot.lane.b32.xlu0 %v520, 28
  %v3483 = vpop.permute.xlu0 %3482
  %3484 = vrot.lane.b32.xlu0 %v521, 28
  %v3485 = vpop.permute.xlu0 %3484
  %3486 = vrot.lane.b32.xlu0 %v522, 28
  %v3487 = vpop.permute.xlu0 %3486
  %3488 = vrot.lane.b32.xlu0 %v523, 28
  %v3489 = vpop.permute.xlu0 %3488
  %3490 = vrot.lane.b32.xlu0 %v524, 28
  %v3491 = vpop.permute.xlu0 %3490
  %3492 = vrot.lane.b32.xlu0 %v525, 28
  %v3493 = vpop.permute.xlu0 %3492
  %3494 = vrot.lane.b32.xlu0 %v526, 28
  %v3495 = vpop.permute.xlu0 %3494
  %3496 = vrot.lane.b32.xlu0 %v527, 28
  %v3497 = vpop.permute.xlu0 %3496
  %3498 = vrot.lane.b32.xlu0 %v528, 28
  %v3499 = vpop.permute.xlu0 %3498
  %3500 = vrot.lane.b32.xlu0 %v529, 28
  %v3501 = vpop.permute.xlu0 %3500
  %3502 = vrot.lane.b32.xlu0 %v530, 28
  %v3503 = vpop.permute.xlu0 %3502
  %3504 = vrot.lane.b32.xlu0 %v531, 28
  %v3505 = vpop.permute.xlu0 %3504
  %3506 = vrot.lane.b32.xlu0 %v532, 28
  %v3507 = vpop.permute.xlu0 %3506
  %3508 = vrot.lane.b32.xlu0 %v533, 28
  %v3509 = vpop.permute.xlu0 %3508
  %3510 = vrot.lane.b32.xlu0 %v534, 28
  %v3511 = vpop.permute.xlu0 %3510
  %3512 = vrot.lane.b32.xlu0 %v535, 28
  %v3513 = vpop.permute.xlu0 %3512
  %3514 = vrot.lane.b32.xlu0 %v536, 28
  %v3515 = vpop.permute.xlu0 %3514
  %3516 = vrot.lane.b32.xlu0 %v537, 28
  %v3517 = vpop.permute.xlu0 %3516
  %3518 = vrot.lane.b32.xlu0 %v538, 28
  %v3519 = vpop.permute.xlu0 %3518
  %3648 = vrot.lane.b32.xlu0 %v539, 32
  %v3649 = vpop.permute.xlu0 %3648
  %3650 = vrot.lane.b32.xlu0 %v540, 32
  %v3651 = vpop.permute.xlu0 %3650
  %3652 = vrot.lane.b32.xlu0 %v541, 32
  %v3653 = vpop.permute.xlu0 %3652
  %3654 = vrot.lane.b32.xlu0 %v542, 32
  %v3655 = vpop.permute.xlu0 %3654
  %3656 = vrot.lane.b32.xlu0 %v543, 32
  %v3657 = vpop.permute.xlu0 %3656
  %3658 = vrot.lane.b32.xlu0 %v544, 32
  %v3659 = vpop.permute.xlu0 %3658
  %3660 = vrot.lane.b32.xlu0 %v545, 32
  %v3661 = vpop.permute.xlu0 %3660
  %3662 = vrot.lane.b32.xlu0 %v546, 32
  %v3663 = vpop.permute.xlu0 %3662
  %3664 = vrot.lane.b32.xlu0 %v547, 32
  %v3665 = vpop.permute.xlu0 %3664
  %3666 = vrot.lane.b32.xlu0 %v548, 32
  %v3667 = vpop.permute.xlu0 %3666
  %3668 = vrot.lane.b32.xlu0 %v549, 32
  %v3669 = vpop.permute.xlu0 %3668
  %3670 = vrot.lane.b32.xlu0 %v550, 32
  %v3671 = vpop.permute.xlu0 %3670
  %3672 = vrot.lane.b32.xlu0 %v551, 32
  %v3673 = vpop.permute.xlu0 %3672
  %3674 = vrot.lane.b32.xlu0 %v552, 32
  %v3675 = vpop.permute.xlu0 %3674
  %3676 = vrot.lane.b32.xlu0 %v553, 32
  %v3677 = vpop.permute.xlu0 %3676
  %3678 = vrot.lane.b32.xlu0 %v554, 32
  %v3679 = vpop.permute.xlu0 %3678
  %3680 = vrot.lane.b32.xlu0 %v555, 32
  %v3681 = vpop.permute.xlu0 %3680
  %3682 = vrot.lane.b32.xlu0 %v556, 32
  %v3683 = vpop.permute.xlu0 %3682
  %3684 = vrot.lane.b32.xlu0 %v557, 32
  %v3685 = vpop.permute.xlu0 %3684
  %3686 = vrot.lane.b32.xlu0 %v558, 32
  %v3687 = vpop.permute.xlu0 %3686
  %3688 = vrot.lane.b32.xlu0 %v559, 32
  %v3689 = vpop.permute.xlu0 %3688
  %3690 = vrot.lane.b32.xlu0 %v560, 32
  %v3691 = vpop.permute.xlu0 %3690
  %3692 = vrot.lane.b32.xlu0 %v561, 32
  %v3693 = vpop.permute.xlu0 %3692
  %3694 = vrot.lane.b32.xlu0 %v562, 32
  %v3695 = vpop.permute.xlu0 %3694
  %3696 = vrot.lane.b32.xlu0 %v563, 32
  %v3697 = vpop.permute.xlu0 %3696
  %3698 = vrot.lane.b32.xlu0 %v564, 32
  %v3699 = vpop.permute.xlu0 %3698
  %3700 = vrot.lane.b32.xlu0 %v565, 32
  %v3701 = vpop.permute.xlu0 %3700
  %3702 = vrot.lane.b32.xlu0 %v566, 32
  %v3703 = vpop.permute.xlu0 %3702
  %3704 = vrot.lane.b32.xlu0 %v567, 32
  %v3705 = vpop.permute.xlu0 %3704
  %3706 = vrot.lane.b32.xlu0 %v568, 32
  %v3707 = vpop.permute.xlu0 %3706
  %3708 = vrot.lane.b32.xlu0 %v569, 32
  %v3709 = vpop.permute.xlu0 %3708
  %3710 = vrot.lane.b32.xlu0 %v570, 32
  %v3711 = vpop.permute.xlu0 %3710
  %3712 = vrot.lane.b32.xlu0 %v571, 32
  %v3713 = vpop.permute.xlu0 %3712
  %3714 = vrot.lane.b32.xlu0 %v572, 32
  %v3715 = vpop.permute.xlu0 %3714
  %3716 = vrot.lane.b32.xlu0 %v573, 32
  %v3717 = vpop.permute.xlu0 %3716
  %3718 = vrot.lane.b32.xlu0 %v574, 32
  %v3719 = vpop.permute.xlu0 %3718
  %3720 = vrot.lane.b32.xlu0 %v575, 32
  %v3721 = vpop.permute.xlu0 %3720
  %3722 = vrot.lane.b32.xlu0 %v576, 32
  %v3723 = vpop.permute.xlu0 %3722
  %3724 = vrot.lane.b32.xlu0 %v577, 32
  %v3725 = vpop.permute.xlu0 %3724
  %3726 = vrot.lane.b32.xlu0 %v578, 32
  %v3727 = vpop.permute.xlu0 %3726
  %3728 = vrot.lane.b32.xlu0 %v579, 32
  %v3729 = vpop.permute.xlu0 %3728
  %3730 = vrot.lane.b32.xlu0 %v580, 32
  %v3731 = vpop.permute.xlu0 %3730
  %3732 = vrot.lane.b32.xlu0 %v581, 32
  %v3733 = vpop.permute.xlu0 %3732
  %3734 = vrot.lane.b32.xlu0 %v582, 32
  %v3735 = vpop.permute.xlu0 %3734
  %3736 = vrot.lane.b32.xlu0 %v583, 32
  %v3737 = vpop.permute.xlu0 %3736
  %3738 = vrot.lane.b32.xlu0 %v584, 32
  %v3739 = vpop.permute.xlu0 %3738
  %3740 = vrot.lane.b32.xlu0 %v585, 32
  %v3741 = vpop.permute.xlu0 %3740
  %3742 = vrot.lane.b32.xlu0 %v586, 32
  %v3743 = vpop.permute.xlu0 %3742
  %3744 = vrot.lane.b32.xlu0 %v587, 32
  %v3745 = vpop.permute.xlu0 %3744
  %3746 = vrot.lane.b32.xlu0 %v588, 32
  %v3747 = vpop.permute.xlu0 %3746
  %3748 = vrot.lane.b32.xlu0 %v589, 32
  %v3749 = vpop.permute.xlu0 %3748
  %3750 = vrot.lane.b32.xlu0 %v590, 32
  %v3751 = vpop.permute.xlu0 %3750
  %3752 = vrot.lane.b32.xlu0 %v591, 32
  %v3753 = vpop.permute.xlu0 %3752
  %3754 = vrot.lane.b32.xlu0 %v592, 32
  %v3755 = vpop.permute.xlu0 %3754
  %3756 = vrot.lane.b32.xlu0 %v593, 32
  %v3757 = vpop.permute.xlu0 %3756
  %3758 = vrot.lane.b32.xlu0 %v594, 32
  %v3759 = vpop.permute.xlu0 %3758
  %3760 = vrot.lane.b32.xlu0 %v595, 32
  %v3761 = vpop.permute.xlu0 %3760
  %3762 = vrot.lane.b32.xlu0 %v596, 32
  %v3763 = vpop.permute.xlu0 %3762
  %3764 = vrot.lane.b32.xlu0 %v597, 32
  %v3765 = vpop.permute.xlu0 %3764
  %3766 = vrot.lane.b32.xlu0 %v598, 32
  %v3767 = vpop.permute.xlu0 %3766
  %3768 = vrot.lane.b32.xlu0 %v599, 32
  %v3769 = vpop.permute.xlu0 %3768
  %3770 = vrot.lane.b32.xlu0 %v600, 32
  %v3771 = vpop.permute.xlu0 %3770
  %3772 = vrot.lane.b32.xlu0 %v601, 32
  %v3773 = vpop.permute.xlu0 %3772
  %3774 = vrot.lane.b32.xlu0 %v602, 32
  %v3775 = vpop.permute.xlu0 %3774
  %3904 = vrot.lane.b32.xlu0 %v604, 36
  %v3905 = vpop.permute.xlu0 %3904
  %3906 = vrot.lane.b32.xlu0 %v605, 36
  %v3907 = vpop.permute.xlu0 %3906
  %3908 = vrot.lane.b32.xlu0 %v606, 36
  %v3909 = vpop.permute.xlu0 %3908
  %3910 = vrot.lane.b32.xlu0 %v607, 36
  %v3911 = vpop.permute.xlu0 %3910
  %3912 = vrot.lane.b32.xlu0 %v608, 36
  %v3913 = vpop.permute.xlu0 %3912
  %3914 = vrot.lane.b32.xlu0 %v609, 36
  %v3915 = vpop.permute.xlu0 %3914
  %3916 = vrot.lane.b32.xlu0 %v610, 36
  %v3917 = vpop.permute.xlu0 %3916
  %3918 = vrot.lane.b32.xlu0 %v611, 36
  %v3919 = vpop.permute.xlu0 %3918
  %3920 = vrot.lane.b32.xlu0 %v612, 36
  %v3921 = vpop.permute.xlu0 %3920
  %3922 = vrot.lane.b32.xlu0 %v613, 36
  %v3923 = vpop.permute.xlu0 %3922
  %3924 = vrot.lane.b32.xlu0 %v614, 36
  %v3925 = vpop.permute.xlu0 %3924
  %3926 = vrot.lane.b32.xlu0 %v615, 36
  %v3927 = vpop.permute.xlu0 %3926
  %3928 = vrot.lane.b32.xlu0 %v616, 36
  %v3929 = vpop.permute.xlu0 %3928
  %3930 = vrot.lane.b32.xlu0 %v617, 36
  %v3931 = vpop.permute.xlu0 %3930
  %3932 = vrot.lane.b32.xlu0 %v618, 36
  %v3933 = vpop.permute.xlu0 %3932
  %3934 = vrot.lane.b32.xlu0 %v619, 36
  %v3935 = vpop.permute.xlu0 %3934
  %3936 = vrot.lane.b32.xlu0 %v620, 36
  %v3937 = vpop.permute.xlu0 %3936
  %3938 = vrot.lane.b32.xlu0 %v621, 36
  %v3939 = vpop.permute.xlu0 %3938
  %3940 = vrot.lane.b32.xlu0 %v622, 36
  %v3941 = vpop.permute.xlu0 %3940
  %3942 = vrot.lane.b32.xlu0 %v623, 36
  %v3943 = vpop.permute.xlu0 %3942
  %3944 = vrot.lane.b32.xlu0 %v624, 36
  %v3945 = vpop.permute.xlu0 %3944
  %3946 = vrot.lane.b32.xlu0 %v625, 36
  %v3947 = vpop.permute.xlu0 %3946
  %3948 = vrot.lane.b32.xlu0 %v626, 36
  %v3949 = vpop.permute.xlu0 %3948
  %3950 = vrot.lane.b32.xlu0 %v627, 36
  %v3951 = vpop.permute.xlu0 %3950
  %3952 = vrot.lane.b32.xlu0 %v628, 36
  %v3953 = vpop.permute.xlu0 %3952
  %3954 = vrot.lane.b32.xlu0 %v629, 36
  %v3955 = vpop.permute.xlu0 %3954
  %3956 = vrot.lane.b32.xlu0 %v630, 36
  %v3957 = vpop.permute.xlu0 %3956
  %3958 = vrot.lane.b32.xlu0 %v631, 36
  %v3959 = vpop.permute.xlu0 %3958
  %3960 = vrot.lane.b32.xlu0 %v632, 36
  %v3961 = vpop.permute.xlu0 %3960
  %3962 = vrot.lane.b32.xlu0 %v633, 36
  %v3963 = vpop.permute.xlu0 %3962
  %3964 = vrot.lane.b32.xlu0 %v634, 36
  %v3965 = vpop.permute.xlu0 %3964
  %3966 = vrot.lane.b32.xlu0 %v635, 36
  %v3967 = vpop.permute.xlu0 %3966
  %3968 = vrot.lane.b32.xlu0 %v636, 36
  %v3969 = vpop.permute.xlu0 %3968
  %3970 = vrot.lane.b32.xlu0 %v637, 36
  %v3971 = vpop.permute.xlu0 %3970
  %3972 = vrot.lane.b32.xlu0 %v638, 36
  %v3973 = vpop.permute.xlu0 %3972
  %3974 = vrot.lane.b32.xlu0 %v639, 36
  %v3975 = vpop.permute.xlu0 %3974
  %3976 = vrot.lane.b32.xlu0 %v640, 36
  %v3977 = vpop.permute.xlu0 %3976
  %3978 = vrot.lane.b32.xlu0 %v641, 36
  %v3979 = vpop.permute.xlu0 %3978
  %3980 = vrot.lane.b32.xlu0 %v642, 36
  %v3981 = vpop.permute.xlu0 %3980
  %3982 = vrot.lane.b32.xlu0 %v643, 36
  %v3983 = vpop.permute.xlu0 %3982
  %3984 = vrot.lane.b32.xlu0 %v644, 36
  %v3985 = vpop.permute.xlu0 %3984
  %3986 = vrot.lane.b32.xlu0 %v645, 36
  %v3987 = vpop.permute.xlu0 %3986
  %3988 = vrot.lane.b32.xlu0 %v646, 36
  %v3989 = vpop.permute.xlu0 %3988
  %3990 = vrot.lane.b32.xlu0 %v647, 36
  %v3991 = vpop.permute.xlu0 %3990
  %3992 = vrot.lane.b32.xlu0 %v648, 36
  %v3993 = vpop.permute.xlu0 %3992
  %3994 = vrot.lane.b32.xlu0 %v649, 36
  %v3995 = vpop.permute.xlu0 %3994
  %3996 = vrot.lane.b32.xlu0 %v650, 36
  %v3997 = vpop.permute.xlu0 %3996
  %3998 = vrot.lane.b32.xlu0 %v651, 36
  %v3999 = vpop.permute.xlu0 %3998
  %4000 = vrot.lane.b32.xlu0 %v652, 36
  %v4001 = vpop.permute.xlu0 %4000
  %4002 = vrot.lane.b32.xlu0 %v653, 36
  %v4003 = vpop.permute.xlu0 %4002
  %4004 = vrot.lane.b32.xlu0 %v654, 36
  %v4005 = vpop.permute.xlu0 %4004
  %4006 = vrot.lane.b32.xlu0 %v655, 36
  %v4007 = vpop.permute.xlu0 %4006
  %4008 = vrot.lane.b32.xlu0 %v656, 36
  %v4009 = vpop.permute.xlu0 %4008
  %4010 = vrot.lane.b32.xlu0 %v657, 36
  %v4011 = vpop.permute.xlu0 %4010
  %4012 = vrot.lane.b32.xlu0 %v658, 36
  %v4013 = vpop.permute.xlu0 %4012
  %4014 = vrot.lane.b32.xlu0 %v659, 36
  %v4015 = vpop.permute.xlu0 %4014
  %4016 = vrot.lane.b32.xlu0 %v660, 36
  %v4017 = vpop.permute.xlu0 %4016
  %4018 = vrot.lane.b32.xlu0 %v661, 36
  %v4019 = vpop.permute.xlu0 %4018
  %4020 = vrot.lane.b32.xlu0 %v662, 36
  %v4021 = vpop.permute.xlu0 %4020
  %4022 = vrot.lane.b32.xlu0 %v663, 36
  %v4023 = vpop.permute.xlu0 %4022
  %4024 = vrot.lane.b32.xlu0 %v664, 36
  %v4025 = vpop.permute.xlu0 %4024
  %4026 = vrot.lane.b32.xlu0 %v665, 36
  %v4027 = vpop.permute.xlu0 %4026
  %4028 = vrot.lane.b32.xlu0 %v666, 36
  %v4029 = vpop.permute.xlu0 %4028
  %4030 = vrot.lane.b32.xlu0 %v667, 36
  %v4031 = vpop.permute.xlu0 %4030
  %4160 = vrot.lane.b32.xlu0 %v668, 40
  %v4161 = vpop.permute.xlu0 %4160
  %4162 = vrot.lane.b32.xlu0 %v669, 40
  %v4163 = vpop.permute.xlu0 %4162
  %4164 = vrot.lane.b32.xlu0 %v670, 40
  %v4165 = vpop.permute.xlu0 %4164
  %4166 = vrot.lane.b32.xlu0 %v671, 40
  %v4167 = vpop.permute.xlu0 %4166
  %4168 = vrot.lane.b32.xlu0 %v672, 40
  %v4169 = vpop.permute.xlu0 %4168
  %4170 = vrot.lane.b32.xlu0 %v673, 40
  %v4171 = vpop.permute.xlu0 %4170
  %4172 = vrot.lane.b32.xlu0 %v674, 40
  %v4173 = vpop.permute.xlu0 %4172
  %4174 = vrot.lane.b32.xlu0 %v675, 40
  %v4175 = vpop.permute.xlu0 %4174
  %4176 = vrot.lane.b32.xlu0 %v676, 40
  %v4177 = vpop.permute.xlu0 %4176
  %4178 = vrot.lane.b32.xlu0 %v677, 40
  %v4179 = vpop.permute.xlu0 %4178
  %4180 = vrot.lane.b32.xlu0 %v678, 40
  %v4181 = vpop.permute.xlu0 %4180
  %4182 = vrot.lane.b32.xlu0 %v679, 40
  %v4183 = vpop.permute.xlu0 %4182
  %4184 = vrot.lane.b32.xlu0 %v680, 40
  %v4185 = vpop.permute.xlu0 %4184
  %4186 = vrot.lane.b32.xlu0 %v681, 40
  %v4187 = vpop.permute.xlu0 %4186
  %4188 = vrot.lane.b32.xlu0 %v682, 40
  %v4189 = vpop.permute.xlu0 %4188
  %4190 = vrot.lane.b32.xlu0 %v683, 40
  %v4191 = vpop.permute.xlu0 %4190
  %4192 = vrot.lane.b32.xlu0 %v684, 40
  %v4193 = vpop.permute.xlu0 %4192
  %4194 = vrot.lane.b32.xlu0 %v685, 40
  %v4195 = vpop.permute.xlu0 %4194
  %4196 = vrot.lane.b32.xlu0 %v686, 40
  %v4197 = vpop.permute.xlu0 %4196
  %4198 = vrot.lane.b32.xlu0 %v687, 40
  %v4199 = vpop.permute.xlu0 %4198
  %4200 = vrot.lane.b32.xlu0 %v688, 40
  %v4201 = vpop.permute.xlu0 %4200
  %4202 = vrot.lane.b32.xlu0 %v689, 40
  %v4203 = vpop.permute.xlu0 %4202
  %4204 = vrot.lane.b32.xlu0 %v690, 40
  %v4205 = vpop.permute.xlu0 %4204
  %4206 = vrot.lane.b32.xlu0 %v691, 40
  %v4207 = vpop.permute.xlu0 %4206
  %4208 = vrot.lane.b32.xlu0 %v692, 40
  %v4209 = vpop.permute.xlu0 %4208
  %4210 = vrot.lane.b32.xlu0 %v693, 40
  %v4211 = vpop.permute.xlu0 %4210
  %4212 = vrot.lane.b32.xlu0 %v694, 40
  %v4213 = vpop.permute.xlu0 %4212
  %4214 = vrot.lane.b32.xlu0 %v695, 40
  %v4215 = vpop.permute.xlu0 %4214
  %4216 = vrot.lane.b32.xlu0 %v696, 40
  %v4217 = vpop.permute.xlu0 %4216
  %4218 = vrot.lane.b32.xlu0 %v697, 40
  %v4219 = vpop.permute.xlu0 %4218
  %4220 = vrot.lane.b32.xlu0 %v698, 40
  %v4221 = vpop.permute.xlu0 %4220
  %4222 = vrot.lane.b32.xlu0 %v699, 40
  %v4223 = vpop.permute.xlu0 %4222
  %4224 = vrot.lane.b32.xlu0 %v700, 40
  %v4225 = vpop.permute.xlu0 %4224
  %4226 = vrot.lane.b32.xlu0 %v701, 40
  %v4227 = vpop.permute.xlu0 %4226
  %4228 = vrot.lane.b32.xlu0 %v702, 40
  %v4229 = vpop.permute.xlu0 %4228
  %4230 = vrot.lane.b32.xlu0 %v703, 40
  %v4231 = vpop.permute.xlu0 %4230
  %4232 = vrot.lane.b32.xlu0 %v704, 40
  %v4233 = vpop.permute.xlu0 %4232
  %4234 = vrot.lane.b32.xlu0 %v705, 40
  %v4235 = vpop.permute.xlu0 %4234
  %4236 = vrot.lane.b32.xlu0 %v706, 40
  %v4237 = vpop.permute.xlu0 %4236
  %4238 = vrot.lane.b32.xlu0 %v707, 40
  %v4239 = vpop.permute.xlu0 %4238
  %4240 = vrot.lane.b32.xlu0 %v708, 40
  %v4241 = vpop.permute.xlu0 %4240
  %4242 = vrot.lane.b32.xlu0 %v709, 40
  %v4243 = vpop.permute.xlu0 %4242
  %4244 = vrot.lane.b32.xlu0 %v710, 40
  %v4245 = vpop.permute.xlu0 %4244
  %4246 = vrot.lane.b32.xlu0 %v711, 40
  %v4247 = vpop.permute.xlu0 %4246
  %4248 = vrot.lane.b32.xlu0 %v712, 40
  %v4249 = vpop.permute.xlu0 %4248
  %4250 = vrot.lane.b32.xlu0 %v713, 40
  %v4251 = vpop.permute.xlu0 %4250
  %4252 = vrot.lane.b32.xlu0 %v714, 40
  %v4253 = vpop.permute.xlu0 %4252
  %4254 = vrot.lane.b32.xlu0 %v715, 40
  %v4255 = vpop.permute.xlu0 %4254
  %4256 = vrot.lane.b32.xlu0 %v716, 40
  %v4257 = vpop.permute.xlu0 %4256
  %4258 = vrot.lane.b32.xlu0 %v717, 40
  %v4259 = vpop.permute.xlu0 %4258
  %4260 = vrot.lane.b32.xlu0 %v718, 40
  %v4261 = vpop.permute.xlu0 %4260
  %4262 = vrot.lane.b32.xlu0 %v719, 40
  %v4263 = vpop.permute.xlu0 %4262
  %4264 = vrot.lane.b32.xlu0 %v720, 40
  %v4265 = vpop.permute.xlu0 %4264
  %4266 = vrot.lane.b32.xlu0 %v721, 40
  %v4267 = vpop.permute.xlu0 %4266
  %4268 = vrot.lane.b32.xlu0 %v722, 40
  %v4269 = vpop.permute.xlu0 %4268
  %4270 = vrot.lane.b32.xlu0 %v723, 40
  %v4271 = vpop.permute.xlu0 %4270
  %4272 = vrot.lane.b32.xlu0 %v724, 40
  %v4273 = vpop.permute.xlu0 %4272
  %4274 = vrot.lane.b32.xlu0 %v725, 40
  %v4275 = vpop.permute.xlu0 %4274
  %4276 = vrot.lane.b32.xlu0 %v726, 40
  %v4277 = vpop.permute.xlu0 %4276
  %4278 = vrot.lane.b32.xlu0 %v727, 40
  %v4279 = vpop.permute.xlu0 %4278
  %4280 = vrot.lane.b32.xlu0 %v728, 40
  %v4281 = vpop.permute.xlu0 %4280
  %4282 = vrot.lane.b32.xlu0 %v729, 40
  %v4283 = vpop.permute.xlu0 %4282
  %4284 = vrot.lane.b32.xlu0 %v730, 40
  %v4285 = vpop.permute.xlu0 %4284
  %4286 = vrot.lane.b32.xlu0 %v731, 40
  %v4287 = vpop.permute.xlu0 %4286
  %4384 = vrot.lane.b32.xlu0 %v605, 44
  %v4385 = vpop.permute.xlu0 %4384
  %4386 = vrot.lane.b32.xlu0 %v732, 44
  %v4387 = vpop.permute.xlu0 %4386
  %4388 = vrot.lane.b32.xlu0 %v607, 44
  %v4389 = vpop.permute.xlu0 %4388
  %4390 = vrot.lane.b32.xlu0 %v733, 44
  %v4391 = vpop.permute.xlu0 %4390
  %4392 = vrot.lane.b32.xlu0 %v609, 44
  %v4393 = vpop.permute.xlu0 %4392
  %4394 = vrot.lane.b32.xlu0 %v734, 44
  %v4395 = vpop.permute.xlu0 %4394
  %4396 = vrot.lane.b32.xlu0 %v611, 44
  %v4397 = vpop.permute.xlu0 %4396
  %4398 = vrot.lane.b32.xlu0 %v735, 44
  %v4399 = vpop.permute.xlu0 %4398
  %4400 = vrot.lane.b32.xlu0 %v613, 44
  %v4401 = vpop.permute.xlu0 %4400
  %4402 = vrot.lane.b32.xlu0 %v736, 44
  %v4403 = vpop.permute.xlu0 %4402
  %4404 = vrot.lane.b32.xlu0 %v615, 44
  %v4405 = vpop.permute.xlu0 %4404
  %4406 = vrot.lane.b32.xlu0 %v737, 44
  %v4407 = vpop.permute.xlu0 %4406
  %4408 = vrot.lane.b32.xlu0 %v617, 44
  %v4409 = vpop.permute.xlu0 %4408
  %4410 = vrot.lane.b32.xlu0 %v738, 44
  %v4411 = vpop.permute.xlu0 %4410
  %4412 = vrot.lane.b32.xlu0 %v619, 44
  %v4413 = vpop.permute.xlu0 %4412
  %4414 = vrot.lane.b32.xlu0 %v739, 44
  %v4415 = vpop.permute.xlu0 %4414
  %4416 = vrot.lane.b32.xlu0 %v621, 44
  %v4417 = vpop.permute.xlu0 %4416
  %4418 = vrot.lane.b32.xlu0 %v740, 44
  %v4419 = vpop.permute.xlu0 %4418
  %4420 = vrot.lane.b32.xlu0 %v623, 44
  %v4421 = vpop.permute.xlu0 %4420
  %4422 = vrot.lane.b32.xlu0 %v741, 44
  %v4423 = vpop.permute.xlu0 %4422
  %4424 = vrot.lane.b32.xlu0 %v625, 44
  %v4425 = vpop.permute.xlu0 %4424
  %4426 = vrot.lane.b32.xlu0 %v742, 44
  %v4427 = vpop.permute.xlu0 %4426
  %4428 = vrot.lane.b32.xlu0 %v627, 44
  %v4429 = vpop.permute.xlu0 %4428
  %4430 = vrot.lane.b32.xlu0 %v743, 44
  %v4431 = vpop.permute.xlu0 %4430
  %4432 = vrot.lane.b32.xlu0 %v629, 44
  %v4433 = vpop.permute.xlu0 %4432
  %4434 = vrot.lane.b32.xlu0 %v744, 44
  %v4435 = vpop.permute.xlu0 %4434
  %4436 = vrot.lane.b32.xlu0 %v631, 44
  %v4437 = vpop.permute.xlu0 %4436
  %4438 = vrot.lane.b32.xlu0 %v745, 44
  %v4439 = vpop.permute.xlu0 %4438
  %4440 = vrot.lane.b32.xlu0 %v633, 44
  %v4441 = vpop.permute.xlu0 %4440
  %4442 = vrot.lane.b32.xlu0 %v746, 44
  %v4443 = vpop.permute.xlu0 %4442
  %4444 = vrot.lane.b32.xlu0 %v635, 44
  %v4445 = vpop.permute.xlu0 %4444
  %4446 = vrot.lane.b32.xlu0 %v747, 44
  %v4447 = vpop.permute.xlu0 %4446
  %4448 = vrot.lane.b32.xlu0 %v637, 44
  %v4449 = vpop.permute.xlu0 %4448
  %4450 = vrot.lane.b32.xlu0 %v748, 44
  %v4451 = vpop.permute.xlu0 %4450
  %4452 = vrot.lane.b32.xlu0 %v639, 44
  %v4453 = vpop.permute.xlu0 %4452
  %4454 = vrot.lane.b32.xlu0 %v749, 44
  %v4455 = vpop.permute.xlu0 %4454
  %4456 = vrot.lane.b32.xlu0 %v641, 44
  %v4457 = vpop.permute.xlu0 %4456
  %4458 = vrot.lane.b32.xlu0 %v750, 44
  %v4459 = vpop.permute.xlu0 %4458
  %4460 = vrot.lane.b32.xlu0 %v643, 44
  %v4461 = vpop.permute.xlu0 %4460
  %4462 = vrot.lane.b32.xlu0 %v751, 44
  %v4463 = vpop.permute.xlu0 %4462
  %4464 = vrot.lane.b32.xlu0 %v645, 44
  %v4465 = vpop.permute.xlu0 %4464
  %4466 = vrot.lane.b32.xlu0 %v752, 44
  %v4467 = vpop.permute.xlu0 %4466
  %4468 = vrot.lane.b32.xlu0 %v647, 44
  %v4469 = vpop.permute.xlu0 %4468
  %4470 = vrot.lane.b32.xlu0 %v753, 44
  %v4471 = vpop.permute.xlu0 %4470
  %4472 = vrot.lane.b32.xlu0 %v649, 44
  %v4473 = vpop.permute.xlu0 %4472
  %4474 = vrot.lane.b32.xlu0 %v754, 44
  %v4475 = vpop.permute.xlu0 %4474
  %4476 = vrot.lane.b32.xlu0 %v651, 44
  %v4477 = vpop.permute.xlu0 %4476
  %4478 = vrot.lane.b32.xlu0 %v755, 44
  %v4479 = vpop.permute.xlu0 %4478
  %4480 = vrot.lane.b32.xlu0 %v653, 44
  %v4481 = vpop.permute.xlu0 %4480
  %4482 = vrot.lane.b32.xlu0 %v756, 44
  %v4483 = vpop.permute.xlu0 %4482
  %4484 = vrot.lane.b32.xlu0 %v655, 44
  %v4485 = vpop.permute.xlu0 %4484
  %4486 = vrot.lane.b32.xlu0 %v757, 44
  %v4487 = vpop.permute.xlu0 %4486
  %4488 = vrot.lane.b32.xlu0 %v657, 44
  %v4489 = vpop.permute.xlu0 %4488
  %4490 = vrot.lane.b32.xlu0 %v758, 44
  %v4491 = vpop.permute.xlu0 %4490
  %4492 = vrot.lane.b32.xlu0 %v659, 44
  %v4493 = vpop.permute.xlu0 %4492
  %4494 = vrot.lane.b32.xlu0 %v759, 44
  %v4495 = vpop.permute.xlu0 %4494
  %4496 = vrot.lane.b32.xlu0 %v661, 44
  %v4497 = vpop.permute.xlu0 %4496
  %4498 = vrot.lane.b32.xlu0 %v760, 44
  %v4499 = vpop.permute.xlu0 %4498
  %4500 = vrot.lane.b32.xlu0 %v663, 44
  %v4501 = vpop.permute.xlu0 %4500
  %4502 = vrot.lane.b32.xlu0 %v761, 44
  %v4503 = vpop.permute.xlu0 %4502
  %4504 = vrot.lane.b32.xlu0 %v665, 44
  %v4505 = vpop.permute.xlu0 %4504
  %4506 = vrot.lane.b32.xlu0 %v762, 44
  %v4507 = vpop.permute.xlu0 %4506
  %4508 = vrot.lane.b32.xlu0 %v667, 44
  %v4509 = vpop.permute.xlu0 %4508
  %4510 = vrot.lane.b32.xlu0 %v763, 44
  %v4511 = vpop.permute.xlu0 %4510
  %4640 = vrot.lane.b32.xlu0 %v764, 48
  %v4641 = vpop.permute.xlu0 %4640
  %4642 = vrot.lane.b32.xlu0 %v765, 48
  %v4643 = vpop.permute.xlu0 %4642
  %4644 = vrot.lane.b32.xlu0 %v766, 48
  %v4645 = vpop.permute.xlu0 %4644
  %4646 = vrot.lane.b32.xlu0 %v767, 48
  %v4647 = vpop.permute.xlu0 %4646
  %4648 = vrot.lane.b32.xlu0 %v768, 48
  %v4649 = vpop.permute.xlu0 %4648
  %4650 = vrot.lane.b32.xlu0 %v769, 48
  %v4651 = vpop.permute.xlu0 %4650
  %4652 = vrot.lane.b32.xlu0 %v770, 48
  %v4653 = vpop.permute.xlu0 %4652
  %4654 = vrot.lane.b32.xlu0 %v771, 48
  %v4655 = vpop.permute.xlu0 %4654
  %4656 = vrot.lane.b32.xlu0 %v772, 48
  %v4657 = vpop.permute.xlu0 %4656
  %4658 = vrot.lane.b32.xlu0 %v773, 48
  %v4659 = vpop.permute.xlu0 %4658
  %4660 = vrot.lane.b32.xlu0 %v774, 48
  %v4661 = vpop.permute.xlu0 %4660
  %4662 = vrot.lane.b32.xlu0 %v775, 48
  %v4663 = vpop.permute.xlu0 %4662
  %4664 = vrot.lane.b32.xlu0 %v776, 48
  %v4665 = vpop.permute.xlu0 %4664
  %4666 = vrot.lane.b32.xlu0 %v777, 48
  %v4667 = vpop.permute.xlu0 %4666
  %4668 = vrot.lane.b32.xlu0 %v778, 48
  %v4669 = vpop.permute.xlu0 %4668
  %4670 = vrot.lane.b32.xlu0 %v779, 48
  %v4671 = vpop.permute.xlu0 %4670
  %4672 = vrot.lane.b32.xlu0 %v780, 48
  %v4673 = vpop.permute.xlu0 %4672
  %4674 = vrot.lane.b32.xlu0 %v781, 48
  %v4675 = vpop.permute.xlu0 %4674
  %4676 = vrot.lane.b32.xlu0 %v782, 48
  %v4677 = vpop.permute.xlu0 %4676
  %4678 = vrot.lane.b32.xlu0 %v783, 48
  %v4679 = vpop.permute.xlu0 %4678
  %4680 = vrot.lane.b32.xlu0 %v784, 48
  %v4681 = vpop.permute.xlu0 %4680
  %4682 = vrot.lane.b32.xlu0 %v785, 48
  %v4683 = vpop.permute.xlu0 %4682
  %4684 = vrot.lane.b32.xlu0 %v786, 48
  %v4685 = vpop.permute.xlu0 %4684
  %4686 = vrot.lane.b32.xlu0 %v787, 48
  %v4687 = vpop.permute.xlu0 %4686
  %4688 = vrot.lane.b32.xlu0 %v788, 48
  %v4689 = vpop.permute.xlu0 %4688
  %4690 = vrot.lane.b32.xlu0 %v789, 48
  %v4691 = vpop.permute.xlu0 %4690
  %4692 = vrot.lane.b32.xlu0 %v790, 48
  %v4693 = vpop.permute.xlu0 %4692
  %4694 = vrot.lane.b32.xlu0 %v791, 48
  %v4695 = vpop.permute.xlu0 %4694
  %4696 = vrot.lane.b32.xlu0 %v792, 48
  %v4697 = vpop.permute.xlu0 %4696
  %4698 = vrot.lane.b32.xlu0 %v793, 48
  %v4699 = vpop.permute.xlu0 %4698
  %4700 = vrot.lane.b32.xlu0 %v794, 48
  %v4701 = vpop.permute.xlu0 %4700
  %4702 = vrot.lane.b32.xlu0 %v795, 48
  %v4703 = vpop.permute.xlu0 %4702
  %4704 = vrot.lane.b32.xlu0 %v796, 48
  %v4705 = vpop.permute.xlu0 %4704
  %4706 = vrot.lane.b32.xlu0 %v797, 48
  %v4707 = vpop.permute.xlu0 %4706
  %4708 = vrot.lane.b32.xlu0 %v798, 48
  %v4709 = vpop.permute.xlu0 %4708
  %4710 = vrot.lane.b32.xlu0 %v799, 48
  %v4711 = vpop.permute.xlu0 %4710
  %4712 = vrot.lane.b32.xlu0 %v800, 48
  %v4713 = vpop.permute.xlu0 %4712
  %4714 = vrot.lane.b32.xlu0 %v801, 48
  %v4715 = vpop.permute.xlu0 %4714
  %4716 = vrot.lane.b32.xlu0 %v802, 48
  %v4717 = vpop.permute.xlu0 %4716
  %4718 = vrot.lane.b32.xlu0 %v803, 48
  %v4719 = vpop.permute.xlu0 %4718
  %4720 = vrot.lane.b32.xlu0 %v804, 48
  %v4721 = vpop.permute.xlu0 %4720
  %4722 = vrot.lane.b32.xlu0 %v805, 48
  %v4723 = vpop.permute.xlu0 %4722
  %4724 = vrot.lane.b32.xlu0 %v806, 48
  %v4725 = vpop.permute.xlu0 %4724
  %4726 = vrot.lane.b32.xlu0 %v807, 48
  %v4727 = vpop.permute.xlu0 %4726
  %4728 = vrot.lane.b32.xlu0 %v808, 48
  %v4729 = vpop.permute.xlu0 %4728
  %4730 = vrot.lane.b32.xlu0 %v809, 48
  %v4731 = vpop.permute.xlu0 %4730
  %4732 = vrot.lane.b32.xlu0 %v810, 48
  %v4733 = vpop.permute.xlu0 %4732
  %4734 = vrot.lane.b32.xlu0 %v811, 48
  %v4735 = vpop.permute.xlu0 %4734
  %4736 = vrot.lane.b32.xlu0 %v812, 48
  %v4737 = vpop.permute.xlu0 %4736
  %4738 = vrot.lane.b32.xlu0 %v813, 48
  %v4739 = vpop.permute.xlu0 %4738
  %4740 = vrot.lane.b32.xlu0 %v814, 48
  %v4741 = vpop.permute.xlu0 %4740
  %4742 = vrot.lane.b32.xlu0 %v815, 48
  %v4743 = vpop.permute.xlu0 %4742
  %4744 = vrot.lane.b32.xlu0 %v816, 48
  %v4745 = vpop.permute.xlu0 %4744
  %4746 = vrot.lane.b32.xlu0 %v817, 48
  %v4747 = vpop.permute.xlu0 %4746
  %4748 = vrot.lane.b32.xlu0 %v818, 48
  %v4749 = vpop.permute.xlu0 %4748
  %4750 = vrot.lane.b32.xlu0 %v819, 48
  %v4751 = vpop.permute.xlu0 %4750
  %4752 = vrot.lane.b32.xlu0 %v820, 48
  %v4753 = vpop.permute.xlu0 %4752
  %4754 = vrot.lane.b32.xlu0 %v821, 48
  %v4755 = vpop.permute.xlu0 %4754
  %4756 = vrot.lane.b32.xlu0 %v822, 48
  %v4757 = vpop.permute.xlu0 %4756
  %4758 = vrot.lane.b32.xlu0 %v823, 48
  %v4759 = vpop.permute.xlu0 %4758
  %4760 = vrot.lane.b32.xlu0 %v824, 48
  %v4761 = vpop.permute.xlu0 %4760
  %4762 = vrot.lane.b32.xlu0 %v825, 48
  %v4763 = vpop.permute.xlu0 %4762
  %4764 = vrot.lane.b32.xlu0 %v826, 48
  %v4765 = vpop.permute.xlu0 %4764
  %4766 = vrot.lane.b32.xlu0 %v827, 48
  %v4767 = vpop.permute.xlu0 %4766
  %4832 = vrot.lane.b32.xlu0 %v282, 52
  %v4833 = vpop.permute.xlu0 %4832
  %4834 = vrot.lane.b32.xlu0 %v283, 52
  %v4835 = vpop.permute.xlu0 %4834
  %4836 = vrot.lane.b32.xlu0 %v284, 52
  %v4837 = vpop.permute.xlu0 %4836
  %4838 = vrot.lane.b32.xlu0 %v285, 52
  %v4839 = vpop.permute.xlu0 %4838
  %4840 = vrot.lane.b32.xlu0 %v286, 52
  %v4841 = vpop.permute.xlu0 %4840
  %4842 = vrot.lane.b32.xlu0 %v287, 52
  %v4843 = vpop.permute.xlu0 %4842
  %4844 = vrot.lane.b32.xlu0 %v288, 52
  %v4845 = vpop.permute.xlu0 %4844
  %4846 = vrot.lane.b32.xlu0 %v289, 52
  %v4847 = vpop.permute.xlu0 %4846
  %4848 = vrot.lane.b32.xlu0 %v290, 52
  %v4849 = vpop.permute.xlu0 %4848
  %4850 = vrot.lane.b32.xlu0 %v291, 52
  %v4851 = vpop.permute.xlu0 %4850
  %4852 = vrot.lane.b32.xlu0 %v292, 52
  %v4853 = vpop.permute.xlu0 %4852
  %4854 = vrot.lane.b32.xlu0 %v293, 52
  %v4855 = vpop.permute.xlu0 %4854
  %4856 = vrot.lane.b32.xlu0 %v294, 52
  %v4857 = vpop.permute.xlu0 %4856
  %4858 = vrot.lane.b32.xlu0 %v295, 52
  %v4859 = vpop.permute.xlu0 %4858
  %4860 = vrot.lane.b32.xlu0 %v296, 52
  %v4861 = vpop.permute.xlu0 %4860
  %4862 = vrot.lane.b32.xlu0 %v297, 52
  %v4863 = vpop.permute.xlu0 %4862
  %4864 = vrot.lane.b32.xlu0 %v298, 52
  %v4865 = vpop.permute.xlu0 %4864
  %4866 = vrot.lane.b32.xlu0 %v299, 52
  %v4867 = vpop.permute.xlu0 %4866
  %4868 = vrot.lane.b32.xlu0 %v300, 52
  %v4869 = vpop.permute.xlu0 %4868
  %4870 = vrot.lane.b32.xlu0 %v301, 52
  %v4871 = vpop.permute.xlu0 %4870
  %4872 = vrot.lane.b32.xlu0 %v302, 52
  %v4873 = vpop.permute.xlu0 %4872
  %4874 = vrot.lane.b32.xlu0 %v303, 52
  %v4875 = vpop.permute.xlu0 %4874
  %4876 = vrot.lane.b32.xlu0 %v304, 52
  %v4877 = vpop.permute.xlu0 %4876
  %4878 = vrot.lane.b32.xlu0 %v305, 52
  %v4879 = vpop.permute.xlu0 %4878
  %4880 = vrot.lane.b32.xlu0 %v306, 52
  %v4881 = vpop.permute.xlu0 %4880
  %4882 = vrot.lane.b32.xlu0 %v307, 52
  %v4883 = vpop.permute.xlu0 %4882
  %4884 = vrot.lane.b32.xlu0 %v308, 52
  %v4885 = vpop.permute.xlu0 %4884
  %4886 = vrot.lane.b32.xlu0 %v309, 52
  %v4887 = vpop.permute.xlu0 %4886
  %4888 = vrot.lane.b32.xlu0 %v310, 52
  %v4889 = vpop.permute.xlu0 %4888
  %4890 = vrot.lane.b32.xlu0 %v311, 52
  %v4891 = vpop.permute.xlu0 %4890
  %4892 = vrot.lane.b32.xlu0 %v312, 52
  %v4893 = vpop.permute.xlu0 %4892
  %4894 = vrot.lane.b32.xlu0 %v313, 52
  %v4895 = vpop.permute.xlu0 %4894
  %4896 = vrot.lane.b32.xlu0 %v314, 52
  %v4897 = vpop.permute.xlu0 %4896
  %4898 = vrot.lane.b32.xlu0 %v315, 52
  %v4899 = vpop.permute.xlu0 %4898
  %4900 = vrot.lane.b32.xlu0 %v316, 52
  %v4901 = vpop.permute.xlu0 %4900
  %4902 = vrot.lane.b32.xlu0 %v317, 52
  %v4903 = vpop.permute.xlu0 %4902
  %4904 = vrot.lane.b32.xlu0 %v318, 52
  %v4905 = vpop.permute.xlu0 %4904
  %4906 = vrot.lane.b32.xlu0 %v319, 52
  %v4907 = vpop.permute.xlu0 %4906
  %4908 = vrot.lane.b32.xlu0 %v320, 52
  %v4909 = vpop.permute.xlu0 %4908
  %4910 = vrot.lane.b32.xlu0 %v321, 52
  %v4911 = vpop.permute.xlu0 %4910
  %4912 = vrot.lane.b32.xlu0 %v322, 52
  %v4913 = vpop.permute.xlu0 %4912
  %4914 = vrot.lane.b32.xlu0 %v323, 52
  %v4915 = vpop.permute.xlu0 %4914
  %4916 = vrot.lane.b32.xlu0 %v324, 52
  %v4917 = vpop.permute.xlu0 %4916
  %4918 = vrot.lane.b32.xlu0 %v325, 52
  %v4919 = vpop.permute.xlu0 %4918
  %4920 = vrot.lane.b32.xlu0 %v326, 52
  %v4921 = vpop.permute.xlu0 %4920
  %4922 = vrot.lane.b32.xlu0 %v327, 52
  %v4923 = vpop.permute.xlu0 %4922
  %4924 = vrot.lane.b32.xlu0 %v328, 52
  %v4925 = vpop.permute.xlu0 %4924
  %4926 = vrot.lane.b32.xlu0 %v329, 52
  %v4927 = vpop.permute.xlu0 %4926
  %4928 = vrot.lane.b32.xlu0 %v330, 52
  %v4929 = vpop.permute.xlu0 %4928
  %4930 = vrot.lane.b32.xlu0 %v331, 52
  %v4931 = vpop.permute.xlu0 %4930
  %4932 = vrot.lane.b32.xlu0 %v332, 52
  %v4933 = vpop.permute.xlu0 %4932
  %4934 = vrot.lane.b32.xlu0 %v333, 52
  %v4935 = vpop.permute.xlu0 %4934
  %4936 = vrot.lane.b32.xlu0 %v334, 52
  %v4937 = vpop.permute.xlu0 %4936
  %4938 = vrot.lane.b32.xlu0 %v335, 52
  %v4939 = vpop.permute.xlu0 %4938
  %4940 = vrot.lane.b32.xlu0 %v336, 52
  %v4941 = vpop.permute.xlu0 %4940
  %4942 = vrot.lane.b32.xlu0 %v337, 52
  %v4943 = vpop.permute.xlu0 %4942
  %4944 = vrot.lane.b32.xlu0 %v338, 52
  %v4945 = vpop.permute.xlu0 %4944
  %4946 = vrot.lane.b32.xlu0 %v339, 52
  %v4947 = vpop.permute.xlu0 %4946
  %4948 = vrot.lane.b32.xlu0 %v340, 52
  %v4949 = vpop.permute.xlu0 %4948
  %4950 = vrot.lane.b32.xlu0 %v341, 52
  %v4951 = vpop.permute.xlu0 %4950
  %4952 = vrot.lane.b32.xlu0 %v342, 52
  %v4953 = vpop.permute.xlu0 %4952
  %4954 = vrot.lane.b32.xlu0 %v343, 52
  %v4955 = vpop.permute.xlu0 %4954
  %4956 = vrot.lane.b32.xlu0 %v344, 52
  %v4957 = vpop.permute.xlu0 %4956
  %4958 = vrot.lane.b32.xlu0 %v345, 52
  %v4959 = vpop.permute.xlu0 %4958
  %5056 = vrot.lane.b32.xlu0 %v765, 56
  %v5057 = vpop.permute.xlu0 %5056
  %5058 = vrot.lane.b32.xlu0 %v828, 56
  %v5059 = vpop.permute.xlu0 %5058
  %5060 = vrot.lane.b32.xlu0 %v767, 56
  %v5061 = vpop.permute.xlu0 %5060
  %5062 = vrot.lane.b32.xlu0 %v829, 56
  %v5063 = vpop.permute.xlu0 %5062
  %5064 = vrot.lane.b32.xlu0 %v769, 56
  %v5065 = vpop.permute.xlu0 %5064
  %5066 = vrot.lane.b32.xlu0 %v830, 56
  %v5067 = vpop.permute.xlu0 %5066
  %5068 = vrot.lane.b32.xlu0 %v771, 56
  %v5069 = vpop.permute.xlu0 %5068
  %5070 = vrot.lane.b32.xlu0 %v831, 56
  %v5071 = vpop.permute.xlu0 %5070
  %5072 = vrot.lane.b32.xlu0 %v773, 56
  %v5073 = vpop.permute.xlu0 %5072
  %5074 = vrot.lane.b32.xlu0 %v832, 56
  %v5075 = vpop.permute.xlu0 %5074
  %5076 = vrot.lane.b32.xlu0 %v775, 56
  %v5077 = vpop.permute.xlu0 %5076
  %5078 = vrot.lane.b32.xlu0 %v833, 56
  %v5079 = vpop.permute.xlu0 %5078
  %5080 = vrot.lane.b32.xlu0 %v777, 56
  %v5081 = vpop.permute.xlu0 %5080
  %5082 = vrot.lane.b32.xlu0 %v834, 56
  %v5083 = vpop.permute.xlu0 %5082
  %5084 = vrot.lane.b32.xlu0 %v779, 56
  %v5085 = vpop.permute.xlu0 %5084
  %5086 = vrot.lane.b32.xlu0 %v835, 56
  %v5087 = vpop.permute.xlu0 %5086
  %5088 = vrot.lane.b32.xlu0 %v781, 56
  %v5089 = vpop.permute.xlu0 %5088
  %5090 = vrot.lane.b32.xlu0 %v836, 56
  %v5091 = vpop.permute.xlu0 %5090
  %5092 = vrot.lane.b32.xlu0 %v783, 56
  %v5093 = vpop.permute.xlu0 %5092
  %5094 = vrot.lane.b32.xlu0 %v837, 56
  %v5095 = vpop.permute.xlu0 %5094
  %5096 = vrot.lane.b32.xlu0 %v785, 56
  %v5097 = vpop.permute.xlu0 %5096
  %5098 = vrot.lane.b32.xlu0 %v838, 56
  %v5099 = vpop.permute.xlu0 %5098
  %5100 = vrot.lane.b32.xlu0 %v787, 56
  %v5101 = vpop.permute.xlu0 %5100
  %5102 = vrot.lane.b32.xlu0 %v839, 56
  %v5103 = vpop.permute.xlu0 %5102
  %5104 = vrot.lane.b32.xlu0 %v789, 56
  %v5105 = vpop.permute.xlu0 %5104
  %5106 = vrot.lane.b32.xlu0 %v840, 56
  %v5107 = vpop.permute.xlu0 %5106
  %5108 = vrot.lane.b32.xlu0 %v791, 56
  %v5109 = vpop.permute.xlu0 %5108
  %5110 = vrot.lane.b32.xlu0 %v841, 56
  %v5111 = vpop.permute.xlu0 %5110
  %5112 = vrot.lane.b32.xlu0 %v793, 56
  %v5113 = vpop.permute.xlu0 %5112
  %5114 = vrot.lane.b32.xlu0 %v842, 56
  %v5115 = vpop.permute.xlu0 %5114
  %5116 = vrot.lane.b32.xlu0 %v795, 56
  %v5117 = vpop.permute.xlu0 %5116
  %5118 = vrot.lane.b32.xlu0 %v843, 56
  %v5119 = vpop.permute.xlu0 %5118
  %5120 = vrot.lane.b32.xlu0 %v797, 56
  %v5121 = vpop.permute.xlu0 %5120
  %5122 = vrot.lane.b32.xlu0 %v844, 56
  %v5123 = vpop.permute.xlu0 %5122
  %5124 = vrot.lane.b32.xlu0 %v799, 56
  %v5125 = vpop.permute.xlu0 %5124
  %5126 = vrot.lane.b32.xlu0 %v845, 56
  %v5127 = vpop.permute.xlu0 %5126
  %5128 = vrot.lane.b32.xlu0 %v801, 56
  %v5129 = vpop.permute.xlu0 %5128
  %5130 = vrot.lane.b32.xlu0 %v846, 56
  %v5131 = vpop.permute.xlu0 %5130
  %5132 = vrot.lane.b32.xlu0 %v803, 56
  %v5133 = vpop.permute.xlu0 %5132
  %5134 = vrot.lane.b32.xlu0 %v847, 56
  %v5135 = vpop.permute.xlu0 %5134
  %5136 = vrot.lane.b32.xlu0 %v805, 56
  %v5137 = vpop.permute.xlu0 %5136
  %5138 = vrot.lane.b32.xlu0 %v848, 56
  %v5139 = vpop.permute.xlu0 %5138
  %5140 = vrot.lane.b32.xlu0 %v807, 56
  %v5141 = vpop.permute.xlu0 %5140
  %5142 = vrot.lane.b32.xlu0 %v849, 56
  %v5143 = vpop.permute.xlu0 %5142
  %5144 = vrot.lane.b32.xlu0 %v809, 56
  %v5145 = vpop.permute.xlu0 %5144
  %5146 = vrot.lane.b32.xlu0 %v850, 56
  %v5147 = vpop.permute.xlu0 %5146
  %5148 = vrot.lane.b32.xlu0 %v811, 56
  %v5149 = vpop.permute.xlu0 %5148
  %5150 = vrot.lane.b32.xlu0 %v851, 56
  %v5151 = vpop.permute.xlu0 %5150
  %5152 = vrot.lane.b32.xlu0 %v813, 56
  %v5153 = vpop.permute.xlu0 %5152
  %5154 = vrot.lane.b32.xlu0 %v852, 56
  %v5155 = vpop.permute.xlu0 %5154
  %5156 = vrot.lane.b32.xlu0 %v815, 56
  %v5157 = vpop.permute.xlu0 %5156
  %5158 = vrot.lane.b32.xlu0 %v853, 56
  %v5159 = vpop.permute.xlu0 %5158
  %5160 = vrot.lane.b32.xlu0 %v817, 56
  %v5161 = vpop.permute.xlu0 %5160
  %5162 = vrot.lane.b32.xlu0 %v854, 56
  %v5163 = vpop.permute.xlu0 %5162
  %5164 = vrot.lane.b32.xlu0 %v819, 56
  %v5165 = vpop.permute.xlu0 %5164
  %5166 = vrot.lane.b32.xlu0 %v855, 56
  %v5167 = vpop.permute.xlu0 %5166
  %5168 = vrot.lane.b32.xlu0 %v821, 56
  %v5169 = vpop.permute.xlu0 %5168
  %5170 = vrot.lane.b32.xlu0 %v856, 56
  %v5171 = vpop.permute.xlu0 %5170
  %5172 = vrot.lane.b32.xlu0 %v823, 56
  %v5173 = vpop.permute.xlu0 %5172
  %5174 = vrot.lane.b32.xlu0 %v857, 56
  %v5175 = vpop.permute.xlu0 %5174
  %5176 = vrot.lane.b32.xlu0 %v825, 56
  %v5177 = vpop.permute.xlu0 %5176
  %5178 = vrot.lane.b32.xlu0 %v858, 56
  %v5179 = vpop.permute.xlu0 %5178
  %5180 = vrot.lane.b32.xlu0 %v827, 56
  %v5181 = vpop.permute.xlu0 %5180
  %5182 = vrot.lane.b32.xlu0 %v859, 56
  %v5183 = vpop.permute.xlu0 %5182
  %5312 = vrot.lane.b32.xlu0 %v861, 60
  %v5313 = vpop.permute.xlu0 %5312
  %5314 = vrot.lane.b32.xlu0 %v862, 60
  %v5315 = vpop.permute.xlu0 %5314
  %5316 = vrot.lane.b32.xlu0 %v863, 60
  %v5317 = vpop.permute.xlu0 %5316
  %5318 = vrot.lane.b32.xlu0 %v864, 60
  %v5319 = vpop.permute.xlu0 %5318
  %5320 = vrot.lane.b32.xlu0 %v865, 60
  %v5321 = vpop.permute.xlu0 %5320
  %5322 = vrot.lane.b32.xlu0 %v866, 60
  %v5323 = vpop.permute.xlu0 %5322
  %5324 = vrot.lane.b32.xlu0 %v867, 60
  %v5325 = vpop.permute.xlu0 %5324
  %5326 = vrot.lane.b32.xlu0 %v868, 60
  %v5327 = vpop.permute.xlu0 %5326
  %5328 = vrot.lane.b32.xlu0 %v869, 60
  %v5329 = vpop.permute.xlu0 %5328
  %5330 = vrot.lane.b32.xlu0 %v870, 60
  %v5331 = vpop.permute.xlu0 %5330
  %5332 = vrot.lane.b32.xlu0 %v871, 60
  %v5333 = vpop.permute.xlu0 %5332
  %5334 = vrot.lane.b32.xlu0 %v872, 60
  %v5335 = vpop.permute.xlu0 %5334
  %5336 = vrot.lane.b32.xlu0 %v873, 60
  %v5337 = vpop.permute.xlu0 %5336
  %5338 = vrot.lane.b32.xlu0 %v874, 60
  %v5339 = vpop.permute.xlu0 %5338
  %5340 = vrot.lane.b32.xlu0 %v875, 60
  %v5341 = vpop.permute.xlu0 %5340
  %5342 = vrot.lane.b32.xlu0 %v876, 60
  %v5343 = vpop.permute.xlu0 %5342
  %5344 = vrot.lane.b32.xlu0 %v877, 60
  %v5345 = vpop.permute.xlu0 %5344
  %5346 = vrot.lane.b32.xlu0 %v878, 60
  %v5347 = vpop.permute.xlu0 %5346
  %5348 = vrot.lane.b32.xlu0 %v879, 60
  %v5349 = vpop.permute.xlu0 %5348
  %5350 = vrot.lane.b32.xlu0 %v880, 60
  %v5351 = vpop.permute.xlu0 %5350
  %5352 = vrot.lane.b32.xlu0 %v881, 60
  %v5353 = vpop.permute.xlu0 %5352
  %5354 = vrot.lane.b32.xlu0 %v882, 60
  %v5355 = vpop.permute.xlu0 %5354
  %5356 = vrot.lane.b32.xlu0 %v883, 60
  %v5357 = vpop.permute.xlu0 %5356
  %5358 = vrot.lane.b32.xlu0 %v884, 60
  %v5359 = vpop.permute.xlu0 %5358
  %5360 = vrot.lane.b32.xlu0 %v885, 60
  %v5361 = vpop.permute.xlu0 %5360
  %5362 = vrot.lane.b32.xlu0 %v886, 60
  %v5363 = vpop.permute.xlu0 %5362
  %5364 = vrot.lane.b32.xlu0 %v887, 60
  %v5365 = vpop.permute.xlu0 %5364
  %5366 = vrot.lane.b32.xlu0 %v888, 60
  %v5367 = vpop.permute.xlu0 %5366
  %5368 = vrot.lane.b32.xlu0 %v889, 60
  %v5369 = vpop.permute.xlu0 %5368
  %5370 = vrot.lane.b32.xlu0 %v890, 60
  %v5371 = vpop.permute.xlu0 %5370
  %5372 = vrot.lane.b32.xlu0 %v891, 60
  %v5373 = vpop.permute.xlu0 %5372
  %5374 = vrot.lane.b32.xlu0 %v892, 60
  %v5375 = vpop.permute.xlu0 %5374
  %5376 = vrot.lane.b32.xlu0 %v893, 60
  %v5377 = vpop.permute.xlu0 %5376
  %5378 = vrot.lane.b32.xlu0 %v894, 60
  %v5379 = vpop.permute.xlu0 %5378
  %5380 = vrot.lane.b32.xlu0 %v895, 60
  %v5381 = vpop.permute.xlu0 %5380
  %5382 = vrot.lane.b32.xlu0 %v896, 60
  %v5383 = vpop.permute.xlu0 %5382
  %5384 = vrot.lane.b32.xlu0 %v897, 60
  %v5385 = vpop.permute.xlu0 %5384
  %5386 = vrot.lane.b32.xlu0 %v898, 60
  %v5387 = vpop.permute.xlu0 %5386
  %5388 = vrot.lane.b32.xlu0 %v899, 60
  %v5389 = vpop.permute.xlu0 %5388
  %5390 = vrot.lane.b32.xlu0 %v900, 60
  %v5391 = vpop.permute.xlu0 %5390
  %5392 = vrot.lane.b32.xlu0 %v901, 60
  %v5393 = vpop.permute.xlu0 %5392
  %5394 = vrot.lane.b32.xlu0 %v902, 60
  %v5395 = vpop.permute.xlu0 %5394
  %5396 = vrot.lane.b32.xlu0 %v903, 60
  %v5397 = vpop.permute.xlu0 %5396
  %5398 = vrot.lane.b32.xlu0 %v904, 60
  %v5399 = vpop.permute.xlu0 %5398
  %5400 = vrot.lane.b32.xlu0 %v905, 60
  %v5401 = vpop.permute.xlu0 %5400
  %5402 = vrot.lane.b32.xlu0 %v906, 60
  %v5403 = vpop.permute.xlu0 %5402
  %5404 = vrot.lane.b32.xlu0 %v907, 60
  %v5405 = vpop.permute.xlu0 %5404
  %5406 = vrot.lane.b32.xlu0 %v908, 60
  %v5407 = vpop.permute.xlu0 %5406
  %5408 = vrot.lane.b32.xlu0 %v909, 60
  %v5409 = vpop.permute.xlu0 %5408
  %5410 = vrot.lane.b32.xlu0 %v910, 60
  %v5411 = vpop.permute.xlu0 %5410
  %5412 = vrot.lane.b32.xlu0 %v911, 60
  %v5413 = vpop.permute.xlu0 %5412
  %5414 = vrot.lane.b32.xlu0 %v912, 60
  %v5415 = vpop.permute.xlu0 %5414
  %5416 = vrot.lane.b32.xlu0 %v913, 60
  %v5417 = vpop.permute.xlu0 %5416
  %5418 = vrot.lane.b32.xlu0 %v914, 60
  %v5419 = vpop.permute.xlu0 %5418
  %5420 = vrot.lane.b32.xlu0 %v915, 60
  %v5421 = vpop.permute.xlu0 %5420
  %5422 = vrot.lane.b32.xlu0 %v916, 60
  %v5423 = vpop.permute.xlu0 %5422
  %5424 = vrot.lane.b32.xlu0 %v917, 60
  %v5425 = vpop.permute.xlu0 %5424
  %5426 = vrot.lane.b32.xlu0 %v918, 60
  %v5427 = vpop.permute.xlu0 %5426
  %5428 = vrot.lane.b32.xlu0 %v919, 60
  %v5429 = vpop.permute.xlu0 %5428
  %5430 = vrot.lane.b32.xlu0 %v920, 60
  %v5431 = vpop.permute.xlu0 %5430
  %5432 = vrot.lane.b32.xlu0 %v921, 60
  %v5433 = vpop.permute.xlu0 %5432
  %5434 = vrot.lane.b32.xlu0 %v922, 60
  %v5435 = vpop.permute.xlu0 %5434
  %5436 = vrot.lane.b32.xlu0 %v923, 60
  %v5437 = vpop.permute.xlu0 %5436
  %5438 = vrot.lane.b32.xlu0 %v924, 60
  %v5439 = vpop.permute.xlu0 %5438
  %vm5504 = vcmask 31744
  %v5505 = vsel %vm5504, %v25, %v1857
  %v5506 = vsel %vm5504, %v26, %v1859
  %v5507 = vsel %vm5504, %v27, %v1861
  %v5508 = vsel %vm5504, %v28, %v1863
  %v5509 = vsel %vm5504, %v29, %v1865
  %v5510 = vsel %vm5504, %v30, %v1867
  %v5511 = vsel %vm5504, %v31, %v1869
  %v5512 = vsel %vm5504, %v32, %v1871
  %v5513 = vsel %vm5504, %v33, %v1873
  %v5514 = vsel %vm5504, %v34, %v1875
  %v5515 = vsel %vm5504, %v35, %v1877
  %v5516 = vsel %vm5504, %v36, %v1879
  %v5517 = vsel %vm5504, %v37, %v1881
  %v5518 = vsel %vm5504, %v38, %v1883
  %v5519 = vsel %vm5504, %v39, %v1885
  %v5520 = vsel %vm5504, %v40, %v1887
  %v5521 = vsel %vm5504, %v41, %v1889
  %v5522 = vsel %vm5504, %v42, %v1891
  %v5523 = vsel %vm5504, %v43, %v1893
  %v5524 = vsel %vm5504, %v44, %v1895
  %v5525 = vsel %vm5504, %v45, %v1897
  %v5526 = vsel %vm5504, %v46, %v1899
  %v5527 = vsel %vm5504, %v47, %v1901
  %v5528 = vsel %vm5504, %v48, %v1903
  %v5529 = vsel %vm5504, %v49, %v1905
  %v5530 = vsel %vm5504, %v50, %v1907
  %v5531 = vsel %vm5504, %v51, %v1909
  %v5532 = vsel %vm5504, %v52, %v1911
  %v5533 = vsel %vm5504, %v53, %v1913
  %v5534 = vsel %vm5504, %v54, %v1915
  %v5535 = vsel %vm5504, %v55, %v1917
  %v5536 = vsel %vm5504, %v56, %v1919
  %v5537 = vsel %vm5504, %v57, %v1921
  %v5538 = vsel %vm5504, %v58, %v1923
  %v5539 = vsel %vm5504, %v59, %v1925
  %v5540 = vsel %vm5504, %v60, %v1927
  %v5541 = vsel %vm5504, %v61, %v1929
  %v5542 = vsel %vm5504, %v62, %v1931
  %v5543 = vsel %vm5504, %v63, %v1933
  %v5544 = vsel %vm5504, %v64, %v1935
  %v5545 = vsel %vm5504, %v65, %v1937
  %v5546 = vsel %vm5504, %v66, %v1939
  %v5547 = vsel %vm5504, %v67, %v1941
  %v5548 = vsel %vm5504, %v68, %v1943
  %v5549 = vsel %vm5504, %v69, %v1945
  %v5550 = vsel %vm5504, %v70, %v1947
  %v5551 = vsel %vm5504, %v71, %v1949
  %v5552 = vsel %vm5504, %v72, %v1951
  %v5553 = vsel %vm5504, %v73, %v1953
  %v5554 = vsel %vm5504, %v74, %v1955
  %v5555 = vsel %vm5504, %v75, %v1957
  %v5556 = vsel %vm5504, %v76, %v1959
  %v5557 = vsel %vm5504, %v77, %v1961
  %v5558 = vsel %vm5504, %v78, %v1963
  %v5559 = vsel %vm5504, %v79, %v1965
  %v5560 = vsel %vm5504, %v80, %v1967
  %v5561 = vsel %vm5504, %v81, %v1969
  %v5562 = vsel %vm5504, %v82, %v1971
  %v5563 = vsel %vm5504, %v83, %v1973
  %v5564 = vsel %vm5504, %v84, %v1975
  %v5565 = vsel %vm5504, %v85, %v1977
  %v5566 = vsel %vm5504, %v86, %v1979
  %v5567 = vsel %vm5504, %v87, %v1981
  %v5568 = vsel %vm5504, %v88, %v1983
  %vm5569 = vcmask 64512
  %v5570 = vsel %vm5569, %v5505, %v2113
  %v5571 = vsel %vm5569, %v5506, %v2115
  %v5572 = vsel %vm5569, %v5507, %v2117
  %v5573 = vsel %vm5569, %v5508, %v2119
  %v5574 = vsel %vm5569, %v5509, %v2121
  %v5575 = vsel %vm5569, %v5510, %v2123
  %v5576 = vsel %vm5569, %v5511, %v2125
  %v5577 = vsel %vm5569, %v5512, %v2127
  %v5578 = vsel %vm5569, %v5513, %v2129
  %v5579 = vsel %vm5569, %v5514, %v2131
  %v5580 = vsel %vm5569, %v5515, %v2133
  %v5581 = vsel %vm5569, %v5516, %v2135
  %v5582 = vsel %vm5569, %v5517, %v2137
  %v5583 = vsel %vm5569, %v5518, %v2139
  %v5584 = vsel %vm5569, %v5519, %v2141
  %v5585 = vsel %vm5569, %v5520, %v2143
  %v5586 = vsel %vm5569, %v5521, %v2145
  %v5587 = vsel %vm5569, %v5522, %v2147
  %v5588 = vsel %vm5569, %v5523, %v2149
  %v5589 = vsel %vm5569, %v5524, %v2151
  %v5590 = vsel %vm5569, %v5525, %v2153
  %v5591 = vsel %vm5569, %v5526, %v2155
  %v5592 = vsel %vm5569, %v5527, %v2157
  %v5593 = vsel %vm5569, %v5528, %v2159
  %v5594 = vsel %vm5569, %v5529, %v2161
  %v5595 = vsel %vm5569, %v5530, %v2163
  %v5596 = vsel %vm5569, %v5531, %v2165
  %v5597 = vsel %vm5569, %v5532, %v2167
  %v5598 = vsel %vm5569, %v5533, %v2169
  %v5599 = vsel %vm5569, %v5534, %v2171
  %v5600 = vsel %vm5569, %v5535, %v2173
  %v5601 = vsel %vm5569, %v5536, %v2175
  %v5602 = vsel %vm5569, %v5537, %v2177
  %v5603 = vsel %vm5569, %v5538, %v2179
  %v5604 = vsel %vm5569, %v5539, %v2181
  %v5605 = vsel %vm5569, %v5540, %v2183
  %v5606 = vsel %vm5569, %v5541, %v2185
  %v5607 = vsel %vm5569, %v5542, %v2187
  %v5608 = vsel %vm5569, %v5543, %v2189
  %v5609 = vsel %vm5569, %v5544, %v2191
  %v5610 = vsel %vm5569, %v5545, %v2193
  %v5611 = vsel %vm5569, %v5546, %v2195
  %v5612 = vsel %vm5569, %v5547, %v2197
  %v5613 = vsel %vm5569, %v5548, %v2199
  %v5614 = vsel %vm5569, %v5549, %v2201
  %v5615 = vsel %vm5569, %v5550, %v2203
  %v5616 = vsel %vm5569, %v5551, %v2205
  %v5617 = vsel %vm5569, %v5552, %v2207
  %v5618 = vsel %vm5569, %v5553, %v2209
  %v5619 = vsel %vm5569, %v5554, %v2211
  %v5620 = vsel %vm5569, %v5555, %v2213
  %v5621 = vsel %vm5569, %v5556, %v2215
  %v5622 = vsel %vm5569, %v5557, %v2217
  %v5623 = vsel %vm5569, %v5558, %v2219
  %v5624 = vsel %vm5569, %v5559, %v2221
  %v5625 = vsel %vm5569, %v5560, %v2223
  %v5626 = vsel %vm5569, %v5561, %v2225
  %v5627 = vsel %vm5569, %v5562, %v2227
  %v5628 = vsel %vm5569, %v5563, %v2229
  %v5629 = vsel %vm5569, %v5564, %v2231
  %v5630 = vsel %vm5569, %v5565, %v2233
  %v5631 = vsel %vm5569, %v5566, %v2235
  %v5632 = vsel %vm5569, %v5567, %v2237
  %v5633 = vsel %vm5569, %v5568, %v2239
  %vm5634 = vcmask 97280
  %v5635 = vsel %vm5634, %v5570, %v2369
  %v5636 = vsel %vm5634, %v5571, %v2371
  %v5637 = vsel %vm5634, %v5572, %v2373
  %v5638 = vsel %vm5634, %v5573, %v2375
  %v5639 = vsel %vm5634, %v5574, %v2377
  %v5640 = vsel %vm5634, %v5575, %v2379
  %v5641 = vsel %vm5634, %v5576, %v2381
  %v5642 = vsel %vm5634, %v5577, %v2383
  %v5643 = vsel %vm5634, %v5578, %v2385
  %v5644 = vsel %vm5634, %v5579, %v2387
  %v5645 = vsel %vm5634, %v5580, %v2389
  %v5646 = vsel %vm5634, %v5581, %v2391
  %v5647 = vsel %vm5634, %v5582, %v2393
  %v5648 = vsel %vm5634, %v5583, %v2395
  %v5649 = vsel %vm5634, %v5584, %v2397
  %v5650 = vsel %vm5634, %v5585, %v2399
  %v5651 = vsel %vm5634, %v5586, %v2401
  %v5652 = vsel %vm5634, %v5587, %v2403
  %v5653 = vsel %vm5634, %v5588, %v2405
  %v5654 = vsel %vm5634, %v5589, %v2407
  %v5655 = vsel %vm5634, %v5590, %v2409
  %v5656 = vsel %vm5634, %v5591, %v2411
  %v5657 = vsel %vm5634, %v5592, %v2413
  %v5658 = vsel %vm5634, %v5593, %v2415
  %v5659 = vsel %vm5634, %v5594, %v2417
  %v5660 = vsel %vm5634, %v5595, %v2419
  %v5661 = vsel %vm5634, %v5596, %v2421
  %v5662 = vsel %vm5634, %v5597, %v2423
  %v5663 = vsel %vm5634, %v5598, %v2425
  %v5664 = vsel %vm5634, %v5599, %v2427
  %v5665 = vsel %vm5634, %v5600, %v2429
  %v5666 = vsel %vm5634, %v5601, %v2431
  %v5667 = vsel %vm5634, %v5602, %v2433
  %v5668 = vsel %vm5634, %v5603, %v2435
  %v5669 = vsel %vm5634, %v5604, %v2437
  %v5670 = vsel %vm5634, %v5605, %v2439
  %v5671 = vsel %vm5634, %v5606, %v2441
  %v5672 = vsel %vm5634, %v5607, %v2443
  %v5673 = vsel %vm5634, %v5608, %v2445
  %v5674 = vsel %vm5634, %v5609, %v2447
  %v5675 = vsel %vm5634, %v5610, %v2449
  %v5676 = vsel %vm5634, %v5611, %v2451
  %v5677 = vsel %vm5634, %v5612, %v2453
  %v5678 = vsel %vm5634, %v5613, %v2455
  %v5679 = vsel %vm5634, %v5614, %v2457
  %v5680 = vsel %vm5634, %v5615, %v2459
  %v5681 = vsel %vm5634, %v5616, %v2461
  %v5682 = vsel %vm5634, %v5617, %v2463
  %v5683 = vsel %vm5634, %v5618, %v2465
  %v5684 = vsel %vm5634, %v5619, %v2467
  %v5685 = vsel %vm5634, %v5620, %v2469
  %v5686 = vsel %vm5634, %v5621, %v2471
  %v5687 = vsel %vm5634, %v5622, %v2473
  %v5688 = vsel %vm5634, %v5623, %v2475
  %v5689 = vsel %vm5634, %v5624, %v2477
  %v5690 = vsel %vm5634, %v5625, %v2479
  %v5691 = vsel %vm5634, %v5626, %v2481
  %v5692 = vsel %vm5634, %v5627, %v2483
  %v5693 = vsel %vm5634, %v5628, %v2485
  %v5694 = vsel %vm5634, %v5629, %v2487
  %v5695 = vsel %vm5634, %v5630, %v2489
  %v5696 = vsel %vm5634, %v5631, %v2491
  %v5697 = vsel %vm5634, %v5632, %v2493
  %v5698 = vsel %vm5634, %v5633, %v2495
  %vm5699 = vcmask 130048
  %v5700 = vsel %vm5699, %v5635, %v2625
  %v5701 = vsel %vm5699, %v5636, %v2627
  %v5702 = vsel %vm5699, %v5637, %v2629
  %v5703 = vsel %vm5699, %v5638, %v2631
  %v5704 = vsel %vm5699, %v5639, %v2633
  %v5705 = vsel %vm5699, %v5640, %v2635
  %v5706 = vsel %vm5699, %v5641, %v2637
  %v5707 = vsel %vm5699, %v5642, %v2639
  %v5708 = vsel %vm5699, %v5643, %v2641
  %v5709 = vsel %vm5699, %v5644, %v2643
  %v5710 = vsel %vm5699, %v5645, %v2645
  %v5711 = vsel %vm5699, %v5646, %v2647
  %v5712 = vsel %vm5699, %v5647, %v2649
  %v5713 = vsel %vm5699, %v5648, %v2651
  %v5714 = vsel %vm5699, %v5649, %v2653
  %v5715 = vsel %vm5699, %v5650, %v2655
  %v5716 = vsel %vm5699, %v5651, %v2657
  %v5717 = vsel %vm5699, %v5652, %v2659
  %v5718 = vsel %vm5699, %v5653, %v2661
  %v5719 = vsel %vm5699, %v5654, %v2663
  %v5720 = vsel %vm5699, %v5655, %v2665
  %v5721 = vsel %vm5699, %v5656, %v2667
  %v5722 = vsel %vm5699, %v5657, %v2669
  %v5723 = vsel %vm5699, %v5658, %v2671
  %v5724 = vsel %vm5699, %v5659, %v2673
  %v5725 = vsel %vm5699, %v5660, %v2675
  %v5726 = vsel %vm5699, %v5661, %v2677
  %v5727 = vsel %vm5699, %v5662, %v2679
  %v5728 = vsel %vm5699, %v5663, %v2681
  %v5729 = vsel %vm5699, %v5664, %v2683
  %v5730 = vsel %vm5699, %v5665, %v2685
  %v5731 = vsel %vm5699, %v5666, %v2687
  %v5732 = vsel %vm5699, %v5667, %v2689
  %v5733 = vsel %vm5699, %v5668, %v2691
  %v5734 = vsel %vm5699, %v5669, %v2693
  %v5735 = vsel %vm5699, %v5670, %v2695
  %v5736 = vsel %vm5699, %v5671, %v2697
  %v5737 = vsel %vm5699, %v5672, %v2699
  %v5738 = vsel %vm5699, %v5673, %v2701
  %v5739 = vsel %vm5699, %v5674, %v2703
  %v5740 = vsel %vm5699, %v5675, %v2705
  %v5741 = vsel %vm5699, %v5676, %v2707
  %v5742 = vsel %vm5699, %v5677, %v2709
  %v5743 = vsel %vm5699, %v5678, %v2711
  %v5744 = vsel %vm5699, %v5679, %v2713
  %v5745 = vsel %vm5699, %v5680, %v2715
  %v5746 = vsel %vm5699, %v5681, %v2717
  %v5747 = vsel %vm5699, %v5682, %v2719
  %v5748 = vsel %vm5699, %v5683, %v2721
  %v5749 = vsel %vm5699, %v5684, %v2723
  %v5750 = vsel %vm5699, %v5685, %v2725
  %v5751 = vsel %vm5699, %v5686, %v2727
  %v5752 = vsel %vm5699, %v5687, %v2729
  %v5753 = vsel %vm5699, %v5688, %v2731
  %v5754 = vsel %vm5699, %v5689, %v2733
  %v5755 = vsel %vm5699, %v5690, %v2735
  %v5756 = vsel %vm5699, %v5691, %v2737
  %v5757 = vsel %vm5699, %v5692, %v2739
  %v5758 = vsel %vm5699, %v5693, %v2741
  %v5759 = vsel %vm5699, %v5694, %v2743
  %v5760 = vsel %vm5699, %v5695, %v2745
  %v5761 = vsel %vm5699, %v5696, %v2747
  %v5762 = vsel %vm5699, %v5697, %v2749
  %v5763 = vsel %vm5699, %v5698, %v2751
  %vm5764 = vcmask 162816
  %v5765 = vsel %vm5764, %v5700, %v2881
  %v5766 = vsel %vm5764, %v5701, %v2883
  %v5767 = vsel %vm5764, %v5702, %v2885
  %v5768 = vsel %vm5764, %v5703, %v2887
  %v5769 = vsel %vm5764, %v5704, %v2889
  %v5770 = vsel %vm5764, %v5705, %v2891
  %v5771 = vsel %vm5764, %v5706, %v2893
  %v5772 = vsel %vm5764, %v5707, %v2895
  %v5773 = vsel %vm5764, %v5708, %v2897
  %v5774 = vsel %vm5764, %v5709, %v2899
  %v5775 = vsel %vm5764, %v5710, %v2901
  %v5776 = vsel %vm5764, %v5711, %v2903
  %v5777 = vsel %vm5764, %v5712, %v2905
  %v5778 = vsel %vm5764, %v5713, %v2907
  %v5779 = vsel %vm5764, %v5714, %v2909
  %v5780 = vsel %vm5764, %v5715, %v2911
  %v5781 = vsel %vm5764, %v5716, %v2913
  %v5782 = vsel %vm5764, %v5717, %v2915
  %v5783 = vsel %vm5764, %v5718, %v2917
  %v5784 = vsel %vm5764, %v5719, %v2919
  %v5785 = vsel %vm5764, %v5720, %v2921
  %v5786 = vsel %vm5764, %v5721, %v2923
  %v5787 = vsel %vm5764, %v5722, %v2925
  %v5788 = vsel %vm5764, %v5723, %v2927
  %v5789 = vsel %vm5764, %v5724, %v2929
  %v5790 = vsel %vm5764, %v5725, %v2931
  %v5791 = vsel %vm5764, %v5726, %v2933
  %v5792 = vsel %vm5764, %v5727, %v2935
  %v5793 = vsel %vm5764, %v5728, %v2937
  %v5794 = vsel %vm5764, %v5729, %v2939
  %v5795 = vsel %vm5764, %v5730, %v2941
  %v5796 = vsel %vm5764, %v5731, %v2943
  %v5797 = vsel %vm5764, %v5732, %v2945
  %v5798 = vsel %vm5764, %v5733, %v2947
  %v5799 = vsel %vm5764, %v5734, %v2949
  %v5800 = vsel %vm5764, %v5735, %v2951
  %v5801 = vsel %vm5764, %v5736, %v2953
  %v5802 = vsel %vm5764, %v5737, %v2955
  %v5803 = vsel %vm5764, %v5738, %v2957
  %v5804 = vsel %vm5764, %v5739, %v2959
  %v5805 = vsel %vm5764, %v5740, %v2961
  %v5806 = vsel %vm5764, %v5741, %v2963
  %v5807 = vsel %vm5764, %v5742, %v2965
  %v5808 = vsel %vm5764, %v5743, %v2967
  %v5809 = vsel %vm5764, %v5744, %v2969
  %v5810 = vsel %vm5764, %v5745, %v2971
  %v5811 = vsel %vm5764, %v5746, %v2973
  %v5812 = vsel %vm5764, %v5747, %v2975
  %v5813 = vsel %vm5764, %v5748, %v2977
  %v5814 = vsel %vm5764, %v5749, %v2979
  %v5815 = vsel %vm5764, %v5750, %v2981
  %v5816 = vsel %vm5764, %v5751, %v2983
  %v5817 = vsel %vm5764, %v5752, %v2985
  %v5818 = vsel %vm5764, %v5753, %v2987
  %v5819 = vsel %vm5764, %v5754, %v2989
  %v5820 = vsel %vm5764, %v5755, %v2991
  %v5821 = vsel %vm5764, %v5756, %v2993
  %v5822 = vsel %vm5764, %v5757, %v2995
  %v5823 = vsel %vm5764, %v5758, %v2997
  %v5824 = vsel %vm5764, %v5759, %v2999
  %v5825 = vsel %vm5764, %v5760, %v3001
  %v5826 = vsel %vm5764, %v5761, %v3003
  %v5827 = vsel %vm5764, %v5762, %v3005
  %v5828 = vsel %vm5764, %v5763, %v3007
  %vm5829 = vcmask 195584
  %v5830 = vsel %vm5829, %v5765, %v3137
  %v5831 = vsel %vm5829, %v5766, %v3139
  %v5832 = vsel %vm5829, %v5767, %v3141
  %v5833 = vsel %vm5829, %v5768, %v3143
  %v5834 = vsel %vm5829, %v5769, %v3145
  %v5835 = vsel %vm5829, %v5770, %v3147
  %v5836 = vsel %vm5829, %v5771, %v3149
  %v5837 = vsel %vm5829, %v5772, %v3151
  %v5838 = vsel %vm5829, %v5773, %v3153
  %v5839 = vsel %vm5829, %v5774, %v3155
  %v5840 = vsel %vm5829, %v5775, %v3157
  %v5841 = vsel %vm5829, %v5776, %v3159
  %v5842 = vsel %vm5829, %v5777, %v3161
  %v5843 = vsel %vm5829, %v5778, %v3163
  %v5844 = vsel %vm5829, %v5779, %v3165
  %v5845 = vsel %vm5829, %v5780, %v3167
  %v5846 = vsel %vm5829, %v5781, %v3169
  %v5847 = vsel %vm5829, %v5782, %v3171
  %v5848 = vsel %vm5829, %v5783, %v3173
  %v5849 = vsel %vm5829, %v5784, %v3175
  %v5850 = vsel %vm5829, %v5785, %v3177
  %v5851 = vsel %vm5829, %v5786, %v3179
  %v5852 = vsel %vm5829, %v5787, %v3181
  %v5853 = vsel %vm5829, %v5788, %v3183
  %v5854 = vsel %vm5829, %v5789, %v3185
  %v5855 = vsel %vm5829, %v5790, %v3187
  %v5856 = vsel %vm5829, %v5791, %v3189
  %v5857 = vsel %vm5829, %v5792, %v3191
  %v5858 = vsel %vm5829, %v5793, %v3193
  %v5859 = vsel %vm5829, %v5794, %v3195
  %v5860 = vsel %vm5829, %v5795, %v3197
  %v5861 = vsel %vm5829, %v5796, %v3199
  %v5862 = vsel %vm5829, %v5797, %v3201
  %v5863 = vsel %vm5829, %v5798, %v3203
  %v5864 = vsel %vm5829, %v5799, %v3205
  %v5865 = vsel %vm5829, %v5800, %v3207
  %v5866 = vsel %vm5829, %v5801, %v3209
  %v5867 = vsel %vm5829, %v5802, %v3211
  %v5868 = vsel %vm5829, %v5803, %v3213
  %v5869 = vsel %vm5829, %v5804, %v3215
  %v5870 = vsel %vm5829, %v5805, %v3217
  %v5871 = vsel %vm5829, %v5806, %v3219
  %v5872 = vsel %vm5829, %v5807, %v3221
  %v5873 = vsel %vm5829, %v5808, %v3223
  %v5874 = vsel %vm5829, %v5809, %v3225
  %v5875 = vsel %vm5829, %v5810, %v3227
  %v5876 = vsel %vm5829, %v5811, %v3229
  %v5877 = vsel %vm5829, %v5812, %v3231
  %v5878 = vsel %vm5829, %v5813, %v3233
  %v5879 = vsel %vm5829, %v5814, %v3235
  %v5880 = vsel %vm5829, %v5815, %v3237
  %v5881 = vsel %vm5829, %v5816, %v3239
  %v5882 = vsel %vm5829, %v5817, %v3241
  %v5883 = vsel %vm5829, %v5818, %v3243
  %v5884 = vsel %vm5829, %v5819, %v3245
  %v5885 = vsel %vm5829, %v5820, %v3247
  %v5886 = vsel %vm5829, %v5821, %v3249
  %v5887 = vsel %vm5829, %v5822, %v3251
  %v5888 = vsel %vm5829, %v5823, %v3253
  %v5889 = vsel %vm5829, %v5824, %v3255
  %v5890 = vsel %vm5829, %v5825, %v3257
  %v5891 = vsel %vm5829, %v5826, %v3259
  %v5892 = vsel %vm5829, %v5827, %v3261
  %v5893 = vsel %vm5829, %v5828, %v3263
  %vm5894 = vcmask 228352
  %v5895 = vsel %vm5894, %v5830, %v3393
  %v5896 = vsel %vm5894, %v5831, %v3395
  %v5897 = vsel %vm5894, %v5832, %v3397
  %v5898 = vsel %vm5894, %v5833, %v3399
  %v5899 = vsel %vm5894, %v5834, %v3401
  %v5900 = vsel %vm5894, %v5835, %v3403
  %v5901 = vsel %vm5894, %v5836, %v3405
  %v5902 = vsel %vm5894, %v5837, %v3407
  %v5903 = vsel %vm5894, %v5838, %v3409
  %v5904 = vsel %vm5894, %v5839, %v3411
  %v5905 = vsel %vm5894, %v5840, %v3413
  %v5906 = vsel %vm5894, %v5841, %v3415
  %v5907 = vsel %vm5894, %v5842, %v3417
  %v5908 = vsel %vm5894, %v5843, %v3419
  %v5909 = vsel %vm5894, %v5844, %v3421
  %v5910 = vsel %vm5894, %v5845, %v3423
  %v5911 = vsel %vm5894, %v5846, %v3425
  %v5912 = vsel %vm5894, %v5847, %v3427
  %v5913 = vsel %vm5894, %v5848, %v3429
  %v5914 = vsel %vm5894, %v5849, %v3431
  %v5915 = vsel %vm5894, %v5850, %v3433
  %v5916 = vsel %vm5894, %v5851, %v3435
  %v5917 = vsel %vm5894, %v5852, %v3437
  %v5918 = vsel %vm5894, %v5853, %v3439
  %v5919 = vsel %vm5894, %v5854, %v3441
  %v5920 = vsel %vm5894, %v5855, %v3443
  %v5921 = vsel %vm5894, %v5856, %v3445
  %v5922 = vsel %vm5894, %v5857, %v3447
  %v5923 = vsel %vm5894, %v5858, %v3449
  %v5924 = vsel %vm5894, %v5859, %v3451
  %v5925 = vsel %vm5894, %v5860, %v3453
  %v5926 = vsel %vm5894, %v5861, %v3455
  %v5927 = vsel %vm5894, %v5862, %v3457
  %v5928 = vsel %vm5894, %v5863, %v3459
  %v5929 = vsel %vm5894, %v5864, %v3461
  %v5930 = vsel %vm5894, %v5865, %v3463
  %v5931 = vsel %vm5894, %v5866, %v3465
  %v5932 = vsel %vm5894, %v5867, %v3467
  %v5933 = vsel %vm5894, %v5868, %v3469
  %v5934 = vsel %vm5894, %v5869, %v3471
  %v5935 = vsel %vm5894, %v5870, %v3473
  %v5936 = vsel %vm5894, %v5871, %v3475
  %v5937 = vsel %vm5894, %v5872, %v3477
  %v5938 = vsel %vm5894, %v5873, %v3479
  %v5939 = vsel %vm5894, %v5874, %v3481
  %v5940 = vsel %vm5894, %v5875, %v3483
  %v5941 = vsel %vm5894, %v5876, %v3485
  %v5942 = vsel %vm5894, %v5877, %v3487
  %v5943 = vsel %vm5894, %v5878, %v3489
  %v5944 = vsel %vm5894, %v5879, %v3491
  %v5945 = vsel %vm5894, %v5880, %v3493
  %v5946 = vsel %vm5894, %v5881, %v3495
  %v5947 = vsel %vm5894, %v5882, %v3497
  %v5948 = vsel %vm5894, %v5883, %v3499
  %v5949 = vsel %vm5894, %v5884, %v3501
  %v5950 = vsel %vm5894, %v5885, %v3503
  %v5951 = vsel %vm5894, %v5886, %v3505
  %v5952 = vsel %vm5894, %v5887, %v3507
  %v5953 = vsel %vm5894, %v5888, %v3509
  %v5954 = vsel %vm5894, %v5889, %v3511
  %v5955 = vsel %vm5894, %v5890, %v3513
  %v5956 = vsel %vm5894, %v5891, %v3515
  %v5957 = vsel %vm5894, %v5892, %v3517
  %v5958 = vsel %vm5894, %v5893, %v3519
  %vm5959 = vcmask 261120
  %v5960 = vsel %vm5959, %v5895, %v3649
  %v5961 = vsel %vm5959, %v5896, %v3651
  %v5962 = vsel %vm5959, %v5897, %v3653
  %v5963 = vsel %vm5959, %v5898, %v3655
  %v5964 = vsel %vm5959, %v5899, %v3657
  %v5965 = vsel %vm5959, %v5900, %v3659
  %v5966 = vsel %vm5959, %v5901, %v3661
  %v5967 = vsel %vm5959, %v5902, %v3663
  %v5968 = vsel %vm5959, %v5903, %v3665
  %v5969 = vsel %vm5959, %v5904, %v3667
  %v5970 = vsel %vm5959, %v5905, %v3669
  %v5971 = vsel %vm5959, %v5906, %v3671
  %v5972 = vsel %vm5959, %v5907, %v3673
  %v5973 = vsel %vm5959, %v5908, %v3675
  %v5974 = vsel %vm5959, %v5909, %v3677
  %v5975 = vsel %vm5959, %v5910, %v3679
  %v5976 = vsel %vm5959, %v5911, %v3681
  %v5977 = vsel %vm5959, %v5912, %v3683
  %v5978 = vsel %vm5959, %v5913, %v3685
  %v5979 = vsel %vm5959, %v5914, %v3687
  %v5980 = vsel %vm5959, %v5915, %v3689
  %v5981 = vsel %vm5959, %v5916, %v3691
  %v5982 = vsel %vm5959, %v5917, %v3693
  %v5983 = vsel %vm5959, %v5918, %v3695
  %v5984 = vsel %vm5959, %v5919, %v3697
  %v5985 = vsel %vm5959, %v5920, %v3699
  %v5986 = vsel %vm5959, %v5921, %v3701
  %v5987 = vsel %vm5959, %v5922, %v3703
  %v5988 = vsel %vm5959, %v5923, %v3705
  %v5989 = vsel %vm5959, %v5924, %v3707
  %v5990 = vsel %vm5959, %v5925, %v3709
  %v5991 = vsel %vm5959, %v5926, %v3711
  %v5992 = vsel %vm5959, %v5927, %v3713
  %v5993 = vsel %vm5959, %v5928, %v3715
  %v5994 = vsel %vm5959, %v5929, %v3717
  %v5995 = vsel %vm5959, %v5930, %v3719
  %v5996 = vsel %vm5959, %v5931, %v3721
  %v5997 = vsel %vm5959, %v5932, %v3723
  %v5998 = vsel %vm5959, %v5933, %v3725
  %v5999 = vsel %vm5959, %v5934, %v3727
  %v6000 = vsel %vm5959, %v5935, %v3729
  %v6001 = vsel %vm5959, %v5936, %v3731
  %v6002 = vsel %vm5959, %v5937, %v3733
  %v6003 = vsel %vm5959, %v5938, %v3735
  %v6004 = vsel %vm5959, %v5939, %v3737
  %v6005 = vsel %vm5959, %v5940, %v3739
  %v6006 = vsel %vm5959, %v5941, %v3741
  %v6007 = vsel %vm5959, %v5942, %v3743
  %v6008 = vsel %vm5959, %v5943, %v3745
  %v6009 = vsel %vm5959, %v5944, %v3747
  %v6010 = vsel %vm5959, %v5945, %v3749
  %v6011 = vsel %vm5959, %v5946, %v3751
  %v6012 = vsel %vm5959, %v5947, %v3753
  %v6013 = vsel %vm5959, %v5948, %v3755
  %v6014 = vsel %vm5959, %v5949, %v3757
  %v6015 = vsel %vm5959, %v5950, %v3759
  %v6016 = vsel %vm5959, %v5951, %v3761
  %v6017 = vsel %vm5959, %v5952, %v3763
  %v6018 = vsel %vm5959, %v5953, %v3765
  %v6019 = vsel %vm5959, %v5954, %v3767
  %v6020 = vsel %vm5959, %v5955, %v3769
  %v6021 = vsel %vm5959, %v5956, %v3771
  %v6022 = vsel %vm5959, %v5957, %v3773
  %v6023 = vsel %vm5959, %v5958, %v3775
  %vm6024 = vcmask 293888
  %v6025 = vsel %vm6024, %v5960, %v3905
  %v6026 = vsel %vm6024, %v5961, %v3907
  %v6027 = vsel %vm6024, %v5962, %v3909
  %v6028 = vsel %vm6024, %v5963, %v3911
  %v6029 = vsel %vm6024, %v5964, %v3913
  %v6030 = vsel %vm6024, %v5965, %v3915
  %v6031 = vsel %vm6024, %v5966, %v3917
  %v6032 = vsel %vm6024, %v5967, %v3919
  %v6033 = vsel %vm6024, %v5968, %v3921
  %v6034 = vsel %vm6024, %v5969, %v3923
  %v6035 = vsel %vm6024, %v5970, %v3925
  %v6036 = vsel %vm6024, %v5971, %v3927
  %v6037 = vsel %vm6024, %v5972, %v3929
  %v6038 = vsel %vm6024, %v5973, %v3931
  %v6039 = vsel %vm6024, %v5974, %v3933
  %v6040 = vsel %vm6024, %v5975, %v3935
  %v6041 = vsel %vm6024, %v5976, %v3937
  %v6042 = vsel %vm6024, %v5977, %v3939
  %v6043 = vsel %vm6024, %v5978, %v3941
  %v6044 = vsel %vm6024, %v5979, %v3943
  %v6045 = vsel %vm6024, %v5980, %v3945
  %v6046 = vsel %vm6024, %v5981, %v3947
  %v6047 = vsel %vm6024, %v5982, %v3949
  %v6048 = vsel %vm6024, %v5983, %v3951
  %v6049 = vsel %vm6024, %v5984, %v3953
  %v6050 = vsel %vm6024, %v5985, %v3955
  %v6051 = vsel %vm6024, %v5986, %v3957
  %v6052 = vsel %vm6024, %v5987, %v3959
  %v6053 = vsel %vm6024, %v5988, %v3961
  %v6054 = vsel %vm6024, %v5989, %v3963
  %v6055 = vsel %vm6024, %v5990, %v3965
  %v6056 = vsel %vm6024, %v5991, %v3967
  %v6057 = vsel %vm6024, %v5992, %v3969
  %v6058 = vsel %vm6024, %v5993, %v3971
  %v6059 = vsel %vm6024, %v5994, %v3973
  %v6060 = vsel %vm6024, %v5995, %v3975
  %v6061 = vsel %vm6024, %v5996, %v3977
  %v6062 = vsel %vm6024, %v5997, %v3979
  %v6063 = vsel %vm6024, %v5998, %v3981
  %v6064 = vsel %vm6024, %v5999, %v3983
  %v6065 = vsel %vm6024, %v6000, %v3985
  %v6066 = vsel %vm6024, %v6001, %v3987
  %v6067 = vsel %vm6024, %v6002, %v3989
  %v6068 = vsel %vm6024, %v6003, %v3991
  %v6069 = vsel %vm6024, %v6004, %v3993
  %v6070 = vsel %vm6024, %v6005, %v3995
  %v6071 = vsel %vm6024, %v6006, %v3997
  %v6072 = vsel %vm6024, %v6007, %v3999
  %v6073 = vsel %vm6024, %v6008, %v4001
  %v6074 = vsel %vm6024, %v6009, %v4003
  %v6075 = vsel %vm6024, %v6010, %v4005
  %v6076 = vsel %vm6024, %v6011, %v4007
  %v6077 = vsel %vm6024, %v6012, %v4009
  %v6078 = vsel %vm6024, %v6013, %v4011
  %v6079 = vsel %vm6024, %v6014, %v4013
  %v6080 = vsel %vm6024, %v6015, %v4015
  %v6081 = vsel %vm6024, %v6016, %v4017
  %v6082 = vsel %vm6024, %v6017, %v4019
  %v6083 = vsel %vm6024, %v6018, %v4021
  %v6084 = vsel %vm6024, %v6019, %v4023
  %v6085 = vsel %vm6024, %v6020, %v4025
  %v6086 = vsel %vm6024, %v6021, %v4027
  %v6087 = vsel %vm6024, %v6022, %v4029
  %v6088 = vsel %vm6024, %v6023, %v4031
  %vm6089 = vcmask 326656
  %v6090 = vsel %vm6089, %v6025, %v4161
  %v6091 = vsel %vm6089, %v6026, %v4163
  %v6092 = vsel %vm6089, %v6027, %v4165
  %v6093 = vsel %vm6089, %v6028, %v4167
  %v6094 = vsel %vm6089, %v6029, %v4169
  %v6095 = vsel %vm6089, %v6030, %v4171
  %v6096 = vsel %vm6089, %v6031, %v4173
  %v6097 = vsel %vm6089, %v6032, %v4175
  %v6098 = vsel %vm6089, %v6033, %v4177
  %v6099 = vsel %vm6089, %v6034, %v4179
  %v6100 = vsel %vm6089, %v6035, %v4181
  %v6101 = vsel %vm6089, %v6036, %v4183
  %v6102 = vsel %vm6089, %v6037, %v4185
  %v6103 = vsel %vm6089, %v6038, %v4187
  %v6104 = vsel %vm6089, %v6039, %v4189
  %v6105 = vsel %vm6089, %v6040, %v4191
  %v6106 = vsel %vm6089, %v6041, %v4193
  %v6107 = vsel %vm6089, %v6042, %v4195
  %v6108 = vsel %vm6089, %v6043, %v4197
  %v6109 = vsel %vm6089, %v6044, %v4199
  %v6110 = vsel %vm6089, %v6045, %v4201
  %v6111 = vsel %vm6089, %v6046, %v4203
  %v6112 = vsel %vm6089, %v6047, %v4205
  %v6113 = vsel %vm6089, %v6048, %v4207
  %v6114 = vsel %vm6089, %v6049, %v4209
  %v6115 = vsel %vm6089, %v6050, %v4211
  %v6116 = vsel %vm6089, %v6051, %v4213
  %v6117 = vsel %vm6089, %v6052, %v4215
  %v6118 = vsel %vm6089, %v6053, %v4217
  %v6119 = vsel %vm6089, %v6054, %v4219
  %v6120 = vsel %vm6089, %v6055, %v4221
  %v6121 = vsel %vm6089, %v6056, %v4223
  %v6122 = vsel %vm6089, %v6057, %v4225
  %v6123 = vsel %vm6089, %v6058, %v4227
  %v6124 = vsel %vm6089, %v6059, %v4229
  %v6125 = vsel %vm6089, %v6060, %v4231
  %v6126 = vsel %vm6089, %v6061, %v4233
  %v6127 = vsel %vm6089, %v6062, %v4235
  %v6128 = vsel %vm6089, %v6063, %v4237
  %v6129 = vsel %vm6089, %v6064, %v4239
  %v6130 = vsel %vm6089, %v6065, %v4241
  %v6131 = vsel %vm6089, %v6066, %v4243
  %v6132 = vsel %vm6089, %v6067, %v4245
  %v6133 = vsel %vm6089, %v6068, %v4247
  %v6134 = vsel %vm6089, %v6069, %v4249
  %v6135 = vsel %vm6089, %v6070, %v4251
  %v6136 = vsel %vm6089, %v6071, %v4253
  %v6137 = vsel %vm6089, %v6072, %v4255
  %v6138 = vsel %vm6089, %v6073, %v4257
  %v6139 = vsel %vm6089, %v6074, %v4259
  %v6140 = vsel %vm6089, %v6075, %v4261
  %v6141 = vsel %vm6089, %v6076, %v4263
  %v6142 = vsel %vm6089, %v6077, %v4265
  %v6143 = vsel %vm6089, %v6078, %v4267
  %v6144 = vsel %vm6089, %v6079, %v4269
  %v6145 = vsel %vm6089, %v6080, %v4271
  %v6146 = vsel %vm6089, %v6081, %v4273
  %v6147 = vsel %vm6089, %v6082, %v4275
  %v6148 = vsel %vm6089, %v6083, %v4277
  %v6149 = vsel %vm6089, %v6084, %v4279
  %v6150 = vsel %vm6089, %v6085, %v4281
  %v6151 = vsel %vm6089, %v6086, %v4283
  %v6152 = vsel %vm6089, %v6087, %v4285
  %v6153 = vsel %vm6089, %v6088, %v4287
  %vm6154 = vcmask 359424
  %v6155 = vsel %vm6154, %v6090, %v4385
  %v6156 = vsel %vm6154, %v6091, %v4387
  %v6157 = vsel %vm6154, %v6092, %v4389
  %v6158 = vsel %vm6154, %v6093, %v4391
  %v6159 = vsel %vm6154, %v6094, %v4393
  %v6160 = vsel %vm6154, %v6095, %v4395
  %v6161 = vsel %vm6154, %v6096, %v4397
  %v6162 = vsel %vm6154, %v6097, %v4399
  %v6163 = vsel %vm6154, %v6098, %v4401
  %v6164 = vsel %vm6154, %v6099, %v4403
  %v6165 = vsel %vm6154, %v6100, %v4405
  %v6166 = vsel %vm6154, %v6101, %v4407
  %v6167 = vsel %vm6154, %v6102, %v4409
  %v6168 = vsel %vm6154, %v6103, %v4411
  %v6169 = vsel %vm6154, %v6104, %v4413
  %v6170 = vsel %vm6154, %v6105, %v4415
  %v6171 = vsel %vm6154, %v6106, %v4417
  %v6172 = vsel %vm6154, %v6107, %v4419
  %v6173 = vsel %vm6154, %v6108, %v4421
  %v6174 = vsel %vm6154, %v6109, %v4423
  %v6175 = vsel %vm6154, %v6110, %v4425
  %v6176 = vsel %vm6154, %v6111, %v4427
  %v6177 = vsel %vm6154, %v6112, %v4429
  %v6178 = vsel %vm6154, %v6113, %v4431
  %v6179 = vsel %vm6154, %v6114, %v4433
  %v6180 = vsel %vm6154, %v6115, %v4435
  %v6181 = vsel %vm6154, %v6116, %v4437
  %v6182 = vsel %vm6154, %v6117, %v4439
  %v6183 = vsel %vm6154, %v6118, %v4441
  %v6184 = vsel %vm6154, %v6119, %v4443
  %v6185 = vsel %vm6154, %v6120, %v4445
  %v6186 = vsel %vm6154, %v6121, %v4447
  %v6187 = vsel %vm6154, %v6122, %v4449
  %v6188 = vsel %vm6154, %v6123, %v4451
  %v6189 = vsel %vm6154, %v6124, %v4453
  %v6190 = vsel %vm6154, %v6125, %v4455
  %v6191 = vsel %vm6154, %v6126, %v4457
  %v6192 = vsel %vm6154, %v6127, %v4459
  %v6193 = vsel %vm6154, %v6128, %v4461
  %v6194 = vsel %vm6154, %v6129, %v4463
  %v6195 = vsel %vm6154, %v6130, %v4465
  %v6196 = vsel %vm6154, %v6131, %v4467
  %v6197 = vsel %vm6154, %v6132, %v4469
  %v6198 = vsel %vm6154, %v6133, %v4471
  %v6199 = vsel %vm6154, %v6134, %v4473
  %v6200 = vsel %vm6154, %v6135, %v4475
  %v6201 = vsel %vm6154, %v6136, %v4477
  %v6202 = vsel %vm6154, %v6137, %v4479
  %v6203 = vsel %vm6154, %v6138, %v4481
  %v6204 = vsel %vm6154, %v6139, %v4483
  %v6205 = vsel %vm6154, %v6140, %v4485
  %v6206 = vsel %vm6154, %v6141, %v4487
  %v6207 = vsel %vm6154, %v6142, %v4489
  %v6208 = vsel %vm6154, %v6143, %v4491
  %v6209 = vsel %vm6154, %v6144, %v4493
  %v6210 = vsel %vm6154, %v6145, %v4495
  %v6211 = vsel %vm6154, %v6146, %v4497
  %v6212 = vsel %vm6154, %v6147, %v4499
  %v6213 = vsel %vm6154, %v6148, %v4501
  %v6214 = vsel %vm6154, %v6149, %v4503
  %v6215 = vsel %vm6154, %v6150, %v4505
  %v6216 = vsel %vm6154, %v6151, %v4507
  %v6217 = vsel %vm6154, %v6152, %v4509
  %v6218 = vsel %vm6154, %v6153, %v4511
  %vm6219 = vcmask 392192
  %v6220 = vsel %vm6219, %v6155, %v4641
  %v6221 = vsel %vm6219, %v6156, %v4643
  %v6222 = vsel %vm6219, %v6157, %v4645
  %v6223 = vsel %vm6219, %v6158, %v4647
  %v6224 = vsel %vm6219, %v6159, %v4649
  %v6225 = vsel %vm6219, %v6160, %v4651
  %v6226 = vsel %vm6219, %v6161, %v4653
  %v6227 = vsel %vm6219, %v6162, %v4655
  %v6228 = vsel %vm6219, %v6163, %v4657
  %v6229 = vsel %vm6219, %v6164, %v4659
  %v6230 = vsel %vm6219, %v6165, %v4661
  %v6231 = vsel %vm6219, %v6166, %v4663
  %v6232 = vsel %vm6219, %v6167, %v4665
  %v6233 = vsel %vm6219, %v6168, %v4667
  %v6234 = vsel %vm6219, %v6169, %v4669
  %v6235 = vsel %vm6219, %v6170, %v4671
  %v6236 = vsel %vm6219, %v6171, %v4673
  %v6237 = vsel %vm6219, %v6172, %v4675
  %v6238 = vsel %vm6219, %v6173, %v4677
  %v6239 = vsel %vm6219, %v6174, %v4679
  %v6240 = vsel %vm6219, %v6175, %v4681
  %v6241 = vsel %vm6219, %v6176, %v4683
  %v6242 = vsel %vm6219, %v6177, %v4685
  %v6243 = vsel %vm6219, %v6178, %v4687
  %v6244 = vsel %vm6219, %v6179, %v4689
  %v6245 = vsel %vm6219, %v6180, %v4691
  %v6246 = vsel %vm6219, %v6181, %v4693
  %v6247 = vsel %vm6219, %v6182, %v4695
  %v6248 = vsel %vm6219, %v6183, %v4697
  %v6249 = vsel %vm6219, %v6184, %v4699
  %v6250 = vsel %vm6219, %v6185, %v4701
  %v6251 = vsel %vm6219, %v6186, %v4703
  %v6252 = vsel %vm6219, %v6187, %v4705
  %v6253 = vsel %vm6219, %v6188, %v4707
  %v6254 = vsel %vm6219, %v6189, %v4709
  %v6255 = vsel %vm6219, %v6190, %v4711
  %v6256 = vsel %vm6219, %v6191, %v4713
  %v6257 = vsel %vm6219, %v6192, %v4715
  %v6258 = vsel %vm6219, %v6193, %v4717
  %v6259 = vsel %vm6219, %v6194, %v4719
  %v6260 = vsel %vm6219, %v6195, %v4721
  %v6261 = vsel %vm6219, %v6196, %v4723
  %v6262 = vsel %vm6219, %v6197, %v4725
  %v6263 = vsel %vm6219, %v6198, %v4727
  %v6264 = vsel %vm6219, %v6199, %v4729
  %v6265 = vsel %vm6219, %v6200, %v4731
  %v6266 = vsel %vm6219, %v6201, %v4733
  %v6267 = vsel %vm6219, %v6202, %v4735
  %v6268 = vsel %vm6219, %v6203, %v4737
  %v6269 = vsel %vm6219, %v6204, %v4739
  %v6270 = vsel %vm6219, %v6205, %v4741
  %v6271 = vsel %vm6219, %v6206, %v4743
  %v6272 = vsel %vm6219, %v6207, %v4745
  %v6273 = vsel %vm6219, %v6208, %v4747
  %v6274 = vsel %vm6219, %v6209, %v4749
  %v6275 = vsel %vm6219, %v6210, %v4751
  %v6276 = vsel %vm6219, %v6211, %v4753
  %v6277 = vsel %vm6219, %v6212, %v4755
  %v6278 = vsel %vm6219, %v6213, %v4757
  %v6279 = vsel %vm6219, %v6214, %v4759
  %v6280 = vsel %vm6219, %v6215, %v4761
  %v6281 = vsel %vm6219, %v6216, %v4763
  %v6282 = vsel %vm6219, %v6217, %v4765
  %v6283 = vsel %vm6219, %v6218, %v4767
  %vm6284 = vcmask 424960
  %v6285 = vsel %vm6284, %v6220, %v4833
  %v6286 = vsel %vm6284, %v6221, %v4835
  %v6287 = vsel %vm6284, %v6222, %v4837
  %v6288 = vsel %vm6284, %v6223, %v4839
  %v6289 = vsel %vm6284, %v6224, %v4841
  %v6290 = vsel %vm6284, %v6225, %v4843
  %v6291 = vsel %vm6284, %v6226, %v4845
  %v6292 = vsel %vm6284, %v6227, %v4847
  %v6293 = vsel %vm6284, %v6228, %v4849
  %v6294 = vsel %vm6284, %v6229, %v4851
  %v6295 = vsel %vm6284, %v6230, %v4853
  %v6296 = vsel %vm6284, %v6231, %v4855
  %v6297 = vsel %vm6284, %v6232, %v4857
  %v6298 = vsel %vm6284, %v6233, %v4859
  %v6299 = vsel %vm6284, %v6234, %v4861
  %v6300 = vsel %vm6284, %v6235, %v4863
  %v6301 = vsel %vm6284, %v6236, %v4865
  %v6302 = vsel %vm6284, %v6237, %v4867
  %v6303 = vsel %vm6284, %v6238, %v4869
  %v6304 = vsel %vm6284, %v6239, %v4871
  %v6305 = vsel %vm6284, %v6240, %v4873
  %v6306 = vsel %vm6284, %v6241, %v4875
  %v6307 = vsel %vm6284, %v6242, %v4877
  %v6308 = vsel %vm6284, %v6243, %v4879
  %v6309 = vsel %vm6284, %v6244, %v4881
  %v6310 = vsel %vm6284, %v6245, %v4883
  %v6311 = vsel %vm6284, %v6246, %v4885
  %v6312 = vsel %vm6284, %v6247, %v4887
  %v6313 = vsel %vm6284, %v6248, %v4889
  %v6314 = vsel %vm6284, %v6249, %v4891
  %v6315 = vsel %vm6284, %v6250, %v4893
  %v6316 = vsel %vm6284, %v6251, %v4895
  %v6317 = vsel %vm6284, %v6252, %v4897
  %v6318 = vsel %vm6284, %v6253, %v4899
  %v6319 = vsel %vm6284, %v6254, %v4901
  %v6320 = vsel %vm6284, %v6255, %v4903
  %v6321 = vsel %vm6284, %v6256, %v4905
  %v6322 = vsel %vm6284, %v6257, %v4907
  %v6323 = vsel %vm6284, %v6258, %v4909
  %v6324 = vsel %vm6284, %v6259, %v4911
  %v6325 = vsel %vm6284, %v6260, %v4913
  %v6326 = vsel %vm6284, %v6261, %v4915
  %v6327 = vsel %vm6284, %v6262, %v4917
  %v6328 = vsel %vm6284, %v6263, %v4919
  %v6329 = vsel %vm6284, %v6264, %v4921
  %v6330 = vsel %vm6284, %v6265, %v4923
  %v6331 = vsel %vm6284, %v6266, %v4925
  %v6332 = vsel %vm6284, %v6267, %v4927
  %v6333 = vsel %vm6284, %v6268, %v4929
  %v6334 = vsel %vm6284, %v6269, %v4931
  %v6335 = vsel %vm6284, %v6270, %v4933
  %v6336 = vsel %vm6284, %v6271, %v4935
  %v6337 = vsel %vm6284, %v6272, %v4937
  %v6338 = vsel %vm6284, %v6273, %v4939
  %v6339 = vsel %vm6284, %v6274, %v4941
  %v6340 = vsel %vm6284, %v6275, %v4943
  %v6341 = vsel %vm6284, %v6276, %v4945
  %v6342 = vsel %vm6284, %v6277, %v4947
  %v6343 = vsel %vm6284, %v6278, %v4949
  %v6344 = vsel %vm6284, %v6279, %v4951
  %v6345 = vsel %vm6284, %v6280, %v4953
  %v6346 = vsel %vm6284, %v6281, %v4955
  %v6347 = vsel %vm6284, %v6282, %v4957
  %v6348 = vsel %vm6284, %v6283, %v4959
  %vm6349 = vcmask 457728
  %v6350 = vsel %vm6349, %v6285, %v5057
  %v6351 = vsel %vm6349, %v6286, %v5059
  %v6352 = vsel %vm6349, %v6287, %v5061
  %v6353 = vsel %vm6349, %v6288, %v5063
  %v6354 = vsel %vm6349, %v6289, %v5065
  %v6355 = vsel %vm6349, %v6290, %v5067
  %v6356 = vsel %vm6349, %v6291, %v5069
  %v6357 = vsel %vm6349, %v6292, %v5071
  %v6358 = vsel %vm6349, %v6293, %v5073
  %v6359 = vsel %vm6349, %v6294, %v5075
  %v6360 = vsel %vm6349, %v6295, %v5077
  %v6361 = vsel %vm6349, %v6296, %v5079
  %v6362 = vsel %vm6349, %v6297, %v5081
  %v6363 = vsel %vm6349, %v6298, %v5083
  %v6364 = vsel %vm6349, %v6299, %v5085
  %v6365 = vsel %vm6349, %v6300, %v5087
  %v6366 = vsel %vm6349, %v6301, %v5089
  %v6367 = vsel %vm6349, %v6302, %v5091
  %v6368 = vsel %vm6349, %v6303, %v5093
  %v6369 = vsel %vm6349, %v6304, %v5095
  %v6370 = vsel %vm6349, %v6305, %v5097
  %v6371 = vsel %vm6349, %v6306, %v5099
  %v6372 = vsel %vm6349, %v6307, %v5101
  %v6373 = vsel %vm6349, %v6308, %v5103
  %v6374 = vsel %vm6349, %v6309, %v5105
  %v6375 = vsel %vm6349, %v6310, %v5107
  %v6376 = vsel %vm6349, %v6311, %v5109
  %v6377 = vsel %vm6349, %v6312, %v5111
  %v6378 = vsel %vm6349, %v6313, %v5113
  %v6379 = vsel %vm6349, %v6314, %v5115
  %v6380 = vsel %vm6349, %v6315, %v5117
  %v6381 = vsel %vm6349, %v6316, %v5119
  %v6382 = vsel %vm6349, %v6317, %v5121
  %v6383 = vsel %vm6349, %v6318, %v5123
  %v6384 = vsel %vm6349, %v6319, %v5125
  %v6385 = vsel %vm6349, %v6320, %v5127
  %v6386 = vsel %vm6349, %v6321, %v5129
  %v6387 = vsel %vm6349, %v6322, %v5131
  %v6388 = vsel %vm6349, %v6323, %v5133
  %v6389 = vsel %vm6349, %v6324, %v5135
  %v6390 = vsel %vm6349, %v6325, %v5137
  %v6391 = vsel %vm6349, %v6326, %v5139
  %v6392 = vsel %vm6349, %v6327, %v5141
  %v6393 = vsel %vm6349, %v6328, %v5143
  %v6394 = vsel %vm6349, %v6329, %v5145
  %v6395 = vsel %vm6349, %v6330, %v5147
  %v6396 = vsel %vm6349, %v6331, %v5149
  %v6397 = vsel %vm6349, %v6332, %v5151
  %v6398 = vsel %vm6349, %v6333, %v5153
  %v6399 = vsel %vm6349, %v6334, %v5155
  %v6400 = vsel %vm6349, %v6335, %v5157
  %v6401 = vsel %vm6349, %v6336, %v5159
  %v6402 = vsel %vm6349, %v6337, %v5161
  %v6403 = vsel %vm6349, %v6338, %v5163
  %v6404 = vsel %vm6349, %v6339, %v5165
  %v6405 = vsel %vm6349, %v6340, %v5167
  %v6406 = vsel %vm6349, %v6341, %v5169
  %v6407 = vsel %vm6349, %v6342, %v5171
  %v6408 = vsel %vm6349, %v6343, %v5173
  %v6409 = vsel %vm6349, %v6344, %v5175
  %v6410 = vsel %vm6349, %v6345, %v5177
  %v6411 = vsel %vm6349, %v6346, %v5179
  %v6412 = vsel %vm6349, %v6347, %v5181
  %v6413 = vsel %vm6349, %v6348, %v5183
  %vm6414 = vcmask 490496
  %v6415 = vsel %vm6414, %v6350, %v5313
  %v6416 = vsel %vm6414, %v6351, %v5315
  %v6417 = vsel %vm6414, %v6352, %v5317
  %v6418 = vsel %vm6414, %v6353, %v5319
  %v6419 = vsel %vm6414, %v6354, %v5321
  %v6420 = vsel %vm6414, %v6355, %v5323
  %v6421 = vsel %vm6414, %v6356, %v5325
  %v6422 = vsel %vm6414, %v6357, %v5327
  %v6423 = vsel %vm6414, %v6358, %v5329
  %v6424 = vsel %vm6414, %v6359, %v5331
  %v6425 = vsel %vm6414, %v6360, %v5333
  %v6426 = vsel %vm6414, %v6361, %v5335
  %v6427 = vsel %vm6414, %v6362, %v5337
  %v6428 = vsel %vm6414, %v6363, %v5339
  %v6429 = vsel %vm6414, %v6364, %v5341
  %v6430 = vsel %vm6414, %v6365, %v5343
  %v6431 = vsel %vm6414, %v6366, %v5345
  %v6432 = vsel %vm6414, %v6367, %v5347
  %v6433 = vsel %vm6414, %v6368, %v5349
  %v6434 = vsel %vm6414, %v6369, %v5351
  %v6435 = vsel %vm6414, %v6370, %v5353
  %v6436 = vsel %vm6414, %v6371, %v5355
  %v6437 = vsel %vm6414, %v6372, %v5357
  %v6438 = vsel %vm6414, %v6373, %v5359
  %v6439 = vsel %vm6414, %v6374, %v5361
  %v6440 = vsel %vm6414, %v6375, %v5363
  %v6441 = vsel %vm6414, %v6376, %v5365
  %v6442 = vsel %vm6414, %v6377, %v5367
  %v6443 = vsel %vm6414, %v6378, %v5369
  %v6444 = vsel %vm6414, %v6379, %v5371
  %v6445 = vsel %vm6414, %v6380, %v5373
  %v6446 = vsel %vm6414, %v6381, %v5375
  %v6447 = vsel %vm6414, %v6382, %v5377
  %v6448 = vsel %vm6414, %v6383, %v5379
  %v6449 = vsel %vm6414, %v6384, %v5381
  %v6450 = vsel %vm6414, %v6385, %v5383
  %v6451 = vsel %vm6414, %v6386, %v5385
  %v6452 = vsel %vm6414, %v6387, %v5387
  %v6453 = vsel %vm6414, %v6388, %v5389
  %v6454 = vsel %vm6414, %v6389, %v5391
  %v6455 = vsel %vm6414, %v6390, %v5393
  %v6456 = vsel %vm6414, %v6391, %v5395
  %v6457 = vsel %vm6414, %v6392, %v5397
  %v6458 = vsel %vm6414, %v6393, %v5399
  %v6459 = vsel %vm6414, %v6394, %v5401
  %v6460 = vsel %vm6414, %v6395, %v5403
  %v6461 = vsel %vm6414, %v6396, %v5405
  %v6462 = vsel %vm6414, %v6397, %v5407
  %v6463 = vsel %vm6414, %v6398, %v5409
  %v6464 = vsel %vm6414, %v6399, %v5411
  %v6465 = vsel %vm6414, %v6400, %v5413
  %v6466 = vsel %vm6414, %v6401, %v5415
  %v6467 = vsel %vm6414, %v6402, %v5417
  %v6468 = vsel %vm6414, %v6403, %v5419
  %v6469 = vsel %vm6414, %v6404, %v5421
  %v6470 = vsel %vm6414, %v6405, %v5423
  %v6471 = vsel %vm6414, %v6406, %v5425
  %v6472 = vsel %vm6414, %v6407, %v5427
  %v6473 = vsel %vm6414, %v6408, %v5429
  %v6474 = vsel %vm6414, %v6409, %v5431
  %v6475 = vsel %vm6414, %v6410, %v5433
  %v6476 = vsel %vm6414, %v6411, %v5435
  %v6477 = vsel %vm6414, %v6412, %v5437
  %v6478 = vsel %vm6414, %v6413, %v5439
  %6511 = vrot.lane.b32.xlu0 %v862, 4
  %v6512 = vpop.permute.xlu0 %6511
  %6513 = vrot.lane.b32.xlu0 %v989, 4
  %v6514 = vpop.permute.xlu0 %6513
  %6515 = vrot.lane.b32.xlu0 %v864, 4
  %v6516 = vpop.permute.xlu0 %6515
  %6517 = vrot.lane.b32.xlu0 %v990, 4
  %v6518 = vpop.permute.xlu0 %6517
  %6519 = vrot.lane.b32.xlu0 %v866, 4
  %v6520 = vpop.permute.xlu0 %6519
  %6521 = vrot.lane.b32.xlu0 %v991, 4
  %v6522 = vpop.permute.xlu0 %6521
  %6523 = vrot.lane.b32.xlu0 %v868, 4
  %v6524 = vpop.permute.xlu0 %6523
  %6525 = vrot.lane.b32.xlu0 %v992, 4
  %v6526 = vpop.permute.xlu0 %6525
  %6527 = vrot.lane.b32.xlu0 %v870, 4
  %v6528 = vpop.permute.xlu0 %6527
  %6529 = vrot.lane.b32.xlu0 %v993, 4
  %v6530 = vpop.permute.xlu0 %6529
  %6531 = vrot.lane.b32.xlu0 %v872, 4
  %v6532 = vpop.permute.xlu0 %6531
  %6533 = vrot.lane.b32.xlu0 %v994, 4
  %v6534 = vpop.permute.xlu0 %6533
  %6535 = vrot.lane.b32.xlu0 %v874, 4
  %v6536 = vpop.permute.xlu0 %6535
  %6537 = vrot.lane.b32.xlu0 %v995, 4
  %v6538 = vpop.permute.xlu0 %6537
  %6539 = vrot.lane.b32.xlu0 %v876, 4
  %v6540 = vpop.permute.xlu0 %6539
  %6541 = vrot.lane.b32.xlu0 %v996, 4
  %v6542 = vpop.permute.xlu0 %6541
  %6543 = vrot.lane.b32.xlu0 %v878, 4
  %v6544 = vpop.permute.xlu0 %6543
  %6545 = vrot.lane.b32.xlu0 %v997, 4
  %v6546 = vpop.permute.xlu0 %6545
  %6547 = vrot.lane.b32.xlu0 %v880, 4
  %v6548 = vpop.permute.xlu0 %6547
  %6549 = vrot.lane.b32.xlu0 %v998, 4
  %v6550 = vpop.permute.xlu0 %6549
  %6551 = vrot.lane.b32.xlu0 %v882, 4
  %v6552 = vpop.permute.xlu0 %6551
  %6553 = vrot.lane.b32.xlu0 %v999, 4
  %v6554 = vpop.permute.xlu0 %6553
  %6555 = vrot.lane.b32.xlu0 %v884, 4
  %v6556 = vpop.permute.xlu0 %6555
  %6557 = vrot.lane.b32.xlu0 %v1000, 4
  %v6558 = vpop.permute.xlu0 %6557
  %6559 = vrot.lane.b32.xlu0 %v886, 4
  %v6560 = vpop.permute.xlu0 %6559
  %6561 = vrot.lane.b32.xlu0 %v1001, 4
  %v6562 = vpop.permute.xlu0 %6561
  %6563 = vrot.lane.b32.xlu0 %v888, 4
  %v6564 = vpop.permute.xlu0 %6563
  %6565 = vrot.lane.b32.xlu0 %v1002, 4
  %v6566 = vpop.permute.xlu0 %6565
  %6567 = vrot.lane.b32.xlu0 %v890, 4
  %v6568 = vpop.permute.xlu0 %6567
  %6569 = vrot.lane.b32.xlu0 %v1003, 4
  %v6570 = vpop.permute.xlu0 %6569
  %6571 = vrot.lane.b32.xlu0 %v892, 4
  %v6572 = vpop.permute.xlu0 %6571
  %6573 = vrot.lane.b32.xlu0 %v1004, 4
  %v6574 = vpop.permute.xlu0 %6573
  %6575 = vrot.lane.b32.xlu0 %v894, 4
  %v6576 = vpop.permute.xlu0 %6575
  %6577 = vrot.lane.b32.xlu0 %v1005, 4
  %v6578 = vpop.permute.xlu0 %6577
  %6579 = vrot.lane.b32.xlu0 %v896, 4
  %v6580 = vpop.permute.xlu0 %6579
  %6581 = vrot.lane.b32.xlu0 %v1006, 4
  %v6582 = vpop.permute.xlu0 %6581
  %6583 = vrot.lane.b32.xlu0 %v898, 4
  %v6584 = vpop.permute.xlu0 %6583
  %6585 = vrot.lane.b32.xlu0 %v1007, 4
  %v6586 = vpop.permute.xlu0 %6585
  %6587 = vrot.lane.b32.xlu0 %v900, 4
  %v6588 = vpop.permute.xlu0 %6587
  %6589 = vrot.lane.b32.xlu0 %v1008, 4
  %v6590 = vpop.permute.xlu0 %6589
  %6591 = vrot.lane.b32.xlu0 %v902, 4
  %v6592 = vpop.permute.xlu0 %6591
  %6593 = vrot.lane.b32.xlu0 %v1009, 4
  %v6594 = vpop.permute.xlu0 %6593
  %6595 = vrot.lane.b32.xlu0 %v904, 4
  %v6596 = vpop.permute.xlu0 %6595
  %6597 = vrot.lane.b32.xlu0 %v1010, 4
  %v6598 = vpop.permute.xlu0 %6597
  %6599 = vrot.lane.b32.xlu0 %v906, 4
  %v6600 = vpop.permute.xlu0 %6599
  %6601 = vrot.lane.b32.xlu0 %v1011, 4
  %v6602 = vpop.permute.xlu0 %6601
  %6603 = vrot.lane.b32.xlu0 %v908, 4
  %v6604 = vpop.permute.xlu0 %6603
  %6605 = vrot.lane.b32.xlu0 %v1012, 4
  %v6606 = vpop.permute.xlu0 %6605
  %6607 = vrot.lane.b32.xlu0 %v910, 4
  %v6608 = vpop.permute.xlu0 %6607
  %6609 = vrot.lane.b32.xlu0 %v1013, 4
  %v6610 = vpop.permute.xlu0 %6609
  %6611 = vrot.lane.b32.xlu0 %v912, 4
  %v6612 = vpop.permute.xlu0 %6611
  %6613 = vrot.lane.b32.xlu0 %v1014, 4
  %v6614 = vpop.permute.xlu0 %6613
  %6615 = vrot.lane.b32.xlu0 %v914, 4
  %v6616 = vpop.permute.xlu0 %6615
  %6617 = vrot.lane.b32.xlu0 %v1015, 4
  %v6618 = vpop.permute.xlu0 %6617
  %6619 = vrot.lane.b32.xlu0 %v916, 4
  %v6620 = vpop.permute.xlu0 %6619
  %6621 = vrot.lane.b32.xlu0 %v1016, 4
  %v6622 = vpop.permute.xlu0 %6621
  %6623 = vrot.lane.b32.xlu0 %v918, 4
  %v6624 = vpop.permute.xlu0 %6623
  %6625 = vrot.lane.b32.xlu0 %v1017, 4
  %v6626 = vpop.permute.xlu0 %6625
  %6627 = vrot.lane.b32.xlu0 %v920, 4
  %v6628 = vpop.permute.xlu0 %6627
  %6629 = vrot.lane.b32.xlu0 %v1018, 4
  %v6630 = vpop.permute.xlu0 %6629
  %6631 = vrot.lane.b32.xlu0 %v922, 4
  %v6632 = vpop.permute.xlu0 %6631
  %6633 = vrot.lane.b32.xlu0 %v1019, 4
  %v6634 = vpop.permute.xlu0 %6633
  %6635 = vrot.lane.b32.xlu0 %v924, 4
  %v6636 = vpop.permute.xlu0 %6635
  %6637 = vrot.lane.b32.xlu0 %v1020, 4
  %v6638 = vpop.permute.xlu0 %6637
  %6767 = vrot.lane.b32.xlu0 %v1022, 8
  %v6768 = vpop.permute.xlu0 %6767
  %6769 = vrot.lane.b32.xlu0 %v1023, 8
  %v6770 = vpop.permute.xlu0 %6769
  %6771 = vrot.lane.b32.xlu0 %v1024, 8
  %v6772 = vpop.permute.xlu0 %6771
  %6773 = vrot.lane.b32.xlu0 %v1025, 8
  %v6774 = vpop.permute.xlu0 %6773
  %6775 = vrot.lane.b32.xlu0 %v1026, 8
  %v6776 = vpop.permute.xlu0 %6775
  %6777 = vrot.lane.b32.xlu0 %v1027, 8
  %v6778 = vpop.permute.xlu0 %6777
  %6779 = vrot.lane.b32.xlu0 %v1028, 8
  %v6780 = vpop.permute.xlu0 %6779
  %6781 = vrot.lane.b32.xlu0 %v1029, 8
  %v6782 = vpop.permute.xlu0 %6781
  %6783 = vrot.lane.b32.xlu0 %v1030, 8
  %v6784 = vpop.permute.xlu0 %6783
  %6785 = vrot.lane.b32.xlu0 %v1031, 8
  %v6786 = vpop.permute.xlu0 %6785
  %6787 = vrot.lane.b32.xlu0 %v1032, 8
  %v6788 = vpop.permute.xlu0 %6787
  %6789 = vrot.lane.b32.xlu0 %v1033, 8
  %v6790 = vpop.permute.xlu0 %6789
  %6791 = vrot.lane.b32.xlu0 %v1034, 8
  %v6792 = vpop.permute.xlu0 %6791
  %6793 = vrot.lane.b32.xlu0 %v1035, 8
  %v6794 = vpop.permute.xlu0 %6793
  %6795 = vrot.lane.b32.xlu0 %v1036, 8
  %v6796 = vpop.permute.xlu0 %6795
  %6797 = vrot.lane.b32.xlu0 %v1037, 8
  %v6798 = vpop.permute.xlu0 %6797
  %6799 = vrot.lane.b32.xlu0 %v1038, 8
  %v6800 = vpop.permute.xlu0 %6799
  %6801 = vrot.lane.b32.xlu0 %v1039, 8
  %v6802 = vpop.permute.xlu0 %6801
  %6803 = vrot.lane.b32.xlu0 %v1040, 8
  %v6804 = vpop.permute.xlu0 %6803
  %6805 = vrot.lane.b32.xlu0 %v1041, 8
  %v6806 = vpop.permute.xlu0 %6805
  %6807 = vrot.lane.b32.xlu0 %v1042, 8
  %v6808 = vpop.permute.xlu0 %6807
  %6809 = vrot.lane.b32.xlu0 %v1043, 8
  %v6810 = vpop.permute.xlu0 %6809
  %6811 = vrot.lane.b32.xlu0 %v1044, 8
  %v6812 = vpop.permute.xlu0 %6811
  %6813 = vrot.lane.b32.xlu0 %v1045, 8
  %v6814 = vpop.permute.xlu0 %6813
  %6815 = vrot.lane.b32.xlu0 %v1046, 8
  %v6816 = vpop.permute.xlu0 %6815
  %6817 = vrot.lane.b32.xlu0 %v1047, 8
  %v6818 = vpop.permute.xlu0 %6817
  %6819 = vrot.lane.b32.xlu0 %v1048, 8
  %v6820 = vpop.permute.xlu0 %6819
  %6821 = vrot.lane.b32.xlu0 %v1049, 8
  %v6822 = vpop.permute.xlu0 %6821
  %6823 = vrot.lane.b32.xlu0 %v1050, 8
  %v6824 = vpop.permute.xlu0 %6823
  %6825 = vrot.lane.b32.xlu0 %v1051, 8
  %v6826 = vpop.permute.xlu0 %6825
  %6827 = vrot.lane.b32.xlu0 %v1052, 8
  %v6828 = vpop.permute.xlu0 %6827
  %6829 = vrot.lane.b32.xlu0 %v1053, 8
  %v6830 = vpop.permute.xlu0 %6829
  %6831 = vrot.lane.b32.xlu0 %v1054, 8
  %v6832 = vpop.permute.xlu0 %6831
  %6833 = vrot.lane.b32.xlu0 %v1055, 8
  %v6834 = vpop.permute.xlu0 %6833
  %6835 = vrot.lane.b32.xlu0 %v1056, 8
  %v6836 = vpop.permute.xlu0 %6835
  %6837 = vrot.lane.b32.xlu0 %v1057, 8
  %v6838 = vpop.permute.xlu0 %6837
  %6839 = vrot.lane.b32.xlu0 %v1058, 8
  %v6840 = vpop.permute.xlu0 %6839
  %6841 = vrot.lane.b32.xlu0 %v1059, 8
  %v6842 = vpop.permute.xlu0 %6841
  %6843 = vrot.lane.b32.xlu0 %v1060, 8
  %v6844 = vpop.permute.xlu0 %6843
  %6845 = vrot.lane.b32.xlu0 %v1061, 8
  %v6846 = vpop.permute.xlu0 %6845
  %6847 = vrot.lane.b32.xlu0 %v1062, 8
  %v6848 = vpop.permute.xlu0 %6847
  %6849 = vrot.lane.b32.xlu0 %v1063, 8
  %v6850 = vpop.permute.xlu0 %6849
  %6851 = vrot.lane.b32.xlu0 %v1064, 8
  %v6852 = vpop.permute.xlu0 %6851
  %6853 = vrot.lane.b32.xlu0 %v1065, 8
  %v6854 = vpop.permute.xlu0 %6853
  %6855 = vrot.lane.b32.xlu0 %v1066, 8
  %v6856 = vpop.permute.xlu0 %6855
  %6857 = vrot.lane.b32.xlu0 %v1067, 8
  %v6858 = vpop.permute.xlu0 %6857
  %6859 = vrot.lane.b32.xlu0 %v1068, 8
  %v6860 = vpop.permute.xlu0 %6859
  %6861 = vrot.lane.b32.xlu0 %v1069, 8
  %v6862 = vpop.permute.xlu0 %6861
  %6863 = vrot.lane.b32.xlu0 %v1070, 8
  %v6864 = vpop.permute.xlu0 %6863
  %6865 = vrot.lane.b32.xlu0 %v1071, 8
  %v6866 = vpop.permute.xlu0 %6865
  %6867 = vrot.lane.b32.xlu0 %v1072, 8
  %v6868 = vpop.permute.xlu0 %6867
  %6869 = vrot.lane.b32.xlu0 %v1073, 8
  %v6870 = vpop.permute.xlu0 %6869
  %6871 = vrot.lane.b32.xlu0 %v1074, 8
  %v6872 = vpop.permute.xlu0 %6871
  %6873 = vrot.lane.b32.xlu0 %v1075, 8
  %v6874 = vpop.permute.xlu0 %6873
  %6875 = vrot.lane.b32.xlu0 %v1076, 8
  %v6876 = vpop.permute.xlu0 %6875
  %6877 = vrot.lane.b32.xlu0 %v1077, 8
  %v6878 = vpop.permute.xlu0 %6877
  %6879 = vrot.lane.b32.xlu0 %v1078, 8
  %v6880 = vpop.permute.xlu0 %6879
  %6881 = vrot.lane.b32.xlu0 %v1079, 8
  %v6882 = vpop.permute.xlu0 %6881
  %6883 = vrot.lane.b32.xlu0 %v1080, 8
  %v6884 = vpop.permute.xlu0 %6883
  %6885 = vrot.lane.b32.xlu0 %v1081, 8
  %v6886 = vpop.permute.xlu0 %6885
  %6887 = vrot.lane.b32.xlu0 %v1082, 8
  %v6888 = vpop.permute.xlu0 %6887
  %6889 = vrot.lane.b32.xlu0 %v1083, 8
  %v6890 = vpop.permute.xlu0 %6889
  %6891 = vrot.lane.b32.xlu0 %v1084, 8
  %v6892 = vpop.permute.xlu0 %6891
  %6893 = vrot.lane.b32.xlu0 %v1085, 8
  %v6894 = vpop.permute.xlu0 %6893
  %7023 = vrot.lane.b32.xlu0 %v1086, 12
  %v7024 = vpop.permute.xlu0 %7023
  %7025 = vrot.lane.b32.xlu0 %v1087, 12
  %v7026 = vpop.permute.xlu0 %7025
  %7027 = vrot.lane.b32.xlu0 %v1088, 12
  %v7028 = vpop.permute.xlu0 %7027
  %7029 = vrot.lane.b32.xlu0 %v1089, 12
  %v7030 = vpop.permute.xlu0 %7029
  %7031 = vrot.lane.b32.xlu0 %v1090, 12
  %v7032 = vpop.permute.xlu0 %7031
  %7033 = vrot.lane.b32.xlu0 %v1091, 12
  %v7034 = vpop.permute.xlu0 %7033
  %7035 = vrot.lane.b32.xlu0 %v1092, 12
  %v7036 = vpop.permute.xlu0 %7035
  %7037 = vrot.lane.b32.xlu0 %v1093, 12
  %v7038 = vpop.permute.xlu0 %7037
  %7039 = vrot.lane.b32.xlu0 %v1094, 12
  %v7040 = vpop.permute.xlu0 %7039
  %7041 = vrot.lane.b32.xlu0 %v1095, 12
  %v7042 = vpop.permute.xlu0 %7041
  %7043 = vrot.lane.b32.xlu0 %v1096, 12
  %v7044 = vpop.permute.xlu0 %7043
  %7045 = vrot.lane.b32.xlu0 %v1097, 12
  %v7046 = vpop.permute.xlu0 %7045
  %7047 = vrot.lane.b32.xlu0 %v1098, 12
  %v7048 = vpop.permute.xlu0 %7047
  %7049 = vrot.lane.b32.xlu0 %v1099, 12
  %v7050 = vpop.permute.xlu0 %7049
  %7051 = vrot.lane.b32.xlu0 %v1100, 12
  %v7052 = vpop.permute.xlu0 %7051
  %7053 = vrot.lane.b32.xlu0 %v1101, 12
  %v7054 = vpop.permute.xlu0 %7053
  %7055 = vrot.lane.b32.xlu0 %v1102, 12
  %v7056 = vpop.permute.xlu0 %7055
  %7057 = vrot.lane.b32.xlu0 %v1103, 12
  %v7058 = vpop.permute.xlu0 %7057
  %7059 = vrot.lane.b32.xlu0 %v1104, 12
  %v7060 = vpop.permute.xlu0 %7059
  %7061 = vrot.lane.b32.xlu0 %v1105, 12
  %v7062 = vpop.permute.xlu0 %7061
  %7063 = vrot.lane.b32.xlu0 %v1106, 12
  %v7064 = vpop.permute.xlu0 %7063
  %7065 = vrot.lane.b32.xlu0 %v1107, 12
  %v7066 = vpop.permute.xlu0 %7065
  %7067 = vrot.lane.b32.xlu0 %v1108, 12
  %v7068 = vpop.permute.xlu0 %7067
  %7069 = vrot.lane.b32.xlu0 %v1109, 12
  %v7070 = vpop.permute.xlu0 %7069
  %7071 = vrot.lane.b32.xlu0 %v1110, 12
  %v7072 = vpop.permute.xlu0 %7071
  %7073 = vrot.lane.b32.xlu0 %v1111, 12
  %v7074 = vpop.permute.xlu0 %7073
  %7075 = vrot.lane.b32.xlu0 %v1112, 12
  %v7076 = vpop.permute.xlu0 %7075
  %7077 = vrot.lane.b32.xlu0 %v1113, 12
  %v7078 = vpop.permute.xlu0 %7077
  %7079 = vrot.lane.b32.xlu0 %v1114, 12
  %v7080 = vpop.permute.xlu0 %7079
  %7081 = vrot.lane.b32.xlu0 %v1115, 12
  %v7082 = vpop.permute.xlu0 %7081
  %7083 = vrot.lane.b32.xlu0 %v1116, 12
  %v7084 = vpop.permute.xlu0 %7083
  %7085 = vrot.lane.b32.xlu0 %v1117, 12
  %v7086 = vpop.permute.xlu0 %7085
  %7087 = vrot.lane.b32.xlu0 %v1118, 12
  %v7088 = vpop.permute.xlu0 %7087
  %7089 = vrot.lane.b32.xlu0 %v1119, 12
  %v7090 = vpop.permute.xlu0 %7089
  %7091 = vrot.lane.b32.xlu0 %v1120, 12
  %v7092 = vpop.permute.xlu0 %7091
  %7093 = vrot.lane.b32.xlu0 %v1121, 12
  %v7094 = vpop.permute.xlu0 %7093
  %7095 = vrot.lane.b32.xlu0 %v1122, 12
  %v7096 = vpop.permute.xlu0 %7095
  %7097 = vrot.lane.b32.xlu0 %v1123, 12
  %v7098 = vpop.permute.xlu0 %7097
  %7099 = vrot.lane.b32.xlu0 %v1124, 12
  %v7100 = vpop.permute.xlu0 %7099
  %7101 = vrot.lane.b32.xlu0 %v1125, 12
  %v7102 = vpop.permute.xlu0 %7101
  %7103 = vrot.lane.b32.xlu0 %v1126, 12
  %v7104 = vpop.permute.xlu0 %7103
  %7105 = vrot.lane.b32.xlu0 %v1127, 12
  %v7106 = vpop.permute.xlu0 %7105
  %7107 = vrot.lane.b32.xlu0 %v1128, 12
  %v7108 = vpop.permute.xlu0 %7107
  %7109 = vrot.lane.b32.xlu0 %v1129, 12
  %v7110 = vpop.permute.xlu0 %7109
  %7111 = vrot.lane.b32.xlu0 %v1130, 12
  %v7112 = vpop.permute.xlu0 %7111
  %7113 = vrot.lane.b32.xlu0 %v1131, 12
  %v7114 = vpop.permute.xlu0 %7113
  %7115 = vrot.lane.b32.xlu0 %v1132, 12
  %v7116 = vpop.permute.xlu0 %7115
  %7117 = vrot.lane.b32.xlu0 %v1133, 12
  %v7118 = vpop.permute.xlu0 %7117
  %7119 = vrot.lane.b32.xlu0 %v1134, 12
  %v7120 = vpop.permute.xlu0 %7119
  %7121 = vrot.lane.b32.xlu0 %v1135, 12
  %v7122 = vpop.permute.xlu0 %7121
  %7123 = vrot.lane.b32.xlu0 %v1136, 12
  %v7124 = vpop.permute.xlu0 %7123
  %7125 = vrot.lane.b32.xlu0 %v1137, 12
  %v7126 = vpop.permute.xlu0 %7125
  %7127 = vrot.lane.b32.xlu0 %v1138, 12
  %v7128 = vpop.permute.xlu0 %7127
  %7129 = vrot.lane.b32.xlu0 %v1139, 12
  %v7130 = vpop.permute.xlu0 %7129
  %7131 = vrot.lane.b32.xlu0 %v1140, 12
  %v7132 = vpop.permute.xlu0 %7131
  %7133 = vrot.lane.b32.xlu0 %v1141, 12
  %v7134 = vpop.permute.xlu0 %7133
  %7135 = vrot.lane.b32.xlu0 %v1142, 12
  %v7136 = vpop.permute.xlu0 %7135
  %7137 = vrot.lane.b32.xlu0 %v1143, 12
  %v7138 = vpop.permute.xlu0 %7137
  %7139 = vrot.lane.b32.xlu0 %v1144, 12
  %v7140 = vpop.permute.xlu0 %7139
  %7141 = vrot.lane.b32.xlu0 %v1145, 12
  %v7142 = vpop.permute.xlu0 %7141
  %7143 = vrot.lane.b32.xlu0 %v1146, 12
  %v7144 = vpop.permute.xlu0 %7143
  %7145 = vrot.lane.b32.xlu0 %v1147, 12
  %v7146 = vpop.permute.xlu0 %7145
  %7147 = vrot.lane.b32.xlu0 %v1148, 12
  %v7148 = vpop.permute.xlu0 %7147
  %7149 = vrot.lane.b32.xlu0 %v1149, 12
  %v7150 = vpop.permute.xlu0 %7149
  %7279 = vrot.lane.b32.xlu0 %v1150, 16
  %v7280 = vpop.permute.xlu0 %7279
  %7281 = vrot.lane.b32.xlu0 %v1151, 16
  %v7282 = vpop.permute.xlu0 %7281
  %7283 = vrot.lane.b32.xlu0 %v1152, 16
  %v7284 = vpop.permute.xlu0 %7283
  %7285 = vrot.lane.b32.xlu0 %v1153, 16
  %v7286 = vpop.permute.xlu0 %7285
  %7287 = vrot.lane.b32.xlu0 %v1154, 16
  %v7288 = vpop.permute.xlu0 %7287
  %7289 = vrot.lane.b32.xlu0 %v1155, 16
  %v7290 = vpop.permute.xlu0 %7289
  %7291 = vrot.lane.b32.xlu0 %v1156, 16
  %v7292 = vpop.permute.xlu0 %7291
  %7293 = vrot.lane.b32.xlu0 %v1157, 16
  %v7294 = vpop.permute.xlu0 %7293
  %7295 = vrot.lane.b32.xlu0 %v1158, 16
  %v7296 = vpop.permute.xlu0 %7295
  %7297 = vrot.lane.b32.xlu0 %v1159, 16
  %v7298 = vpop.permute.xlu0 %7297
  %7299 = vrot.lane.b32.xlu0 %v1160, 16
  %v7300 = vpop.permute.xlu0 %7299
  %7301 = vrot.lane.b32.xlu0 %v1161, 16
  %v7302 = vpop.permute.xlu0 %7301
  %7303 = vrot.lane.b32.xlu0 %v1162, 16
  %v7304 = vpop.permute.xlu0 %7303
  %7305 = vrot.lane.b32.xlu0 %v1163, 16
  %v7306 = vpop.permute.xlu0 %7305
  %7307 = vrot.lane.b32.xlu0 %v1164, 16
  %v7308 = vpop.permute.xlu0 %7307
  %7309 = vrot.lane.b32.xlu0 %v1165, 16
  %v7310 = vpop.permute.xlu0 %7309
  %7311 = vrot.lane.b32.xlu0 %v1166, 16
  %v7312 = vpop.permute.xlu0 %7311
  %7313 = vrot.lane.b32.xlu0 %v1167, 16
  %v7314 = vpop.permute.xlu0 %7313
  %7315 = vrot.lane.b32.xlu0 %v1168, 16
  %v7316 = vpop.permute.xlu0 %7315
  %7317 = vrot.lane.b32.xlu0 %v1169, 16
  %v7318 = vpop.permute.xlu0 %7317
  %7319 = vrot.lane.b32.xlu0 %v1170, 16
  %v7320 = vpop.permute.xlu0 %7319
  %7321 = vrot.lane.b32.xlu0 %v1171, 16
  %v7322 = vpop.permute.xlu0 %7321
  %7323 = vrot.lane.b32.xlu0 %v1172, 16
  %v7324 = vpop.permute.xlu0 %7323
  %7325 = vrot.lane.b32.xlu0 %v1173, 16
  %v7326 = vpop.permute.xlu0 %7325
  %7327 = vrot.lane.b32.xlu0 %v1174, 16
  %v7328 = vpop.permute.xlu0 %7327
  %7329 = vrot.lane.b32.xlu0 %v1175, 16
  %v7330 = vpop.permute.xlu0 %7329
  %7331 = vrot.lane.b32.xlu0 %v1176, 16
  %v7332 = vpop.permute.xlu0 %7331
  %7333 = vrot.lane.b32.xlu0 %v1177, 16
  %v7334 = vpop.permute.xlu0 %7333
  %7335 = vrot.lane.b32.xlu0 %v1178, 16
  %v7336 = vpop.permute.xlu0 %7335
  %7337 = vrot.lane.b32.xlu0 %v1179, 16
  %v7338 = vpop.permute.xlu0 %7337
  %7339 = vrot.lane.b32.xlu0 %v1180, 16
  %v7340 = vpop.permute.xlu0 %7339
  %7341 = vrot.lane.b32.xlu0 %v1181, 16
  %v7342 = vpop.permute.xlu0 %7341
  %7343 = vrot.lane.b32.xlu0 %v1182, 16
  %v7344 = vpop.permute.xlu0 %7343
  %7345 = vrot.lane.b32.xlu0 %v1183, 16
  %v7346 = vpop.permute.xlu0 %7345
  %7347 = vrot.lane.b32.xlu0 %v1184, 16
  %v7348 = vpop.permute.xlu0 %7347
  %7349 = vrot.lane.b32.xlu0 %v1185, 16
  %v7350 = vpop.permute.xlu0 %7349
  %7351 = vrot.lane.b32.xlu0 %v1186, 16
  %v7352 = vpop.permute.xlu0 %7351
  %7353 = vrot.lane.b32.xlu0 %v1187, 16
  %v7354 = vpop.permute.xlu0 %7353
  %7355 = vrot.lane.b32.xlu0 %v1188, 16
  %v7356 = vpop.permute.xlu0 %7355
  %7357 = vrot.lane.b32.xlu0 %v1189, 16
  %v7358 = vpop.permute.xlu0 %7357
  %7359 = vrot.lane.b32.xlu0 %v1190, 16
  %v7360 = vpop.permute.xlu0 %7359
  %7361 = vrot.lane.b32.xlu0 %v1191, 16
  %v7362 = vpop.permute.xlu0 %7361
  %7363 = vrot.lane.b32.xlu0 %v1192, 16
  %v7364 = vpop.permute.xlu0 %7363
  %7365 = vrot.lane.b32.xlu0 %v1193, 16
  %v7366 = vpop.permute.xlu0 %7365
  %7367 = vrot.lane.b32.xlu0 %v1194, 16
  %v7368 = vpop.permute.xlu0 %7367
  %7369 = vrot.lane.b32.xlu0 %v1195, 16
  %v7370 = vpop.permute.xlu0 %7369
  %7371 = vrot.lane.b32.xlu0 %v1196, 16
  %v7372 = vpop.permute.xlu0 %7371
  %7373 = vrot.lane.b32.xlu0 %v1197, 16
  %v7374 = vpop.permute.xlu0 %7373
  %7375 = vrot.lane.b32.xlu0 %v1198, 16
  %v7376 = vpop.permute.xlu0 %7375
  %7377 = vrot.lane.b32.xlu0 %v1199, 16
  %v7378 = vpop.permute.xlu0 %7377
  %7379 = vrot.lane.b32.xlu0 %v1200, 16
  %v7380 = vpop.permute.xlu0 %7379
  %7381 = vrot.lane.b32.xlu0 %v1201, 16
  %v7382 = vpop.permute.xlu0 %7381
  %7383 = vrot.lane.b32.xlu0 %v1202, 16
  %v7384 = vpop.permute.xlu0 %7383
  %7385 = vrot.lane.b32.xlu0 %v1203, 16
  %v7386 = vpop.permute.xlu0 %7385
  %7387 = vrot.lane.b32.xlu0 %v1204, 16
  %v7388 = vpop.permute.xlu0 %7387
  %7389 = vrot.lane.b32.xlu0 %v1205, 16
  %v7390 = vpop.permute.xlu0 %7389
  %7391 = vrot.lane.b32.xlu0 %v1206, 16
  %v7392 = vpop.permute.xlu0 %7391
  %7393 = vrot.lane.b32.xlu0 %v1207, 16
  %v7394 = vpop.permute.xlu0 %7393
  %7395 = vrot.lane.b32.xlu0 %v1208, 16
  %v7396 = vpop.permute.xlu0 %7395
  %7397 = vrot.lane.b32.xlu0 %v1209, 16
  %v7398 = vpop.permute.xlu0 %7397
  %7399 = vrot.lane.b32.xlu0 %v1210, 16
  %v7400 = vpop.permute.xlu0 %7399
  %7401 = vrot.lane.b32.xlu0 %v1211, 16
  %v7402 = vpop.permute.xlu0 %7401
  %7403 = vrot.lane.b32.xlu0 %v1212, 16
  %v7404 = vpop.permute.xlu0 %7403
  %7405 = vrot.lane.b32.xlu0 %v1213, 16
  %v7406 = vpop.permute.xlu0 %7405
  %7503 = vrot.lane.b32.xlu0 %v1214, 20
  %v7504 = vpop.permute.xlu0 %7503
  %7505 = vrot.lane.b32.xlu0 %v1215, 20
  %v7506 = vpop.permute.xlu0 %7505
  %7507 = vrot.lane.b32.xlu0 %v1216, 20
  %v7508 = vpop.permute.xlu0 %7507
  %7509 = vrot.lane.b32.xlu0 %v1217, 20
  %v7510 = vpop.permute.xlu0 %7509
  %7511 = vrot.lane.b32.xlu0 %v1218, 20
  %v7512 = vpop.permute.xlu0 %7511
  %7513 = vrot.lane.b32.xlu0 %v1219, 20
  %v7514 = vpop.permute.xlu0 %7513
  %7515 = vrot.lane.b32.xlu0 %v1220, 20
  %v7516 = vpop.permute.xlu0 %7515
  %7517 = vrot.lane.b32.xlu0 %v1221, 20
  %v7518 = vpop.permute.xlu0 %7517
  %7519 = vrot.lane.b32.xlu0 %v1222, 20
  %v7520 = vpop.permute.xlu0 %7519
  %7521 = vrot.lane.b32.xlu0 %v1223, 20
  %v7522 = vpop.permute.xlu0 %7521
  %7523 = vrot.lane.b32.xlu0 %v1224, 20
  %v7524 = vpop.permute.xlu0 %7523
  %7525 = vrot.lane.b32.xlu0 %v1225, 20
  %v7526 = vpop.permute.xlu0 %7525
  %7527 = vrot.lane.b32.xlu0 %v1226, 20
  %v7528 = vpop.permute.xlu0 %7527
  %7529 = vrot.lane.b32.xlu0 %v1227, 20
  %v7530 = vpop.permute.xlu0 %7529
  %7531 = vrot.lane.b32.xlu0 %v1228, 20
  %v7532 = vpop.permute.xlu0 %7531
  %7533 = vrot.lane.b32.xlu0 %v1229, 20
  %v7534 = vpop.permute.xlu0 %7533
  %7535 = vrot.lane.b32.xlu0 %v1230, 20
  %v7536 = vpop.permute.xlu0 %7535
  %7537 = vrot.lane.b32.xlu0 %v1231, 20
  %v7538 = vpop.permute.xlu0 %7537
  %7539 = vrot.lane.b32.xlu0 %v1232, 20
  %v7540 = vpop.permute.xlu0 %7539
  %7541 = vrot.lane.b32.xlu0 %v1233, 20
  %v7542 = vpop.permute.xlu0 %7541
  %7543 = vrot.lane.b32.xlu0 %v1234, 20
  %v7544 = vpop.permute.xlu0 %7543
  %7545 = vrot.lane.b32.xlu0 %v1235, 20
  %v7546 = vpop.permute.xlu0 %7545
  %7547 = vrot.lane.b32.xlu0 %v1236, 20
  %v7548 = vpop.permute.xlu0 %7547
  %7549 = vrot.lane.b32.xlu0 %v1237, 20
  %v7550 = vpop.permute.xlu0 %7549
  %7551 = vrot.lane.b32.xlu0 %v1238, 20
  %v7552 = vpop.permute.xlu0 %7551
  %7553 = vrot.lane.b32.xlu0 %v1239, 20
  %v7554 = vpop.permute.xlu0 %7553
  %7555 = vrot.lane.b32.xlu0 %v1240, 20
  %v7556 = vpop.permute.xlu0 %7555
  %7557 = vrot.lane.b32.xlu0 %v1241, 20
  %v7558 = vpop.permute.xlu0 %7557
  %7559 = vrot.lane.b32.xlu0 %v1242, 20
  %v7560 = vpop.permute.xlu0 %7559
  %7561 = vrot.lane.b32.xlu0 %v1243, 20
  %v7562 = vpop.permute.xlu0 %7561
  %7563 = vrot.lane.b32.xlu0 %v1244, 20
  %v7564 = vpop.permute.xlu0 %7563
  %7565 = vrot.lane.b32.xlu0 %v1245, 20
  %v7566 = vpop.permute.xlu0 %7565
  %7599 = vrot.lane.b32.xlu0 %v282, 24
  %v7600 = vpop.permute.xlu0 %7599
  %7601 = vrot.lane.b32.xlu0 %v283, 24
  %v7602 = vpop.permute.xlu0 %7601
  %7603 = vrot.lane.b32.xlu0 %v284, 24
  %v7604 = vpop.permute.xlu0 %7603
  %7605 = vrot.lane.b32.xlu0 %v285, 24
  %v7606 = vpop.permute.xlu0 %7605
  %7607 = vrot.lane.b32.xlu0 %v286, 24
  %v7608 = vpop.permute.xlu0 %7607
  %7609 = vrot.lane.b32.xlu0 %v287, 24
  %v7610 = vpop.permute.xlu0 %7609
  %7611 = vrot.lane.b32.xlu0 %v288, 24
  %v7612 = vpop.permute.xlu0 %7611
  %7613 = vrot.lane.b32.xlu0 %v289, 24
  %v7614 = vpop.permute.xlu0 %7613
  %7615 = vrot.lane.b32.xlu0 %v290, 24
  %v7616 = vpop.permute.xlu0 %7615
  %7617 = vrot.lane.b32.xlu0 %v291, 24
  %v7618 = vpop.permute.xlu0 %7617
  %7619 = vrot.lane.b32.xlu0 %v292, 24
  %v7620 = vpop.permute.xlu0 %7619
  %7621 = vrot.lane.b32.xlu0 %v293, 24
  %v7622 = vpop.permute.xlu0 %7621
  %7623 = vrot.lane.b32.xlu0 %v294, 24
  %v7624 = vpop.permute.xlu0 %7623
  %7625 = vrot.lane.b32.xlu0 %v295, 24
  %v7626 = vpop.permute.xlu0 %7625
  %7627 = vrot.lane.b32.xlu0 %v296, 24
  %v7628 = vpop.permute.xlu0 %7627
  %7629 = vrot.lane.b32.xlu0 %v297, 24
  %v7630 = vpop.permute.xlu0 %7629
  %7631 = vrot.lane.b32.xlu0 %v298, 24
  %v7632 = vpop.permute.xlu0 %7631
  %7633 = vrot.lane.b32.xlu0 %v299, 24
  %v7634 = vpop.permute.xlu0 %7633
  %7635 = vrot.lane.b32.xlu0 %v300, 24
  %v7636 = vpop.permute.xlu0 %7635
  %7637 = vrot.lane.b32.xlu0 %v301, 24
  %v7638 = vpop.permute.xlu0 %7637
  %7639 = vrot.lane.b32.xlu0 %v302, 24
  %v7640 = vpop.permute.xlu0 %7639
  %7641 = vrot.lane.b32.xlu0 %v303, 24
  %v7642 = vpop.permute.xlu0 %7641
  %7643 = vrot.lane.b32.xlu0 %v304, 24
  %v7644 = vpop.permute.xlu0 %7643
  %7645 = vrot.lane.b32.xlu0 %v305, 24
  %v7646 = vpop.permute.xlu0 %7645
  %7647 = vrot.lane.b32.xlu0 %v306, 24
  %v7648 = vpop.permute.xlu0 %7647
  %7649 = vrot.lane.b32.xlu0 %v307, 24
  %v7650 = vpop.permute.xlu0 %7649
  %7651 = vrot.lane.b32.xlu0 %v308, 24
  %v7652 = vpop.permute.xlu0 %7651
  %7653 = vrot.lane.b32.xlu0 %v309, 24
  %v7654 = vpop.permute.xlu0 %7653
  %7655 = vrot.lane.b32.xlu0 %v310, 24
  %v7656 = vpop.permute.xlu0 %7655
  %7657 = vrot.lane.b32.xlu0 %v311, 24
  %v7658 = vpop.permute.xlu0 %7657
  %7659 = vrot.lane.b32.xlu0 %v312, 24
  %v7660 = vpop.permute.xlu0 %7659
  %7661 = vrot.lane.b32.xlu0 %v313, 24
  %v7662 = vpop.permute.xlu0 %7661
  %7663 = vrot.lane.b32.xlu0 %v314, 24
  %v7664 = vpop.permute.xlu0 %7663
  %7665 = vrot.lane.b32.xlu0 %v315, 24
  %v7666 = vpop.permute.xlu0 %7665
  %7667 = vrot.lane.b32.xlu0 %v316, 24
  %v7668 = vpop.permute.xlu0 %7667
  %7669 = vrot.lane.b32.xlu0 %v317, 24
  %v7670 = vpop.permute.xlu0 %7669
  %7671 = vrot.lane.b32.xlu0 %v318, 24
  %v7672 = vpop.permute.xlu0 %7671
  %7673 = vrot.lane.b32.xlu0 %v319, 24
  %v7674 = vpop.permute.xlu0 %7673
  %7675 = vrot.lane.b32.xlu0 %v320, 24
  %v7676 = vpop.permute.xlu0 %7675
  %7677 = vrot.lane.b32.xlu0 %v321, 24
  %v7678 = vpop.permute.xlu0 %7677
  %7679 = vrot.lane.b32.xlu0 %v322, 24
  %v7680 = vpop.permute.xlu0 %7679
  %7681 = vrot.lane.b32.xlu0 %v323, 24
  %v7682 = vpop.permute.xlu0 %7681
  %7683 = vrot.lane.b32.xlu0 %v324, 24
  %v7684 = vpop.permute.xlu0 %7683
  %7685 = vrot.lane.b32.xlu0 %v325, 24
  %v7686 = vpop.permute.xlu0 %7685
  %7687 = vrot.lane.b32.xlu0 %v326, 24
  %v7688 = vpop.permute.xlu0 %7687
  %7689 = vrot.lane.b32.xlu0 %v327, 24
  %v7690 = vpop.permute.xlu0 %7689
  %7691 = vrot.lane.b32.xlu0 %v328, 24
  %v7692 = vpop.permute.xlu0 %7691
  %7693 = vrot.lane.b32.xlu0 %v329, 24
  %v7694 = vpop.permute.xlu0 %7693
  %7695 = vrot.lane.b32.xlu0 %v330, 24
  %v7696 = vpop.permute.xlu0 %7695
  %7697 = vrot.lane.b32.xlu0 %v331, 24
  %v7698 = vpop.permute.xlu0 %7697
  %7699 = vrot.lane.b32.xlu0 %v332, 24
  %v7700 = vpop.permute.xlu0 %7699
  %7701 = vrot.lane.b32.xlu0 %v333, 24
  %v7702 = vpop.permute.xlu0 %7701
  %7703 = vrot.lane.b32.xlu0 %v334, 24
  %v7704 = vpop.permute.xlu0 %7703
  %7705 = vrot.lane.b32.xlu0 %v335, 24
  %v7706 = vpop.permute.xlu0 %7705
  %7707 = vrot.lane.b32.xlu0 %v336, 24
  %v7708 = vpop.permute.xlu0 %7707
  %7709 = vrot.lane.b32.xlu0 %v337, 24
  %v7710 = vpop.permute.xlu0 %7709
  %7711 = vrot.lane.b32.xlu0 %v338, 24
  %v7712 = vpop.permute.xlu0 %7711
  %7713 = vrot.lane.b32.xlu0 %v339, 24
  %v7714 = vpop.permute.xlu0 %7713
  %7715 = vrot.lane.b32.xlu0 %v340, 24
  %v7716 = vpop.permute.xlu0 %7715
  %7717 = vrot.lane.b32.xlu0 %v341, 24
  %v7718 = vpop.permute.xlu0 %7717
  %7719 = vrot.lane.b32.xlu0 %v342, 24
  %v7720 = vpop.permute.xlu0 %7719
  %7721 = vrot.lane.b32.xlu0 %v343, 24
  %v7722 = vpop.permute.xlu0 %7721
  %7723 = vrot.lane.b32.xlu0 %v344, 24
  %v7724 = vpop.permute.xlu0 %7723
  %7725 = vrot.lane.b32.xlu0 %v345, 24
  %v7726 = vpop.permute.xlu0 %7725
  %7823 = vrot.lane.b32.xlu0 %v219, 28
  %v7824 = vpop.permute.xlu0 %7823
  %7825 = vrot.lane.b32.xlu0 %v1246, 28
  %v7826 = vpop.permute.xlu0 %7825
  %7827 = vrot.lane.b32.xlu0 %v221, 28
  %v7828 = vpop.permute.xlu0 %7827
  %7829 = vrot.lane.b32.xlu0 %v1247, 28
  %v7830 = vpop.permute.xlu0 %7829
  %7831 = vrot.lane.b32.xlu0 %v223, 28
  %v7832 = vpop.permute.xlu0 %7831
  %7833 = vrot.lane.b32.xlu0 %v1248, 28
  %v7834 = vpop.permute.xlu0 %7833
  %7835 = vrot.lane.b32.xlu0 %v225, 28
  %v7836 = vpop.permute.xlu0 %7835
  %7837 = vrot.lane.b32.xlu0 %v1249, 28
  %v7838 = vpop.permute.xlu0 %7837
  %7839 = vrot.lane.b32.xlu0 %v227, 28
  %v7840 = vpop.permute.xlu0 %7839
  %7841 = vrot.lane.b32.xlu0 %v1250, 28
  %v7842 = vpop.permute.xlu0 %7841
  %7843 = vrot.lane.b32.xlu0 %v229, 28
  %v7844 = vpop.permute.xlu0 %7843
  %7845 = vrot.lane.b32.xlu0 %v1251, 28
  %v7846 = vpop.permute.xlu0 %7845
  %7847 = vrot.lane.b32.xlu0 %v231, 28
  %v7848 = vpop.permute.xlu0 %7847
  %7849 = vrot.lane.b32.xlu0 %v1252, 28
  %v7850 = vpop.permute.xlu0 %7849
  %7851 = vrot.lane.b32.xlu0 %v233, 28
  %v7852 = vpop.permute.xlu0 %7851
  %7853 = vrot.lane.b32.xlu0 %v1253, 28
  %v7854 = vpop.permute.xlu0 %7853
  %7855 = vrot.lane.b32.xlu0 %v235, 28
  %v7856 = vpop.permute.xlu0 %7855
  %7857 = vrot.lane.b32.xlu0 %v1254, 28
  %v7858 = vpop.permute.xlu0 %7857
  %7859 = vrot.lane.b32.xlu0 %v237, 28
  %v7860 = vpop.permute.xlu0 %7859
  %7861 = vrot.lane.b32.xlu0 %v1255, 28
  %v7862 = vpop.permute.xlu0 %7861
  %7863 = vrot.lane.b32.xlu0 %v239, 28
  %v7864 = vpop.permute.xlu0 %7863
  %7865 = vrot.lane.b32.xlu0 %v1256, 28
  %v7866 = vpop.permute.xlu0 %7865
  %7867 = vrot.lane.b32.xlu0 %v241, 28
  %v7868 = vpop.permute.xlu0 %7867
  %7869 = vrot.lane.b32.xlu0 %v1257, 28
  %v7870 = vpop.permute.xlu0 %7869
  %7871 = vrot.lane.b32.xlu0 %v243, 28
  %v7872 = vpop.permute.xlu0 %7871
  %7873 = vrot.lane.b32.xlu0 %v1258, 28
  %v7874 = vpop.permute.xlu0 %7873
  %7875 = vrot.lane.b32.xlu0 %v245, 28
  %v7876 = vpop.permute.xlu0 %7875
  %7877 = vrot.lane.b32.xlu0 %v1259, 28
  %v7878 = vpop.permute.xlu0 %7877
  %7879 = vrot.lane.b32.xlu0 %v247, 28
  %v7880 = vpop.permute.xlu0 %7879
  %7881 = vrot.lane.b32.xlu0 %v1260, 28
  %v7882 = vpop.permute.xlu0 %7881
  %7883 = vrot.lane.b32.xlu0 %v249, 28
  %v7884 = vpop.permute.xlu0 %7883
  %7885 = vrot.lane.b32.xlu0 %v1261, 28
  %v7886 = vpop.permute.xlu0 %7885
  %7887 = vrot.lane.b32.xlu0 %v251, 28
  %v7888 = vpop.permute.xlu0 %7887
  %7889 = vrot.lane.b32.xlu0 %v1262, 28
  %v7890 = vpop.permute.xlu0 %7889
  %7891 = vrot.lane.b32.xlu0 %v253, 28
  %v7892 = vpop.permute.xlu0 %7891
  %7893 = vrot.lane.b32.xlu0 %v1263, 28
  %v7894 = vpop.permute.xlu0 %7893
  %7895 = vrot.lane.b32.xlu0 %v255, 28
  %v7896 = vpop.permute.xlu0 %7895
  %7897 = vrot.lane.b32.xlu0 %v1264, 28
  %v7898 = vpop.permute.xlu0 %7897
  %7899 = vrot.lane.b32.xlu0 %v257, 28
  %v7900 = vpop.permute.xlu0 %7899
  %7901 = vrot.lane.b32.xlu0 %v1265, 28
  %v7902 = vpop.permute.xlu0 %7901
  %7903 = vrot.lane.b32.xlu0 %v259, 28
  %v7904 = vpop.permute.xlu0 %7903
  %7905 = vrot.lane.b32.xlu0 %v1266, 28
  %v7906 = vpop.permute.xlu0 %7905
  %7907 = vrot.lane.b32.xlu0 %v261, 28
  %v7908 = vpop.permute.xlu0 %7907
  %7909 = vrot.lane.b32.xlu0 %v1267, 28
  %v7910 = vpop.permute.xlu0 %7909
  %7911 = vrot.lane.b32.xlu0 %v263, 28
  %v7912 = vpop.permute.xlu0 %7911
  %7913 = vrot.lane.b32.xlu0 %v1268, 28
  %v7914 = vpop.permute.xlu0 %7913
  %7915 = vrot.lane.b32.xlu0 %v265, 28
  %v7916 = vpop.permute.xlu0 %7915
  %7917 = vrot.lane.b32.xlu0 %v1269, 28
  %v7918 = vpop.permute.xlu0 %7917
  %7919 = vrot.lane.b32.xlu0 %v267, 28
  %v7920 = vpop.permute.xlu0 %7919
  %7921 = vrot.lane.b32.xlu0 %v1270, 28
  %v7922 = vpop.permute.xlu0 %7921
  %7923 = vrot.lane.b32.xlu0 %v269, 28
  %v7924 = vpop.permute.xlu0 %7923
  %7925 = vrot.lane.b32.xlu0 %v1271, 28
  %v7926 = vpop.permute.xlu0 %7925
  %7927 = vrot.lane.b32.xlu0 %v271, 28
  %v7928 = vpop.permute.xlu0 %7927
  %7929 = vrot.lane.b32.xlu0 %v1272, 28
  %v7930 = vpop.permute.xlu0 %7929
  %7931 = vrot.lane.b32.xlu0 %v273, 28
  %v7932 = vpop.permute.xlu0 %7931
  %7933 = vrot.lane.b32.xlu0 %v1273, 28
  %v7934 = vpop.permute.xlu0 %7933
  %7935 = vrot.lane.b32.xlu0 %v275, 28
  %v7936 = vpop.permute.xlu0 %7935
  %7937 = vrot.lane.b32.xlu0 %v1274, 28
  %v7938 = vpop.permute.xlu0 %7937
  %7939 = vrot.lane.b32.xlu0 %v277, 28
  %v7940 = vpop.permute.xlu0 %7939
  %7941 = vrot.lane.b32.xlu0 %v1275, 28
  %v7942 = vpop.permute.xlu0 %7941
  %7943 = vrot.lane.b32.xlu0 %v279, 28
  %v7944 = vpop.permute.xlu0 %7943
  %7945 = vrot.lane.b32.xlu0 %v1276, 28
  %v7946 = vpop.permute.xlu0 %7945
  %7947 = vrot.lane.b32.xlu0 %v281, 28
  %v7948 = vpop.permute.xlu0 %7947
  %7949 = vrot.lane.b32.xlu0 %v1277, 28
  %v7950 = vpop.permute.xlu0 %7949
  %8079 = vrot.lane.b32.xlu0 %v1279, 32
  %v8080 = vpop.permute.xlu0 %8079
  %8081 = vrot.lane.b32.xlu0 %v1280, 32
  %v8082 = vpop.permute.xlu0 %8081
  %8083 = vrot.lane.b32.xlu0 %v1281, 32
  %v8084 = vpop.permute.xlu0 %8083
  %8085 = vrot.lane.b32.xlu0 %v1282, 32
  %v8086 = vpop.permute.xlu0 %8085
  %8087 = vrot.lane.b32.xlu0 %v1283, 32
  %v8088 = vpop.permute.xlu0 %8087
  %8089 = vrot.lane.b32.xlu0 %v1284, 32
  %v8090 = vpop.permute.xlu0 %8089
  %8091 = vrot.lane.b32.xlu0 %v1285, 32
  %v8092 = vpop.permute.xlu0 %8091
  %8093 = vrot.lane.b32.xlu0 %v1286, 32
  %v8094 = vpop.permute.xlu0 %8093
  %8095 = vrot.lane.b32.xlu0 %v1287, 32
  %v8096 = vpop.permute.xlu0 %8095
  %8097 = vrot.lane.b32.xlu0 %v1288, 32
  %v8098 = vpop.permute.xlu0 %8097
  %8099 = vrot.lane.b32.xlu0 %v1289, 32
  %v8100 = vpop.permute.xlu0 %8099
  %8101 = vrot.lane.b32.xlu0 %v1290, 32
  %v8102 = vpop.permute.xlu0 %8101
  %8103 = vrot.lane.b32.xlu0 %v1291, 32
  %v8104 = vpop.permute.xlu0 %8103
  %8105 = vrot.lane.b32.xlu0 %v1292, 32
  %v8106 = vpop.permute.xlu0 %8105
  %8107 = vrot.lane.b32.xlu0 %v1293, 32
  %v8108 = vpop.permute.xlu0 %8107
  %8109 = vrot.lane.b32.xlu0 %v1294, 32
  %v8110 = vpop.permute.xlu0 %8109
  %8111 = vrot.lane.b32.xlu0 %v1295, 32
  %v8112 = vpop.permute.xlu0 %8111
  %8113 = vrot.lane.b32.xlu0 %v1296, 32
  %v8114 = vpop.permute.xlu0 %8113
  %8115 = vrot.lane.b32.xlu0 %v1297, 32
  %v8116 = vpop.permute.xlu0 %8115
  %8117 = vrot.lane.b32.xlu0 %v1298, 32
  %v8118 = vpop.permute.xlu0 %8117
  %8119 = vrot.lane.b32.xlu0 %v1299, 32
  %v8120 = vpop.permute.xlu0 %8119
  %8121 = vrot.lane.b32.xlu0 %v1300, 32
  %v8122 = vpop.permute.xlu0 %8121
  %8123 = vrot.lane.b32.xlu0 %v1301, 32
  %v8124 = vpop.permute.xlu0 %8123
  %8125 = vrot.lane.b32.xlu0 %v1302, 32
  %v8126 = vpop.permute.xlu0 %8125
  %8127 = vrot.lane.b32.xlu0 %v1303, 32
  %v8128 = vpop.permute.xlu0 %8127
  %8129 = vrot.lane.b32.xlu0 %v1304, 32
  %v8130 = vpop.permute.xlu0 %8129
  %8131 = vrot.lane.b32.xlu0 %v1305, 32
  %v8132 = vpop.permute.xlu0 %8131
  %8133 = vrot.lane.b32.xlu0 %v1306, 32
  %v8134 = vpop.permute.xlu0 %8133
  %8135 = vrot.lane.b32.xlu0 %v1307, 32
  %v8136 = vpop.permute.xlu0 %8135
  %8137 = vrot.lane.b32.xlu0 %v1308, 32
  %v8138 = vpop.permute.xlu0 %8137
  %8139 = vrot.lane.b32.xlu0 %v1309, 32
  %v8140 = vpop.permute.xlu0 %8139
  %8141 = vrot.lane.b32.xlu0 %v1310, 32
  %v8142 = vpop.permute.xlu0 %8141
  %8143 = vrot.lane.b32.xlu0 %v1311, 32
  %v8144 = vpop.permute.xlu0 %8143
  %8145 = vrot.lane.b32.xlu0 %v1312, 32
  %v8146 = vpop.permute.xlu0 %8145
  %8147 = vrot.lane.b32.xlu0 %v1313, 32
  %v8148 = vpop.permute.xlu0 %8147
  %8149 = vrot.lane.b32.xlu0 %v1314, 32
  %v8150 = vpop.permute.xlu0 %8149
  %8151 = vrot.lane.b32.xlu0 %v1315, 32
  %v8152 = vpop.permute.xlu0 %8151
  %8153 = vrot.lane.b32.xlu0 %v1316, 32
  %v8154 = vpop.permute.xlu0 %8153
  %8155 = vrot.lane.b32.xlu0 %v1317, 32
  %v8156 = vpop.permute.xlu0 %8155
  %8157 = vrot.lane.b32.xlu0 %v1318, 32
  %v8158 = vpop.permute.xlu0 %8157
  %8159 = vrot.lane.b32.xlu0 %v1319, 32
  %v8160 = vpop.permute.xlu0 %8159
  %8161 = vrot.lane.b32.xlu0 %v1320, 32
  %v8162 = vpop.permute.xlu0 %8161
  %8163 = vrot.lane.b32.xlu0 %v1321, 32
  %v8164 = vpop.permute.xlu0 %8163
  %8165 = vrot.lane.b32.xlu0 %v1322, 32
  %v8166 = vpop.permute.xlu0 %8165
  %8167 = vrot.lane.b32.xlu0 %v1323, 32
  %v8168 = vpop.permute.xlu0 %8167
  %8169 = vrot.lane.b32.xlu0 %v1324, 32
  %v8170 = vpop.permute.xlu0 %8169
  %8171 = vrot.lane.b32.xlu0 %v1325, 32
  %v8172 = vpop.permute.xlu0 %8171
  %8173 = vrot.lane.b32.xlu0 %v1326, 32
  %v8174 = vpop.permute.xlu0 %8173
  %8175 = vrot.lane.b32.xlu0 %v1327, 32
  %v8176 = vpop.permute.xlu0 %8175
  %8177 = vrot.lane.b32.xlu0 %v1328, 32
  %v8178 = vpop.permute.xlu0 %8177
  %8179 = vrot.lane.b32.xlu0 %v1329, 32
  %v8180 = vpop.permute.xlu0 %8179
  %8181 = vrot.lane.b32.xlu0 %v1330, 32
  %v8182 = vpop.permute.xlu0 %8181
  %8183 = vrot.lane.b32.xlu0 %v1331, 32
  %v8184 = vpop.permute.xlu0 %8183
  %8185 = vrot.lane.b32.xlu0 %v1332, 32
  %v8186 = vpop.permute.xlu0 %8185
  %8187 = vrot.lane.b32.xlu0 %v1333, 32
  %v8188 = vpop.permute.xlu0 %8187
  %8189 = vrot.lane.b32.xlu0 %v1334, 32
  %v8190 = vpop.permute.xlu0 %8189
  %8191 = vrot.lane.b32.xlu0 %v1335, 32
  %v8192 = vpop.permute.xlu0 %8191
  %8193 = vrot.lane.b32.xlu0 %v1336, 32
  %v8194 = vpop.permute.xlu0 %8193
  %8195 = vrot.lane.b32.xlu0 %v1337, 32
  %v8196 = vpop.permute.xlu0 %8195
  %8197 = vrot.lane.b32.xlu0 %v1338, 32
  %v8198 = vpop.permute.xlu0 %8197
  %8199 = vrot.lane.b32.xlu0 %v1339, 32
  %v8200 = vpop.permute.xlu0 %8199
  %8201 = vrot.lane.b32.xlu0 %v1340, 32
  %v8202 = vpop.permute.xlu0 %8201
  %8203 = vrot.lane.b32.xlu0 %v1341, 32
  %v8204 = vpop.permute.xlu0 %8203
  %8205 = vrot.lane.b32.xlu0 %v1342, 32
  %v8206 = vpop.permute.xlu0 %8205
  %8335 = vrot.lane.b32.xlu0 %v1343, 36
  %v8336 = vpop.permute.xlu0 %8335
  %8337 = vrot.lane.b32.xlu0 %v1344, 36
  %v8338 = vpop.permute.xlu0 %8337
  %8339 = vrot.lane.b32.xlu0 %v1345, 36
  %v8340 = vpop.permute.xlu0 %8339
  %8341 = vrot.lane.b32.xlu0 %v1346, 36
  %v8342 = vpop.permute.xlu0 %8341
  %8343 = vrot.lane.b32.xlu0 %v1347, 36
  %v8344 = vpop.permute.xlu0 %8343
  %8345 = vrot.lane.b32.xlu0 %v1348, 36
  %v8346 = vpop.permute.xlu0 %8345
  %8347 = vrot.lane.b32.xlu0 %v1349, 36
  %v8348 = vpop.permute.xlu0 %8347
  %8349 = vrot.lane.b32.xlu0 %v1350, 36
  %v8350 = vpop.permute.xlu0 %8349
  %8351 = vrot.lane.b32.xlu0 %v1351, 36
  %v8352 = vpop.permute.xlu0 %8351
  %8353 = vrot.lane.b32.xlu0 %v1352, 36
  %v8354 = vpop.permute.xlu0 %8353
  %8355 = vrot.lane.b32.xlu0 %v1353, 36
  %v8356 = vpop.permute.xlu0 %8355
  %8357 = vrot.lane.b32.xlu0 %v1354, 36
  %v8358 = vpop.permute.xlu0 %8357
  %8359 = vrot.lane.b32.xlu0 %v1355, 36
  %v8360 = vpop.permute.xlu0 %8359
  %8361 = vrot.lane.b32.xlu0 %v1356, 36
  %v8362 = vpop.permute.xlu0 %8361
  %8363 = vrot.lane.b32.xlu0 %v1357, 36
  %v8364 = vpop.permute.xlu0 %8363
  %8365 = vrot.lane.b32.xlu0 %v1358, 36
  %v8366 = vpop.permute.xlu0 %8365
  %8367 = vrot.lane.b32.xlu0 %v1359, 36
  %v8368 = vpop.permute.xlu0 %8367
  %8369 = vrot.lane.b32.xlu0 %v1360, 36
  %v8370 = vpop.permute.xlu0 %8369
  %8371 = vrot.lane.b32.xlu0 %v1361, 36
  %v8372 = vpop.permute.xlu0 %8371
  %8373 = vrot.lane.b32.xlu0 %v1362, 36
  %v8374 = vpop.permute.xlu0 %8373
  %8375 = vrot.lane.b32.xlu0 %v1363, 36
  %v8376 = vpop.permute.xlu0 %8375
  %8377 = vrot.lane.b32.xlu0 %v1364, 36
  %v8378 = vpop.permute.xlu0 %8377
  %8379 = vrot.lane.b32.xlu0 %v1365, 36
  %v8380 = vpop.permute.xlu0 %8379
  %8381 = vrot.lane.b32.xlu0 %v1366, 36
  %v8382 = vpop.permute.xlu0 %8381
  %8383 = vrot.lane.b32.xlu0 %v1367, 36
  %v8384 = vpop.permute.xlu0 %8383
  %8385 = vrot.lane.b32.xlu0 %v1368, 36
  %v8386 = vpop.permute.xlu0 %8385
  %8387 = vrot.lane.b32.xlu0 %v1369, 36
  %v8388 = vpop.permute.xlu0 %8387
  %8389 = vrot.lane.b32.xlu0 %v1370, 36
  %v8390 = vpop.permute.xlu0 %8389
  %8391 = vrot.lane.b32.xlu0 %v1371, 36
  %v8392 = vpop.permute.xlu0 %8391
  %8393 = vrot.lane.b32.xlu0 %v1372, 36
  %v8394 = vpop.permute.xlu0 %8393
  %8395 = vrot.lane.b32.xlu0 %v1373, 36
  %v8396 = vpop.permute.xlu0 %8395
  %8397 = vrot.lane.b32.xlu0 %v1374, 36
  %v8398 = vpop.permute.xlu0 %8397
  %8399 = vrot.lane.b32.xlu0 %v1375, 36
  %v8400 = vpop.permute.xlu0 %8399
  %8401 = vrot.lane.b32.xlu0 %v1376, 36
  %v8402 = vpop.permute.xlu0 %8401
  %8403 = vrot.lane.b32.xlu0 %v1377, 36
  %v8404 = vpop.permute.xlu0 %8403
  %8405 = vrot.lane.b32.xlu0 %v1378, 36
  %v8406 = vpop.permute.xlu0 %8405
  %8407 = vrot.lane.b32.xlu0 %v1379, 36
  %v8408 = vpop.permute.xlu0 %8407
  %8409 = vrot.lane.b32.xlu0 %v1380, 36
  %v8410 = vpop.permute.xlu0 %8409
  %8411 = vrot.lane.b32.xlu0 %v1381, 36
  %v8412 = vpop.permute.xlu0 %8411
  %8413 = vrot.lane.b32.xlu0 %v1382, 36
  %v8414 = vpop.permute.xlu0 %8413
  %8415 = vrot.lane.b32.xlu0 %v1383, 36
  %v8416 = vpop.permute.xlu0 %8415
  %8417 = vrot.lane.b32.xlu0 %v1384, 36
  %v8418 = vpop.permute.xlu0 %8417
  %8419 = vrot.lane.b32.xlu0 %v1385, 36
  %v8420 = vpop.permute.xlu0 %8419
  %8421 = vrot.lane.b32.xlu0 %v1386, 36
  %v8422 = vpop.permute.xlu0 %8421
  %8423 = vrot.lane.b32.xlu0 %v1387, 36
  %v8424 = vpop.permute.xlu0 %8423
  %8425 = vrot.lane.b32.xlu0 %v1388, 36
  %v8426 = vpop.permute.xlu0 %8425
  %8427 = vrot.lane.b32.xlu0 %v1389, 36
  %v8428 = vpop.permute.xlu0 %8427
  %8429 = vrot.lane.b32.xlu0 %v1390, 36
  %v8430 = vpop.permute.xlu0 %8429
  %8431 = vrot.lane.b32.xlu0 %v1391, 36
  %v8432 = vpop.permute.xlu0 %8431
  %8433 = vrot.lane.b32.xlu0 %v1392, 36
  %v8434 = vpop.permute.xlu0 %8433
  %8435 = vrot.lane.b32.xlu0 %v1393, 36
  %v8436 = vpop.permute.xlu0 %8435
  %8437 = vrot.lane.b32.xlu0 %v1394, 36
  %v8438 = vpop.permute.xlu0 %8437
  %8439 = vrot.lane.b32.xlu0 %v1395, 36
  %v8440 = vpop.permute.xlu0 %8439
  %8441 = vrot.lane.b32.xlu0 %v1396, 36
  %v8442 = vpop.permute.xlu0 %8441
  %8443 = vrot.lane.b32.xlu0 %v1397, 36
  %v8444 = vpop.permute.xlu0 %8443
  %8445 = vrot.lane.b32.xlu0 %v1398, 36
  %v8446 = vpop.permute.xlu0 %8445
  %8447 = vrot.lane.b32.xlu0 %v1399, 36
  %v8448 = vpop.permute.xlu0 %8447
  %8449 = vrot.lane.b32.xlu0 %v1400, 36
  %v8450 = vpop.permute.xlu0 %8449
  %8451 = vrot.lane.b32.xlu0 %v1401, 36
  %v8452 = vpop.permute.xlu0 %8451
  %8453 = vrot.lane.b32.xlu0 %v1402, 36
  %v8454 = vpop.permute.xlu0 %8453
  %8455 = vrot.lane.b32.xlu0 %v1403, 36
  %v8456 = vpop.permute.xlu0 %8455
  %8457 = vrot.lane.b32.xlu0 %v1404, 36
  %v8458 = vpop.permute.xlu0 %8457
  %8459 = vrot.lane.b32.xlu0 %v1405, 36
  %v8460 = vpop.permute.xlu0 %8459
  %8461 = vrot.lane.b32.xlu0 %v1406, 36
  %v8462 = vpop.permute.xlu0 %8461
  %8591 = vrot.lane.b32.xlu0 %v1407, 40
  %v8592 = vpop.permute.xlu0 %8591
  %8593 = vrot.lane.b32.xlu0 %v1408, 40
  %v8594 = vpop.permute.xlu0 %8593
  %8595 = vrot.lane.b32.xlu0 %v1409, 40
  %v8596 = vpop.permute.xlu0 %8595
  %8597 = vrot.lane.b32.xlu0 %v1410, 40
  %v8598 = vpop.permute.xlu0 %8597
  %8599 = vrot.lane.b32.xlu0 %v1411, 40
  %v8600 = vpop.permute.xlu0 %8599
  %8601 = vrot.lane.b32.xlu0 %v1412, 40
  %v8602 = vpop.permute.xlu0 %8601
  %8603 = vrot.lane.b32.xlu0 %v1413, 40
  %v8604 = vpop.permute.xlu0 %8603
  %8605 = vrot.lane.b32.xlu0 %v1414, 40
  %v8606 = vpop.permute.xlu0 %8605
  %8607 = vrot.lane.b32.xlu0 %v1415, 40
  %v8608 = vpop.permute.xlu0 %8607
  %8609 = vrot.lane.b32.xlu0 %v1416, 40
  %v8610 = vpop.permute.xlu0 %8609
  %8611 = vrot.lane.b32.xlu0 %v1417, 40
  %v8612 = vpop.permute.xlu0 %8611
  %8613 = vrot.lane.b32.xlu0 %v1418, 40
  %v8614 = vpop.permute.xlu0 %8613
  %8615 = vrot.lane.b32.xlu0 %v1419, 40
  %v8616 = vpop.permute.xlu0 %8615
  %8617 = vrot.lane.b32.xlu0 %v1420, 40
  %v8618 = vpop.permute.xlu0 %8617
  %8619 = vrot.lane.b32.xlu0 %v1421, 40
  %v8620 = vpop.permute.xlu0 %8619
  %8621 = vrot.lane.b32.xlu0 %v1422, 40
  %v8622 = vpop.permute.xlu0 %8621
  %8623 = vrot.lane.b32.xlu0 %v1423, 40
  %v8624 = vpop.permute.xlu0 %8623
  %8625 = vrot.lane.b32.xlu0 %v1424, 40
  %v8626 = vpop.permute.xlu0 %8625
  %8627 = vrot.lane.b32.xlu0 %v1425, 40
  %v8628 = vpop.permute.xlu0 %8627
  %8629 = vrot.lane.b32.xlu0 %v1426, 40
  %v8630 = vpop.permute.xlu0 %8629
  %8631 = vrot.lane.b32.xlu0 %v1427, 40
  %v8632 = vpop.permute.xlu0 %8631
  %8633 = vrot.lane.b32.xlu0 %v1428, 40
  %v8634 = vpop.permute.xlu0 %8633
  %8635 = vrot.lane.b32.xlu0 %v1429, 40
  %v8636 = vpop.permute.xlu0 %8635
  %8637 = vrot.lane.b32.xlu0 %v1430, 40
  %v8638 = vpop.permute.xlu0 %8637
  %8639 = vrot.lane.b32.xlu0 %v1431, 40
  %v8640 = vpop.permute.xlu0 %8639
  %8641 = vrot.lane.b32.xlu0 %v1432, 40
  %v8642 = vpop.permute.xlu0 %8641
  %8643 = vrot.lane.b32.xlu0 %v1433, 40
  %v8644 = vpop.permute.xlu0 %8643
  %8645 = vrot.lane.b32.xlu0 %v1434, 40
  %v8646 = vpop.permute.xlu0 %8645
  %8647 = vrot.lane.b32.xlu0 %v1435, 40
  %v8648 = vpop.permute.xlu0 %8647
  %8649 = vrot.lane.b32.xlu0 %v1436, 40
  %v8650 = vpop.permute.xlu0 %8649
  %8651 = vrot.lane.b32.xlu0 %v1437, 40
  %v8652 = vpop.permute.xlu0 %8651
  %8653 = vrot.lane.b32.xlu0 %v1438, 40
  %v8654 = vpop.permute.xlu0 %8653
  %8655 = vrot.lane.b32.xlu0 %v1439, 40
  %v8656 = vpop.permute.xlu0 %8655
  %8657 = vrot.lane.b32.xlu0 %v1440, 40
  %v8658 = vpop.permute.xlu0 %8657
  %8659 = vrot.lane.b32.xlu0 %v1441, 40
  %v8660 = vpop.permute.xlu0 %8659
  %8661 = vrot.lane.b32.xlu0 %v1442, 40
  %v8662 = vpop.permute.xlu0 %8661
  %8663 = vrot.lane.b32.xlu0 %v1443, 40
  %v8664 = vpop.permute.xlu0 %8663
  %8665 = vrot.lane.b32.xlu0 %v1444, 40
  %v8666 = vpop.permute.xlu0 %8665
  %8667 = vrot.lane.b32.xlu0 %v1445, 40
  %v8668 = vpop.permute.xlu0 %8667
  %8669 = vrot.lane.b32.xlu0 %v1446, 40
  %v8670 = vpop.permute.xlu0 %8669
  %8671 = vrot.lane.b32.xlu0 %v1447, 40
  %v8672 = vpop.permute.xlu0 %8671
  %8673 = vrot.lane.b32.xlu0 %v1448, 40
  %v8674 = vpop.permute.xlu0 %8673
  %8675 = vrot.lane.b32.xlu0 %v1449, 40
  %v8676 = vpop.permute.xlu0 %8675
  %8677 = vrot.lane.b32.xlu0 %v1450, 40
  %v8678 = vpop.permute.xlu0 %8677
  %8679 = vrot.lane.b32.xlu0 %v1451, 40
  %v8680 = vpop.permute.xlu0 %8679
  %8681 = vrot.lane.b32.xlu0 %v1452, 40
  %v8682 = vpop.permute.xlu0 %8681
  %8683 = vrot.lane.b32.xlu0 %v1453, 40
  %v8684 = vpop.permute.xlu0 %8683
  %8685 = vrot.lane.b32.xlu0 %v1454, 40
  %v8686 = vpop.permute.xlu0 %8685
  %8687 = vrot.lane.b32.xlu0 %v1455, 40
  %v8688 = vpop.permute.xlu0 %8687
  %8689 = vrot.lane.b32.xlu0 %v1456, 40
  %v8690 = vpop.permute.xlu0 %8689
  %8691 = vrot.lane.b32.xlu0 %v1457, 40
  %v8692 = vpop.permute.xlu0 %8691
  %8693 = vrot.lane.b32.xlu0 %v1458, 40
  %v8694 = vpop.permute.xlu0 %8693
  %8695 = vrot.lane.b32.xlu0 %v1459, 40
  %v8696 = vpop.permute.xlu0 %8695
  %8697 = vrot.lane.b32.xlu0 %v1460, 40
  %v8698 = vpop.permute.xlu0 %8697
  %8699 = vrot.lane.b32.xlu0 %v1461, 40
  %v8700 = vpop.permute.xlu0 %8699
  %8701 = vrot.lane.b32.xlu0 %v1462, 40
  %v8702 = vpop.permute.xlu0 %8701
  %8703 = vrot.lane.b32.xlu0 %v1463, 40
  %v8704 = vpop.permute.xlu0 %8703
  %8705 = vrot.lane.b32.xlu0 %v1464, 40
  %v8706 = vpop.permute.xlu0 %8705
  %8707 = vrot.lane.b32.xlu0 %v1465, 40
  %v8708 = vpop.permute.xlu0 %8707
  %8709 = vrot.lane.b32.xlu0 %v1466, 40
  %v8710 = vpop.permute.xlu0 %8709
  %8711 = vrot.lane.b32.xlu0 %v1467, 40
  %v8712 = vpop.permute.xlu0 %8711
  %8713 = vrot.lane.b32.xlu0 %v1468, 40
  %v8714 = vpop.permute.xlu0 %8713
  %8715 = vrot.lane.b32.xlu0 %v1469, 40
  %v8716 = vpop.permute.xlu0 %8715
  %8717 = vrot.lane.b32.xlu0 %v1470, 40
  %v8718 = vpop.permute.xlu0 %8717
  %8847 = vrot.lane.b32.xlu0 %v1471, 44
  %v8848 = vpop.permute.xlu0 %8847
  %8849 = vrot.lane.b32.xlu0 %v1472, 44
  %v8850 = vpop.permute.xlu0 %8849
  %8851 = vrot.lane.b32.xlu0 %v1473, 44
  %v8852 = vpop.permute.xlu0 %8851
  %8853 = vrot.lane.b32.xlu0 %v1474, 44
  %v8854 = vpop.permute.xlu0 %8853
  %8855 = vrot.lane.b32.xlu0 %v1475, 44
  %v8856 = vpop.permute.xlu0 %8855
  %8857 = vrot.lane.b32.xlu0 %v1476, 44
  %v8858 = vpop.permute.xlu0 %8857
  %8859 = vrot.lane.b32.xlu0 %v1477, 44
  %v8860 = vpop.permute.xlu0 %8859
  %8861 = vrot.lane.b32.xlu0 %v1478, 44
  %v8862 = vpop.permute.xlu0 %8861
  %8863 = vrot.lane.b32.xlu0 %v1479, 44
  %v8864 = vpop.permute.xlu0 %8863
  %8865 = vrot.lane.b32.xlu0 %v1480, 44
  %v8866 = vpop.permute.xlu0 %8865
  %8867 = vrot.lane.b32.xlu0 %v1481, 44
  %v8868 = vpop.permute.xlu0 %8867
  %8869 = vrot.lane.b32.xlu0 %v1482, 44
  %v8870 = vpop.permute.xlu0 %8869
  %8871 = vrot.lane.b32.xlu0 %v1483, 44
  %v8872 = vpop.permute.xlu0 %8871
  %8873 = vrot.lane.b32.xlu0 %v1484, 44
  %v8874 = vpop.permute.xlu0 %8873
  %8875 = vrot.lane.b32.xlu0 %v1485, 44
  %v8876 = vpop.permute.xlu0 %8875
  %8877 = vrot.lane.b32.xlu0 %v1486, 44
  %v8878 = vpop.permute.xlu0 %8877
  %8879 = vrot.lane.b32.xlu0 %v1487, 44
  %v8880 = vpop.permute.xlu0 %8879
  %8881 = vrot.lane.b32.xlu0 %v1488, 44
  %v8882 = vpop.permute.xlu0 %8881
  %8883 = vrot.lane.b32.xlu0 %v1489, 44
  %v8884 = vpop.permute.xlu0 %8883
  %8885 = vrot.lane.b32.xlu0 %v1490, 44
  %v8886 = vpop.permute.xlu0 %8885
  %8887 = vrot.lane.b32.xlu0 %v1491, 44
  %v8888 = vpop.permute.xlu0 %8887
  %8889 = vrot.lane.b32.xlu0 %v1492, 44
  %v8890 = vpop.permute.xlu0 %8889
  %8891 = vrot.lane.b32.xlu0 %v1493, 44
  %v8892 = vpop.permute.xlu0 %8891
  %8893 = vrot.lane.b32.xlu0 %v1494, 44
  %v8894 = vpop.permute.xlu0 %8893
  %8895 = vrot.lane.b32.xlu0 %v1495, 44
  %v8896 = vpop.permute.xlu0 %8895
  %8897 = vrot.lane.b32.xlu0 %v1496, 44
  %v8898 = vpop.permute.xlu0 %8897
  %8899 = vrot.lane.b32.xlu0 %v1497, 44
  %v8900 = vpop.permute.xlu0 %8899
  %8901 = vrot.lane.b32.xlu0 %v1498, 44
  %v8902 = vpop.permute.xlu0 %8901
  %8903 = vrot.lane.b32.xlu0 %v1499, 44
  %v8904 = vpop.permute.xlu0 %8903
  %8905 = vrot.lane.b32.xlu0 %v1500, 44
  %v8906 = vpop.permute.xlu0 %8905
  %8907 = vrot.lane.b32.xlu0 %v1501, 44
  %v8908 = vpop.permute.xlu0 %8907
  %8909 = vrot.lane.b32.xlu0 %v1502, 44
  %v8910 = vpop.permute.xlu0 %8909
  %8911 = vrot.lane.b32.xlu0 %v1503, 44
  %v8912 = vpop.permute.xlu0 %8911
  %8913 = vrot.lane.b32.xlu0 %v1504, 44
  %v8914 = vpop.permute.xlu0 %8913
  %8915 = vrot.lane.b32.xlu0 %v1505, 44
  %v8916 = vpop.permute.xlu0 %8915
  %8917 = vrot.lane.b32.xlu0 %v1506, 44
  %v8918 = vpop.permute.xlu0 %8917
  %8919 = vrot.lane.b32.xlu0 %v1507, 44
  %v8920 = vpop.permute.xlu0 %8919
  %8921 = vrot.lane.b32.xlu0 %v1508, 44
  %v8922 = vpop.permute.xlu0 %8921
  %8923 = vrot.lane.b32.xlu0 %v1509, 44
  %v8924 = vpop.permute.xlu0 %8923
  %8925 = vrot.lane.b32.xlu0 %v1510, 44
  %v8926 = vpop.permute.xlu0 %8925
  %8927 = vrot.lane.b32.xlu0 %v1511, 44
  %v8928 = vpop.permute.xlu0 %8927
  %8929 = vrot.lane.b32.xlu0 %v1512, 44
  %v8930 = vpop.permute.xlu0 %8929
  %8931 = vrot.lane.b32.xlu0 %v1513, 44
  %v8932 = vpop.permute.xlu0 %8931
  %8933 = vrot.lane.b32.xlu0 %v1514, 44
  %v8934 = vpop.permute.xlu0 %8933
  %8935 = vrot.lane.b32.xlu0 %v1515, 44
  %v8936 = vpop.permute.xlu0 %8935
  %8937 = vrot.lane.b32.xlu0 %v1516, 44
  %v8938 = vpop.permute.xlu0 %8937
  %8939 = vrot.lane.b32.xlu0 %v1517, 44
  %v8940 = vpop.permute.xlu0 %8939
  %8941 = vrot.lane.b32.xlu0 %v1518, 44
  %v8942 = vpop.permute.xlu0 %8941
  %8943 = vrot.lane.b32.xlu0 %v1519, 44
  %v8944 = vpop.permute.xlu0 %8943
  %8945 = vrot.lane.b32.xlu0 %v1520, 44
  %v8946 = vpop.permute.xlu0 %8945
  %8947 = vrot.lane.b32.xlu0 %v1521, 44
  %v8948 = vpop.permute.xlu0 %8947
  %8949 = vrot.lane.b32.xlu0 %v1522, 44
  %v8950 = vpop.permute.xlu0 %8949
  %8951 = vrot.lane.b32.xlu0 %v1523, 44
  %v8952 = vpop.permute.xlu0 %8951
  %8953 = vrot.lane.b32.xlu0 %v1524, 44
  %v8954 = vpop.permute.xlu0 %8953
  %8955 = vrot.lane.b32.xlu0 %v1525, 44
  %v8956 = vpop.permute.xlu0 %8955
  %8957 = vrot.lane.b32.xlu0 %v1526, 44
  %v8958 = vpop.permute.xlu0 %8957
  %8959 = vrot.lane.b32.xlu0 %v1527, 44
  %v8960 = vpop.permute.xlu0 %8959
  %8961 = vrot.lane.b32.xlu0 %v1528, 44
  %v8962 = vpop.permute.xlu0 %8961
  %8963 = vrot.lane.b32.xlu0 %v1529, 44
  %v8964 = vpop.permute.xlu0 %8963
  %8965 = vrot.lane.b32.xlu0 %v1530, 44
  %v8966 = vpop.permute.xlu0 %8965
  %8967 = vrot.lane.b32.xlu0 %v1531, 44
  %v8968 = vpop.permute.xlu0 %8967
  %8969 = vrot.lane.b32.xlu0 %v1532, 44
  %v8970 = vpop.permute.xlu0 %8969
  %8971 = vrot.lane.b32.xlu0 %v1533, 44
  %v8972 = vpop.permute.xlu0 %8971
  %8973 = vrot.lane.b32.xlu0 %v1534, 44
  %v8974 = vpop.permute.xlu0 %8973
  %9071 = vrot.lane.b32.xlu0 %v1472, 48
  %v9072 = vpop.permute.xlu0 %9071
  %9073 = vrot.lane.b32.xlu0 %v1535, 48
  %v9074 = vpop.permute.xlu0 %9073
  %9075 = vrot.lane.b32.xlu0 %v1474, 48
  %v9076 = vpop.permute.xlu0 %9075
  %9077 = vrot.lane.b32.xlu0 %v1536, 48
  %v9078 = vpop.permute.xlu0 %9077
  %9079 = vrot.lane.b32.xlu0 %v1476, 48
  %v9080 = vpop.permute.xlu0 %9079
  %9081 = vrot.lane.b32.xlu0 %v1537, 48
  %v9082 = vpop.permute.xlu0 %9081
  %9083 = vrot.lane.b32.xlu0 %v1478, 48
  %v9084 = vpop.permute.xlu0 %9083
  %9085 = vrot.lane.b32.xlu0 %v1538, 48
  %v9086 = vpop.permute.xlu0 %9085
  %9087 = vrot.lane.b32.xlu0 %v1480, 48
  %v9088 = vpop.permute.xlu0 %9087
  %9089 = vrot.lane.b32.xlu0 %v1539, 48
  %v9090 = vpop.permute.xlu0 %9089
  %9091 = vrot.lane.b32.xlu0 %v1482, 48
  %v9092 = vpop.permute.xlu0 %9091
  %9093 = vrot.lane.b32.xlu0 %v1540, 48
  %v9094 = vpop.permute.xlu0 %9093
  %9095 = vrot.lane.b32.xlu0 %v1484, 48
  %v9096 = vpop.permute.xlu0 %9095
  %9097 = vrot.lane.b32.xlu0 %v1541, 48
  %v9098 = vpop.permute.xlu0 %9097
  %9099 = vrot.lane.b32.xlu0 %v1486, 48
  %v9100 = vpop.permute.xlu0 %9099
  %9101 = vrot.lane.b32.xlu0 %v1542, 48
  %v9102 = vpop.permute.xlu0 %9101
  %9103 = vrot.lane.b32.xlu0 %v1488, 48
  %v9104 = vpop.permute.xlu0 %9103
  %9105 = vrot.lane.b32.xlu0 %v1543, 48
  %v9106 = vpop.permute.xlu0 %9105
  %9107 = vrot.lane.b32.xlu0 %v1490, 48
  %v9108 = vpop.permute.xlu0 %9107
  %9109 = vrot.lane.b32.xlu0 %v1544, 48
  %v9110 = vpop.permute.xlu0 %9109
  %9111 = vrot.lane.b32.xlu0 %v1492, 48
  %v9112 = vpop.permute.xlu0 %9111
  %9113 = vrot.lane.b32.xlu0 %v1545, 48
  %v9114 = vpop.permute.xlu0 %9113
  %9115 = vrot.lane.b32.xlu0 %v1494, 48
  %v9116 = vpop.permute.xlu0 %9115
  %9117 = vrot.lane.b32.xlu0 %v1546, 48
  %v9118 = vpop.permute.xlu0 %9117
  %9119 = vrot.lane.b32.xlu0 %v1496, 48
  %v9120 = vpop.permute.xlu0 %9119
  %9121 = vrot.lane.b32.xlu0 %v1547, 48
  %v9122 = vpop.permute.xlu0 %9121
  %9123 = vrot.lane.b32.xlu0 %v1498, 48
  %v9124 = vpop.permute.xlu0 %9123
  %9125 = vrot.lane.b32.xlu0 %v1548, 48
  %v9126 = vpop.permute.xlu0 %9125
  %9127 = vrot.lane.b32.xlu0 %v1500, 48
  %v9128 = vpop.permute.xlu0 %9127
  %9129 = vrot.lane.b32.xlu0 %v1549, 48
  %v9130 = vpop.permute.xlu0 %9129
  %9131 = vrot.lane.b32.xlu0 %v1502, 48
  %v9132 = vpop.permute.xlu0 %9131
  %9133 = vrot.lane.b32.xlu0 %v1550, 48
  %v9134 = vpop.permute.xlu0 %9133
  %9135 = vrot.lane.b32.xlu0 %v1504, 48
  %v9136 = vpop.permute.xlu0 %9135
  %9137 = vrot.lane.b32.xlu0 %v1551, 48
  %v9138 = vpop.permute.xlu0 %9137
  %9139 = vrot.lane.b32.xlu0 %v1506, 48
  %v9140 = vpop.permute.xlu0 %9139
  %9141 = vrot.lane.b32.xlu0 %v1552, 48
  %v9142 = vpop.permute.xlu0 %9141
  %9143 = vrot.lane.b32.xlu0 %v1508, 48
  %v9144 = vpop.permute.xlu0 %9143
  %9145 = vrot.lane.b32.xlu0 %v1553, 48
  %v9146 = vpop.permute.xlu0 %9145
  %9147 = vrot.lane.b32.xlu0 %v1510, 48
  %v9148 = vpop.permute.xlu0 %9147
  %9149 = vrot.lane.b32.xlu0 %v1554, 48
  %v9150 = vpop.permute.xlu0 %9149
  %9151 = vrot.lane.b32.xlu0 %v1512, 48
  %v9152 = vpop.permute.xlu0 %9151
  %9153 = vrot.lane.b32.xlu0 %v1555, 48
  %v9154 = vpop.permute.xlu0 %9153
  %9155 = vrot.lane.b32.xlu0 %v1514, 48
  %v9156 = vpop.permute.xlu0 %9155
  %9157 = vrot.lane.b32.xlu0 %v1556, 48
  %v9158 = vpop.permute.xlu0 %9157
  %9159 = vrot.lane.b32.xlu0 %v1516, 48
  %v9160 = vpop.permute.xlu0 %9159
  %9161 = vrot.lane.b32.xlu0 %v1557, 48
  %v9162 = vpop.permute.xlu0 %9161
  %9163 = vrot.lane.b32.xlu0 %v1518, 48
  %v9164 = vpop.permute.xlu0 %9163
  %9165 = vrot.lane.b32.xlu0 %v1558, 48
  %v9166 = vpop.permute.xlu0 %9165
  %9167 = vrot.lane.b32.xlu0 %v1520, 48
  %v9168 = vpop.permute.xlu0 %9167
  %9169 = vrot.lane.b32.xlu0 %v1559, 48
  %v9170 = vpop.permute.xlu0 %9169
  %9171 = vrot.lane.b32.xlu0 %v1522, 48
  %v9172 = vpop.permute.xlu0 %9171
  %9173 = vrot.lane.b32.xlu0 %v1560, 48
  %v9174 = vpop.permute.xlu0 %9173
  %9175 = vrot.lane.b32.xlu0 %v1524, 48
  %v9176 = vpop.permute.xlu0 %9175
  %9177 = vrot.lane.b32.xlu0 %v1561, 48
  %v9178 = vpop.permute.xlu0 %9177
  %9179 = vrot.lane.b32.xlu0 %v1526, 48
  %v9180 = vpop.permute.xlu0 %9179
  %9181 = vrot.lane.b32.xlu0 %v1562, 48
  %v9182 = vpop.permute.xlu0 %9181
  %9183 = vrot.lane.b32.xlu0 %v1528, 48
  %v9184 = vpop.permute.xlu0 %9183
  %9185 = vrot.lane.b32.xlu0 %v1563, 48
  %v9186 = vpop.permute.xlu0 %9185
  %9187 = vrot.lane.b32.xlu0 %v1530, 48
  %v9188 = vpop.permute.xlu0 %9187
  %9189 = vrot.lane.b32.xlu0 %v1564, 48
  %v9190 = vpop.permute.xlu0 %9189
  %9191 = vrot.lane.b32.xlu0 %v1532, 48
  %v9192 = vpop.permute.xlu0 %9191
  %9193 = vrot.lane.b32.xlu0 %v1565, 48
  %v9194 = vpop.permute.xlu0 %9193
  %9195 = vrot.lane.b32.xlu0 %v1534, 48
  %v9196 = vpop.permute.xlu0 %9195
  %9197 = vrot.lane.b32.xlu0 %v1566, 48
  %v9198 = vpop.permute.xlu0 %9197
  %9295 = vrot.lane.b32.xlu0 %v1535, 52
  %v9296 = vpop.permute.xlu0 %9295
  %9297 = vrot.lane.b32.xlu0 %v1567, 52
  %v9298 = vpop.permute.xlu0 %9297
  %9299 = vrot.lane.b32.xlu0 %v1536, 52
  %v9300 = vpop.permute.xlu0 %9299
  %9301 = vrot.lane.b32.xlu0 %v1568, 52
  %v9302 = vpop.permute.xlu0 %9301
  %9303 = vrot.lane.b32.xlu0 %v1537, 52
  %v9304 = vpop.permute.xlu0 %9303
  %9305 = vrot.lane.b32.xlu0 %v1569, 52
  %v9306 = vpop.permute.xlu0 %9305
  %9307 = vrot.lane.b32.xlu0 %v1538, 52
  %v9308 = vpop.permute.xlu0 %9307
  %9309 = vrot.lane.b32.xlu0 %v1570, 52
  %v9310 = vpop.permute.xlu0 %9309
  %9311 = vrot.lane.b32.xlu0 %v1539, 52
  %v9312 = vpop.permute.xlu0 %9311
  %9313 = vrot.lane.b32.xlu0 %v1571, 52
  %v9314 = vpop.permute.xlu0 %9313
  %9315 = vrot.lane.b32.xlu0 %v1540, 52
  %v9316 = vpop.permute.xlu0 %9315
  %9317 = vrot.lane.b32.xlu0 %v1572, 52
  %v9318 = vpop.permute.xlu0 %9317
  %9319 = vrot.lane.b32.xlu0 %v1541, 52
  %v9320 = vpop.permute.xlu0 %9319
  %9321 = vrot.lane.b32.xlu0 %v1573, 52
  %v9322 = vpop.permute.xlu0 %9321
  %9323 = vrot.lane.b32.xlu0 %v1542, 52
  %v9324 = vpop.permute.xlu0 %9323
  %9325 = vrot.lane.b32.xlu0 %v1574, 52
  %v9326 = vpop.permute.xlu0 %9325
  %9327 = vrot.lane.b32.xlu0 %v1543, 52
  %v9328 = vpop.permute.xlu0 %9327
  %9329 = vrot.lane.b32.xlu0 %v1575, 52
  %v9330 = vpop.permute.xlu0 %9329
  %9331 = vrot.lane.b32.xlu0 %v1544, 52
  %v9332 = vpop.permute.xlu0 %9331
  %9333 = vrot.lane.b32.xlu0 %v1576, 52
  %v9334 = vpop.permute.xlu0 %9333
  %9335 = vrot.lane.b32.xlu0 %v1545, 52
  %v9336 = vpop.permute.xlu0 %9335
  %9337 = vrot.lane.b32.xlu0 %v1577, 52
  %v9338 = vpop.permute.xlu0 %9337
  %9339 = vrot.lane.b32.xlu0 %v1546, 52
  %v9340 = vpop.permute.xlu0 %9339
  %9341 = vrot.lane.b32.xlu0 %v1578, 52
  %v9342 = vpop.permute.xlu0 %9341
  %9343 = vrot.lane.b32.xlu0 %v1547, 52
  %v9344 = vpop.permute.xlu0 %9343
  %9345 = vrot.lane.b32.xlu0 %v1579, 52
  %v9346 = vpop.permute.xlu0 %9345
  %9347 = vrot.lane.b32.xlu0 %v1548, 52
  %v9348 = vpop.permute.xlu0 %9347
  %9349 = vrot.lane.b32.xlu0 %v1580, 52
  %v9350 = vpop.permute.xlu0 %9349
  %9351 = vrot.lane.b32.xlu0 %v1549, 52
  %v9352 = vpop.permute.xlu0 %9351
  %9353 = vrot.lane.b32.xlu0 %v1581, 52
  %v9354 = vpop.permute.xlu0 %9353
  %9355 = vrot.lane.b32.xlu0 %v1550, 52
  %v9356 = vpop.permute.xlu0 %9355
  %9357 = vrot.lane.b32.xlu0 %v1582, 52
  %v9358 = vpop.permute.xlu0 %9357
  %9359 = vrot.lane.b32.xlu0 %v1551, 52
  %v9360 = vpop.permute.xlu0 %9359
  %9361 = vrot.lane.b32.xlu0 %v1583, 52
  %v9362 = vpop.permute.xlu0 %9361
  %9363 = vrot.lane.b32.xlu0 %v1552, 52
  %v9364 = vpop.permute.xlu0 %9363
  %9365 = vrot.lane.b32.xlu0 %v1584, 52
  %v9366 = vpop.permute.xlu0 %9365
  %9367 = vrot.lane.b32.xlu0 %v1553, 52
  %v9368 = vpop.permute.xlu0 %9367
  %9369 = vrot.lane.b32.xlu0 %v1585, 52
  %v9370 = vpop.permute.xlu0 %9369
  %9371 = vrot.lane.b32.xlu0 %v1554, 52
  %v9372 = vpop.permute.xlu0 %9371
  %9373 = vrot.lane.b32.xlu0 %v1586, 52
  %v9374 = vpop.permute.xlu0 %9373
  %9375 = vrot.lane.b32.xlu0 %v1555, 52
  %v9376 = vpop.permute.xlu0 %9375
  %9377 = vrot.lane.b32.xlu0 %v1587, 52
  %v9378 = vpop.permute.xlu0 %9377
  %9379 = vrot.lane.b32.xlu0 %v1556, 52
  %v9380 = vpop.permute.xlu0 %9379
  %9381 = vrot.lane.b32.xlu0 %v1588, 52
  %v9382 = vpop.permute.xlu0 %9381
  %9383 = vrot.lane.b32.xlu0 %v1557, 52
  %v9384 = vpop.permute.xlu0 %9383
  %9385 = vrot.lane.b32.xlu0 %v1589, 52
  %v9386 = vpop.permute.xlu0 %9385
  %9387 = vrot.lane.b32.xlu0 %v1558, 52
  %v9388 = vpop.permute.xlu0 %9387
  %9389 = vrot.lane.b32.xlu0 %v1590, 52
  %v9390 = vpop.permute.xlu0 %9389
  %9391 = vrot.lane.b32.xlu0 %v1559, 52
  %v9392 = vpop.permute.xlu0 %9391
  %9393 = vrot.lane.b32.xlu0 %v1591, 52
  %v9394 = vpop.permute.xlu0 %9393
  %9395 = vrot.lane.b32.xlu0 %v1560, 52
  %v9396 = vpop.permute.xlu0 %9395
  %9397 = vrot.lane.b32.xlu0 %v1592, 52
  %v9398 = vpop.permute.xlu0 %9397
  %9399 = vrot.lane.b32.xlu0 %v1561, 52
  %v9400 = vpop.permute.xlu0 %9399
  %9401 = vrot.lane.b32.xlu0 %v1593, 52
  %v9402 = vpop.permute.xlu0 %9401
  %9403 = vrot.lane.b32.xlu0 %v1562, 52
  %v9404 = vpop.permute.xlu0 %9403
  %9405 = vrot.lane.b32.xlu0 %v1594, 52
  %v9406 = vpop.permute.xlu0 %9405
  %9407 = vrot.lane.b32.xlu0 %v1563, 52
  %v9408 = vpop.permute.xlu0 %9407
  %9409 = vrot.lane.b32.xlu0 %v1595, 52
  %v9410 = vpop.permute.xlu0 %9409
  %9411 = vrot.lane.b32.xlu0 %v1564, 52
  %v9412 = vpop.permute.xlu0 %9411
  %9413 = vrot.lane.b32.xlu0 %v1596, 52
  %v9414 = vpop.permute.xlu0 %9413
  %9415 = vrot.lane.b32.xlu0 %v1565, 52
  %v9416 = vpop.permute.xlu0 %9415
  %9417 = vrot.lane.b32.xlu0 %v1597, 52
  %v9418 = vpop.permute.xlu0 %9417
  %9419 = vrot.lane.b32.xlu0 %v1566, 52
  %v9420 = vpop.permute.xlu0 %9419
  %9421 = vrot.lane.b32.xlu0 %v1598, 52
  %v9422 = vpop.permute.xlu0 %9421
  %9519 = vrot.lane.b32.xlu0 %v1599, 56
  %v9520 = vpop.permute.xlu0 %9519
  %9521 = vrot.lane.b32.xlu0 %v282, 56
  %v9522 = vpop.permute.xlu0 %9521
  %9523 = vrot.lane.b32.xlu0 %v1600, 56
  %v9524 = vpop.permute.xlu0 %9523
  %9525 = vrot.lane.b32.xlu0 %v284, 56
  %v9526 = vpop.permute.xlu0 %9525
  %9527 = vrot.lane.b32.xlu0 %v1601, 56
  %v9528 = vpop.permute.xlu0 %9527
  %9529 = vrot.lane.b32.xlu0 %v286, 56
  %v9530 = vpop.permute.xlu0 %9529
  %9531 = vrot.lane.b32.xlu0 %v1602, 56
  %v9532 = vpop.permute.xlu0 %9531
  %9533 = vrot.lane.b32.xlu0 %v288, 56
  %v9534 = vpop.permute.xlu0 %9533
  %9535 = vrot.lane.b32.xlu0 %v1603, 56
  %v9536 = vpop.permute.xlu0 %9535
  %9537 = vrot.lane.b32.xlu0 %v290, 56
  %v9538 = vpop.permute.xlu0 %9537
  %9539 = vrot.lane.b32.xlu0 %v1604, 56
  %v9540 = vpop.permute.xlu0 %9539
  %9541 = vrot.lane.b32.xlu0 %v292, 56
  %v9542 = vpop.permute.xlu0 %9541
  %9543 = vrot.lane.b32.xlu0 %v1605, 56
  %v9544 = vpop.permute.xlu0 %9543
  %9545 = vrot.lane.b32.xlu0 %v294, 56
  %v9546 = vpop.permute.xlu0 %9545
  %9547 = vrot.lane.b32.xlu0 %v1606, 56
  %v9548 = vpop.permute.xlu0 %9547
  %9549 = vrot.lane.b32.xlu0 %v296, 56
  %v9550 = vpop.permute.xlu0 %9549
  %9551 = vrot.lane.b32.xlu0 %v1607, 56
  %v9552 = vpop.permute.xlu0 %9551
  %9553 = vrot.lane.b32.xlu0 %v298, 56
  %v9554 = vpop.permute.xlu0 %9553
  %9555 = vrot.lane.b32.xlu0 %v1608, 56
  %v9556 = vpop.permute.xlu0 %9555
  %9557 = vrot.lane.b32.xlu0 %v300, 56
  %v9558 = vpop.permute.xlu0 %9557
  %9559 = vrot.lane.b32.xlu0 %v1609, 56
  %v9560 = vpop.permute.xlu0 %9559
  %9561 = vrot.lane.b32.xlu0 %v302, 56
  %v9562 = vpop.permute.xlu0 %9561
  %9563 = vrot.lane.b32.xlu0 %v1610, 56
  %v9564 = vpop.permute.xlu0 %9563
  %9565 = vrot.lane.b32.xlu0 %v304, 56
  %v9566 = vpop.permute.xlu0 %9565
  %9567 = vrot.lane.b32.xlu0 %v1611, 56
  %v9568 = vpop.permute.xlu0 %9567
  %9569 = vrot.lane.b32.xlu0 %v306, 56
  %v9570 = vpop.permute.xlu0 %9569
  %9571 = vrot.lane.b32.xlu0 %v1612, 56
  %v9572 = vpop.permute.xlu0 %9571
  %9573 = vrot.lane.b32.xlu0 %v308, 56
  %v9574 = vpop.permute.xlu0 %9573
  %9575 = vrot.lane.b32.xlu0 %v1613, 56
  %v9576 = vpop.permute.xlu0 %9575
  %9577 = vrot.lane.b32.xlu0 %v310, 56
  %v9578 = vpop.permute.xlu0 %9577
  %9579 = vrot.lane.b32.xlu0 %v1614, 56
  %v9580 = vpop.permute.xlu0 %9579
  %9581 = vrot.lane.b32.xlu0 %v312, 56
  %v9582 = vpop.permute.xlu0 %9581
  %9583 = vrot.lane.b32.xlu0 %v1615, 56
  %v9584 = vpop.permute.xlu0 %9583
  %9585 = vrot.lane.b32.xlu0 %v314, 56
  %v9586 = vpop.permute.xlu0 %9585
  %9587 = vrot.lane.b32.xlu0 %v1616, 56
  %v9588 = vpop.permute.xlu0 %9587
  %9589 = vrot.lane.b32.xlu0 %v316, 56
  %v9590 = vpop.permute.xlu0 %9589
  %9591 = vrot.lane.b32.xlu0 %v1617, 56
  %v9592 = vpop.permute.xlu0 %9591
  %9593 = vrot.lane.b32.xlu0 %v318, 56
  %v9594 = vpop.permute.xlu0 %9593
  %9595 = vrot.lane.b32.xlu0 %v1618, 56
  %v9596 = vpop.permute.xlu0 %9595
  %9597 = vrot.lane.b32.xlu0 %v320, 56
  %v9598 = vpop.permute.xlu0 %9597
  %9599 = vrot.lane.b32.xlu0 %v1619, 56
  %v9600 = vpop.permute.xlu0 %9599
  %9601 = vrot.lane.b32.xlu0 %v322, 56
  %v9602 = vpop.permute.xlu0 %9601
  %9603 = vrot.lane.b32.xlu0 %v1620, 56
  %v9604 = vpop.permute.xlu0 %9603
  %9605 = vrot.lane.b32.xlu0 %v324, 56
  %v9606 = vpop.permute.xlu0 %9605
  %9607 = vrot.lane.b32.xlu0 %v1621, 56
  %v9608 = vpop.permute.xlu0 %9607
  %9609 = vrot.lane.b32.xlu0 %v326, 56
  %v9610 = vpop.permute.xlu0 %9609
  %9611 = vrot.lane.b32.xlu0 %v1622, 56
  %v9612 = vpop.permute.xlu0 %9611
  %9613 = vrot.lane.b32.xlu0 %v328, 56
  %v9614 = vpop.permute.xlu0 %9613
  %9615 = vrot.lane.b32.xlu0 %v1623, 56
  %v9616 = vpop.permute.xlu0 %9615
  %9617 = vrot.lane.b32.xlu0 %v330, 56
  %v9618 = vpop.permute.xlu0 %9617
  %9619 = vrot.lane.b32.xlu0 %v1624, 56
  %v9620 = vpop.permute.xlu0 %9619
  %9621 = vrot.lane.b32.xlu0 %v332, 56
  %v9622 = vpop.permute.xlu0 %9621
  %9623 = vrot.lane.b32.xlu0 %v1625, 56
  %v9624 = vpop.permute.xlu0 %9623
  %9625 = vrot.lane.b32.xlu0 %v334, 56
  %v9626 = vpop.permute.xlu0 %9625
  %9627 = vrot.lane.b32.xlu0 %v1626, 56
  %v9628 = vpop.permute.xlu0 %9627
  %9629 = vrot.lane.b32.xlu0 %v336, 56
  %v9630 = vpop.permute.xlu0 %9629
  %9631 = vrot.lane.b32.xlu0 %v1627, 56
  %v9632 = vpop.permute.xlu0 %9631
  %9633 = vrot.lane.b32.xlu0 %v338, 56
  %v9634 = vpop.permute.xlu0 %9633
  %9635 = vrot.lane.b32.xlu0 %v1628, 56
  %v9636 = vpop.permute.xlu0 %9635
  %9637 = vrot.lane.b32.xlu0 %v340, 56
  %v9638 = vpop.permute.xlu0 %9637
  %9639 = vrot.lane.b32.xlu0 %v1629, 56
  %v9640 = vpop.permute.xlu0 %9639
  %9641 = vrot.lane.b32.xlu0 %v342, 56
  %v9642 = vpop.permute.xlu0 %9641
  %9643 = vrot.lane.b32.xlu0 %v1630, 56
  %v9644 = vpop.permute.xlu0 %9643
  %9645 = vrot.lane.b32.xlu0 %v344, 56
  %v9646 = vpop.permute.xlu0 %9645
  %9711 = vrot.lane.b32.xlu0 %v282, 60
  %v9712 = vpop.permute.xlu0 %9711
  %9713 = vrot.lane.b32.xlu0 %v283, 60
  %v9714 = vpop.permute.xlu0 %9713
  %9715 = vrot.lane.b32.xlu0 %v284, 60
  %v9716 = vpop.permute.xlu0 %9715
  %9717 = vrot.lane.b32.xlu0 %v285, 60
  %v9718 = vpop.permute.xlu0 %9717
  %9719 = vrot.lane.b32.xlu0 %v286, 60
  %v9720 = vpop.permute.xlu0 %9719
  %9721 = vrot.lane.b32.xlu0 %v287, 60
  %v9722 = vpop.permute.xlu0 %9721
  %9723 = vrot.lane.b32.xlu0 %v288, 60
  %v9724 = vpop.permute.xlu0 %9723
  %9725 = vrot.lane.b32.xlu0 %v289, 60
  %v9726 = vpop.permute.xlu0 %9725
  %9727 = vrot.lane.b32.xlu0 %v290, 60
  %v9728 = vpop.permute.xlu0 %9727
  %9729 = vrot.lane.b32.xlu0 %v291, 60
  %v9730 = vpop.permute.xlu0 %9729
  %9731 = vrot.lane.b32.xlu0 %v292, 60
  %v9732 = vpop.permute.xlu0 %9731
  %9733 = vrot.lane.b32.xlu0 %v293, 60
  %v9734 = vpop.permute.xlu0 %9733
  %9735 = vrot.lane.b32.xlu0 %v294, 60
  %v9736 = vpop.permute.xlu0 %9735
  %9737 = vrot.lane.b32.xlu0 %v295, 60
  %v9738 = vpop.permute.xlu0 %9737
  %9739 = vrot.lane.b32.xlu0 %v296, 60
  %v9740 = vpop.permute.xlu0 %9739
  %9741 = vrot.lane.b32.xlu0 %v297, 60
  %v9742 = vpop.permute.xlu0 %9741
  %9743 = vrot.lane.b32.xlu0 %v298, 60
  %v9744 = vpop.permute.xlu0 %9743
  %9745 = vrot.lane.b32.xlu0 %v299, 60
  %v9746 = vpop.permute.xlu0 %9745
  %9747 = vrot.lane.b32.xlu0 %v300, 60
  %v9748 = vpop.permute.xlu0 %9747
  %9749 = vrot.lane.b32.xlu0 %v301, 60
  %v9750 = vpop.permute.xlu0 %9749
  %9751 = vrot.lane.b32.xlu0 %v302, 60
  %v9752 = vpop.permute.xlu0 %9751
  %9753 = vrot.lane.b32.xlu0 %v303, 60
  %v9754 = vpop.permute.xlu0 %9753
  %9755 = vrot.lane.b32.xlu0 %v304, 60
  %v9756 = vpop.permute.xlu0 %9755
  %9757 = vrot.lane.b32.xlu0 %v305, 60
  %v9758 = vpop.permute.xlu0 %9757
  %9759 = vrot.lane.b32.xlu0 %v306, 60
  %v9760 = vpop.permute.xlu0 %9759
  %9761 = vrot.lane.b32.xlu0 %v307, 60
  %v9762 = vpop.permute.xlu0 %9761
  %9763 = vrot.lane.b32.xlu0 %v308, 60
  %v9764 = vpop.permute.xlu0 %9763
  %9765 = vrot.lane.b32.xlu0 %v309, 60
  %v9766 = vpop.permute.xlu0 %9765
  %9767 = vrot.lane.b32.xlu0 %v310, 60
  %v9768 = vpop.permute.xlu0 %9767
  %9769 = vrot.lane.b32.xlu0 %v311, 60
  %v9770 = vpop.permute.xlu0 %9769
  %9771 = vrot.lane.b32.xlu0 %v312, 60
  %v9772 = vpop.permute.xlu0 %9771
  %9773 = vrot.lane.b32.xlu0 %v313, 60
  %v9774 = vpop.permute.xlu0 %9773
  %9775 = vrot.lane.b32.xlu0 %v314, 60
  %v9776 = vpop.permute.xlu0 %9775
  %9777 = vrot.lane.b32.xlu0 %v315, 60
  %v9778 = vpop.permute.xlu0 %9777
  %9779 = vrot.lane.b32.xlu0 %v316, 60
  %v9780 = vpop.permute.xlu0 %9779
  %9781 = vrot.lane.b32.xlu0 %v317, 60
  %v9782 = vpop.permute.xlu0 %9781
  %9783 = vrot.lane.b32.xlu0 %v318, 60
  %v9784 = vpop.permute.xlu0 %9783
  %9785 = vrot.lane.b32.xlu0 %v319, 60
  %v9786 = vpop.permute.xlu0 %9785
  %9787 = vrot.lane.b32.xlu0 %v320, 60
  %v9788 = vpop.permute.xlu0 %9787
  %9789 = vrot.lane.b32.xlu0 %v321, 60
  %v9790 = vpop.permute.xlu0 %9789
  %9791 = vrot.lane.b32.xlu0 %v322, 60
  %v9792 = vpop.permute.xlu0 %9791
  %9793 = vrot.lane.b32.xlu0 %v323, 60
  %v9794 = vpop.permute.xlu0 %9793
  %9795 = vrot.lane.b32.xlu0 %v324, 60
  %v9796 = vpop.permute.xlu0 %9795
  %9797 = vrot.lane.b32.xlu0 %v325, 60
  %v9798 = vpop.permute.xlu0 %9797
  %9799 = vrot.lane.b32.xlu0 %v326, 60
  %v9800 = vpop.permute.xlu0 %9799
  %9801 = vrot.lane.b32.xlu0 %v327, 60
  %v9802 = vpop.permute.xlu0 %9801
  %9803 = vrot.lane.b32.xlu0 %v328, 60
  %v9804 = vpop.permute.xlu0 %9803
  %9805 = vrot.lane.b32.xlu0 %v329, 60
  %v9806 = vpop.permute.xlu0 %9805
  %9807 = vrot.lane.b32.xlu0 %v330, 60
  %v9808 = vpop.permute.xlu0 %9807
  %9809 = vrot.lane.b32.xlu0 %v331, 60
  %v9810 = vpop.permute.xlu0 %9809
  %9811 = vrot.lane.b32.xlu0 %v332, 60
  %v9812 = vpop.permute.xlu0 %9811
  %9813 = vrot.lane.b32.xlu0 %v333, 60
  %v9814 = vpop.permute.xlu0 %9813
  %9815 = vrot.lane.b32.xlu0 %v334, 60
  %v9816 = vpop.permute.xlu0 %9815
  %9817 = vrot.lane.b32.xlu0 %v335, 60
  %v9818 = vpop.permute.xlu0 %9817
  %9819 = vrot.lane.b32.xlu0 %v336, 60
  %v9820 = vpop.permute.xlu0 %9819
  %9821 = vrot.lane.b32.xlu0 %v337, 60
  %v9822 = vpop.permute.xlu0 %9821
  %9823 = vrot.lane.b32.xlu0 %v338, 60
  %v9824 = vpop.permute.xlu0 %9823
  %9825 = vrot.lane.b32.xlu0 %v339, 60
  %v9826 = vpop.permute.xlu0 %9825
  %9827 = vrot.lane.b32.xlu0 %v340, 60
  %v9828 = vpop.permute.xlu0 %9827
  %9829 = vrot.lane.b32.xlu0 %v341, 60
  %v9830 = vpop.permute.xlu0 %9829
  %9831 = vrot.lane.b32.xlu0 %v342, 60
  %v9832 = vpop.permute.xlu0 %9831
  %9833 = vrot.lane.b32.xlu0 %v343, 60
  %v9834 = vpop.permute.xlu0 %9833
  %9835 = vrot.lane.b32.xlu0 %v344, 60
  %v9836 = vpop.permute.xlu0 %9835
  %9837 = vrot.lane.b32.xlu0 %v345, 60
  %v9838 = vpop.permute.xlu0 %9837
  %v9903 = vsel %vm5504, %v925, %v6512
  %v9904 = vsel %vm5504, %v926, %v6514
  %v9905 = vsel %vm5504, %v927, %v6516
  %v9906 = vsel %vm5504, %v928, %v6518
  %v9907 = vsel %vm5504, %v929, %v6520
  %v9908 = vsel %vm5504, %v930, %v6522
  %v9909 = vsel %vm5504, %v931, %v6524
  %v9910 = vsel %vm5504, %v932, %v6526
  %v9911 = vsel %vm5504, %v933, %v6528
  %v9912 = vsel %vm5504, %v934, %v6530
  %v9913 = vsel %vm5504, %v935, %v6532
  %v9914 = vsel %vm5504, %v936, %v6534
  %v9915 = vsel %vm5504, %v937, %v6536
  %v9916 = vsel %vm5504, %v938, %v6538
  %v9917 = vsel %vm5504, %v939, %v6540
  %v9918 = vsel %vm5504, %v940, %v6542
  %v9919 = vsel %vm5504, %v941, %v6544
  %v9920 = vsel %vm5504, %v942, %v6546
  %v9921 = vsel %vm5504, %v943, %v6548
  %v9922 = vsel %vm5504, %v944, %v6550
  %v9923 = vsel %vm5504, %v945, %v6552
  %v9924 = vsel %vm5504, %v946, %v6554
  %v9925 = vsel %vm5504, %v947, %v6556
  %v9926 = vsel %vm5504, %v948, %v6558
  %v9927 = vsel %vm5504, %v949, %v6560
  %v9928 = vsel %vm5504, %v950, %v6562
  %v9929 = vsel %vm5504, %v951, %v6564
  %v9930 = vsel %vm5504, %v952, %v6566
  %v9931 = vsel %vm5504, %v953, %v6568
  %v9932 = vsel %vm5504, %v954, %v6570
  %v9933 = vsel %vm5504, %v955, %v6572
  %v9934 = vsel %vm5504, %v956, %v6574
  %v9935 = vsel %vm5504, %v957, %v6576
  %v9936 = vsel %vm5504, %v958, %v6578
  %v9937 = vsel %vm5504, %v959, %v6580
  %v9938 = vsel %vm5504, %v960, %v6582
  %v9939 = vsel %vm5504, %v961, %v6584
  %v9940 = vsel %vm5504, %v962, %v6586
  %v9941 = vsel %vm5504, %v963, %v6588
  %v9942 = vsel %vm5504, %v964, %v6590
  %v9943 = vsel %vm5504, %v965, %v6592
  %v9944 = vsel %vm5504, %v966, %v6594
  %v9945 = vsel %vm5504, %v967, %v6596
  %v9946 = vsel %vm5504, %v968, %v6598
  %v9947 = vsel %vm5504, %v969, %v6600
  %v9948 = vsel %vm5504, %v970, %v6602
  %v9949 = vsel %vm5504, %v971, %v6604
  %v9950 = vsel %vm5504, %v972, %v6606
  %v9951 = vsel %vm5504, %v973, %v6608
  %v9952 = vsel %vm5504, %v974, %v6610
  %v9953 = vsel %vm5504, %v975, %v6612
  %v9954 = vsel %vm5504, %v976, %v6614
  %v9955 = vsel %vm5504, %v977, %v6616
  %v9956 = vsel %vm5504, %v978, %v6618
  %v9957 = vsel %vm5504, %v979, %v6620
  %v9958 = vsel %vm5504, %v980, %v6622
  %v9959 = vsel %vm5504, %v981, %v6624
  %v9960 = vsel %vm5504, %v982, %v6626
  %v9961 = vsel %vm5504, %v983, %v6628
  %v9962 = vsel %vm5504, %v984, %v6630
  %v9963 = vsel %vm5504, %v985, %v6632
  %v9964 = vsel %vm5504, %v986, %v6634
  %v9965 = vsel %vm5504, %v987, %v6636
  %v9966 = vsel %vm5504, %v988, %v6638
  %v9967 = vsel %vm5569, %v9903, %v6768
  %v9968 = vsel %vm5569, %v9904, %v6770
  %v9969 = vsel %vm5569, %v9905, %v6772
  %v9970 = vsel %vm5569, %v9906, %v6774
  %v9971 = vsel %vm5569, %v9907, %v6776
  %v9972 = vsel %vm5569, %v9908, %v6778
  %v9973 = vsel %vm5569, %v9909, %v6780
  %v9974 = vsel %vm5569, %v9910, %v6782
  %v9975 = vsel %vm5569, %v9911, %v6784
  %v9976 = vsel %vm5569, %v9912, %v6786
  %v9977 = vsel %vm5569, %v9913, %v6788
  %v9978 = vsel %vm5569, %v9914, %v6790
  %v9979 = vsel %vm5569, %v9915, %v6792
  %v9980 = vsel %vm5569, %v9916, %v6794
  %v9981 = vsel %vm5569, %v9917, %v6796
  %v9982 = vsel %vm5569, %v9918, %v6798
  %v9983 = vsel %vm5569, %v9919, %v6800
  %v9984 = vsel %vm5569, %v9920, %v6802
  %v9985 = vsel %vm5569, %v9921, %v6804
  %v9986 = vsel %vm5569, %v9922, %v6806
  %v9987 = vsel %vm5569, %v9923, %v6808
  %v9988 = vsel %vm5569, %v9924, %v6810
  %v9989 = vsel %vm5569, %v9925, %v6812
  %v9990 = vsel %vm5569, %v9926, %v6814
  %v9991 = vsel %vm5569, %v9927, %v6816
  %v9992 = vsel %vm5569, %v9928, %v6818
  %v9993 = vsel %vm5569, %v9929, %v6820
  %v9994 = vsel %vm5569, %v9930, %v6822
  %v9995 = vsel %vm5569, %v9931, %v6824
  %v9996 = vsel %vm5569, %v9932, %v6826
  %v9997 = vsel %vm5569, %v9933, %v6828
  %v9998 = vsel %vm5569, %v9934, %v6830
  %v9999 = vsel %vm5569, %v9935, %v6832
  %v10000 = vsel %vm5569, %v9936, %v6834
  %v10001 = vsel %vm5569, %v9937, %v6836
  %v10002 = vsel %vm5569, %v9938, %v6838
  %v10003 = vsel %vm5569, %v9939, %v6840
  %v10004 = vsel %vm5569, %v9940, %v6842
  %v10005 = vsel %vm5569, %v9941, %v6844
  %v10006 = vsel %vm5569, %v9942, %v6846
  %v10007 = vsel %vm5569, %v9943, %v6848
  %v10008 = vsel %vm5569, %v9944, %v6850
  %v10009 = vsel %vm5569, %v9945, %v6852
  %v10010 = vsel %vm5569, %v9946, %v6854
  %v10011 = vsel %vm5569, %v9947, %v6856
  %v10012 = vsel %vm5569, %v9948, %v6858
  %v10013 = vsel %vm5569, %v9949, %v6860
  %v10014 = vsel %vm5569, %v9950, %v6862
  %v10015 = vsel %vm5569, %v9951, %v6864
  %v10016 = vsel %vm5569, %v9952, %v6866
  %v10017 = vsel %vm5569, %v9953, %v6868
  %v10018 = vsel %vm5569, %v9954, %v6870
  %v10019 = vsel %vm5569, %v9955, %v6872
  %v10020 = vsel %vm5569, %v9956, %v6874
  %v10021 = vsel %vm5569, %v9957, %v6876
  %v10022 = vsel %vm5569, %v9958, %v6878
  %v10023 = vsel %vm5569, %v9959, %v6880
  %v10024 = vsel %vm5569, %v9960, %v6882
  %v10025 = vsel %vm5569, %v9961, %v6884
  %v10026 = vsel %vm5569, %v9962, %v6886
  %v10027 = vsel %vm5569, %v9963, %v6888
  %v10028 = vsel %vm5569, %v9964, %v6890
  %v10029 = vsel %vm5569, %v9965, %v6892
  %v10030 = vsel %vm5569, %v9966, %v6894
  %v10031 = vsel %vm5634, %v9967, %v7024
  %v10032 = vsel %vm5634, %v9968, %v7026
  %v10033 = vsel %vm5634, %v9969, %v7028
  %v10034 = vsel %vm5634, %v9970, %v7030
  %v10035 = vsel %vm5634, %v9971, %v7032
  %v10036 = vsel %vm5634, %v9972, %v7034
  %v10037 = vsel %vm5634, %v9973, %v7036
  %v10038 = vsel %vm5634, %v9974, %v7038
  %v10039 = vsel %vm5634, %v9975, %v7040
  %v10040 = vsel %vm5634, %v9976, %v7042
  %v10041 = vsel %vm5634, %v9977, %v7044
  %v10042 = vsel %vm5634, %v9978, %v7046
  %v10043 = vsel %vm5634, %v9979, %v7048
  %v10044 = vsel %vm5634, %v9980, %v7050
  %v10045 = vsel %vm5634, %v9981, %v7052
  %v10046 = vsel %vm5634, %v9982, %v7054
  %v10047 = vsel %vm5634, %v9983, %v7056
  %v10048 = vsel %vm5634, %v9984, %v7058
  %v10049 = vsel %vm5634, %v9985, %v7060
  %v10050 = vsel %vm5634, %v9986, %v7062
  %v10051 = vsel %vm5634, %v9987, %v7064
  %v10052 = vsel %vm5634, %v9988, %v7066
  %v10053 = vsel %vm5634, %v9989, %v7068
  %v10054 = vsel %vm5634, %v9990, %v7070
  %v10055 = vsel %vm5634, %v9991, %v7072
  %v10056 = vsel %vm5634, %v9992, %v7074
  %v10057 = vsel %vm5634, %v9993, %v7076
  %v10058 = vsel %vm5634, %v9994, %v7078
  %v10059 = vsel %vm5634, %v9995, %v7080
  %v10060 = vsel %vm5634, %v9996, %v7082
  %v10061 = vsel %vm5634, %v9997, %v7084
  %v10062 = vsel %vm5634, %v9998, %v7086
  %v10063 = vsel %vm5634, %v9999, %v7088
  %v10064 = vsel %vm5634, %v10000, %v7090
  %v10065 = vsel %vm5634, %v10001, %v7092
  %v10066 = vsel %vm5634, %v10002, %v7094
  %v10067 = vsel %vm5634, %v10003, %v7096
  %v10068 = vsel %vm5634, %v10004, %v7098
  %v10069 = vsel %vm5634, %v10005, %v7100
  %v10070 = vsel %vm5634, %v10006, %v7102
  %v10071 = vsel %vm5634, %v10007, %v7104
  %v10072 = vsel %vm5634, %v10008, %v7106
  %v10073 = vsel %vm5634, %v10009, %v7108
  %v10074 = vsel %vm5634, %v10010, %v7110
  %v10075 = vsel %vm5634, %v10011, %v7112
  %v10076 = vsel %vm5634, %v10012, %v7114
  %v10077 = vsel %vm5634, %v10013, %v7116
  %v10078 = vsel %vm5634, %v10014, %v7118
  %v10079 = vsel %vm5634, %v10015, %v7120
  %v10080 = vsel %vm5634, %v10016, %v7122
  %v10081 = vsel %vm5634, %v10017, %v7124
  %v10082 = vsel %vm5634, %v10018, %v7126
  %v10083 = vsel %vm5634, %v10019, %v7128
  %v10084 = vsel %vm5634, %v10020, %v7130
  %v10085 = vsel %vm5634, %v10021, %v7132
  %v10086 = vsel %vm5634, %v10022, %v7134
  %v10087 = vsel %vm5634, %v10023, %v7136
  %v10088 = vsel %vm5634, %v10024, %v7138
  %v10089 = vsel %vm5634, %v10025, %v7140
  %v10090 = vsel %vm5634, %v10026, %v7142
  %v10091 = vsel %vm5634, %v10027, %v7144
  %v10092 = vsel %vm5634, %v10028, %v7146
  %v10093 = vsel %vm5634, %v10029, %v7148
  %v10094 = vsel %vm5634, %v10030, %v7150
  %v10095 = vsel %vm5699, %v10031, %v7280
  %v10096 = vsel %vm5699, %v10032, %v7282
  %v10097 = vsel %vm5699, %v10033, %v7284
  %v10098 = vsel %vm5699, %v10034, %v7286
  %v10099 = vsel %vm5699, %v10035, %v7288
  %v10100 = vsel %vm5699, %v10036, %v7290
  %v10101 = vsel %vm5699, %v10037, %v7292
  %v10102 = vsel %vm5699, %v10038, %v7294
  %v10103 = vsel %vm5699, %v10039, %v7296
  %v10104 = vsel %vm5699, %v10040, %v7298
  %v10105 = vsel %vm5699, %v10041, %v7300
  %v10106 = vsel %vm5699, %v10042, %v7302
  %v10107 = vsel %vm5699, %v10043, %v7304
  %v10108 = vsel %vm5699, %v10044, %v7306
  %v10109 = vsel %vm5699, %v10045, %v7308
  %v10110 = vsel %vm5699, %v10046, %v7310
  %v10111 = vsel %vm5699, %v10047, %v7312
  %v10112 = vsel %vm5699, %v10048, %v7314
  %v10113 = vsel %vm5699, %v10049, %v7316
  %v10114 = vsel %vm5699, %v10050, %v7318
  %v10115 = vsel %vm5699, %v10051, %v7320
  %v10116 = vsel %vm5699, %v10052, %v7322
  %v10117 = vsel %vm5699, %v10053, %v7324
  %v10118 = vsel %vm5699, %v10054, %v7326
  %v10119 = vsel %vm5699, %v10055, %v7328
  %v10120 = vsel %vm5699, %v10056, %v7330
  %v10121 = vsel %vm5699, %v10057, %v7332
  %v10122 = vsel %vm5699, %v10058, %v7334
  %v10123 = vsel %vm5699, %v10059, %v7336
  %v10124 = vsel %vm5699, %v10060, %v7338
  %v10125 = vsel %vm5699, %v10061, %v7340
  %v10126 = vsel %vm5699, %v10062, %v7342
  %v10127 = vsel %vm5699, %v10063, %v7344
  %v10128 = vsel %vm5699, %v10064, %v7346
  %v10129 = vsel %vm5699, %v10065, %v7348
  %v10130 = vsel %vm5699, %v10066, %v7350
  %v10131 = vsel %vm5699, %v10067, %v7352
  %v10132 = vsel %vm5699, %v10068, %v7354
  %v10133 = vsel %vm5699, %v10069, %v7356
  %v10134 = vsel %vm5699, %v10070, %v7358
  %v10135 = vsel %vm5699, %v10071, %v7360
  %v10136 = vsel %vm5699, %v10072, %v7362
  %v10137 = vsel %vm5699, %v10073, %v7364
  %v10138 = vsel %vm5699, %v10074, %v7366
  %v10139 = vsel %vm5699, %v10075, %v7368
  %v10140 = vsel %vm5699, %v10076, %v7370
  %v10141 = vsel %vm5699, %v10077, %v7372
  %v10142 = vsel %vm5699, %v10078, %v7374
  %v10143 = vsel %vm5699, %v10079, %v7376
  %v10144 = vsel %vm5699, %v10080, %v7378
  %v10145 = vsel %vm5699, %v10081, %v7380
  %v10146 = vsel %vm5699, %v10082, %v7382
  %v10147 = vsel %vm5699, %v10083, %v7384
  %v10148 = vsel %vm5699, %v10084, %v7386
  %v10149 = vsel %vm5699, %v10085, %v7388
  %v10150 = vsel %vm5699, %v10086, %v7390
  %v10151 = vsel %vm5699, %v10087, %v7392
  %v10152 = vsel %vm5699, %v10088, %v7394
  %v10153 = vsel %vm5699, %v10089, %v7396
  %v10154 = vsel %vm5699, %v10090, %v7398
  %v10155 = vsel %vm5699, %v10091, %v7400
  %v10156 = vsel %vm5699, %v10092, %v7402
  %v10157 = vsel %vm5699, %v10093, %v7404
  %v10158 = vsel %vm5699, %v10094, %v7406
  %v10159 = vsel %vm5764, %v10095, %v7504
  %v10160 = vsel %vm5764, %v10096, %v2881
  %v10161 = vsel %vm5764, %v10097, %v7506
  %v10162 = vsel %vm5764, %v10098, %v2885
  %v10163 = vsel %vm5764, %v10099, %v7508
  %v10164 = vsel %vm5764, %v10100, %v2889
  %v10165 = vsel %vm5764, %v10101, %v7510
  %v10166 = vsel %vm5764, %v10102, %v2893
  %v10167 = vsel %vm5764, %v10103, %v7512
  %v10168 = vsel %vm5764, %v10104, %v2897
  %v10169 = vsel %vm5764, %v10105, %v7514
  %v10170 = vsel %vm5764, %v10106, %v2901
  %v10171 = vsel %vm5764, %v10107, %v7516
  %v10172 = vsel %vm5764, %v10108, %v2905
  %v10173 = vsel %vm5764, %v10109, %v7518
  %v10174 = vsel %vm5764, %v10110, %v2909
  %v10175 = vsel %vm5764, %v10111, %v7520
  %v10176 = vsel %vm5764, %v10112, %v2913
  %v10177 = vsel %vm5764, %v10113, %v7522
  %v10178 = vsel %vm5764, %v10114, %v2917
  %v10179 = vsel %vm5764, %v10115, %v7524
  %v10180 = vsel %vm5764, %v10116, %v2921
  %v10181 = vsel %vm5764, %v10117, %v7526
  %v10182 = vsel %vm5764, %v10118, %v2925
  %v10183 = vsel %vm5764, %v10119, %v7528
  %v10184 = vsel %vm5764, %v10120, %v2929
  %v10185 = vsel %vm5764, %v10121, %v7530
  %v10186 = vsel %vm5764, %v10122, %v2933
  %v10187 = vsel %vm5764, %v10123, %v7532
  %v10188 = vsel %vm5764, %v10124, %v2937
  %v10189 = vsel %vm5764, %v10125, %v7534
  %v10190 = vsel %vm5764, %v10126, %v2941
  %v10191 = vsel %vm5764, %v10127, %v7536
  %v10192 = vsel %vm5764, %v10128, %v2945
  %v10193 = vsel %vm5764, %v10129, %v7538
  %v10194 = vsel %vm5764, %v10130, %v2949
  %v10195 = vsel %vm5764, %v10131, %v7540
  %v10196 = vsel %vm5764, %v10132, %v2953
  %v10197 = vsel %vm5764, %v10133, %v7542
  %v10198 = vsel %vm5764, %v10134, %v2957
  %v10199 = vsel %vm5764, %v10135, %v7544
  %v10200 = vsel %vm5764, %v10136, %v2961
  %v10201 = vsel %vm5764, %v10137, %v7546
  %v10202 = vsel %vm5764, %v10138, %v2965
  %v10203 = vsel %vm5764, %v10139, %v7548
  %v10204 = vsel %vm5764, %v10140, %v2969
  %v10205 = vsel %vm5764, %v10141, %v7550
  %v10206 = vsel %vm5764, %v10142, %v2973
  %v10207 = vsel %vm5764, %v10143, %v7552
  %v10208 = vsel %vm5764, %v10144, %v2977
  %v10209 = vsel %vm5764, %v10145, %v7554
  %v10210 = vsel %vm5764, %v10146, %v2981
  %v10211 = vsel %vm5764, %v10147, %v7556
  %v10212 = vsel %vm5764, %v10148, %v2985
  %v10213 = vsel %vm5764, %v10149, %v7558
  %v10214 = vsel %vm5764, %v10150, %v2989
  %v10215 = vsel %vm5764, %v10151, %v7560
  %v10216 = vsel %vm5764, %v10152, %v2993
  %v10217 = vsel %vm5764, %v10153, %v7562
  %v10218 = vsel %vm5764, %v10154, %v2997
  %v10219 = vsel %vm5764, %v10155, %v7564
  %v10220 = vsel %vm5764, %v10156, %v3001
  %v10221 = vsel %vm5764, %v10157, %v7566
  %v10222 = vsel %vm5764, %v10158, %v3005
  %v10223 = vsel %vm5829, %v10159, %v7600
  %v10224 = vsel %vm5829, %v10160, %v7602
  %v10225 = vsel %vm5829, %v10161, %v7604
  %v10226 = vsel %vm5829, %v10162, %v7606
  %v10227 = vsel %vm5829, %v10163, %v7608
  %v10228 = vsel %vm5829, %v10164, %v7610
  %v10229 = vsel %vm5829, %v10165, %v7612
  %v10230 = vsel %vm5829, %v10166, %v7614
  %v10231 = vsel %vm5829, %v10167, %v7616
  %v10232 = vsel %vm5829, %v10168, %v7618
  %v10233 = vsel %vm5829, %v10169, %v7620
  %v10234 = vsel %vm5829, %v10170, %v7622
  %v10235 = vsel %vm5829, %v10171, %v7624
  %v10236 = vsel %vm5829, %v10172, %v7626
  %v10237 = vsel %vm5829, %v10173, %v7628
  %v10238 = vsel %vm5829, %v10174, %v7630
  %v10239 = vsel %vm5829, %v10175, %v7632
  %v10240 = vsel %vm5829, %v10176, %v7634
  %v10241 = vsel %vm5829, %v10177, %v7636
  %v10242 = vsel %vm5829, %v10178, %v7638
  %v10243 = vsel %vm5829, %v10179, %v7640
  %v10244 = vsel %vm5829, %v10180, %v7642
  %v10245 = vsel %vm5829, %v10181, %v7644
  %v10246 = vsel %vm5829, %v10182, %v7646
  %v10247 = vsel %vm5829, %v10183, %v7648
  %v10248 = vsel %vm5829, %v10184, %v7650
  %v10249 = vsel %vm5829, %v10185, %v7652
  %v10250 = vsel %vm5829, %v10186, %v7654
  %v10251 = vsel %vm5829, %v10187, %v7656
  %v10252 = vsel %vm5829, %v10188, %v7658
  %v10253 = vsel %vm5829, %v10189, %v7660
  %v10254 = vsel %vm5829, %v10190, %v7662
  %v10255 = vsel %vm5829, %v10191, %v7664
  %v10256 = vsel %vm5829, %v10192, %v7666
  %v10257 = vsel %vm5829, %v10193, %v7668
  %v10258 = vsel %vm5829, %v10194, %v7670
  %v10259 = vsel %vm5829, %v10195, %v7672
  %v10260 = vsel %vm5829, %v10196, %v7674
  %v10261 = vsel %vm5829, %v10197, %v7676
  %v10262 = vsel %vm5829, %v10198, %v7678
  %v10263 = vsel %vm5829, %v10199, %v7680
  %v10264 = vsel %vm5829, %v10200, %v7682
  %v10265 = vsel %vm5829, %v10201, %v7684
  %v10266 = vsel %vm5829, %v10202, %v7686
  %v10267 = vsel %vm5829, %v10203, %v7688
  %v10268 = vsel %vm5829, %v10204, %v7690
  %v10269 = vsel %vm5829, %v10205, %v7692
  %v10270 = vsel %vm5829, %v10206, %v7694
  %v10271 = vsel %vm5829, %v10207, %v7696
  %v10272 = vsel %vm5829, %v10208, %v7698
  %v10273 = vsel %vm5829, %v10209, %v7700
  %v10274 = vsel %vm5829, %v10210, %v7702
  %v10275 = vsel %vm5829, %v10211, %v7704
  %v10276 = vsel %vm5829, %v10212, %v7706
  %v10277 = vsel %vm5829, %v10213, %v7708
  %v10278 = vsel %vm5829, %v10214, %v7710
  %v10279 = vsel %vm5829, %v10215, %v7712
  %v10280 = vsel %vm5829, %v10216, %v7714
  %v10281 = vsel %vm5829, %v10217, %v7716
  %v10282 = vsel %vm5829, %v10218, %v7718
  %v10283 = vsel %vm5829, %v10219, %v7720
  %v10284 = vsel %vm5829, %v10220, %v7722
  %v10285 = vsel %vm5829, %v10221, %v7724
  %v10286 = vsel %vm5829, %v10222, %v7726
  %v10287 = vsel %vm5894, %v10223, %v7824
  %v10288 = vsel %vm5894, %v10224, %v7826
  %v10289 = vsel %vm5894, %v10225, %v7828
  %v10290 = vsel %vm5894, %v10226, %v7830
  %v10291 = vsel %vm5894, %v10227, %v7832
  %v10292 = vsel %vm5894, %v10228, %v7834
  %v10293 = vsel %vm5894, %v10229, %v7836
  %v10294 = vsel %vm5894, %v10230, %v7838
  %v10295 = vsel %vm5894, %v10231, %v7840
  %v10296 = vsel %vm5894, %v10232, %v7842
  %v10297 = vsel %vm5894, %v10233, %v7844
  %v10298 = vsel %vm5894, %v10234, %v7846
  %v10299 = vsel %vm5894, %v10235, %v7848
  %v10300 = vsel %vm5894, %v10236, %v7850
  %v10301 = vsel %vm5894, %v10237, %v7852
  %v10302 = vsel %vm5894, %v10238, %v7854
  %v10303 = vsel %vm5894, %v10239, %v7856
  %v10304 = vsel %vm5894, %v10240, %v7858
  %v10305 = vsel %vm5894, %v10241, %v7860
  %v10306 = vsel %vm5894, %v10242, %v7862
  %v10307 = vsel %vm5894, %v10243, %v7864
  %v10308 = vsel %vm5894, %v10244, %v7866
  %v10309 = vsel %vm5894, %v10245, %v7868
  %v10310 = vsel %vm5894, %v10246, %v7870
  %v10311 = vsel %vm5894, %v10247, %v7872
  %v10312 = vsel %vm5894, %v10248, %v7874
  %v10313 = vsel %vm5894, %v10249, %v7876
  %v10314 = vsel %vm5894, %v10250, %v7878
  %v10315 = vsel %vm5894, %v10251, %v7880
  %v10316 = vsel %vm5894, %v10252, %v7882
  %v10317 = vsel %vm5894, %v10253, %v7884
  %v10318 = vsel %vm5894, %v10254, %v7886
  %v10319 = vsel %vm5894, %v10255, %v7888
  %v10320 = vsel %vm5894, %v10256, %v7890
  %v10321 = vsel %vm5894, %v10257, %v7892
  %v10322 = vsel %vm5894, %v10258, %v7894
  %v10323 = vsel %vm5894, %v10259, %v7896
  %v10324 = vsel %vm5894, %v10260, %v7898
  %v10325 = vsel %vm5894, %v10261, %v7900
  %v10326 = vsel %vm5894, %v10262, %v7902
  %v10327 = vsel %vm5894, %v10263, %v7904
  %v10328 = vsel %vm5894, %v10264, %v7906
  %v10329 = vsel %vm5894, %v10265, %v7908
  %v10330 = vsel %vm5894, %v10266, %v7910
  %v10331 = vsel %vm5894, %v10267, %v7912
  %v10332 = vsel %vm5894, %v10268, %v7914
  %v10333 = vsel %vm5894, %v10269, %v7916
  %v10334 = vsel %vm5894, %v10270, %v7918
  %v10335 = vsel %vm5894, %v10271, %v7920
  %v10336 = vsel %vm5894, %v10272, %v7922
  %v10337 = vsel %vm5894, %v10273, %v7924
  %v10338 = vsel %vm5894, %v10274, %v7926
  %v10339 = vsel %vm5894, %v10275, %v7928
  %v10340 = vsel %vm5894, %v10276, %v7930
  %v10341 = vsel %vm5894, %v10277, %v7932
  %v10342 = vsel %vm5894, %v10278, %v7934
  %v10343 = vsel %vm5894, %v10279, %v7936
  %v10344 = vsel %vm5894, %v10280, %v7938
  %v10345 = vsel %vm5894, %v10281, %v7940
  %v10346 = vsel %vm5894, %v10282, %v7942
  %v10347 = vsel %vm5894, %v10283, %v7944
  %v10348 = vsel %vm5894, %v10284, %v7946
  %v10349 = vsel %vm5894, %v10285, %v7948
  %v10350 = vsel %vm5894, %v10286, %v7950
  %v10351 = vsel %vm5959, %v10287, %v8080
  %v10352 = vsel %vm5959, %v10288, %v8082
  %v10353 = vsel %vm5959, %v10289, %v8084
  %v10354 = vsel %vm5959, %v10290, %v8086
  %v10355 = vsel %vm5959, %v10291, %v8088
  %v10356 = vsel %vm5959, %v10292, %v8090
  %v10357 = vsel %vm5959, %v10293, %v8092
  %v10358 = vsel %vm5959, %v10294, %v8094
  %v10359 = vsel %vm5959, %v10295, %v8096
  %v10360 = vsel %vm5959, %v10296, %v8098
  %v10361 = vsel %vm5959, %v10297, %v8100
  %v10362 = vsel %vm5959, %v10298, %v8102
  %v10363 = vsel %vm5959, %v10299, %v8104
  %v10364 = vsel %vm5959, %v10300, %v8106
  %v10365 = vsel %vm5959, %v10301, %v8108
  %v10366 = vsel %vm5959, %v10302, %v8110
  %v10367 = vsel %vm5959, %v10303, %v8112
  %v10368 = vsel %vm5959, %v10304, %v8114
  %v10369 = vsel %vm5959, %v10305, %v8116
  %v10370 = vsel %vm5959, %v10306, %v8118
  %v10371 = vsel %vm5959, %v10307, %v8120
  %v10372 = vsel %vm5959, %v10308, %v8122
  %v10373 = vsel %vm5959, %v10309, %v8124
  %v10374 = vsel %vm5959, %v10310, %v8126
  %v10375 = vsel %vm5959, %v10311, %v8128
  %v10376 = vsel %vm5959, %v10312, %v8130
  %v10377 = vsel %vm5959, %v10313, %v8132
  %v10378 = vsel %vm5959, %v10314, %v8134
  %v10379 = vsel %vm5959, %v10315, %v8136
  %v10380 = vsel %vm5959, %v10316, %v8138
  %v10381 = vsel %vm5959, %v10317, %v8140
  %v10382 = vsel %vm5959, %v10318, %v8142
  %v10383 = vsel %vm5959, %v10319, %v8144
  %v10384 = vsel %vm5959, %v10320, %v8146
  %v10385 = vsel %vm5959, %v10321, %v8148
  %v10386 = vsel %vm5959, %v10322, %v8150
  %v10387 = vsel %vm5959, %v10323, %v8152
  %v10388 = vsel %vm5959, %v10324, %v8154
  %v10389 = vsel %vm5959, %v10325, %v8156
  %v10390 = vsel %vm5959, %v10326, %v8158
  %v10391 = vsel %vm5959, %v10327, %v8160
  %v10392 = vsel %vm5959, %v10328, %v8162
  %v10393 = vsel %vm5959, %v10329, %v8164
  %v10394 = vsel %vm5959, %v10330, %v8166
  %v10395 = vsel %vm5959, %v10331, %v8168
  %v10396 = vsel %vm5959, %v10332, %v8170
  %v10397 = vsel %vm5959, %v10333, %v8172
  %v10398 = vsel %vm5959, %v10334, %v8174
  %v10399 = vsel %vm5959, %v10335, %v8176
  %v10400 = vsel %vm5959, %v10336, %v8178
  %v10401 = vsel %vm5959, %v10337, %v8180
  %v10402 = vsel %vm5959, %v10338, %v8182
  %v10403 = vsel %vm5959, %v10339, %v8184
  %v10404 = vsel %vm5959, %v10340, %v8186
  %v10405 = vsel %vm5959, %v10341, %v8188
  %v10406 = vsel %vm5959, %v10342, %v8190
  %v10407 = vsel %vm5959, %v10343, %v8192
  %v10408 = vsel %vm5959, %v10344, %v8194
  %v10409 = vsel %vm5959, %v10345, %v8196
  %v10410 = vsel %vm5959, %v10346, %v8198
  %v10411 = vsel %vm5959, %v10347, %v8200
  %v10412 = vsel %vm5959, %v10348, %v8202
  %v10413 = vsel %vm5959, %v10349, %v8204
  %v10414 = vsel %vm5959, %v10350, %v8206
  %v10415 = vsel %vm6024, %v10351, %v8336
  %v10416 = vsel %vm6024, %v10352, %v8338
  %v10417 = vsel %vm6024, %v10353, %v8340
  %v10418 = vsel %vm6024, %v10354, %v8342
  %v10419 = vsel %vm6024, %v10355, %v8344
  %v10420 = vsel %vm6024, %v10356, %v8346
  %v10421 = vsel %vm6024, %v10357, %v8348
  %v10422 = vsel %vm6024, %v10358, %v8350
  %v10423 = vsel %vm6024, %v10359, %v8352
  %v10424 = vsel %vm6024, %v10360, %v8354
  %v10425 = vsel %vm6024, %v10361, %v8356
  %v10426 = vsel %vm6024, %v10362, %v8358
  %v10427 = vsel %vm6024, %v10363, %v8360
  %v10428 = vsel %vm6024, %v10364, %v8362
  %v10429 = vsel %vm6024, %v10365, %v8364
  %v10430 = vsel %vm6024, %v10366, %v8366
  %v10431 = vsel %vm6024, %v10367, %v8368
  %v10432 = vsel %vm6024, %v10368, %v8370
  %v10433 = vsel %vm6024, %v10369, %v8372
  %v10434 = vsel %vm6024, %v10370, %v8374
  %v10435 = vsel %vm6024, %v10371, %v8376
  %v10436 = vsel %vm6024, %v10372, %v8378
  %v10437 = vsel %vm6024, %v10373, %v8380
  %v10438 = vsel %vm6024, %v10374, %v8382
  %v10439 = vsel %vm6024, %v10375, %v8384
  %v10440 = vsel %vm6024, %v10376, %v8386
  %v10441 = vsel %vm6024, %v10377, %v8388
  %v10442 = vsel %vm6024, %v10378, %v8390
  %v10443 = vsel %vm6024, %v10379, %v8392
  %v10444 = vsel %vm6024, %v10380, %v8394
  %v10445 = vsel %vm6024, %v10381, %v8396
  %v10446 = vsel %vm6024, %v10382, %v8398
  %v10447 = vsel %vm6024, %v10383, %v8400
  %v10448 = vsel %vm6024, %v10384, %v8402
  %v10449 = vsel %vm6024, %v10385, %v8404
  %v10450 = vsel %vm6024, %v10386, %v8406
  %v10451 = vsel %vm6024, %v10387, %v8408
  %v10452 = vsel %vm6024, %v10388, %v8410
  %v10453 = vsel %vm6024, %v10389, %v8412
  %v10454 = vsel %vm6024, %v10390, %v8414
  %v10455 = vsel %vm6024, %v10391, %v8416
  %v10456 = vsel %vm6024, %v10392, %v8418
  %v10457 = vsel %vm6024, %v10393, %v8420
  %v10458 = vsel %vm6024, %v10394, %v8422
  %v10459 = vsel %vm6024, %v10395, %v8424
  %v10460 = vsel %vm6024, %v10396, %v8426
  %v10461 = vsel %vm6024, %v10397, %v8428
  %v10462 = vsel %vm6024, %v10398, %v8430
  %v10463 = vsel %vm6024, %v10399, %v8432
  %v10464 = vsel %vm6024, %v10400, %v8434
  %v10465 = vsel %vm6024, %v10401, %v8436
  %v10466 = vsel %vm6024, %v10402, %v8438
  %v10467 = vsel %vm6024, %v10403, %v8440
  %v10468 = vsel %vm6024, %v10404, %v8442
  %v10469 = vsel %vm6024, %v10405, %v8444
  %v10470 = vsel %vm6024, %v10406, %v8446
  %v10471 = vsel %vm6024, %v10407, %v8448
  %v10472 = vsel %vm6024, %v10408, %v8450
  %v10473 = vsel %vm6024, %v10409, %v8452
  %v10474 = vsel %vm6024, %v10410, %v8454
  %v10475 = vsel %vm6024, %v10411, %v8456
  %v10476 = vsel %vm6024, %v10412, %v8458
  %v10477 = vsel %vm6024, %v10413, %v8460
  %v10478 = vsel %vm6024, %v10414, %v8462
  %v10479 = vsel %vm6089, %v10415, %v8592
  %v10480 = vsel %vm6089, %v10416, %v8594
  %v10481 = vsel %vm6089, %v10417, %v8596
  %v10482 = vsel %vm6089, %v10418, %v8598
  %v10483 = vsel %vm6089, %v10419, %v8600
  %v10484 = vsel %vm6089, %v10420, %v8602
  %v10485 = vsel %vm6089, %v10421, %v8604
  %v10486 = vsel %vm6089, %v10422, %v8606
  %v10487 = vsel %vm6089, %v10423, %v8608
  %v10488 = vsel %vm6089, %v10424, %v8610
  %v10489 = vsel %vm6089, %v10425, %v8612
  %v10490 = vsel %vm6089, %v10426, %v8614
  %v10491 = vsel %vm6089, %v10427, %v8616
  %v10492 = vsel %vm6089, %v10428, %v8618
  %v10493 = vsel %vm6089, %v10429, %v8620
  %v10494 = vsel %vm6089, %v10430, %v8622
  %v10495 = vsel %vm6089, %v10431, %v8624
  %v10496 = vsel %vm6089, %v10432, %v8626
  %v10497 = vsel %vm6089, %v10433, %v8628
  %v10498 = vsel %vm6089, %v10434, %v8630
  %v10499 = vsel %vm6089, %v10435, %v8632
  %v10500 = vsel %vm6089, %v10436, %v8634
  %v10501 = vsel %vm6089, %v10437, %v8636
  %v10502 = vsel %vm6089, %v10438, %v8638
  %v10503 = vsel %vm6089, %v10439, %v8640
  %v10504 = vsel %vm6089, %v10440, %v8642
  %v10505 = vsel %vm6089, %v10441, %v8644
  %v10506 = vsel %vm6089, %v10442, %v8646
  %v10507 = vsel %vm6089, %v10443, %v8648
  %v10508 = vsel %vm6089, %v10444, %v8650
  %v10509 = vsel %vm6089, %v10445, %v8652
  %v10510 = vsel %vm6089, %v10446, %v8654
  %v10511 = vsel %vm6089, %v10447, %v8656
  %v10512 = vsel %vm6089, %v10448, %v8658
  %v10513 = vsel %vm6089, %v10449, %v8660
  %v10514 = vsel %vm6089, %v10450, %v8662
  %v10515 = vsel %vm6089, %v10451, %v8664
  %v10516 = vsel %vm6089, %v10452, %v8666
  %v10517 = vsel %vm6089, %v10453, %v8668
  %v10518 = vsel %vm6089, %v10454, %v8670
  %v10519 = vsel %vm6089, %v10455, %v8672
  %v10520 = vsel %vm6089, %v10456, %v8674
  %v10521 = vsel %vm6089, %v10457, %v8676
  %v10522 = vsel %vm6089, %v10458, %v8678
  %v10523 = vsel %vm6089, %v10459, %v8680
  %v10524 = vsel %vm6089, %v10460, %v8682
  %v10525 = vsel %vm6089, %v10461, %v8684
  %v10526 = vsel %vm6089, %v10462, %v8686
  %v10527 = vsel %vm6089, %v10463, %v8688
  %v10528 = vsel %vm6089, %v10464, %v8690
  %v10529 = vsel %vm6089, %v10465, %v8692
  %v10530 = vsel %vm6089, %v10466, %v8694
  %v10531 = vsel %vm6089, %v10467, %v8696
  %v10532 = vsel %vm6089, %v10468, %v8698
  %v10533 = vsel %vm6089, %v10469, %v8700
  %v10534 = vsel %vm6089, %v10470, %v8702
  %v10535 = vsel %vm6089, %v10471, %v8704
  %v10536 = vsel %vm6089, %v10472, %v8706
  %v10537 = vsel %vm6089, %v10473, %v8708
  %v10538 = vsel %vm6089, %v10474, %v8710
  %v10539 = vsel %vm6089, %v10475, %v8712
  %v10540 = vsel %vm6089, %v10476, %v8714
  %v10541 = vsel %vm6089, %v10477, %v8716
  %v10542 = vsel %vm6089, %v10478, %v8718
  %v10543 = vsel %vm6154, %v10479, %v8848
  %v10544 = vsel %vm6154, %v10480, %v8850
  %v10545 = vsel %vm6154, %v10481, %v8852
  %v10546 = vsel %vm6154, %v10482, %v8854
  %v10547 = vsel %vm6154, %v10483, %v8856
  %v10548 = vsel %vm6154, %v10484, %v8858
  %v10549 = vsel %vm6154, %v10485, %v8860
  %v10550 = vsel %vm6154, %v10486, %v8862
  %v10551 = vsel %vm6154, %v10487, %v8864
  %v10552 = vsel %vm6154, %v10488, %v8866
  %v10553 = vsel %vm6154, %v10489, %v8868
  %v10554 = vsel %vm6154, %v10490, %v8870
  %v10555 = vsel %vm6154, %v10491, %v8872
  %v10556 = vsel %vm6154, %v10492, %v8874
  %v10557 = vsel %vm6154, %v10493, %v8876
  %v10558 = vsel %vm6154, %v10494, %v8878
  %v10559 = vsel %vm6154, %v10495, %v8880
  %v10560 = vsel %vm6154, %v10496, %v8882
  %v10561 = vsel %vm6154, %v10497, %v8884
  %v10562 = vsel %vm6154, %v10498, %v8886
  %v10563 = vsel %vm6154, %v10499, %v8888
  %v10564 = vsel %vm6154, %v10500, %v8890
  %v10565 = vsel %vm6154, %v10501, %v8892
  %v10566 = vsel %vm6154, %v10502, %v8894
  %v10567 = vsel %vm6154, %v10503, %v8896
  %v10568 = vsel %vm6154, %v10504, %v8898
  %v10569 = vsel %vm6154, %v10505, %v8900
  %v10570 = vsel %vm6154, %v10506, %v8902
  %v10571 = vsel %vm6154, %v10507, %v8904
  %v10572 = vsel %vm6154, %v10508, %v8906
  %v10573 = vsel %vm6154, %v10509, %v8908
  %v10574 = vsel %vm6154, %v10510, %v8910
  %v10575 = vsel %vm6154, %v10511, %v8912
  %v10576 = vsel %vm6154, %v10512, %v8914
  %v10577 = vsel %vm6154, %v10513, %v8916
  %v10578 = vsel %vm6154, %v10514, %v8918
  %v10579 = vsel %vm6154, %v10515, %v8920
  %v10580 = vsel %vm6154, %v10516, %v8922
  %v10581 = vsel %vm6154, %v10517, %v8924
  %v10582 = vsel %vm6154, %v10518, %v8926
  %v10583 = vsel %vm6154, %v10519, %v8928
  %v10584 = vsel %vm6154, %v10520, %v8930
  %v10585 = vsel %vm6154, %v10521, %v8932
  %v10586 = vsel %vm6154, %v10522, %v8934
  %v10587 = vsel %vm6154, %v10523, %v8936
  %v10588 = vsel %vm6154, %v10524, %v8938
  %v10589 = vsel %vm6154, %v10525, %v8940
  %v10590 = vsel %vm6154, %v10526, %v8942
  %v10591 = vsel %vm6154, %v10527, %v8944
  %v10592 = vsel %vm6154, %v10528, %v8946
  %v10593 = vsel %vm6154, %v10529, %v8948
  %v10594 = vsel %vm6154, %v10530, %v8950
  %v10595 = vsel %vm6154, %v10531, %v8952
  %v10596 = vsel %vm6154, %v10532, %v8954
  %v10597 = vsel %vm6154, %v10533, %v8956
  %v10598 = vsel %vm6154, %v10534, %v8958
  %v10599 = vsel %vm6154, %v10535, %v8960
  %v10600 = vsel %vm6154, %v10536, %v8962
  %v10601 = vsel %vm6154, %v10537, %v8964
  %v10602 = vsel %vm6154, %v10538, %v8966
  %v10603 = vsel %vm6154, %v10539, %v8968
  %v10604 = vsel %vm6154, %v10540, %v8970
  %v10605 = vsel %vm6154, %v10541, %v8972
  %v10606 = vsel %vm6154, %v10542, %v8974
  %v10607 = vsel %vm6219, %v10543, %v9072
  %v10608 = vsel %vm6219, %v10544, %v9074
  %v10609 = vsel %vm6219, %v10545, %v9076
  %v10610 = vsel %vm6219, %v10546, %v9078
  %v10611 = vsel %vm6219, %v10547, %v9080
  %v10612 = vsel %vm6219, %v10548, %v9082
  %v10613 = vsel %vm6219, %v10549, %v9084
  %v10614 = vsel %vm6219, %v10550, %v9086
  %v10615 = vsel %vm6219, %v10551, %v9088
  %v10616 = vsel %vm6219, %v10552, %v9090
  %v10617 = vsel %vm6219, %v10553, %v9092
  %v10618 = vsel %vm6219, %v10554, %v9094
  %v10619 = vsel %vm6219, %v10555, %v9096
  %v10620 = vsel %vm6219, %v10556, %v9098
  %v10621 = vsel %vm6219, %v10557, %v9100
  %v10622 = vsel %vm6219, %v10558, %v9102
  %v10623 = vsel %vm6219, %v10559, %v9104
  %v10624 = vsel %vm6219, %v10560, %v9106
  %v10625 = vsel %vm6219, %v10561, %v9108
  %v10626 = vsel %vm6219, %v10562, %v9110
  %v10627 = vsel %vm6219, %v10563, %v9112
  %v10628 = vsel %vm6219, %v10564, %v9114
  %v10629 = vsel %vm6219, %v10565, %v9116
  %v10630 = vsel %vm6219, %v10566, %v9118
  %v10631 = vsel %vm6219, %v10567, %v9120
  %v10632 = vsel %vm6219, %v10568, %v9122
  %v10633 = vsel %vm6219, %v10569, %v9124
  %v10634 = vsel %vm6219, %v10570, %v9126
  %v10635 = vsel %vm6219, %v10571, %v9128
  %v10636 = vsel %vm6219, %v10572, %v9130
  %v10637 = vsel %vm6219, %v10573, %v9132
  %v10638 = vsel %vm6219, %v10574, %v9134
  %v10639 = vsel %vm6219, %v10575, %v9136
  %v10640 = vsel %vm6219, %v10576, %v9138
  %v10641 = vsel %vm6219, %v10577, %v9140
  %v10642 = vsel %vm6219, %v10578, %v9142
  %v10643 = vsel %vm6219, %v10579, %v9144
  %v10644 = vsel %vm6219, %v10580, %v9146
  %v10645 = vsel %vm6219, %v10581, %v9148
  %v10646 = vsel %vm6219, %v10582, %v9150
  %v10647 = vsel %vm6219, %v10583, %v9152
  %v10648 = vsel %vm6219, %v10584, %v9154
  %v10649 = vsel %vm6219, %v10585, %v9156
  %v10650 = vsel %vm6219, %v10586, %v9158
  %v10651 = vsel %vm6219, %v10587, %v9160
  %v10652 = vsel %vm6219, %v10588, %v9162
  %v10653 = vsel %vm6219, %v10589, %v9164
  %v10654 = vsel %vm6219, %v10590, %v9166
  %v10655 = vsel %vm6219, %v10591, %v9168
  %v10656 = vsel %vm6219, %v10592, %v9170
  %v10657 = vsel %vm6219, %v10593, %v9172
  %v10658 = vsel %vm6219, %v10594, %v9174
  %v10659 = vsel %vm6219, %v10595, %v9176
  %v10660 = vsel %vm6219, %v10596, %v9178
  %v10661 = vsel %vm6219, %v10597, %v9180
  %v10662 = vsel %vm6219, %v10598, %v9182
  %v10663 = vsel %vm6219, %v10599, %v9184
  %v10664 = vsel %vm6219, %v10600, %v9186
  %v10665 = vsel %vm6219, %v10601, %v9188
  %v10666 = vsel %vm6219, %v10602, %v9190
  %v10667 = vsel %vm6219, %v10603, %v9192
  %v10668 = vsel %vm6219, %v10604, %v9194
  %v10669 = vsel %vm6219, %v10605, %v9196
  %v10670 = vsel %vm6219, %v10606, %v9198
  %v10671 = vsel %vm6284, %v10607, %v9296
  %v10672 = vsel %vm6284, %v10608, %v9298
  %v10673 = vsel %vm6284, %v10609, %v9300
  %v10674 = vsel %vm6284, %v10610, %v9302
  %v10675 = vsel %vm6284, %v10611, %v9304
  %v10676 = vsel %vm6284, %v10612, %v9306
  %v10677 = vsel %vm6284, %v10613, %v9308
  %v10678 = vsel %vm6284, %v10614, %v9310
  %v10679 = vsel %vm6284, %v10615, %v9312
  %v10680 = vsel %vm6284, %v10616, %v9314
  %v10681 = vsel %vm6284, %v10617, %v9316
  %v10682 = vsel %vm6284, %v10618, %v9318
  %v10683 = vsel %vm6284, %v10619, %v9320
  %v10684 = vsel %vm6284, %v10620, %v9322
  %v10685 = vsel %vm6284, %v10621, %v9324
  %v10686 = vsel %vm6284, %v10622, %v9326
  %v10687 = vsel %vm6284, %v10623, %v9328
  %v10688 = vsel %vm6284, %v10624, %v9330
  %v10689 = vsel %vm6284, %v10625, %v9332
  %v10690 = vsel %vm6284, %v10626, %v9334
  %v10691 = vsel %vm6284, %v10627, %v9336
  %v10692 = vsel %vm6284, %v10628, %v9338
  %v10693 = vsel %vm6284, %v10629, %v9340
  %v10694 = vsel %vm6284, %v10630, %v9342
  %v10695 = vsel %vm6284, %v10631, %v9344
  %v10696 = vsel %vm6284, %v10632, %v9346
  %v10697 = vsel %vm6284, %v10633, %v9348
  %v10698 = vsel %vm6284, %v10634, %v9350
  %v10699 = vsel %vm6284, %v10635, %v9352
  %v10700 = vsel %vm6284, %v10636, %v9354
  %v10701 = vsel %vm6284, %v10637, %v9356
  %v10702 = vsel %vm6284, %v10638, %v9358
  %v10703 = vsel %vm6284, %v10639, %v9360
  %v10704 = vsel %vm6284, %v10640, %v9362
  %v10705 = vsel %vm6284, %v10641, %v9364
  %v10706 = vsel %vm6284, %v10642, %v9366
  %v10707 = vsel %vm6284, %v10643, %v9368
  %v10708 = vsel %vm6284, %v10644, %v9370
  %v10709 = vsel %vm6284, %v10645, %v9372
  %v10710 = vsel %vm6284, %v10646, %v9374
  %v10711 = vsel %vm6284, %v10647, %v9376
  %v10712 = vsel %vm6284, %v10648, %v9378
  %v10713 = vsel %vm6284, %v10649, %v9380
  %v10714 = vsel %vm6284, %v10650, %v9382
  %v10715 = vsel %vm6284, %v10651, %v9384
  %v10716 = vsel %vm6284, %v10652, %v9386
  %v10717 = vsel %vm6284, %v10653, %v9388
  %v10718 = vsel %vm6284, %v10654, %v9390
  %v10719 = vsel %vm6284, %v10655, %v9392
  %v10720 = vsel %vm6284, %v10656, %v9394
  %v10721 = vsel %vm6284, %v10657, %v9396
  %v10722 = vsel %vm6284, %v10658, %v9398
  %v10723 = vsel %vm6284, %v10659, %v9400
  %v10724 = vsel %vm6284, %v10660, %v9402
  %v10725 = vsel %vm6284, %v10661, %v9404
  %v10726 = vsel %vm6284, %v10662, %v9406
  %v10727 = vsel %vm6284, %v10663, %v9408
  %v10728 = vsel %vm6284, %v10664, %v9410
  %v10729 = vsel %vm6284, %v10665, %v9412
  %v10730 = vsel %vm6284, %v10666, %v9414
  %v10731 = vsel %vm6284, %v10667, %v9416
  %v10732 = vsel %vm6284, %v10668, %v9418
  %v10733 = vsel %vm6284, %v10669, %v9420
  %v10734 = vsel %vm6284, %v10670, %v9422
  %v10735 = vsel %vm6349, %v10671, %v9520
  %v10736 = vsel %vm6349, %v10672, %v9522
  %v10737 = vsel %vm6349, %v10673, %v9524
  %v10738 = vsel %vm6349, %v10674, %v9526
  %v10739 = vsel %vm6349, %v10675, %v9528
  %v10740 = vsel %vm6349, %v10676, %v9530
  %v10741 = vsel %vm6349, %v10677, %v9532
  %v10742 = vsel %vm6349, %v10678, %v9534
  %v10743 = vsel %vm6349, %v10679, %v9536
  %v10744 = vsel %vm6349, %v10680, %v9538
  %v10745 = vsel %vm6349, %v10681, %v9540
  %v10746 = vsel %vm6349, %v10682, %v9542
  %v10747 = vsel %vm6349, %v10683, %v9544
  %v10748 = vsel %vm6349, %v10684, %v9546
  %v10749 = vsel %vm6349, %v10685, %v9548
  %v10750 = vsel %vm6349, %v10686, %v9550
  %v10751 = vsel %vm6349, %v10687, %v9552
  %v10752 = vsel %vm6349, %v10688, %v9554
  %v10753 = vsel %vm6349, %v10689, %v9556
  %v10754 = vsel %vm6349, %v10690, %v9558
  %v10755 = vsel %vm6349, %v10691, %v9560
  %v10756 = vsel %vm6349, %v10692, %v9562
  %v10757 = vsel %vm6349, %v10693, %v9564
  %v10758 = vsel %vm6349, %v10694, %v9566
  %v10759 = vsel %vm6349, %v10695, %v9568
  %v10760 = vsel %vm6349, %v10696, %v9570
  %v10761 = vsel %vm6349, %v10697, %v9572
  %v10762 = vsel %vm6349, %v10698, %v9574
  %v10763 = vsel %vm6349, %v10699, %v9576
  %v10764 = vsel %vm6349, %v10700, %v9578
  %v10765 = vsel %vm6349, %v10701, %v9580
  %v10766 = vsel %vm6349, %v10702, %v9582
  %v10767 = vsel %vm6349, %v10703, %v9584
  %v10768 = vsel %vm6349, %v10704, %v9586
  %v10769 = vsel %vm6349, %v10705, %v9588
  %v10770 = vsel %vm6349, %v10706, %v9590
  %v10771 = vsel %vm6349, %v10707, %v9592
  %v10772 = vsel %vm6349, %v10708, %v9594
  %v10773 = vsel %vm6349, %v10709, %v9596
  %v10774 = vsel %vm6349, %v10710, %v9598
  %v10775 = vsel %vm6349, %v10711, %v9600
  %v10776 = vsel %vm6349, %v10712, %v9602
  %v10777 = vsel %vm6349, %v10713, %v9604
  %v10778 = vsel %vm6349, %v10714, %v9606
  %v10779 = vsel %vm6349, %v10715, %v9608
  %v10780 = vsel %vm6349, %v10716, %v9610
  %v10781 = vsel %vm6349, %v10717, %v9612
  %v10782 = vsel %vm6349, %v10718, %v9614
  %v10783 = vsel %vm6349, %v10719, %v9616
  %v10784 = vsel %vm6349, %v10720, %v9618
  %v10785 = vsel %vm6349, %v10721, %v9620
  %v10786 = vsel %vm6349, %v10722, %v9622
  %v10787 = vsel %vm6349, %v10723, %v9624
  %v10788 = vsel %vm6349, %v10724, %v9626
  %v10789 = vsel %vm6349, %v10725, %v9628
  %v10790 = vsel %vm6349, %v10726, %v9630
  %v10791 = vsel %vm6349, %v10727, %v9632
  %v10792 = vsel %vm6349, %v10728, %v9634
  %v10793 = vsel %vm6349, %v10729, %v9636
  %v10794 = vsel %vm6349, %v10730, %v9638
  %v10795 = vsel %vm6349, %v10731, %v9640
  %v10796 = vsel %vm6349, %v10732, %v9642
  %v10797 = vsel %vm6349, %v10733, %v9644
  %v10798 = vsel %vm6349, %v10734, %v9646
  %v10799 = vsel %vm6414, %v10735, %v9712
  %v10800 = vsel %vm6414, %v10736, %v9714
  %v10801 = vsel %vm6414, %v10737, %v9716
  %v10802 = vsel %vm6414, %v10738, %v9718
  %v10803 = vsel %vm6414, %v10739, %v9720
  %v10804 = vsel %vm6414, %v10740, %v9722
  %v10805 = vsel %vm6414, %v10741, %v9724
  %v10806 = vsel %vm6414, %v10742, %v9726
  %v10807 = vsel %vm6414, %v10743, %v9728
  %v10808 = vsel %vm6414, %v10744, %v9730
  %v10809 = vsel %vm6414, %v10745, %v9732
  %v10810 = vsel %vm6414, %v10746, %v9734
  %v10811 = vsel %vm6414, %v10747, %v9736
  %v10812 = vsel %vm6414, %v10748, %v9738
  %v10813 = vsel %vm6414, %v10749, %v9740
  %v10814 = vsel %vm6414, %v10750, %v9742
  %v10815 = vsel %vm6414, %v10751, %v9744
  %v10816 = vsel %vm6414, %v10752, %v9746
  %v10817 = vsel %vm6414, %v10753, %v9748
  %v10818 = vsel %vm6414, %v10754, %v9750
  %v10819 = vsel %vm6414, %v10755, %v9752
  %v10820 = vsel %vm6414, %v10756, %v9754
  %v10821 = vsel %vm6414, %v10757, %v9756
  %v10822 = vsel %vm6414, %v10758, %v9758
  %v10823 = vsel %vm6414, %v10759, %v9760
  %v10824 = vsel %vm6414, %v10760, %v9762
  %v10825 = vsel %vm6414, %v10761, %v9764
  %v10826 = vsel %vm6414, %v10762, %v9766
  %v10827 = vsel %vm6414, %v10763, %v9768
  %v10828 = vsel %vm6414, %v10764, %v9770
  %v10829 = vsel %vm6414, %v10765, %v9772
  %v10830 = vsel %vm6414, %v10766, %v9774
  %v10831 = vsel %vm6414, %v10767, %v9776
  %v10832 = vsel %vm6414, %v10768, %v9778
  %v10833 = vsel %vm6414, %v10769, %v9780
  %v10834 = vsel %vm6414, %v10770, %v9782
  %v10835 = vsel %vm6414, %v10771, %v9784
  %v10836 = vsel %vm6414, %v10772, %v9786
  %v10837 = vsel %vm6414, %v10773, %v9788
  %v10838 = vsel %vm6414, %v10774, %v9790
  %v10839 = vsel %vm6414, %v10775, %v9792
  %v10840 = vsel %vm6414, %v10776, %v9794
  %v10841 = vsel %vm6414, %v10777, %v9796
  %v10842 = vsel %vm6414, %v10778, %v9798
  %v10843 = vsel %vm6414, %v10779, %v9800
  %v10844 = vsel %vm6414, %v10780, %v9802
  %v10845 = vsel %vm6414, %v10781, %v9804
  %v10846 = vsel %vm6414, %v10782, %v9806
  %v10847 = vsel %vm6414, %v10783, %v9808
  %v10848 = vsel %vm6414, %v10784, %v9810
  %v10849 = vsel %vm6414, %v10785, %v9812
  %v10850 = vsel %vm6414, %v10786, %v9814
  %v10851 = vsel %vm6414, %v10787, %v9816
  %v10852 = vsel %vm6414, %v10788, %v9818
  %v10853 = vsel %vm6414, %v10789, %v9820
  %v10854 = vsel %vm6414, %v10790, %v9822
  %v10855 = vsel %vm6414, %v10791, %v9824
  %v10856 = vsel %vm6414, %v10792, %v9826
  %v10857 = vsel %vm6414, %v10793, %v9828
  %v10858 = vsel %vm6414, %v10794, %v9830
  %v10859 = vsel %vm6414, %v10795, %v9832
  %v10860 = vsel %vm6414, %v10796, %v9834
  %v10861 = vsel %vm6414, %v10797, %v9836
  %v10862 = vsel %vm6414, %v10798, %v9838
  %10927 = vrot.lane.b32.xlu0 %v1664, 4
  %v10928 = vpop.permute.xlu0 %10927
  %10929 = vrot.lane.b32.xlu0 %v1665, 4
  %v10930 = vpop.permute.xlu0 %10929
  %10931 = vrot.lane.b32.xlu0 %v1666, 4
  %v10932 = vpop.permute.xlu0 %10931
  %10933 = vrot.lane.b32.xlu0 %v1667, 4
  %v10934 = vpop.permute.xlu0 %10933
  %10935 = vrot.lane.b32.xlu0 %v1668, 4
  %v10936 = vpop.permute.xlu0 %10935
  %10937 = vrot.lane.b32.xlu0 %v1669, 4
  %v10938 = vpop.permute.xlu0 %10937
  %10939 = vrot.lane.b32.xlu0 %v1670, 4
  %v10940 = vpop.permute.xlu0 %10939
  %10941 = vrot.lane.b32.xlu0 %v1671, 4
  %v10942 = vpop.permute.xlu0 %10941
  %10943 = vrot.lane.b32.xlu0 %v1672, 4
  %v10944 = vpop.permute.xlu0 %10943
  %10945 = vrot.lane.b32.xlu0 %v1673, 4
  %v10946 = vpop.permute.xlu0 %10945
  %10947 = vrot.lane.b32.xlu0 %v1674, 4
  %v10948 = vpop.permute.xlu0 %10947
  %10949 = vrot.lane.b32.xlu0 %v1675, 4
  %v10950 = vpop.permute.xlu0 %10949
  %10951 = vrot.lane.b32.xlu0 %v1676, 4
  %v10952 = vpop.permute.xlu0 %10951
  %10953 = vrot.lane.b32.xlu0 %v1677, 4
  %v10954 = vpop.permute.xlu0 %10953
  %10955 = vrot.lane.b32.xlu0 %v1678, 4
  %v10956 = vpop.permute.xlu0 %10955
  %10957 = vrot.lane.b32.xlu0 %v1679, 4
  %v10958 = vpop.permute.xlu0 %10957
  %10959 = vrot.lane.b32.xlu0 %v1680, 4
  %v10960 = vpop.permute.xlu0 %10959
  %10961 = vrot.lane.b32.xlu0 %v1681, 4
  %v10962 = vpop.permute.xlu0 %10961
  %10963 = vrot.lane.b32.xlu0 %v1682, 4
  %v10964 = vpop.permute.xlu0 %10963
  %10965 = vrot.lane.b32.xlu0 %v1683, 4
  %v10966 = vpop.permute.xlu0 %10965
  %10967 = vrot.lane.b32.xlu0 %v1684, 4
  %v10968 = vpop.permute.xlu0 %10967
  %10969 = vrot.lane.b32.xlu0 %v1685, 4
  %v10970 = vpop.permute.xlu0 %10969
  %10971 = vrot.lane.b32.xlu0 %v1686, 4
  %v10972 = vpop.permute.xlu0 %10971
  %10973 = vrot.lane.b32.xlu0 %v1687, 4
  %v10974 = vpop.permute.xlu0 %10973
  %10975 = vrot.lane.b32.xlu0 %v1688, 4
  %v10976 = vpop.permute.xlu0 %10975
  %10977 = vrot.lane.b32.xlu0 %v1689, 4
  %v10978 = vpop.permute.xlu0 %10977
  %10979 = vrot.lane.b32.xlu0 %v1690, 4
  %v10980 = vpop.permute.xlu0 %10979
  %10981 = vrot.lane.b32.xlu0 %v1691, 4
  %v10982 = vpop.permute.xlu0 %10981
  %10983 = vrot.lane.b32.xlu0 %v1692, 4
  %v10984 = vpop.permute.xlu0 %10983
  %10985 = vrot.lane.b32.xlu0 %v1693, 4
  %v10986 = vpop.permute.xlu0 %10985
  %10987 = vrot.lane.b32.xlu0 %v1694, 4
  %v10988 = vpop.permute.xlu0 %10987
  %10989 = vrot.lane.b32.xlu0 %v1695, 4
  %v10990 = vpop.permute.xlu0 %10989
  %10991 = vrot.lane.b32.xlu0 %v1696, 4
  %v10992 = vpop.permute.xlu0 %10991
  %10993 = vrot.lane.b32.xlu0 %v1697, 4
  %v10994 = vpop.permute.xlu0 %10993
  %10995 = vrot.lane.b32.xlu0 %v1698, 4
  %v10996 = vpop.permute.xlu0 %10995
  %10997 = vrot.lane.b32.xlu0 %v1699, 4
  %v10998 = vpop.permute.xlu0 %10997
  %10999 = vrot.lane.b32.xlu0 %v1700, 4
  %v11000 = vpop.permute.xlu0 %10999
  %11001 = vrot.lane.b32.xlu0 %v1701, 4
  %v11002 = vpop.permute.xlu0 %11001
  %11003 = vrot.lane.b32.xlu0 %v1702, 4
  %v11004 = vpop.permute.xlu0 %11003
  %11005 = vrot.lane.b32.xlu0 %v1703, 4
  %v11006 = vpop.permute.xlu0 %11005
  %11007 = vrot.lane.b32.xlu0 %v1704, 4
  %v11008 = vpop.permute.xlu0 %11007
  %11009 = vrot.lane.b32.xlu0 %v1705, 4
  %v11010 = vpop.permute.xlu0 %11009
  %11011 = vrot.lane.b32.xlu0 %v1706, 4
  %v11012 = vpop.permute.xlu0 %11011
  %11013 = vrot.lane.b32.xlu0 %v1707, 4
  %v11014 = vpop.permute.xlu0 %11013
  %11015 = vrot.lane.b32.xlu0 %v1708, 4
  %v11016 = vpop.permute.xlu0 %11015
  %11017 = vrot.lane.b32.xlu0 %v1709, 4
  %v11018 = vpop.permute.xlu0 %11017
  %11019 = vrot.lane.b32.xlu0 %v1710, 4
  %v11020 = vpop.permute.xlu0 %11019
  %11021 = vrot.lane.b32.xlu0 %v1711, 4
  %v11022 = vpop.permute.xlu0 %11021
  %11023 = vrot.lane.b32.xlu0 %v1712, 4
  %v11024 = vpop.permute.xlu0 %11023
  %11025 = vrot.lane.b32.xlu0 %v1713, 4
  %v11026 = vpop.permute.xlu0 %11025
  %11027 = vrot.lane.b32.xlu0 %v1714, 4
  %v11028 = vpop.permute.xlu0 %11027
  %11029 = vrot.lane.b32.xlu0 %v1715, 4
  %v11030 = vpop.permute.xlu0 %11029
  %11031 = vrot.lane.b32.xlu0 %v1716, 4
  %v11032 = vpop.permute.xlu0 %11031
  %11033 = vrot.lane.b32.xlu0 %v1717, 4
  %v11034 = vpop.permute.xlu0 %11033
  %11035 = vrot.lane.b32.xlu0 %v1718, 4
  %v11036 = vpop.permute.xlu0 %11035
  %11037 = vrot.lane.b32.xlu0 %v1719, 4
  %v11038 = vpop.permute.xlu0 %11037
  %11039 = vrot.lane.b32.xlu0 %v1720, 4
  %v11040 = vpop.permute.xlu0 %11039
  %11041 = vrot.lane.b32.xlu0 %v1721, 4
  %v11042 = vpop.permute.xlu0 %11041
  %11043 = vrot.lane.b32.xlu0 %v1722, 4
  %v11044 = vpop.permute.xlu0 %11043
  %11045 = vrot.lane.b32.xlu0 %v1723, 4
  %v11046 = vpop.permute.xlu0 %11045
  %11047 = vrot.lane.b32.xlu0 %v1724, 4
  %v11048 = vpop.permute.xlu0 %11047
  %11049 = vrot.lane.b32.xlu0 %v1725, 4
  %v11050 = vpop.permute.xlu0 %11049
  %11051 = vrot.lane.b32.xlu0 %v1726, 4
  %v11052 = vpop.permute.xlu0 %11051
  %11053 = vrot.lane.b32.xlu0 %v1727, 4
  %v11054 = vpop.permute.xlu0 %11053
  %11151 = vrot.lane.b32.xlu0 %v1665, 8
  %v11152 = vpop.permute.xlu0 %11151
  %11153 = vrot.lane.b32.xlu0 %v1728, 8
  %v11154 = vpop.permute.xlu0 %11153
  %11155 = vrot.lane.b32.xlu0 %v1667, 8
  %v11156 = vpop.permute.xlu0 %11155
  %11157 = vrot.lane.b32.xlu0 %v1729, 8
  %v11158 = vpop.permute.xlu0 %11157
  %11159 = vrot.lane.b32.xlu0 %v1669, 8
  %v11160 = vpop.permute.xlu0 %11159
  %11161 = vrot.lane.b32.xlu0 %v1730, 8
  %v11162 = vpop.permute.xlu0 %11161
  %11163 = vrot.lane.b32.xlu0 %v1671, 8
  %v11164 = vpop.permute.xlu0 %11163
  %11165 = vrot.lane.b32.xlu0 %v1731, 8
  %v11166 = vpop.permute.xlu0 %11165
  %11167 = vrot.lane.b32.xlu0 %v1673, 8
  %v11168 = vpop.permute.xlu0 %11167
  %11169 = vrot.lane.b32.xlu0 %v1732, 8
  %v11170 = vpop.permute.xlu0 %11169
  %11171 = vrot.lane.b32.xlu0 %v1675, 8
  %v11172 = vpop.permute.xlu0 %11171
  %11173 = vrot.lane.b32.xlu0 %v1733, 8
  %v11174 = vpop.permute.xlu0 %11173
  %11175 = vrot.lane.b32.xlu0 %v1677, 8
  %v11176 = vpop.permute.xlu0 %11175
  %11177 = vrot.lane.b32.xlu0 %v1734, 8
  %v11178 = vpop.permute.xlu0 %11177
  %11179 = vrot.lane.b32.xlu0 %v1679, 8
  %v11180 = vpop.permute.xlu0 %11179
  %11181 = vrot.lane.b32.xlu0 %v1735, 8
  %v11182 = vpop.permute.xlu0 %11181
  %11183 = vrot.lane.b32.xlu0 %v1681, 8
  %v11184 = vpop.permute.xlu0 %11183
  %11185 = vrot.lane.b32.xlu0 %v1736, 8
  %v11186 = vpop.permute.xlu0 %11185
  %11187 = vrot.lane.b32.xlu0 %v1683, 8
  %v11188 = vpop.permute.xlu0 %11187
  %11189 = vrot.lane.b32.xlu0 %v1737, 8
  %v11190 = vpop.permute.xlu0 %11189
  %11191 = vrot.lane.b32.xlu0 %v1685, 8
  %v11192 = vpop.permute.xlu0 %11191
  %11193 = vrot.lane.b32.xlu0 %v1738, 8
  %v11194 = vpop.permute.xlu0 %11193
  %11195 = vrot.lane.b32.xlu0 %v1687, 8
  %v11196 = vpop.permute.xlu0 %11195
  %11197 = vrot.lane.b32.xlu0 %v1739, 8
  %v11198 = vpop.permute.xlu0 %11197
  %11199 = vrot.lane.b32.xlu0 %v1689, 8
  %v11200 = vpop.permute.xlu0 %11199
  %11201 = vrot.lane.b32.xlu0 %v1740, 8
  %v11202 = vpop.permute.xlu0 %11201
  %11203 = vrot.lane.b32.xlu0 %v1691, 8
  %v11204 = vpop.permute.xlu0 %11203
  %11205 = vrot.lane.b32.xlu0 %v1741, 8
  %v11206 = vpop.permute.xlu0 %11205
  %11207 = vrot.lane.b32.xlu0 %v1693, 8
  %v11208 = vpop.permute.xlu0 %11207
  %11209 = vrot.lane.b32.xlu0 %v1742, 8
  %v11210 = vpop.permute.xlu0 %11209
  %11211 = vrot.lane.b32.xlu0 %v1695, 8
  %v11212 = vpop.permute.xlu0 %11211
  %11213 = vrot.lane.b32.xlu0 %v1743, 8
  %v11214 = vpop.permute.xlu0 %11213
  %11215 = vrot.lane.b32.xlu0 %v1697, 8
  %v11216 = vpop.permute.xlu0 %11215
  %11217 = vrot.lane.b32.xlu0 %v1744, 8
  %v11218 = vpop.permute.xlu0 %11217
  %11219 = vrot.lane.b32.xlu0 %v1699, 8
  %v11220 = vpop.permute.xlu0 %11219
  %11221 = vrot.lane.b32.xlu0 %v1745, 8
  %v11222 = vpop.permute.xlu0 %11221
  %11223 = vrot.lane.b32.xlu0 %v1701, 8
  %v11224 = vpop.permute.xlu0 %11223
  %11225 = vrot.lane.b32.xlu0 %v1746, 8
  %v11226 = vpop.permute.xlu0 %11225
  %11227 = vrot.lane.b32.xlu0 %v1703, 8
  %v11228 = vpop.permute.xlu0 %11227
  %11229 = vrot.lane.b32.xlu0 %v1747, 8
  %v11230 = vpop.permute.xlu0 %11229
  %11231 = vrot.lane.b32.xlu0 %v1705, 8
  %v11232 = vpop.permute.xlu0 %11231
  %11233 = vrot.lane.b32.xlu0 %v1748, 8
  %v11234 = vpop.permute.xlu0 %11233
  %11235 = vrot.lane.b32.xlu0 %v1707, 8
  %v11236 = vpop.permute.xlu0 %11235
  %11237 = vrot.lane.b32.xlu0 %v1749, 8
  %v11238 = vpop.permute.xlu0 %11237
  %11239 = vrot.lane.b32.xlu0 %v1709, 8
  %v11240 = vpop.permute.xlu0 %11239
  %11241 = vrot.lane.b32.xlu0 %v1750, 8
  %v11242 = vpop.permute.xlu0 %11241
  %11243 = vrot.lane.b32.xlu0 %v1711, 8
  %v11244 = vpop.permute.xlu0 %11243
  %11245 = vrot.lane.b32.xlu0 %v1751, 8
  %v11246 = vpop.permute.xlu0 %11245
  %11247 = vrot.lane.b32.xlu0 %v1713, 8
  %v11248 = vpop.permute.xlu0 %11247
  %11249 = vrot.lane.b32.xlu0 %v1752, 8
  %v11250 = vpop.permute.xlu0 %11249
  %11251 = vrot.lane.b32.xlu0 %v1715, 8
  %v11252 = vpop.permute.xlu0 %11251
  %11253 = vrot.lane.b32.xlu0 %v1753, 8
  %v11254 = vpop.permute.xlu0 %11253
  %11255 = vrot.lane.b32.xlu0 %v1717, 8
  %v11256 = vpop.permute.xlu0 %11255
  %11257 = vrot.lane.b32.xlu0 %v1754, 8
  %v11258 = vpop.permute.xlu0 %11257
  %11259 = vrot.lane.b32.xlu0 %v1719, 8
  %v11260 = vpop.permute.xlu0 %11259
  %11261 = vrot.lane.b32.xlu0 %v1755, 8
  %v11262 = vpop.permute.xlu0 %11261
  %11263 = vrot.lane.b32.xlu0 %v1721, 8
  %v11264 = vpop.permute.xlu0 %11263
  %11265 = vrot.lane.b32.xlu0 %v1756, 8
  %v11266 = vpop.permute.xlu0 %11265
  %11267 = vrot.lane.b32.xlu0 %v1723, 8
  %v11268 = vpop.permute.xlu0 %11267
  %11269 = vrot.lane.b32.xlu0 %v1757, 8
  %v11270 = vpop.permute.xlu0 %11269
  %11271 = vrot.lane.b32.xlu0 %v1725, 8
  %v11272 = vpop.permute.xlu0 %11271
  %11273 = vrot.lane.b32.xlu0 %v1758, 8
  %v11274 = vpop.permute.xlu0 %11273
  %11275 = vrot.lane.b32.xlu0 %v1727, 8
  %v11276 = vpop.permute.xlu0 %11275
  %11277 = vrot.lane.b32.xlu0 %v1759, 8
  %v11278 = vpop.permute.xlu0 %11277
  %11375 = vrot.lane.b32.xlu0 %v1728, 12
  %v11376 = vpop.permute.xlu0 %11375
  %11377 = vrot.lane.b32.xlu0 %v1760, 12
  %v11378 = vpop.permute.xlu0 %11377
  %11379 = vrot.lane.b32.xlu0 %v1729, 12
  %v11380 = vpop.permute.xlu0 %11379
  %11381 = vrot.lane.b32.xlu0 %v1761, 12
  %v11382 = vpop.permute.xlu0 %11381
  %11383 = vrot.lane.b32.xlu0 %v1730, 12
  %v11384 = vpop.permute.xlu0 %11383
  %11385 = vrot.lane.b32.xlu0 %v1762, 12
  %v11386 = vpop.permute.xlu0 %11385
  %11387 = vrot.lane.b32.xlu0 %v1731, 12
  %v11388 = vpop.permute.xlu0 %11387
  %11389 = vrot.lane.b32.xlu0 %v1763, 12
  %v11390 = vpop.permute.xlu0 %11389
  %11391 = vrot.lane.b32.xlu0 %v1732, 12
  %v11392 = vpop.permute.xlu0 %11391
  %11393 = vrot.lane.b32.xlu0 %v1764, 12
  %v11394 = vpop.permute.xlu0 %11393
  %11395 = vrot.lane.b32.xlu0 %v1733, 12
  %v11396 = vpop.permute.xlu0 %11395
  %11397 = vrot.lane.b32.xlu0 %v1765, 12
  %v11398 = vpop.permute.xlu0 %11397
  %11399 = vrot.lane.b32.xlu0 %v1734, 12
  %v11400 = vpop.permute.xlu0 %11399
  %11401 = vrot.lane.b32.xlu0 %v1766, 12
  %v11402 = vpop.permute.xlu0 %11401
  %11403 = vrot.lane.b32.xlu0 %v1735, 12
  %v11404 = vpop.permute.xlu0 %11403
  %11405 = vrot.lane.b32.xlu0 %v1767, 12
  %v11406 = vpop.permute.xlu0 %11405
  %11407 = vrot.lane.b32.xlu0 %v1736, 12
  %v11408 = vpop.permute.xlu0 %11407
  %11409 = vrot.lane.b32.xlu0 %v1768, 12
  %v11410 = vpop.permute.xlu0 %11409
  %11411 = vrot.lane.b32.xlu0 %v1737, 12
  %v11412 = vpop.permute.xlu0 %11411
  %11413 = vrot.lane.b32.xlu0 %v1769, 12
  %v11414 = vpop.permute.xlu0 %11413
  %11415 = vrot.lane.b32.xlu0 %v1738, 12
  %v11416 = vpop.permute.xlu0 %11415
  %11417 = vrot.lane.b32.xlu0 %v1770, 12
  %v11418 = vpop.permute.xlu0 %11417
  %11419 = vrot.lane.b32.xlu0 %v1739, 12
  %v11420 = vpop.permute.xlu0 %11419
  %11421 = vrot.lane.b32.xlu0 %v1771, 12
  %v11422 = vpop.permute.xlu0 %11421
  %11423 = vrot.lane.b32.xlu0 %v1740, 12
  %v11424 = vpop.permute.xlu0 %11423
  %11425 = vrot.lane.b32.xlu0 %v1772, 12
  %v11426 = vpop.permute.xlu0 %11425
  %11427 = vrot.lane.b32.xlu0 %v1741, 12
  %v11428 = vpop.permute.xlu0 %11427
  %11429 = vrot.lane.b32.xlu0 %v1773, 12
  %v11430 = vpop.permute.xlu0 %11429
  %11431 = vrot.lane.b32.xlu0 %v1742, 12
  %v11432 = vpop.permute.xlu0 %11431
  %11433 = vrot.lane.b32.xlu0 %v1774, 12
  %v11434 = vpop.permute.xlu0 %11433
  %11435 = vrot.lane.b32.xlu0 %v1743, 12
  %v11436 = vpop.permute.xlu0 %11435
  %11437 = vrot.lane.b32.xlu0 %v1775, 12
  %v11438 = vpop.permute.xlu0 %11437
  %11439 = vrot.lane.b32.xlu0 %v1744, 12
  %v11440 = vpop.permute.xlu0 %11439
  %11441 = vrot.lane.b32.xlu0 %v1776, 12
  %v11442 = vpop.permute.xlu0 %11441
  %11443 = vrot.lane.b32.xlu0 %v1745, 12
  %v11444 = vpop.permute.xlu0 %11443
  %11445 = vrot.lane.b32.xlu0 %v1777, 12
  %v11446 = vpop.permute.xlu0 %11445
  %11447 = vrot.lane.b32.xlu0 %v1746, 12
  %v11448 = vpop.permute.xlu0 %11447
  %11449 = vrot.lane.b32.xlu0 %v1778, 12
  %v11450 = vpop.permute.xlu0 %11449
  %11451 = vrot.lane.b32.xlu0 %v1747, 12
  %v11452 = vpop.permute.xlu0 %11451
  %11453 = vrot.lane.b32.xlu0 %v1779, 12
  %v11454 = vpop.permute.xlu0 %11453
  %11455 = vrot.lane.b32.xlu0 %v1748, 12
  %v11456 = vpop.permute.xlu0 %11455
  %11457 = vrot.lane.b32.xlu0 %v1780, 12
  %v11458 = vpop.permute.xlu0 %11457
  %11459 = vrot.lane.b32.xlu0 %v1749, 12
  %v11460 = vpop.permute.xlu0 %11459
  %11461 = vrot.lane.b32.xlu0 %v1781, 12
  %v11462 = vpop.permute.xlu0 %11461
  %11463 = vrot.lane.b32.xlu0 %v1750, 12
  %v11464 = vpop.permute.xlu0 %11463
  %11465 = vrot.lane.b32.xlu0 %v1782, 12
  %v11466 = vpop.permute.xlu0 %11465
  %11467 = vrot.lane.b32.xlu0 %v1751, 12
  %v11468 = vpop.permute.xlu0 %11467
  %11469 = vrot.lane.b32.xlu0 %v1783, 12
  %v11470 = vpop.permute.xlu0 %11469
  %11471 = vrot.lane.b32.xlu0 %v1752, 12
  %v11472 = vpop.permute.xlu0 %11471
  %11473 = vrot.lane.b32.xlu0 %v1784, 12
  %v11474 = vpop.permute.xlu0 %11473
  %11475 = vrot.lane.b32.xlu0 %v1753, 12
  %v11476 = vpop.permute.xlu0 %11475
  %11477 = vrot.lane.b32.xlu0 %v1785, 12
  %v11478 = vpop.permute.xlu0 %11477
  %11479 = vrot.lane.b32.xlu0 %v1754, 12
  %v11480 = vpop.permute.xlu0 %11479
  %11481 = vrot.lane.b32.xlu0 %v1786, 12
  %v11482 = vpop.permute.xlu0 %11481
  %11483 = vrot.lane.b32.xlu0 %v1755, 12
  %v11484 = vpop.permute.xlu0 %11483
  %11485 = vrot.lane.b32.xlu0 %v1787, 12
  %v11486 = vpop.permute.xlu0 %11485
  %11487 = vrot.lane.b32.xlu0 %v1756, 12
  %v11488 = vpop.permute.xlu0 %11487
  %11489 = vrot.lane.b32.xlu0 %v1788, 12
  %v11490 = vpop.permute.xlu0 %11489
  %11491 = vrot.lane.b32.xlu0 %v1757, 12
  %v11492 = vpop.permute.xlu0 %11491
  %11493 = vrot.lane.b32.xlu0 %v1789, 12
  %v11494 = vpop.permute.xlu0 %11493
  %11495 = vrot.lane.b32.xlu0 %v1758, 12
  %v11496 = vpop.permute.xlu0 %11495
  %11497 = vrot.lane.b32.xlu0 %v1790, 12
  %v11498 = vpop.permute.xlu0 %11497
  %11499 = vrot.lane.b32.xlu0 %v1759, 12
  %v11500 = vpop.permute.xlu0 %11499
  %11501 = vrot.lane.b32.xlu0 %v1791, 12
  %v11502 = vpop.permute.xlu0 %11501
  %v11567 = vsel %vm5504, %v283, %v10928
  %v11568 = vsel %vm5504, %v1631, %v10930
  %v11569 = vsel %vm5504, %v285, %v10932
  %v11570 = vsel %vm5504, %v1632, %v10934
  %v11571 = vsel %vm5504, %v287, %v10936
  %v11572 = vsel %vm5504, %v1633, %v10938
  %v11573 = vsel %vm5504, %v289, %v10940
  %v11574 = vsel %vm5504, %v1634, %v10942
  %v11575 = vsel %vm5504, %v291, %v10944
  %v11576 = vsel %vm5504, %v1635, %v10946
  %v11577 = vsel %vm5504, %v293, %v10948
  %v11578 = vsel %vm5504, %v1636, %v10950
  %v11579 = vsel %vm5504, %v295, %v10952
  %v11580 = vsel %vm5504, %v1637, %v10954
  %v11581 = vsel %vm5504, %v297, %v10956
  %v11582 = vsel %vm5504, %v1638, %v10958
  %v11583 = vsel %vm5504, %v299, %v10960
  %v11584 = vsel %vm5504, %v1639, %v10962
  %v11585 = vsel %vm5504, %v301, %v10964
  %v11586 = vsel %vm5504, %v1640, %v10966
  %v11587 = vsel %vm5504, %v303, %v10968
  %v11588 = vsel %vm5504, %v1641, %v10970
  %v11589 = vsel %vm5504, %v305, %v10972
  %v11590 = vsel %vm5504, %v1642, %v10974
  %v11591 = vsel %vm5504, %v307, %v10976
  %v11592 = vsel %vm5504, %v1643, %v10978
  %v11593 = vsel %vm5504, %v309, %v10980
  %v11594 = vsel %vm5504, %v1644, %v10982
  %v11595 = vsel %vm5504, %v311, %v10984
  %v11596 = vsel %vm5504, %v1645, %v10986
  %v11597 = vsel %vm5504, %v313, %v10988
  %v11598 = vsel %vm5504, %v1646, %v10990
  %v11599 = vsel %vm5504, %v315, %v10992
  %v11600 = vsel %vm5504, %v1647, %v10994
  %v11601 = vsel %vm5504, %v317, %v10996
  %v11602 = vsel %vm5504, %v1648, %v10998
  %v11603 = vsel %vm5504, %v319, %v11000
  %v11604 = vsel %vm5504, %v1649, %v11002
  %v11605 = vsel %vm5504, %v321, %v11004
  %v11606 = vsel %vm5504, %v1650, %v11006
  %v11607 = vsel %vm5504, %v323, %v11008
  %v11608 = vsel %vm5504, %v1651, %v11010
  %v11609 = vsel %vm5504, %v325, %v11012
  %v11610 = vsel %vm5504, %v1652, %v11014
  %v11611 = vsel %vm5504, %v327, %v11016
  %v11612 = vsel %vm5504, %v1653, %v11018
  %v11613 = vsel %vm5504, %v329, %v11020
  %v11614 = vsel %vm5504, %v1654, %v11022
  %v11615 = vsel %vm5504, %v331, %v11024
  %v11616 = vsel %vm5504, %v1655, %v11026
  %v11617 = vsel %vm5504, %v333, %v11028
  %v11618 = vsel %vm5504, %v1656, %v11030
  %v11619 = vsel %vm5504, %v335, %v11032
  %v11620 = vsel %vm5504, %v1657, %v11034
  %v11621 = vsel %vm5504, %v337, %v11036
  %v11622 = vsel %vm5504, %v1658, %v11038
  %v11623 = vsel %vm5504, %v339, %v11040
  %v11624 = vsel %vm5504, %v1659, %v11042
  %v11625 = vsel %vm5504, %v341, %v11044
  %v11626 = vsel %vm5504, %v1660, %v11046
  %v11627 = vsel %vm5504, %v343, %v11048
  %v11628 = vsel %vm5504, %v1661, %v11050
  %v11629 = vsel %vm5504, %v345, %v11052
  %v11630 = vsel %vm5504, %v1662, %v11054
  %v11631 = vsel %vm5569, %v11567, %v11152
  %v11632 = vsel %vm5569, %v11568, %v11154
  %v11633 = vsel %vm5569, %v11569, %v11156
  %v11634 = vsel %vm5569, %v11570, %v11158
  %v11635 = vsel %vm5569, %v11571, %v11160
  %v11636 = vsel %vm5569, %v11572, %v11162
  %v11637 = vsel %vm5569, %v11573, %v11164
  %v11638 = vsel %vm5569, %v11574, %v11166
  %v11639 = vsel %vm5569, %v11575, %v11168
  %v11640 = vsel %vm5569, %v11576, %v11170
  %v11641 = vsel %vm5569, %v11577, %v11172
  %v11642 = vsel %vm5569, %v11578, %v11174
  %v11643 = vsel %vm5569, %v11579, %v11176
  %v11644 = vsel %vm5569, %v11580, %v11178
  %v11645 = vsel %vm5569, %v11581, %v11180
  %v11646 = vsel %vm5569, %v11582, %v11182
  %v11647 = vsel %vm5569, %v11583, %v11184
  %v11648 = vsel %vm5569, %v11584, %v11186
  %v11649 = vsel %vm5569, %v11585, %v11188
  %v11650 = vsel %vm5569, %v11586, %v11190
  %v11651 = vsel %vm5569, %v11587, %v11192
  %v11652 = vsel %vm5569, %v11588, %v11194
  %v11653 = vsel %vm5569, %v11589, %v11196
  %v11654 = vsel %vm5569, %v11590, %v11198
  %v11655 = vsel %vm5569, %v11591, %v11200
  %v11656 = vsel %vm5569, %v11592, %v11202
  %v11657 = vsel %vm5569, %v11593, %v11204
  %v11658 = vsel %vm5569, %v11594, %v11206
  %v11659 = vsel %vm5569, %v11595, %v11208
  %v11660 = vsel %vm5569, %v11596, %v11210
  %v11661 = vsel %vm5569, %v11597, %v11212
  %v11662 = vsel %vm5569, %v11598, %v11214
  %v11663 = vsel %vm5569, %v11599, %v11216
  %v11664 = vsel %vm5569, %v11600, %v11218
  %v11665 = vsel %vm5569, %v11601, %v11220
  %v11666 = vsel %vm5569, %v11602, %v11222
  %v11667 = vsel %vm5569, %v11603, %v11224
  %v11668 = vsel %vm5569, %v11604, %v11226
  %v11669 = vsel %vm5569, %v11605, %v11228
  %v11670 = vsel %vm5569, %v11606, %v11230
  %v11671 = vsel %vm5569, %v11607, %v11232
  %v11672 = vsel %vm5569, %v11608, %v11234
  %v11673 = vsel %vm5569, %v11609, %v11236
  %v11674 = vsel %vm5569, %v11610, %v11238
  %v11675 = vsel %vm5569, %v11611, %v11240
  %v11676 = vsel %vm5569, %v11612, %v11242
  %v11677 = vsel %vm5569, %v11613, %v11244
  %v11678 = vsel %vm5569, %v11614, %v11246
  %v11679 = vsel %vm5569, %v11615, %v11248
  %v11680 = vsel %vm5569, %v11616, %v11250
  %v11681 = vsel %vm5569, %v11617, %v11252
  %v11682 = vsel %vm5569, %v11618, %v11254
  %v11683 = vsel %vm5569, %v11619, %v11256
  %v11684 = vsel %vm5569, %v11620, %v11258
  %v11685 = vsel %vm5569, %v11621, %v11260
  %v11686 = vsel %vm5569, %v11622, %v11262
  %v11687 = vsel %vm5569, %v11623, %v11264
  %v11688 = vsel %vm5569, %v11624, %v11266
  %v11689 = vsel %vm5569, %v11625, %v11268
  %v11690 = vsel %vm5569, %v11626, %v11270
  %v11691 = vsel %vm5569, %v11627, %v11272
  %v11692 = vsel %vm5569, %v11628, %v11274
  %v11693 = vsel %vm5569, %v11629, %v11276
  %v11694 = vsel %vm5569, %v11630, %v11278
  %v11695 = vsel %vm5634, %v11631, %v11376
  %v11696 = vsel %vm5634, %v11632, %v11378
  %v11697 = vsel %vm5634, %v11633, %v11380
  %v11698 = vsel %vm5634, %v11634, %v11382
  %v11699 = vsel %vm5634, %v11635, %v11384
  %v11700 = vsel %vm5634, %v11636, %v11386
  %v11701 = vsel %vm5634, %v11637, %v11388
  %v11702 = vsel %vm5634, %v11638, %v11390
  %v11703 = vsel %vm5634, %v11639, %v11392
  %v11704 = vsel %vm5634, %v11640, %v11394
  %v11705 = vsel %vm5634, %v11641, %v11396
  %v11706 = vsel %vm5634, %v11642, %v11398
  %v11707 = vsel %vm5634, %v11643, %v11400
  %v11708 = vsel %vm5634, %v11644, %v11402
  %v11709 = vsel %vm5634, %v11645, %v11404
  %v11710 = vsel %vm5634, %v11646, %v11406
  %v11711 = vsel %vm5634, %v11647, %v11408
  %v11712 = vsel %vm5634, %v11648, %v11410
  %v11713 = vsel %vm5634, %v11649, %v11412
  %v11714 = vsel %vm5634, %v11650, %v11414
  %v11715 = vsel %vm5634, %v11651, %v11416
  %v11716 = vsel %vm5634, %v11652, %v11418
  %v11717 = vsel %vm5634, %v11653, %v11420
  %v11718 = vsel %vm5634, %v11654, %v11422
  %v11719 = vsel %vm5634, %v11655, %v11424
  %v11720 = vsel %vm5634, %v11656, %v11426
  %v11721 = vsel %vm5634, %v11657, %v11428
  %v11722 = vsel %vm5634, %v11658, %v11430
  %v11723 = vsel %vm5634, %v11659, %v11432
  %v11724 = vsel %vm5634, %v11660, %v11434
  %v11725 = vsel %vm5634, %v11661, %v11436
  %v11726 = vsel %vm5634, %v11662, %v11438
  %v11727 = vsel %vm5634, %v11663, %v11440
  %v11728 = vsel %vm5634, %v11664, %v11442
  %v11729 = vsel %vm5634, %v11665, %v11444
  %v11730 = vsel %vm5634, %v11666, %v11446
  %v11731 = vsel %vm5634, %v11667, %v11448
  %v11732 = vsel %vm5634, %v11668, %v11450
  %v11733 = vsel %vm5634, %v11669, %v11452
  %v11734 = vsel %vm5634, %v11670, %v11454
  %v11735 = vsel %vm5634, %v11671, %v11456
  %v11736 = vsel %vm5634, %v11672, %v11458
  %v11737 = vsel %vm5634, %v11673, %v11460
  %v11738 = vsel %vm5634, %v11674, %v11462
  %v11739 = vsel %vm5634, %v11675, %v11464
  %v11740 = vsel %vm5634, %v11676, %v11466
  %v11741 = vsel %vm5634, %v11677, %v11468
  %v11742 = vsel %vm5634, %v11678, %v11470
  %v11743 = vsel %vm5634, %v11679, %v11472
  %v11744 = vsel %vm5634, %v11680, %v11474
  %v11745 = vsel %vm5634, %v11681, %v11476
  %v11746 = vsel %vm5634, %v11682, %v11478
  %v11747 = vsel %vm5634, %v11683, %v11480
  %v11748 = vsel %vm5634, %v11684, %v11482
  %v11749 = vsel %vm5634, %v11685, %v11484
  %v11750 = vsel %vm5634, %v11686, %v11486
  %v11751 = vsel %vm5634, %v11687, %v11488
  %v11752 = vsel %vm5634, %v11688, %v11490
  %v11753 = vsel %vm5634, %v11689, %v11492
  %v11754 = vsel %vm5634, %v11690, %v11494
  %v11755 = vsel %vm5634, %v11691, %v11496
  %v11756 = vsel %vm5634, %v11692, %v11498
  %v11757 = vsel %vm5634, %v11693, %v11500
  %v11758 = vsel %vm5634, %v11694, %v11502
  %11823 = vrot.lane.b32.xlu0 %v10799, 64
  %v11824 = vpop.permute.xlu0 %11823
  %11825 = vrot.lane.b32.xlu0 %v10800, 64
  %v11826 = vpop.permute.xlu0 %11825
  %11827 = vrot.lane.b32.xlu0 %v10801, 64
  %v11828 = vpop.permute.xlu0 %11827
  %11829 = vrot.lane.b32.xlu0 %v10802, 64
  %v11830 = vpop.permute.xlu0 %11829
  %11831 = vrot.lane.b32.xlu0 %v10803, 64
  %v11832 = vpop.permute.xlu0 %11831
  %11833 = vrot.lane.b32.xlu0 %v10804, 64
  %v11834 = vpop.permute.xlu0 %11833
  %11835 = vrot.lane.b32.xlu0 %v10805, 64
  %v11836 = vpop.permute.xlu0 %11835
  %11837 = vrot.lane.b32.xlu0 %v10806, 64
  %v11838 = vpop.permute.xlu0 %11837
  %11839 = vrot.lane.b32.xlu0 %v10807, 64
  %v11840 = vpop.permute.xlu0 %11839
  %11841 = vrot.lane.b32.xlu0 %v10808, 64
  %v11842 = vpop.permute.xlu0 %11841
  %11843 = vrot.lane.b32.xlu0 %v10809, 64
  %v11844 = vpop.permute.xlu0 %11843
  %11845 = vrot.lane.b32.xlu0 %v10810, 64
  %v11846 = vpop.permute.xlu0 %11845
  %11847 = vrot.lane.b32.xlu0 %v10811, 64
  %v11848 = vpop.permute.xlu0 %11847
  %11849 = vrot.lane.b32.xlu0 %v10812, 64
  %v11850 = vpop.permute.xlu0 %11849
  %11851 = vrot.lane.b32.xlu0 %v10813, 64
  %v11852 = vpop.permute.xlu0 %11851
  %11853 = vrot.lane.b32.xlu0 %v10814, 64
  %v11854 = vpop.permute.xlu0 %11853
  %11855 = vrot.lane.b32.xlu0 %v10815, 64
  %v11856 = vpop.permute.xlu0 %11855
  %11857 = vrot.lane.b32.xlu0 %v10816, 64
  %v11858 = vpop.permute.xlu0 %11857
  %11859 = vrot.lane.b32.xlu0 %v10817, 64
  %v11860 = vpop.permute.xlu0 %11859
  %11861 = vrot.lane.b32.xlu0 %v10818, 64
  %v11862 = vpop.permute.xlu0 %11861
  %11863 = vrot.lane.b32.xlu0 %v10819, 64
  %v11864 = vpop.permute.xlu0 %11863
  %11865 = vrot.lane.b32.xlu0 %v10820, 64
  %v11866 = vpop.permute.xlu0 %11865
  %11867 = vrot.lane.b32.xlu0 %v10821, 64
  %v11868 = vpop.permute.xlu0 %11867
  %11869 = vrot.lane.b32.xlu0 %v10822, 64
  %v11870 = vpop.permute.xlu0 %11869
  %11871 = vrot.lane.b32.xlu0 %v10823, 64
  %v11872 = vpop.permute.xlu0 %11871
  %11873 = vrot.lane.b32.xlu0 %v10824, 64
  %v11874 = vpop.permute.xlu0 %11873
  %11875 = vrot.lane.b32.xlu0 %v10825, 64
  %v11876 = vpop.permute.xlu0 %11875
  %11877 = vrot.lane.b32.xlu0 %v10826, 64
  %v11878 = vpop.permute.xlu0 %11877
  %11879 = vrot.lane.b32.xlu0 %v10827, 64
  %v11880 = vpop.permute.xlu0 %11879
  %11881 = vrot.lane.b32.xlu0 %v10828, 64
  %v11882 = vpop.permute.xlu0 %11881
  %11883 = vrot.lane.b32.xlu0 %v10829, 64
  %v11884 = vpop.permute.xlu0 %11883
  %11885 = vrot.lane.b32.xlu0 %v10830, 64
  %v11886 = vpop.permute.xlu0 %11885
  %11887 = vrot.lane.b32.xlu0 %v10831, 64
  %v11888 = vpop.permute.xlu0 %11887
  %11889 = vrot.lane.b32.xlu0 %v10832, 64
  %v11890 = vpop.permute.xlu0 %11889
  %11891 = vrot.lane.b32.xlu0 %v10833, 64
  %v11892 = vpop.permute.xlu0 %11891
  %11893 = vrot.lane.b32.xlu0 %v10834, 64
  %v11894 = vpop.permute.xlu0 %11893
  %11895 = vrot.lane.b32.xlu0 %v10835, 64
  %v11896 = vpop.permute.xlu0 %11895
  %11897 = vrot.lane.b32.xlu0 %v10836, 64
  %v11898 = vpop.permute.xlu0 %11897
  %11899 = vrot.lane.b32.xlu0 %v10837, 64
  %v11900 = vpop.permute.xlu0 %11899
  %11901 = vrot.lane.b32.xlu0 %v10838, 64
  %v11902 = vpop.permute.xlu0 %11901
  %11903 = vrot.lane.b32.xlu0 %v10839, 64
  %v11904 = vpop.permute.xlu0 %11903
  %11905 = vrot.lane.b32.xlu0 %v10840, 64
  %v11906 = vpop.permute.xlu0 %11905
  %11907 = vrot.lane.b32.xlu0 %v10841, 64
  %v11908 = vpop.permute.xlu0 %11907
  %11909 = vrot.lane.b32.xlu0 %v10842, 64
  %v11910 = vpop.permute.xlu0 %11909
  %11911 = vrot.lane.b32.xlu0 %v10843, 64
  %v11912 = vpop.permute.xlu0 %11911
  %11913 = vrot.lane.b32.xlu0 %v10844, 64
  %v11914 = vpop.permute.xlu0 %11913
  %11915 = vrot.lane.b32.xlu0 %v10845, 64
  %v11916 = vpop.permute.xlu0 %11915
  %11917 = vrot.lane.b32.xlu0 %v10846, 64
  %v11918 = vpop.permute.xlu0 %11917
  %11919 = vrot.lane.b32.xlu0 %v10847, 64
  %v11920 = vpop.permute.xlu0 %11919
  %11921 = vrot.lane.b32.xlu0 %v10848, 64
  %v11922 = vpop.permute.xlu0 %11921
  %11923 = vrot.lane.b32.xlu0 %v10849, 64
  %v11924 = vpop.permute.xlu0 %11923
  %11925 = vrot.lane.b32.xlu0 %v10850, 64
  %v11926 = vpop.permute.xlu0 %11925
  %11927 = vrot.lane.b32.xlu0 %v10851, 64
  %v11928 = vpop.permute.xlu0 %11927
  %11929 = vrot.lane.b32.xlu0 %v10852, 64
  %v11930 = vpop.permute.xlu0 %11929
  %11931 = vrot.lane.b32.xlu0 %v10853, 64
  %v11932 = vpop.permute.xlu0 %11931
  %11933 = vrot.lane.b32.xlu0 %v10854, 64
  %v11934 = vpop.permute.xlu0 %11933
  %11935 = vrot.lane.b32.xlu0 %v10855, 64
  %v11936 = vpop.permute.xlu0 %11935
  %11937 = vrot.lane.b32.xlu0 %v10856, 64
  %v11938 = vpop.permute.xlu0 %11937
  %11939 = vrot.lane.b32.xlu0 %v10857, 64
  %v11940 = vpop.permute.xlu0 %11939
  %11941 = vrot.lane.b32.xlu0 %v10858, 64
  %v11942 = vpop.permute.xlu0 %11941
  %11943 = vrot.lane.b32.xlu0 %v10859, 64
  %v11944 = vpop.permute.xlu0 %11943
  %11945 = vrot.lane.b32.xlu0 %v10860, 64
  %v11946 = vpop.permute.xlu0 %11945
  %11947 = vrot.lane.b32.xlu0 %v10861, 64
  %v11948 = vpop.permute.xlu0 %11947
  %11949 = vrot.lane.b32.xlu0 %v10862, 64
  %v11950 = vpop.permute.xlu0 %11949
  %vm12015 = vcmask 523264
  %v12016 = vsel %vm12015, %v6415, %v11824
  %v12017 = vsel %vm12015, %v6416, %v11826
  %v12018 = vsel %vm12015, %v6417, %v11828
  %v12019 = vsel %vm12015, %v6418, %v11830
  %v12020 = vsel %vm12015, %v6419, %v11832
  %v12021 = vsel %vm12015, %v6420, %v11834
  %v12022 = vsel %vm12015, %v6421, %v11836
  %v12023 = vsel %vm12015, %v6422, %v11838
  %v12024 = vsel %vm12015, %v6423, %v11840
  %v12025 = vsel %vm12015, %v6424, %v11842
  %v12026 = vsel %vm12015, %v6425, %v11844
  %v12027 = vsel %vm12015, %v6426, %v11846
  %v12028 = vsel %vm12015, %v6427, %v11848
  %v12029 = vsel %vm12015, %v6428, %v11850
  %v12030 = vsel %vm12015, %v6429, %v11852
  %v12031 = vsel %vm12015, %v6430, %v11854
  %v12032 = vsel %vm12015, %v6431, %v11856
  %v12033 = vsel %vm12015, %v6432, %v11858
  %v12034 = vsel %vm12015, %v6433, %v11860
  %v12035 = vsel %vm12015, %v6434, %v11862
  %v12036 = vsel %vm12015, %v6435, %v11864
  %v12037 = vsel %vm12015, %v6436, %v11866
  %v12038 = vsel %vm12015, %v6437, %v11868
  %v12039 = vsel %vm12015, %v6438, %v11870
  %v12040 = vsel %vm12015, %v6439, %v11872
  %v12041 = vsel %vm12015, %v6440, %v11874
  %v12042 = vsel %vm12015, %v6441, %v11876
  %v12043 = vsel %vm12015, %v6442, %v11878
  %v12044 = vsel %vm12015, %v6443, %v11880
  %v12045 = vsel %vm12015, %v6444, %v11882
  %v12046 = vsel %vm12015, %v6445, %v11884
  %v12047 = vsel %vm12015, %v6446, %v11886
  %v12048 = vsel %vm12015, %v6447, %v11888
  %v12049 = vsel %vm12015, %v6448, %v11890
  %v12050 = vsel %vm12015, %v6449, %v11892
  %v12051 = vsel %vm12015, %v6450, %v11894
  %v12052 = vsel %vm12015, %v6451, %v11896
  %v12053 = vsel %vm12015, %v6452, %v11898
  %v12054 = vsel %vm12015, %v6453, %v11900
  %v12055 = vsel %vm12015, %v6454, %v11902
  %v12056 = vsel %vm12015, %v6455, %v11904
  %v12057 = vsel %vm12015, %v6456, %v11906
  %v12058 = vsel %vm12015, %v6457, %v11908
  %v12059 = vsel %vm12015, %v6458, %v11910
  %v12060 = vsel %vm12015, %v6459, %v11912
  %v12061 = vsel %vm12015, %v6460, %v11914
  %v12062 = vsel %vm12015, %v6461, %v11916
  %v12063 = vsel %vm12015, %v6462, %v11918
  %v12064 = vsel %vm12015, %v6463, %v11920
  %v12065 = vsel %vm12015, %v6464, %v11922
  %v12066 = vsel %vm12015, %v6465, %v11924
  %v12067 = vsel %vm12015, %v6466, %v11926
  %v12068 = vsel %vm12015, %v6467, %v11928
  %v12069 = vsel %vm12015, %v6468, %v11930
  %v12070 = vsel %vm12015, %v6469, %v11932
  %v12071 = vsel %vm12015, %v6470, %v11934
  %v12072 = vsel %vm12015, %v6471, %v11936
  %v12073 = vsel %vm12015, %v6472, %v11938
  %v12074 = vsel %vm12015, %v6473, %v11940
  %v12075 = vsel %vm12015, %v6474, %v11942
  %v12076 = vsel %vm12015, %v6475, %v11944
  %v12077 = vsel %vm12015, %v6476, %v11946
  %v12078 = vsel %vm12015, %v6477, %v11948
  %v12079 = vsel %vm12015, %v6478, %v11950
  %v12080 = vpack.c.bf16 %v12017, %v12016
  %v12081 = vpack.c.bf16 %v11696, %v11695
  %v12082 = vpack.c.bf16 %v12019, %v12018
  %v12083 = vpack.c.bf16 %v11698, %v11697
  %v12084 = vpack.c.bf16 %v12021, %v12020
  %v12085 = vpack.c.bf16 %v11700, %v11699
  %v12086 = vpack.c.bf16 %v12023, %v12022
  %v12087 = vpack.c.bf16 %v11702, %v11701
  %v12088 = vpack.c.bf16 %v12025, %v12024
  %v12089 = vpack.c.bf16 %v11704, %v11703
  %v12090 = vpack.c.bf16 %v12027, %v12026
  %v12091 = vpack.c.bf16 %v11706, %v11705
  %v12092 = vpack.c.bf16 %v12029, %v12028
  %v12093 = vpack.c.bf16 %v11708, %v11707
  %v12094 = vpack.c.bf16 %v12031, %v12030
  %v12095 = vpack.c.bf16 %v11710, %v11709
  %v12096 = vpack.c.bf16 %v12033, %v12032
  %v12097 = vpack.c.bf16 %v11712, %v11711
  %v12098 = vpack.c.bf16 %v12035, %v12034
  %v12099 = vpack.c.bf16 %v11714, %v11713
  %v12100 = vpack.c.bf16 %v12037, %v12036
  %v12101 = vpack.c.bf16 %v11716, %v11715
  %v12102 = vpack.c.bf16 %v12039, %v12038
  %v12103 = vpack.c.bf16 %v11718, %v11717
  %v12104 = vpack.c.bf16 %v12041, %v12040
  %v12105 = vpack.c.bf16 %v11720, %v11719
  %v12106 = vpack.c.bf16 %v12043, %v12042
  %v12107 = vpack.c.bf16 %v11722, %v11721
  %v12108 = vpack.c.bf16 %v12045, %v12044
  %v12109 = vpack.c.bf16 %v11724, %v11723
  %v12110 = vpack.c.bf16 %v12047, %v12046
  %v12111 = vpack.c.bf16 %v11726, %v11725
  %v12112 = vpack.c.bf16 %v12049, %v12048
  %v12113 = vpack.c.bf16 %v11728, %v11727
  %v12114 = vpack.c.bf16 %v12051, %v12050
  %v12115 = vpack.c.bf16 %v11730, %v11729
  %v12116 = vpack.c.bf16 %v12053, %v12052
  %v12117 = vpack.c.bf16 %v11732, %v11731
  %v12118 = vpack.c.bf16 %v12055, %v12054
  %v12119 = vpack.c.bf16 %v11734, %v11733
  %v12120 = vpack.c.bf16 %v12057, %v12056
  %v12121 = vpack.c.bf16 %v11736, %v11735
  %v12122 = vpack.c.bf16 %v12059, %v12058
  %v12123 = vpack.c.bf16 %v11738, %v11737
  %v12124 = vpack.c.bf16 %v12061, %v12060
  %v12125 = vpack.c.bf16 %v11740, %v11739
  %v12126 = vpack.c.bf16 %v12063, %v12062
  %v12127 = vpack.c.bf16 %v11742, %v11741
  %v12128 = vpack.c.bf16 %v12065, %v12064
  %v12129 = vpack.c.bf16 %v11744, %v11743
  %v12130 = vpack.c.bf16 %v12067, %v12066
  %v12131 = vpack.c.bf16 %v11746, %v11745
  %v12132 = vpack.c.bf16 %v12069, %v12068
  %v12133 = vpack.c.bf16 %v11748, %v11747
  %v12134 = vpack.c.bf16 %v12071, %v12070
  %v12135 = vpack.c.bf16 %v11750, %v11749
  %v12136 = vpack.c.bf16 %v12073, %v12072
  %v12137 = vpack.c.bf16 %v11752, %v11751
  %v12138 = vpack.c.bf16 %v12075, %v12074
  %v12139 = vpack.c.bf16 %v11754, %v11753
  %v12140 = vpack.c.bf16 %v12077, %v12076
  %v12141 = vpack.c.bf16 %v11756, %v11755
  %v12142 = vpack.c.bf16 %v12079, %v12078
  %v12143 = vpack.c.bf16 %v11758, %v11757
  %v12144 = vld [vmem:[%s1] sm:$0xf]
  %v12145 = vld [vmem:[%s1 + $0x4] sm:$0xf]
  %v12146 = vld [vmem:[%s1 + $0x8] sm:$0xf]
  %v12147 = vld [vmem:[%s1 + $0xc] sm:$0xf]
  %v12148 = vld [vmem:[%s1 + $0x10] sm:$0xf]
  %v12149 = vld [vmem:[%s1 + $0x14] sm:$0xf]
  %v12150 = vld [vmem:[%s1 + $0x18] sm:$0xf]
  %v12151 = vld [vmem:[%s1 + $0x1c] sm:$0xf]
  %v12152 = vld [vmem:[%s1 + $0x20] sm:$0xf]
  %v12153 = vld [vmem:[%s1 + $0x24] sm:$0xf]
  %v12154 = vld [vmem:[%s1 + $0x28] sm:$0xf]
  %v12155 = vld [vmem:[%s1 + $0x2c] sm:$0xf]
  %v12156 = vld [vmem:[%s1 + $0x30] sm:$0xf]
  %v12157 = vld [vmem:[%s1 + $0x34] sm:$0xf]
  %v12158 = vld [vmem:[%s1 + $0x38] sm:$0xf]
  %v12159 = vld [vmem:[%s1 + $0x3c] sm:$0xf]
  %v12160 = vld [vmem:[%s1 + $0x40] sm:$0xf]
  %v12161 = vld [vmem:[%s1 + $0x44] sm:$0xf]
  %v12180 = vunpack.c.l.b16 %v12144
  %v12181 = vunpack.c.l.b16 %v12145
  %v12182 = vunpack.c.l.b16 %v12146
  %v12183 = vunpack.c.l.b16 %v12147
  %v12184 = vunpack.c.l.b16 %v12148
  %v12185 = vunpack.c.l.b16 %v12149
  %v12186 = vunpack.c.l.b16 %v12150
  %v12187 = vunpack.c.l.b16 %v12151
  %v12188 = vunpack.c.l.b16 %v12152
  %v12189 = vunpack.c.l.b16 %v12153
  %v12190 = vunpack.c.l.b16 %v12154
  %v12191 = vunpack.c.l.b16 %v12155
  %v12192 = vunpack.c.l.b16 %v12156
  %v12193 = vunpack.c.l.b16 %v12157
  %v12194 = vunpack.c.l.b16 %v12158
  %v12195 = vunpack.c.l.b16 %v12159
  %v12196 = vunpack.c.l.b16 %v12160
  %v12197 = vunpack.c.l.b16 %v12161
  %v12198 = vpack.c.b16 %v12181, %v12180
  %v12199 = vpack.c.b16 %v12183, %v12182
  %v12200 = vpack.c.b16 %v12185, %v12184
  %v12201 = vpack.c.b16 %v12187, %v12186
  %v12202 = vpack.c.b16 %v12189, %v12188
  %v12203 = vpack.c.b16 %v12191, %v12190
  %v12204 = vpack.c.b16 %v12193, %v12192
  %v12205 = vpack.c.b16 %v12195, %v12194
  %v12206 = vpack.c.b16 %v12197, %v12196
  %v12217 = vsel %vm5699, %v12081, 0
  %v12220 = vsel %vm5699, %v12083, 0
  %v12223 = vsel %vm5699, %v12085, 0
  %v12226 = vsel %vm5699, %v12087, 0
  %v12229 = vsel %vm5699, %v12089, 0
  %v12232 = vsel %vm5699, %v12091, 0
  %v12235 = vsel %vm5699, %v12093, 0
  %v12238 = vsel %vm5699, %v12095, 0
  %v12241 = vsel %vm5699, %v12097, 0
  %v12244 = vsel %vm5699, %v12099, 0
  %v12247 = vsel %vm5699, %v12101, 0
  %v12250 = vsel %vm5699, %v12103, 0
  %v12253 = vsel %vm5699, %v12105, 0
  %v12256 = vsel %vm5699, %v12107, 0
  %v12259 = vsel %vm5699, %v12109, 0
  %v12262 = vsel %vm5699, %v12111, 0
  %v12265 = vsel %vm5699, %v12113, 0
  %v12268 = vsel %vm5699, %v12115, 0
  %v12271 = vsel %vm5699, %v12117, 0
  %v12274 = vsel %vm5699, %v12119, 0
  %v12277 = vsel %vm5699, %v12121, 0
  %v12280 = vsel %vm5699, %v12123, 0
  %v12283 = vsel %vm5699, %v12125, 0
  %v12286 = vsel %vm5699, %v12127, 0
  %v12289 = vsel %vm5699, %v12129, 0
  %v12292 = vsel %vm5699, %v12131, 0
  %v12295 = vsel %vm5699, %v12133, 0
  %v12298 = vsel %vm5699, %v12135, 0
  %v12301 = vsel %vm5699, %v12137, 0
  %v12304 = vsel %vm5699, %v12139, 0
  %v12307 = vsel %vm5699, %v12141, 0
  %v12310 = vsel %vm5699, %v12143, 0
  %12312 = vmatprep.subr.bf16.mxu0 0
  %12313 = vmatpush1.bf16.msra.mxu0 %v12198
  %12314 = vmatprep.subr.bf16.mxu0 0
  %12315 = vmatpush1.bf16.msra.mxu0 %v12199
  %12316 = vmatprep.subr.bf16.mxu0 0
  %12317 = vmatpush1.bf16.msra.mxu0 %v12200
  %12318 = vmatprep.subr.bf16.mxu0 0
  %12319 = vmatpush1.bf16.msra.mxu0 %v12201
  %12320 = vmatprep.subr.bf16.mxu0 0
  %12321 = vmatpush1.bf16.msra.mxu0 %v12202
  %12322 = vmatprep.subr.bf16.mxu0 0
  %12323 = vmatpush1.bf16.msra.mxu0 %v12203
  %12324 = vmatprep.subr.bf16.mxu0 0
  %12325 = vmatpush1.bf16.msra.mxu0 %v12204
  %12326 = vmatprep.subr.bf16.mxu0 0
  %12327 = vmatpush1.bf16.msra.mxu0 %v12205
  %12328 = vmatprep.subr.bf16.mxu0 0
  %12329 = vmatpush1.bf16.msra.mxu0 %v12206
  %12330 = vmatprep.subr.bf16.mxu0 0
  %12331 = vmatpush1.bf16.msra.mxu0 0
  %12332 = vmatprep.subr.bf16.mxu0 0
  %12333 = vmatpush1.bf16.msra.mxu0 0
  %12334 = vmatprep.subr.bf16.mxu0 0
  %12335 = vmatpush1.bf16.msra.mxu0 0
  %12336 = vmatprep.subr.bf16.mxu0 0
  %12337 = vmatpush1.bf16.msra.mxu0 0
  %12338 = vmatprep.subr.bf16.mxu0 0
  %12339 = vmatpush1.bf16.msra.mxu0 0
  %12340 = vmatprep.subr.bf16.mxu0 0
  %12341 = vmatpush1.bf16.msra.mxu0 0
  %12342 = vmatprep.subr.bf16.mxu0 0
  %12343 = vmatpush1.bf16.msra.mxu0 0
  %12344 = vmatprep.mubr.bf16.mxu0 %v12217
  %12345 = vmatmul.mubr.bf16.gmra.mrb[0].mxu0 %v12080
  %v12346 = vpop.f32.mrb[0].mxu0
  %v12347 = vadd.f32 0.0, %v12346
  %v12348 = vpop.f32.mrb[0].mxu0
  %v12349 = vpop.f32.mrb[0].mxu0
  %v12350 = vadd.f32 0.0, %v12349
  %v12351 = vpop.f32.mrb[0].mxu0
  %12352 = vmatprep.mubr.bf16.mxu0 %v12220
  %12353 = vmatmul.mubr.bf16.gmra.mrb[0].mxu0 %v12082
  %v12354 = vpop.f32.mrb[0].mxu0
  %v12355 = vadd.f32 0.0, %v12354
  %v12356 = vpop.f32.mrb[0].mxu0
  %v12357 = vpop.f32.mrb[0].mxu0
  %v12358 = vadd.f32 0.0, %v12357
  %v12359 = vpop.f32.mrb[0].mxu0
  %12360 = vmatprep.mubr.bf16.mxu0 %v12223
  %12361 = vmatmul.mubr.bf16.gmra.mrb[0].mxu0 %v12084
  %v12362 = vpop.f32.mrb[0].mxu0
  %v12363 = vadd.f32 0.0, %v12362
  %v12364 = vpop.f32.mrb[0].mxu0
  %v12365 = vpop.f32.mrb[0].mxu0
  %v12366 = vadd.f32 0.0, %v12365
  %v12367 = vpop.f32.mrb[0].mxu0
  %12368 = vmatprep.mubr.bf16.mxu0 %v12226
  %12369 = vmatmul.mubr.bf16.gmra.mrb[0].mxu0 %v12086
  %v12370 = vpop.f32.mrb[0].mxu0
  %v12371 = vadd.f32 0.0, %v12370
  %v12372 = vpop.f32.mrb[0].mxu0
  %v12373 = vpop.f32.mrb[0].mxu0
  %v12374 = vadd.f32 0.0, %v12373
  %v12375 = vpop.f32.mrb[0].mxu0
  %12376 = vmatprep.mubr.bf16.mxu0 %v12229
  %12377 = vmatmul.mubr.bf16.gmra.mrb[0].mxu0 %v12088
  %v12378 = vpop.f32.mrb[0].mxu0
  %v12379 = vadd.f32 0.0, %v12378
  %v12380 = vpop.f32.mrb[0].mxu0
  %v12381 = vpop.f32.mrb[0].mxu0
  %v12382 = vadd.f32 0.0, %v12381
  %v12383 = vpop.f32.mrb[0].mxu0
  %12384 = vmatprep.mubr.bf16.mxu0 %v12232
  %12385 = vmatmul.mubr.bf16.gmra.mrb[0].mxu0 %v12090
  %v12386 = vpop.f32.mrb[0].mxu0
  %v12387 = vadd.f32 0.0, %v12386
  %v12388 = vpop.f32.mrb[0].mxu0
  %v12389 = vpop.f32.mrb[0].mxu0
  %v12390 = vadd.f32 0.0, %v12389
  %v12391 = vpop.f32.mrb[0].mxu0
  %12392 = vmatprep.mubr.bf16.mxu0 %v12235
  %12393 = vmatmul.mubr.bf16.gmra.mrb[0].mxu0 %v12092
  %v12394 = vpop.f32.mrb[0].mxu0
  %v12395 = vadd.f32 0.0, %v12394
  %v12396 = vpop.f32.mrb[0].mxu0
  %v12397 = vpop.f32.mrb[0].mxu0
  %v12398 = vadd.f32 0.0, %v12397
  %v12399 = vpop.f32.mrb[0].mxu0
  %12400 = vmatprep.mubr.bf16.mxu0 %v12238
  %12401 = vmatmul.mubr.bf16.gmra.mrb[0].mxu0 %v12094
  %v12402 = vpop.f32.mrb[0].mxu0
  %v12403 = vadd.f32 0.0, %v12402
  %v12404 = vpop.f32.mrb[0].mxu0
  %v12405 = vpop.f32.mrb[0].mxu0
  %v12406 = vadd.f32 0.0, %v12405
  %v12407 = vpop.f32.mrb[0].mxu0
  %12408 = vmatprep.mubr.bf16.mxu0 %v12241
  %12409 = vmatmul.mubr.bf16.gmra.mrb[0].mxu0 %v12096
  %v12410 = vpop.f32.mrb[0].mxu0
  %v12411 = vadd.f32 0.0, %v12410
  %v12412 = vpop.f32.mrb[0].mxu0
  %v12413 = vpop.f32.mrb[0].mxu0
  %v12414 = vadd.f32 0.0, %v12413
  %v12415 = vpop.f32.mrb[0].mxu0
  %12416 = vmatprep.mubr.bf16.mxu0 %v12244
  %12417 = vmatmul.mubr.bf16.gmra.mrb[0].mxu0 %v12098
  %v12418 = vpop.f32.mrb[0].mxu0
  %v12419 = vadd.f32 0.0, %v12418
  %v12420 = vpop.f32.mrb[0].mxu0
  %v12421 = vpop.f32.mrb[0].mxu0
  %v12422 = vadd.f32 0.0, %v12421
  %v12423 = vpop.f32.mrb[0].mxu0
  %12424 = vmatprep.mubr.bf16.mxu0 %v12247
  %12425 = vmatmul.mubr.bf16.gmra.mrb[0].mxu0 %v12100
  %v12426 = vpop.f32.mrb[0].mxu0
  %v12427 = vadd.f32 0.0, %v12426
  %v12428 = vpop.f32.mrb[0].mxu0
  %v12429 = vpop.f32.mrb[0].mxu0
  %v12430 = vadd.f32 0.0, %v12429
  %v12431 = vpop.f32.mrb[0].mxu0
  %12432 = vmatprep.mubr.bf16.mxu0 %v12250
  %12433 = vmatmul.mubr.bf16.gmra.mrb[0].mxu0 %v12102
  %v12434 = vpop.f32.mrb[0].mxu0
  %v12435 = vadd.f32 0.0, %v12434
  %v12436 = vpop.f32.mrb[0].mxu0
  %v12437 = vpop.f32.mrb[0].mxu0
  %v12438 = vadd.f32 0.0, %v12437
  %v12439 = vpop.f32.mrb[0].mxu0
  %12440 = vmatprep.mubr.bf16.mxu0 %v12253
  %12441 = vmatmul.mubr.bf16.gmra.mrb[0].mxu0 %v12104
  %v12442 = vpop.f32.mrb[0].mxu0
  %v12443 = vadd.f32 0.0, %v12442
  %v12444 = vpop.f32.mrb[0].mxu0
  %v12445 = vpop.f32.mrb[0].mxu0
  %v12446 = vadd.f32 0.0, %v12445
  %v12447 = vpop.f32.mrb[0].mxu0
  %12448 = vmatprep.mubr.bf16.mxu0 %v12256
  %12449 = vmatmul.mubr.bf16.gmra.mrb[0].mxu0 %v12106
  %v12450 = vpop.f32.mrb[0].mxu0
  %v12451 = vadd.f32 0.0, %v12450
  %v12452 = vpop.f32.mrb[0].mxu0
  %v12453 = vpop.f32.mrb[0].mxu0
  %v12454 = vadd.f32 0.0, %v12453
  %v12455 = vpop.f32.mrb[0].mxu0
  %12456 = vmatprep.mubr.bf16.mxu0 %v12259
  %12457 = vmatmul.mubr.bf16.gmra.mrb[0].mxu0 %v12108
  %v12458 = vpop.f32.mrb[0].mxu0
  %v12459 = vadd.f32 0.0, %v12458
  %v12460 = vpop.f32.mrb[0].mxu0
  %v12461 = vpop.f32.mrb[0].mxu0
  %v12462 = vadd.f32 0.0, %v12461
  %v12463 = vpop.f32.mrb[0].mxu0
  %12464 = vmatprep.mubr.bf16.mxu0 %v12262
  %12465 = vmatmul.mubr.bf16.gmra.mrb[0].mxu0 %v12110
  %v12466 = vpop.f32.mrb[0].mxu0
  %v12467 = vadd.f32 0.0, %v12466
  %v12468 = vpop.f32.mrb[0].mxu0
  %v12469 = vpop.f32.mrb[0].mxu0
  %v12470 = vadd.f32 0.0, %v12469
  %v12471 = vpop.f32.mrb[0].mxu0
  %12472 = vmatprep.mubr.bf16.mxu0 %v12265
  %12473 = vmatmul.mubr.bf16.gmra.mrb[0].mxu0 %v12112
  %v12474 = vpop.f32.mrb[0].mxu0
  %v12475 = vadd.f32 0.0, %v12474
  %v12476 = vpop.f32.mrb[0].mxu0
  %v12477 = vpop.f32.mrb[0].mxu0
  %v12478 = vadd.f32 0.0, %v12477
  %v12479 = vpop.f32.mrb[0].mxu0
  %12480 = vmatprep.mubr.bf16.mxu0 %v12268
  %12481 = vmatmul.mubr.bf16.gmra.mrb[0].mxu0 %v12114
  %v12482 = vpop.f32.mrb[0].mxu0
  %v12483 = vadd.f32 0.0, %v12482
  %v12484 = vpop.f32.mrb[0].mxu0
  %v12485 = vpop.f32.mrb[0].mxu0
  %v12486 = vadd.f32 0.0, %v12485
  %v12487 = vpop.f32.mrb[0].mxu0
  %12488 = vmatprep.mubr.bf16.mxu0 %v12271
  %12489 = vmatmul.mubr.bf16.gmra.mrb[0].mxu0 %v12116
  %v12490 = vpop.f32.mrb[0].mxu0
  %v12491 = vadd.f32 0.0, %v12490
  %v12492 = vpop.f32.mrb[0].mxu0
  %v12493 = vpop.f32.mrb[0].mxu0
  %v12494 = vadd.f32 0.0, %v12493
  %v12495 = vpop.f32.mrb[0].mxu0
  %12496 = vmatprep.mubr.bf16.mxu0 %v12274
  %12497 = vmatmul.mubr.bf16.gmra.mrb[0].mxu0 %v12118
  %v12498 = vpop.f32.mrb[0].mxu0
  %v12499 = vadd.f32 0.0, %v12498
  %v12500 = vpop.f32.mrb[0].mxu0
  %v12501 = vpop.f32.mrb[0].mxu0
  %v12502 = vadd.f32 0.0, %v12501
  %v12503 = vpop.f32.mrb[0].mxu0
  %12504 = vmatprep.mubr.bf16.mxu0 %v12277
  %12505 = vmatmul.mubr.bf16.gmra.mrb[0].mxu0 %v12120
  %v12506 = vpop.f32.mrb[0].mxu0
  %v12507 = vadd.f32 0.0, %v12506
  %v12508 = vpop.f32.mrb[0].mxu0
  %v12509 = vpop.f32.mrb[0].mxu0
  %v12510 = vadd.f32 0.0, %v12509
  %v12511 = vpop.f32.mrb[0].mxu0
  %12512 = vmatprep.mubr.bf16.mxu0 %v12280
  %12513 = vmatmul.mubr.bf16.gmra.mrb[0].mxu0 %v12122
  %v12514 = vpop.f32.mrb[0].mxu0
  %v12515 = vadd.f32 0.0, %v12514
  %v12516 = vpop.f32.mrb[0].mxu0
  %v12517 = vpop.f32.mrb[0].mxu0
  %v12518 = vadd.f32 0.0, %v12517
  %v12519 = vpop.f32.mrb[0].mxu0
  %12520 = vmatprep.mubr.bf16.mxu0 %v12283
  %12521 = vmatmul.mubr.bf16.gmra.mrb[0].mxu0 %v12124
  %v12522 = vpop.f32.mrb[0].mxu0
  %v12523 = vadd.f32 0.0, %v12522
  %v12524 = vpop.f32.mrb[0].mxu0
  %v12525 = vpop.f32.mrb[0].mxu0
  %v12526 = vadd.f32 0.0, %v12525
  %v12527 = vpop.f32.mrb[0].mxu0
  %12528 = vmatprep.mubr.bf16.mxu0 %v12286
  %12529 = vmatmul.mubr.bf16.gmra.mrb[0].mxu0 %v12126
  %v12530 = vpop.f32.mrb[0].mxu0
  %v12531 = vadd.f32 0.0, %v12530
  %v12532 = vpop.f32.mrb[0].mxu0
  %v12533 = vpop.f32.mrb[0].mxu0
  %v12534 = vadd.f32 0.0, %v12533
  %v12535 = vpop.f32.mrb[0].mxu0
  %12536 = vmatprep.mubr.bf16.mxu0 %v12289
  %12537 = vmatmul.mubr.bf16.gmra.mrb[0].mxu0 %v12128
  %v12538 = vpop.f32.mrb[0].mxu0
  %v12539 = vadd.f32 0.0, %v12538
  %v12540 = vpop.f32.mrb[0].mxu0
  %v12541 = vpop.f32.mrb[0].mxu0
  %v12542 = vadd.f32 0.0, %v12541
  %v12543 = vpop.f32.mrb[0].mxu0
  %12544 = vmatprep.mubr.bf16.mxu0 %v12292
  %12545 = vmatmul.mubr.bf16.gmra.mrb[0].mxu0 %v12130
  %v12546 = vpop.f32.mrb[0].mxu0
  %v12547 = vadd.f32 0.0, %v12546
  %v12548 = vpop.f32.mrb[0].mxu0
  %v12549 = vpop.f32.mrb[0].mxu0
  %v12550 = vadd.f32 0.0, %v12549
  %v12551 = vpop.f32.mrb[0].mxu0
  %12552 = vmatprep.mubr.bf16.mxu0 %v12295
  %12553 = vmatmul.mubr.bf16.gmra.mrb[0].mxu0 %v12132
  %v12554 = vpop.f32.mrb[0].mxu0
  %v12555 = vadd.f32 0.0, %v12554
  %v12556 = vpop.f32.mrb[0].mxu0
  %v12557 = vpop.f32.mrb[0].mxu0
  %v12558 = vadd.f32 0.0, %v12557
  %v12559 = vpop.f32.mrb[0].mxu0
  %12560 = vmatprep.mubr.bf16.mxu0 %v12298
  %12561 = vmatmul.mubr.bf16.gmra.mrb[0].mxu0 %v12134
  %v12562 = vpop.f32.mrb[0].mxu0
  %v12563 = vadd.f32 0.0, %v12562
  %v12564 = vpop.f32.mrb[0].mxu0
  %v12565 = vpop.f32.mrb[0].mxu0
  %v12566 = vadd.f32 0.0, %v12565
  %v12567 = vpop.f32.mrb[0].mxu0
  %12568 = vmatprep.mubr.bf16.mxu0 %v12301
  %12569 = vmatmul.mubr.bf16.gmra.mrb[0].mxu0 %v12136
  %v12570 = vpop.f32.mrb[0].mxu0
  %v12571 = vadd.f32 0.0, %v12570
  %v12572 = vpop.f32.mrb[0].mxu0
  %v12573 = vpop.f32.mrb[0].mxu0
  %v12574 = vadd.f32 0.0, %v12573
  %v12575 = vpop.f32.mrb[0].mxu0
  %12576 = vmatprep.mubr.bf16.mxu0 %v12304
  %12577 = vmatmul.mubr.bf16.gmra.mrb[0].mxu0 %v12138
  %v12578 = vpop.f32.mrb[0].mxu0
  %v12579 = vadd.f32 0.0, %v12578
  %v12580 = vpop.f32.mrb[0].mxu0
  %v12581 = vpop.f32.mrb[0].mxu0
  %v12582 = vadd.f32 0.0, %v12581
  %v12583 = vpop.f32.mrb[0].mxu0
  %12584 = vmatprep.mubr.bf16.mxu0 %v12307
  %12585 = vmatmul.mubr.bf16.gmra.mrb[0].mxu0 %v12140
  %v12586 = vpop.f32.mrb[0].mxu0
  %v12587 = vadd.f32 0.0, %v12586
  %v12588 = vpop.f32.mrb[0].mxu0
  %v12589 = vpop.f32.mrb[0].mxu0
  %v12590 = vadd.f32 0.0, %v12589
  %v12591 = vpop.f32.mrb[0].mxu0
  %12592 = vmatprep.mubr.bf16.mxu0 %v12310
  %12593 = vmatmul.mubr.bf16.gmra.mrb[0].mxu0 %v12142
  %v12594 = vpop.f32.mrb[0].mxu0
  %v12595 = vadd.f32 0.0, %v12594
  %v12596 = vpop.f32.mrb[0].mxu0
  %v12597 = vpop.f32.mrb[0].mxu0
  %v12598 = vadd.f32 0.0, %v12597
  %v12599 = vpop.f32.mrb[0].mxu0
  %12600 = vdwg.mxu0
  %v12601 = vsel %vm5699, %v12347, 0.0
  %v12602 = vsel %vm5699, %v12350, 0.0
  %v12603 = vadd.f32 %v12601, %v12602
  %v12604 = vsel %vm5699, %v12355, 0.0
  %v12605 = vadd.f32 %v12603, %v12604
  %v12606 = vsel %vm5699, %v12358, 0.0
  %v12607 = vadd.f32 %v12605, %v12606
  %v12608 = vsel %vm5699, %v12363, 0.0
  %v12609 = vadd.f32 %v12607, %v12608
  %v12610 = vsel %vm5699, %v12366, 0.0
  %v12611 = vadd.f32 %v12609, %v12610
  %v12612 = vsel %vm5699, %v12371, 0.0
  %v12613 = vadd.f32 %v12611, %v12612
  %v12614 = vsel %vm5699, %v12374, 0.0
  %v12615 = vadd.f32 %v12613, %v12614
  %v12616 = vsel %vm5699, %v12379, 0.0
  %v12617 = vadd.f32 %v12615, %v12616
  %v12618 = vsel %vm5699, %v12382, 0.0
  %v12619 = vadd.f32 %v12617, %v12618
  %v12620 = vsel %vm5699, %v12387, 0.0
  %v12621 = vadd.f32 %v12619, %v12620
  %v12622 = vsel %vm5699, %v12390, 0.0
  %v12623 = vadd.f32 %v12621, %v12622
  %v12624 = vsel %vm5699, %v12395, 0.0
  %v12625 = vadd.f32 %v12623, %v12624
  %v12626 = vsel %vm5699, %v12398, 0.0
  %v12627 = vadd.f32 %v12625, %v12626
  %v12628 = vsel %vm5699, %v12403, 0.0
  %v12629 = vadd.f32 %v12627, %v12628
  %v12630 = vsel %vm5699, %v12406, 0.0
  %v12631 = vadd.f32 %v12629, %v12630
  %v12632 = vsel %vm5699, %v12411, 0.0
  %v12633 = vadd.f32 %v12631, %v12632
  %v12634 = vsel %vm5699, %v12414, 0.0
  %v12635 = vadd.f32 %v12633, %v12634
  %v12636 = vsel %vm5699, %v12419, 0.0
  %v12637 = vadd.f32 %v12635, %v12636
  %v12638 = vsel %vm5699, %v12422, 0.0
  %v12639 = vadd.f32 %v12637, %v12638
  %v12640 = vsel %vm5699, %v12427, 0.0
  %v12641 = vadd.f32 %v12639, %v12640
  %v12642 = vsel %vm5699, %v12430, 0.0
  %v12643 = vadd.f32 %v12641, %v12642
  %v12644 = vsel %vm5699, %v12435, 0.0
  %v12645 = vadd.f32 %v12643, %v12644
  %v12646 = vsel %vm5699, %v12438, 0.0
  %v12647 = vadd.f32 %v12645, %v12646
  %v12648 = vsel %vm5699, %v12443, 0.0
  %v12649 = vadd.f32 %v12647, %v12648
  %v12650 = vsel %vm5699, %v12446, 0.0
  %v12651 = vadd.f32 %v12649, %v12650
  %v12652 = vsel %vm5699, %v12451, 0.0
  %v12653 = vadd.f32 %v12651, %v12652
  %v12654 = vsel %vm5699, %v12454, 0.0
  %v12655 = vadd.f32 %v12653, %v12654
  %v12656 = vsel %vm5699, %v12459, 0.0
  %v12657 = vadd.f32 %v12655, %v12656
  %v12658 = vsel %vm5699, %v12462, 0.0
  %v12659 = vadd.f32 %v12657, %v12658
  %v12660 = vsel %vm5699, %v12467, 0.0
  %v12661 = vadd.f32 %v12659, %v12660
  %v12662 = vsel %vm5699, %v12470, 0.0
  %v12663 = vadd.f32 %v12661, %v12662
  %v12664 = vsel %vm5699, %v12475, 0.0
  %v12665 = vadd.f32 %v12663, %v12664
  %v12666 = vsel %vm5699, %v12478, 0.0
  %v12667 = vadd.f32 %v12665, %v12666
  %v12668 = vsel %vm5699, %v12483, 0.0
  %v12669 = vadd.f32 %v12667, %v12668
  %v12670 = vsel %vm5699, %v12486, 0.0
  %v12671 = vadd.f32 %v12669, %v12670
  %v12672 = vsel %vm5699, %v12491, 0.0
  %v12673 = vadd.f32 %v12671, %v12672
  %v12674 = vsel %vm5699, %v12494, 0.0
  %v12675 = vadd.f32 %v12673, %v12674
  %v12676 = vsel %vm5699, %v12499, 0.0
  %v12677 = vadd.f32 %v12675, %v12676
  %v12678 = vsel %vm5699, %v12502, 0.0
  %v12679 = vadd.f32 %v12677, %v12678
  %v12680 = vsel %vm5699, %v12507, 0.0
  %v12681 = vadd.f32 %v12679, %v12680
  %v12682 = vsel %vm5699, %v12510, 0.0
  %v12683 = vadd.f32 %v12681, %v12682
  %v12684 = vsel %vm5699, %v12515, 0.0
  %v12685 = vadd.f32 %v12683, %v12684
  %v12686 = vsel %vm5699, %v12518, 0.0
  %v12687 = vadd.f32 %v12685, %v12686
  %v12688 = vsel %vm5699, %v12523, 0.0
  %v12689 = vadd.f32 %v12687, %v12688
  %v12690 = vsel %vm5699, %v12526, 0.0
  %v12691 = vadd.f32 %v12689, %v12690
  %v12692 = vsel %vm5699, %v12531, 0.0
  %v12693 = vadd.f32 %v12691, %v12692
  %v12694 = vsel %vm5699, %v12534, 0.0
  %v12695 = vadd.f32 %v12693, %v12694
  %v12696 = vsel %vm5699, %v12539, 0.0
  %v12697 = vadd.f32 %v12695, %v12696
  %v12698 = vsel %vm5699, %v12542, 0.0
  %v12699 = vadd.f32 %v12697, %v12698
  %v12700 = vsel %vm5699, %v12547, 0.0
  %v12701 = vadd.f32 %v12699, %v12700
  %v12702 = vsel %vm5699, %v12550, 0.0
  %v12703 = vadd.f32 %v12701, %v12702
  %v12704 = vsel %vm5699, %v12555, 0.0
  %v12705 = vadd.f32 %v12703, %v12704
  %v12706 = vsel %vm5699, %v12558, 0.0
  %v12707 = vadd.f32 %v12705, %v12706
  %v12708 = vsel %vm5699, %v12563, 0.0
  %v12709 = vadd.f32 %v12707, %v12708
  %v12710 = vsel %vm5699, %v12566, 0.0
  %v12711 = vadd.f32 %v12709, %v12710
  %v12712 = vsel %vm5699, %v12571, 0.0
  %v12713 = vadd.f32 %v12711, %v12712
  %v12714 = vsel %vm5699, %v12574, 0.0
  %v12715 = vadd.f32 %v12713, %v12714
  %v12716 = vsel %vm5699, %v12579, 0.0
  %v12717 = vadd.f32 %v12715, %v12716
  %v12718 = vsel %vm5699, %v12582, 0.0
  %v12719 = vadd.f32 %v12717, %v12718
  %v12720 = vsel %vm5699, %v12587, 0.0
  %v12721 = vadd.f32 %v12719, %v12720
  %v12722 = vsel %vm5699, %v12590, 0.0
  %v12723 = vadd.f32 %v12721, %v12722
  %v12724 = vsel %vm5699, %v12595, 0.0
  %v12725 = vadd.f32 %v12723, %v12724
  %v12726 = vsel %vm5699, %v12598, 0.0
  %v12727 = vadd.f32 %v12725, %v12726
  %v12728 = vrot.slane %v12727, 4
  %v12729 = vadd.f32 %v12727, %v12728
  %v12730 = vrot.slane %v12729, 2
  %v12731 = vadd.f32 %v12729, %v12730
  %v12732 = vrot.slane %v12731, 1
  %v12733 = vadd.f32 %v12731, %v12732
  %v12734 = vrcp.pop 512.0
  %v12735 = vmul.f32 %v12733, %v12734
  %v12736 = vmul.f32 %v12347, %v12347
  %v12737 = vmul.f32 %v12350, %v12350
  %v12738 = vmul.f32 %v12355, %v12355
  %v12739 = vmul.f32 %v12358, %v12358
  %v12740 = vmul.f32 %v12363, %v12363
  %v12741 = vmul.f32 %v12366, %v12366
  %v12742 = vmul.f32 %v12371, %v12371
  %v12743 = vmul.f32 %v12374, %v12374
  %v12744 = vmul.f32 %v12379, %v12379
  %v12745 = vmul.f32 %v12382, %v12382
  %v12746 = vmul.f32 %v12387, %v12387
  %v12747 = vmul.f32 %v12390, %v12390
  %v12748 = vmul.f32 %v12395, %v12395
  %v12749 = vmul.f32 %v12398, %v12398
  %v12750 = vmul.f32 %v12403, %v12403
  %v12751 = vmul.f32 %v12406, %v12406
  %v12752 = vmul.f32 %v12411, %v12411
  %v12753 = vmul.f32 %v12414, %v12414
  %v12754 = vmul.f32 %v12419, %v12419
  %v12755 = vmul.f32 %v12422, %v12422
  %v12756 = vmul.f32 %v12427, %v12427
  %v12757 = vmul.f32 %v12430, %v12430
  %v12758 = vmul.f32 %v12435, %v12435
  %v12759 = vmul.f32 %v12438, %v12438
  %v12760 = vmul.f32 %v12443, %v12443
  %v12761 = vmul.f32 %v12446, %v12446
  %v12762 = vmul.f32 %v12451, %v12451
  %v12763 = vmul.f32 %v12454, %v12454
  %v12764 = vmul.f32 %v12459, %v12459
  %v12765 = vmul.f32 %v12462, %v12462
  %v12766 = vmul.f32 %v12467, %v12467
  %v12767 = vmul.f32 %v12470, %v12470
  %v12768 = vmul.f32 %v12475, %v12475
  %v12769 = vmul.f32 %v12478, %v12478
  %v12770 = vmul.f32 %v12483, %v12483
  %v12771 = vmul.f32 %v12486, %v12486
  %v12772 = vmul.f32 %v12491, %v12491
  %v12773 = vmul.f32 %v12494, %v12494
  %v12774 = vmul.f32 %v12499, %v12499
  %v12775 = vmul.f32 %v12502, %v12502
  %v12776 = vmul.f32 %v12507, %v12507
  %v12777 = vmul.f32 %v12510, %v12510
  %v12778 = vmul.f32 %v12515, %v12515
  %v12779 = vmul.f32 %v12518, %v12518
  %v12780 = vmul.f32 %v12523, %v12523
  %v12781 = vmul.f32 %v12526, %v12526
  %v12782 = vmul.f32 %v12531, %v12531
  %v12783 = vmul.f32 %v12534, %v12534
  %v12784 = vmul.f32 %v12539, %v12539
  %v12785 = vmul.f32 %v12542, %v12542
  %v12786 = vmul.f32 %v12547, %v12547
  %v12787 = vmul.f32 %v12550, %v12550
  %v12788 = vmul.f32 %v12555, %v12555
  %v12789 = vmul.f32 %v12558, %v12558
  %v12790 = vmul.f32 %v12563, %v12563
  %v12791 = vmul.f32 %v12566, %v12566
  %v12792 = vmul.f32 %v12571, %v12571
  %v12793 = vmul.f32 %v12574, %v12574
  %v12794 = vmul.f32 %v12579, %v12579
  %v12795 = vmul.f32 %v12582, %v12582
  %v12796 = vmul.f32 %v12587, %v12587
  %v12797 = vmul.f32 %v12590, %v12590
  %v12798 = vmul.f32 %v12595, %v12595
  %v12799 = vmul.f32 %v12598, %v12598
  %v12800 = vsel %vm5699, %v12736, 0.0
  %v12801 = vsel %vm5699, %v12737, 0.0
  %v12802 = vadd.f32 %v12800, %v12801
  %v12803 = vsel %vm5699, %v12738, 0.0
  %v12804 = vadd.f32 %v12802, %v12803
  %v12805 = vsel %vm5699, %v12739, 0.0
  %v12806 = vadd.f32 %v12804, %v12805
  %v12807 = vsel %vm5699, %v12740, 0.0
  %v12808 = vadd.f32 %v12806, %v12807
  %v12809 = vsel %vm5699, %v12741, 0.0
  %v12810 = vadd.f32 %v12808, %v12809
  %v12811 = vsel %vm5699, %v12742, 0.0
  %v12812 = vadd.f32 %v12810, %v12811
  %v12813 = vsel %vm5699, %v12743, 0.0
  %v12814 = vadd.f32 %v12812, %v12813
  %v12815 = vsel %vm5699, %v12744, 0.0
  %v12816 = vadd.f32 %v12814, %v12815
  %v12817 = vsel %vm5699, %v12745, 0.0
  %v12818 = vadd.f32 %v12816, %v12817
  %v12819 = vsel %vm5699, %v12746, 0.0
  %v12820 = vadd.f32 %v12818, %v12819
  %v12821 = vsel %vm5699, %v12747, 0.0
  %v12822 = vadd.f32 %v12820, %v12821
  %v12823 = vsel %vm5699, %v12748, 0.0
  %v12824 = vadd.f32 %v12822, %v12823
  %v12825 = vsel %vm5699, %v12749, 0.0
  %v12826 = vadd.f32 %v12824, %v12825
  %v12827 = vsel %vm5699, %v12750, 0.0
  %v12828 = vadd.f32 %v12826, %v12827
  %v12829 = vsel %vm5699, %v12751, 0.0
  %v12830 = vadd.f32 %v12828, %v12829
  %v12831 = vsel %vm5699, %v12752, 0.0
  %v12832 = vadd.f32 %v12830, %v12831
  %v12833 = vsel %vm5699, %v12753, 0.0
  %v12834 = vadd.f32 %v12832, %v12833
  %v12835 = vsel %vm5699, %v12754, 0.0
  %v12836 = vadd.f32 %v12834, %v12835
  %v12837 = vsel %vm5699, %v12755, 0.0
  %v12838 = vadd.f32 %v12836, %v12837
  %v12839 = vsel %vm5699, %v12756, 0.0
  %v12840 = vadd.f32 %v12838, %v12839
  %v12841 = vsel %vm5699, %v12757, 0.0
  %v12842 = vadd.f32 %v12840, %v12841
  %v12843 = vsel %vm5699, %v12758, 0.0
  %v12844 = vadd.f32 %v12842, %v12843
  %v12845 = vsel %vm5699, %v12759, 0.0
  %v12846 = vadd.f32 %v12844, %v12845
  %v12847 = vsel %vm5699, %v12760, 0.0
  %v12848 = vadd.f32 %v12846, %v12847
  %v12849 = vsel %vm5699, %v12761, 0.0
  %v12850 = vadd.f32 %v12848, %v12849
  %v12851 = vsel %vm5699, %v12762, 0.0
  %v12852 = vadd.f32 %v12850, %v12851
  %v12853 = vsel %vm5699, %v12763, 0.0
  %v12854 = vadd.f32 %v12852, %v12853
  %v12855 = vsel %vm5699, %v12764, 0.0
  %v12856 = vadd.f32 %v12854, %v12855
  %v12857 = vsel %vm5699, %v12765, 0.0
  %v12858 = vadd.f32 %v12856, %v12857
  %v12859 = vsel %vm5699, %v12766, 0.0
  %v12860 = vadd.f32 %v12858, %v12859
  %v12861 = vsel %vm5699, %v12767, 0.0
  %v12862 = vadd.f32 %v12860, %v12861
  %v12863 = vsel %vm5699, %v12768, 0.0
  %v12864 = vadd.f32 %v12862, %v12863
  %v12865 = vsel %vm5699, %v12769, 0.0
  %v12866 = vadd.f32 %v12864, %v12865
  %v12867 = vsel %vm5699, %v12770, 0.0
  %v12868 = vadd.f32 %v12866, %v12867
  %v12869 = vsel %vm5699, %v12771, 0.0
  %v12870 = vadd.f32 %v12868, %v12869
  %v12871 = vsel %vm5699, %v12772, 0.0
  %v12872 = vadd.f32 %v12870, %v12871
  %v12873 = vsel %vm5699, %v12773, 0.0
  %v12874 = vadd.f32 %v12872, %v12873
  %v12875 = vsel %vm5699, %v12774, 0.0
  %v12876 = vadd.f32 %v12874, %v12875
  %v12877 = vsel %vm5699, %v12775, 0.0
  %v12878 = vadd.f32 %v12876, %v12877
  %v12879 = vsel %vm5699, %v12776, 0.0
  %v12880 = vadd.f32 %v12878, %v12879
  %v12881 = vsel %vm5699, %v12777, 0.0
  %v12882 = vadd.f32 %v12880, %v12881
  %v12883 = vsel %vm5699, %v12778, 0.0
  %v12884 = vadd.f32 %v12882, %v12883
  %v12885 = vsel %vm5699, %v12779, 0.0
  %v12886 = vadd.f32 %v12884, %v12885
  %v12887 = vsel %vm5699, %v12780, 0.0
  %v12888 = vadd.f32 %v12886, %v12887
  %v12889 = vsel %vm5699, %v12781, 0.0
  %v12890 = vadd.f32 %v12888, %v12889
  %v12891 = vsel %vm5699, %v12782, 0.0
  %v12892 = vadd.f32 %v12890, %v12891
  %v12893 = vsel %vm5699, %v12783, 0.0
  %v12894 = vadd.f32 %v12892, %v12893
  %v12895 = vsel %vm5699, %v12784, 0.0
  %v12896 = vadd.f32 %v12894, %v12895
  %v12897 = vsel %vm5699, %v12785, 0.0
  %v12898 = vadd.f32 %v12896, %v12897
  %v12899 = vsel %vm5699, %v12786, 0.0
  %v12900 = vadd.f32 %v12898, %v12899
  %v12901 = vsel %vm5699, %v12787, 0.0
  %v12902 = vadd.f32 %v12900, %v12901
  %v12903 = vsel %vm5699, %v12788, 0.0
  %v12904 = vadd.f32 %v12902, %v12903
  %v12905 = vsel %vm5699, %v12789, 0.0
  %v12906 = vadd.f32 %v12904, %v12905
  %v12907 = vsel %vm5699, %v12790, 0.0
  %v12908 = vadd.f32 %v12906, %v12907
  %v12909 = vsel %vm5699, %v12791, 0.0
  %v12910 = vadd.f32 %v12908, %v12909
  %v12911 = vsel %vm5699, %v12792, 0.0
  %v12912 = vadd.f32 %v12910, %v12911
  %v12913 = vsel %vm5699, %v12793, 0.0
  %v12914 = vadd.f32 %v12912, %v12913
  %v12915 = vsel %vm5699, %v12794, 0.0
  %v12916 = vadd.f32 %v12914, %v12915
  %v12917 = vsel %vm5699, %v12795, 0.0
  %v12918 = vadd.f32 %v12916, %v12917
  %v12919 = vsel %vm5699, %v12796, 0.0
  %v12920 = vadd.f32 %v12918, %v12919
  %v12921 = vsel %vm5699, %v12797, 0.0
  %v12922 = vadd.f32 %v12920, %v12921
  %v12923 = vsel %vm5699, %v12798, 0.0
  %v12924 = vadd.f32 %v12922, %v12923
  %v12925 = vsel %vm5699, %v12799, 0.0
  %v12926 = vadd.f32 %v12924, %v12925
  %v12927 = vrot.slane %v12926, 4
  %v12928 = vadd.f32 %v12926, %v12927
  %v12929 = vrot.slane %v12928, 2
  %v12930 = vadd.f32 %v12928, %v12929
  %v12931 = vrot.slane %v12930, 1
  %v12932 = vadd.f32 %v12930, %v12931
  %v12933 = vmul.f32 %v12932, %v12734
  %v12934 = vmul.f32 %v12735, %v12735
  %v12935 = vsub.f32 %v12933, %v12934
  %v12936 = vld [vmem:[%s2] sm:$0x1]
  %v12937 = vadd.f32 %v12935, 1e-05
  %v12938 = vrsqrt.pop %v12937
  %v12939 = vmul.f32 %v12936, %v12938
  %v12940 = vld [vmem:[%s3] sm:$0x1]
  %v12941 = vmul.f32 %v12735, %v12939
  %v12942 = vsub.f32 %v12940, %v12941
  %v12944 = vlaneseq
  %v12945 = vshrl.u32 %v12944, 7
  %v12946 = vsub.s32 0, %v12945
  %v12947 = vrot.slane %v12939, %v12946
  %v12949 = vmul.f32 %v12347, %v12947
  %v12950 = vmul.f32 %v12350, %v12947
  %v12951 = vmul.f32 %v12355, %v12947
  %v12952 = vmul.f32 %v12358, %v12947
  %v12953 = vmul.f32 %v12363, %v12947
  %v12954 = vmul.f32 %v12366, %v12947
  %v12955 = vmul.f32 %v12371, %v12947
  %v12956 = vmul.f32 %v12374, %v12947
  %v12957 = vmul.f32 %v12379, %v12947
  %v12958 = vmul.f32 %v12382, %v12947
  %v12959 = vmul.f32 %v12387, %v12947
  %v12960 = vmul.f32 %v12390, %v12947
  %v12961 = vmul.f32 %v12395, %v12947
  %v12962 = vmul.f32 %v12398, %v12947
  %v12963 = vmul.f32 %v12403, %v12947
  %v12964 = vmul.f32 %v12406, %v12947
  %v12965 = vmul.f32 %v12411, %v12947
  %v12966 = vmul.f32 %v12414, %v12947
  %v12967 = vmul.f32 %v12419, %v12947
  %v12968 = vmul.f32 %v12422, %v12947
  %v12969 = vmul.f32 %v12427, %v12947
  %v12970 = vmul.f32 %v12430, %v12947
  %v12971 = vmul.f32 %v12435, %v12947
  %v12972 = vmul.f32 %v12438, %v12947
  %v12973 = vmul.f32 %v12443, %v12947
  %v12974 = vmul.f32 %v12446, %v12947
  %v12975 = vmul.f32 %v12451, %v12947
  %v12976 = vmul.f32 %v12454, %v12947
  %v12977 = vmul.f32 %v12459, %v12947
  %v12978 = vmul.f32 %v12462, %v12947
  %v12979 = vmul.f32 %v12467, %v12947
  %v12980 = vmul.f32 %v12470, %v12947
  %v12981 = vmul.f32 %v12475, %v12947
  %v12982 = vmul.f32 %v12478, %v12947
  %v12983 = vmul.f32 %v12483, %v12947
  %v12984 = vmul.f32 %v12486, %v12947
  %v12985 = vmul.f32 %v12491, %v12947
  %v12986 = vmul.f32 %v12494, %v12947
  %v12987 = vmul.f32 %v12499, %v12947
  %v12988 = vmul.f32 %v12502, %v12947
  %v12989 = vmul.f32 %v12507, %v12947
  %v12990 = vmul.f32 %v12510, %v12947
  %v12991 = vmul.f32 %v12515, %v12947
  %v12992 = vmul.f32 %v12518, %v12947
  %v12993 = vmul.f32 %v12523, %v12947
  %v12994 = vmul.f32 %v12526, %v12947
  %v12995 = vmul.f32 %v12531, %v12947
  %v12996 = vmul.f32 %v12534, %v12947
  %v12997 = vmul.f32 %v12539, %v12947
  %v12998 = vmul.f32 %v12542, %v12947
  %v12999 = vmul.f32 %v12547, %v12947
  %v13000 = vmul.f32 %v12550, %v12947
  %v13001 = vmul.f32 %v12555, %v12947
  %v13002 = vmul.f32 %v12558, %v12947
  %v13003 = vmul.f32 %v12563, %v12947
  %v13004 = vmul.f32 %v12566, %v12947
  %v13005 = vmul.f32 %v12571, %v12947
  %v13006 = vmul.f32 %v12574, %v12947
  %v13007 = vmul.f32 %v12579, %v12947
  %v13008 = vmul.f32 %v12582, %v12947
  %v13009 = vmul.f32 %v12587, %v12947
  %v13010 = vmul.f32 %v12590, %v12947
  %v13011 = vmul.f32 %v12595, %v12947
  %v13012 = vmul.f32 %v12598, %v12947
  %v13014 = vlaneseq
  %v13015 = vshrl.u32 %v13014, 7
  %v13016 = vsub.s32 0, %v13015
  %v13017 = vrot.slane %v12942, %v13016
  %v13019 = vadd.f32 %v12949, %v13017
  %v13020 = vadd.f32 %v12950, %v13017
  %v13021 = vadd.f32 %v12951, %v13017
  %v13022 = vadd.f32 %v12952, %v13017
  %v13023 = vadd.f32 %v12953, %v13017
  %v13024 = vadd.f32 %v12954, %v13017
  %v13025 = vadd.f32 %v12955, %v13017
  %v13026 = vadd.f32 %v12956, %v13017
  %v13027 = vadd.f32 %v12957, %v13017
  %v13028 = vadd.f32 %v12958, %v13017
  %v13029 = vadd.f32 %v12959, %v13017
  %v13030 = vadd.f32 %v12960, %v13017
  %v13031 = vadd.f32 %v12961, %v13017
  %v13032 = vadd.f32 %v12962, %v13017
  %v13033 = vadd.f32 %v12963, %v13017
  %v13034 = vadd.f32 %v12964, %v13017
  %v13035 = vadd.f32 %v12965, %v13017
  %v13036 = vadd.f32 %v12966, %v13017
  %v13037 = vadd.f32 %v12967, %v13017
  %v13038 = vadd.f32 %v12968, %v13017
  %v13039 = vadd.f32 %v12969, %v13017
  %v13040 = vadd.f32 %v12970, %v13017
  %v13041 = vadd.f32 %v12971, %v13017
  %v13042 = vadd.f32 %v12972, %v13017
  %v13043 = vadd.f32 %v12973, %v13017
  %v13044 = vadd.f32 %v12974, %v13017
  %v13045 = vadd.f32 %v12975, %v13017
  %v13046 = vadd.f32 %v12976, %v13017
  %v13047 = vadd.f32 %v12977, %v13017
  %v13048 = vadd.f32 %v12978, %v13017
  %v13049 = vadd.f32 %v12979, %v13017
  %v13050 = vadd.f32 %v12980, %v13017
  %v13051 = vadd.f32 %v12981, %v13017
  %v13052 = vadd.f32 %v12982, %v13017
  %v13053 = vadd.f32 %v12983, %v13017
  %v13054 = vadd.f32 %v12984, %v13017
  %v13055 = vadd.f32 %v12985, %v13017
  %v13056 = vadd.f32 %v12986, %v13017
  %v13057 = vadd.f32 %v12987, %v13017
  %v13058 = vadd.f32 %v12988, %v13017
  %v13059 = vadd.f32 %v12989, %v13017
  %v13060 = vadd.f32 %v12990, %v13017
  %v13061 = vadd.f32 %v12991, %v13017
  %v13062 = vadd.f32 %v12992, %v13017
  %v13063 = vadd.f32 %v12993, %v13017
  %v13064 = vadd.f32 %v12994, %v13017
  %v13065 = vadd.f32 %v12995, %v13017
  %v13066 = vadd.f32 %v12996, %v13017
  %v13067 = vadd.f32 %v12997, %v13017
  %v13068 = vadd.f32 %v12998, %v13017
  %v13069 = vadd.f32 %v12999, %v13017
  %v13070 = vadd.f32 %v13000, %v13017
  %v13071 = vadd.f32 %v13001, %v13017
  %v13072 = vadd.f32 %v13002, %v13017
  %v13073 = vadd.f32 %v13003, %v13017
  %v13074 = vadd.f32 %v13004, %v13017
  %v13075 = vadd.f32 %v13005, %v13017
  %v13076 = vadd.f32 %v13006, %v13017
  %v13077 = vadd.f32 %v13007, %v13017
  %v13078 = vadd.f32 %v13008, %v13017
  %v13079 = vadd.f32 %v13009, %v13017
  %v13080 = vadd.f32 %v13010, %v13017
  %v13081 = vadd.f32 %v13011, %v13017
  %v13082 = vadd.f32 %v13012, %v13017
  %v13083 = vmul.f32 %v13019, 0.5
  %v13084 = vmul.f32 %v13020, 0.5
  %v13085 = vmul.f32 %v13021, 0.5
  %v13086 = vmul.f32 %v13022, 0.5
  %v13087 = vmul.f32 %v13023, 0.5
  %v13088 = vmul.f32 %v13024, 0.5
  %v13089 = vmul.f32 %v13025, 0.5
  %v13090 = vmul.f32 %v13026, 0.5
  %v13091 = vmul.f32 %v13027, 0.5
  %v13092 = vmul.f32 %v13028, 0.5
  %v13093 = vmul.f32 %v13029, 0.5
  %v13094 = vmul.f32 %v13030, 0.5
  %v13095 = vmul.f32 %v13031, 0.5
  %v13096 = vmul.f32 %v13032, 0.5
  %v13097 = vmul.f32 %v13033, 0.5
  %v13098 = vmul.f32 %v13034, 0.5
  %v13099 = vmul.f32 %v13035, 0.5
  %v13100 = vmul.f32 %v13036, 0.5
  %v13101 = vmul.f32 %v13037, 0.5
  %v13102 = vmul.f32 %v13038, 0.5
  %v13103 = vmul.f32 %v13039, 0.5
  %v13104 = vmul.f32 %v13040, 0.5
  %v13105 = vmul.f32 %v13041, 0.5
  %v13106 = vmul.f32 %v13042, 0.5
  %v13107 = vmul.f32 %v13043, 0.5
  %v13108 = vmul.f32 %v13044, 0.5
  %v13109 = vmul.f32 %v13045, 0.5
  %v13110 = vmul.f32 %v13046, 0.5
  %v13111 = vmul.f32 %v13047, 0.5
  %v13112 = vmul.f32 %v13048, 0.5
  %v13113 = vmul.f32 %v13049, 0.5
  %v13114 = vmul.f32 %v13050, 0.5
  %v13115 = vmul.f32 %v13051, 0.5
  %v13116 = vmul.f32 %v13052, 0.5
  %v13117 = vmul.f32 %v13053, 0.5
  %v13118 = vmul.f32 %v13054, 0.5
  %v13119 = vmul.f32 %v13055, 0.5
  %v13120 = vmul.f32 %v13056, 0.5
  %v13121 = vmul.f32 %v13057, 0.5
  %v13122 = vmul.f32 %v13058, 0.5
  %v13123 = vmul.f32 %v13059, 0.5
  %v13124 = vmul.f32 %v13060, 0.5
  %v13125 = vmul.f32 %v13061, 0.5
  %v13126 = vmul.f32 %v13062, 0.5
  %v13127 = vmul.f32 %v13063, 0.5
  %v13128 = vmul.f32 %v13064, 0.5
  %v13129 = vmul.f32 %v13065, 0.5
  %v13130 = vmul.f32 %v13066, 0.5
  %v13131 = vmul.f32 %v13067, 0.5
  %v13132 = vmul.f32 %v13068, 0.5
  %v13133 = vmul.f32 %v13069, 0.5
  %v13134 = vmul.f32 %v13070, 0.5
  %v13135 = vmul.f32 %v13071, 0.5
  %v13136 = vmul.f32 %v13072, 0.5
  %v13137 = vmul.f32 %v13073, 0.5
  %v13138 = vmul.f32 %v13074, 0.5
  %v13139 = vmul.f32 %v13075, 0.5
  %v13140 = vmul.f32 %v13076, 0.5
  %v13141 = vmul.f32 %v13077, 0.5
  %v13142 = vmul.f32 %v13078, 0.5
  %v13143 = vmul.f32 %v13079, 0.5
  %v13144 = vmul.f32 %v13080, 0.5
  %v13145 = vmul.f32 %v13081, 0.5
  %v13146 = vmul.f32 %v13082, 0.5
  %v13147 = vmul.f32 %v13019, 0.70710677
  %v13148 = vmul.f32 %v13020, 0.70710677
  %v13149 = vmul.f32 %v13021, 0.70710677
  %v13150 = vmul.f32 %v13022, 0.70710677
  %v13151 = vmul.f32 %v13023, 0.70710677
  %v13152 = vmul.f32 %v13024, 0.70710677
  %v13153 = vmul.f32 %v13025, 0.70710677
  %v13154 = vmul.f32 %v13026, 0.70710677
  %v13155 = vmul.f32 %v13027, 0.70710677
  %v13156 = vmul.f32 %v13028, 0.70710677
  %v13157 = vmul.f32 %v13029, 0.70710677
  %v13158 = vmul.f32 %v13030, 0.70710677
  %v13159 = vmul.f32 %v13031, 0.70710677
  %v13160 = vmul.f32 %v13032, 0.70710677
  %v13161 = vmul.f32 %v13033, 0.70710677
  %v13162 = vmul.f32 %v13034, 0.70710677
  %v13163 = vmul.f32 %v13035, 0.70710677
  %v13164 = vmul.f32 %v13036, 0.70710677
  %v13165 = vmul.f32 %v13037, 0.70710677
  %v13166 = vmul.f32 %v13038, 0.70710677
  %v13167 = vmul.f32 %v13039, 0.70710677
  %v13168 = vmul.f32 %v13040, 0.70710677
  %v13169 = vmul.f32 %v13041, 0.70710677
  %v13170 = vmul.f32 %v13042, 0.70710677
  %v13171 = vmul.f32 %v13043, 0.70710677
  %v13172 = vmul.f32 %v13044, 0.70710677
  %v13173 = vmul.f32 %v13045, 0.70710677
  %v13174 = vmul.f32 %v13046, 0.70710677
  %v13175 = vmul.f32 %v13047, 0.70710677
  %v13176 = vmul.f32 %v13048, 0.70710677
  %v13177 = vmul.f32 %v13049, 0.70710677
  %v13178 = vmul.f32 %v13050, 0.70710677
  %v13179 = vmul.f32 %v13051, 0.70710677
  %v13180 = vmul.f32 %v13052, 0.70710677
  %v13181 = vmul.f32 %v13053, 0.70710677
  %v13182 = vmul.f32 %v13054, 0.70710677
  %v13183 = vmul.f32 %v13055, 0.70710677
  %v13184 = vmul.f32 %v13056, 0.70710677
  %v13185 = vmul.f32 %v13057, 0.70710677
  %v13186 = vmul.f32 %v13058, 0.70710677
  %v13187 = vmul.f32 %v13059, 0.70710677
  %v13188 = vmul.f32 %v13060, 0.70710677
  %v13189 = vmul.f32 %v13061, 0.70710677
  %v13190 = vmul.f32 %v13062, 0.70710677
  %v13191 = vmul.f32 %v13063, 0.70710677
  %v13192 = vmul.f32 %v13064, 0.70710677
  %v13193 = vmul.f32 %v13065, 0.70710677
  %v13194 = vmul.f32 %v13066, 0.70710677
  %v13195 = vmul.f32 %v13067, 0.70710677
  %v13196 = vmul.f32 %v13068, 0.70710677
  %v13197 = vmul.f32 %v13069, 0.70710677
  %v13198 = vmul.f32 %v13070, 0.70710677
  %v13199 = vmul.f32 %v13071, 0.70710677
  %v13200 = vmul.f32 %v13072, 0.70710677
  %v13201 = vmul.f32 %v13073, 0.70710677
  %v13202 = vmul.f32 %v13074, 0.70710677
  %v13203 = vmul.f32 %v13075, 0.70710677
  %v13204 = vmul.f32 %v13076, 0.70710677
  %v13205 = vmul.f32 %v13077, 0.70710677
  %v13206 = vmul.f32 %v13078, 0.70710677
  %v13207 = vmul.f32 %v13079, 0.70710677
  %v13208 = vmul.f32 %v13080, 0.70710677
  %v13209 = vmul.f32 %v13081, 0.70710677
  %v13210 = vmul.f32 %v13082, 0.70710677
  %v13211 = verf.f32.pop %v13147
  %v13212 = verf.f32.pop %v13148
  %v13213 = verf.f32.pop %v13149
  %v13214 = verf.f32.pop %v13150
  %v13215 = verf.f32.pop %v13151
  %v13216 = verf.f32.pop %v13152
  %v13217 = verf.f32.pop %v13153
  %v13218 = verf.f32.pop %v13154
  %v13219 = verf.f32.pop %v13155
  %v13220 = verf.f32.pop %v13156
  %v13221 = verf.f32.pop %v13157
  %v13222 = verf.f32.pop %v13158
  %v13223 = verf.f32.pop %v13159
  %v13224 = verf.f32.pop %v13160
  %v13225 = verf.f32.pop %v13161
  %v13226 = verf.f32.pop %v13162
  %v13227 = verf.f32.pop %v13163
  %v13228 = verf.f32.pop %v13164
  %v13229 = verf.f32.pop %v13165
  %v13230 = verf.f32.pop %v13166
  %v13231 = verf.f32.pop %v13167
  %v13232 = verf.f32.pop %v13168
  %v13233 = verf.f32.pop %v13169
  %v13234 = verf.f32.pop %v13170
  %v13235 = verf.f32.pop %v13171
  %v13236 = verf.f32.pop %v13172
  %v13237 = verf.f32.pop %v13173
  %v13238 = verf.f32.pop %v13174
  %v13239 = verf.f32.pop %v13175
  %v13240 = verf.f32.pop %v13176
  %v13241 = verf.f32.pop %v13177
  %v13242 = verf.f32.pop %v13178
  %v13243 = verf.f32.pop %v13179
  %v13244 = verf.f32.pop %v13180
  %v13245 = verf.f32.pop %v13181
  %v13246 = verf.f32.pop %v13182
  %v13247 = verf.f32.pop %v13183
  %v13248 = verf.f32.pop %v13184
  %v13249 = verf.f32.pop %v13185
  %v13250 = verf.f32.pop %v13186
  %v13251 = verf.f32.pop %v13187
  %v13252 = verf.f32.pop %v13188
  %v13253 = verf.f32.pop %v13189
  %v13254 = verf.f32.pop %v13190
  %v13255 = verf.f32.pop %v13191
  %v13256 = verf.f32.pop %v13192
  %v13257 = verf.f32.pop %v13193
  %v13258 = verf.f32.pop %v13194
  %v13259 = verf.f32.pop %v13195
  %v13260 = verf.f32.pop %v13196
  %v13261 = verf.f32.pop %v13197
  %v13262 = verf.f32.pop %v13198
  %v13263 = verf.f32.pop %v13199
  %v13264 = verf.f32.pop %v13200
  %v13265 = verf.f32.pop %v13201
  %v13266 = verf.f32.pop %v13202
  %v13267 = verf.f32.pop %v13203
  %v13268 = verf.f32.pop %v13204
  %v13269 = verf.f32.pop %v13205
  %v13270 = verf.f32.pop %v13206
  %v13271 = verf.f32.pop %v13207
  %v13272 = verf.f32.pop %v13208
  %v13273 = verf.f32.pop %v13209
  %v13274 = verf.f32.pop %v13210
  %v13275 = vadd.f32 %v13211, 1.0
  %v13276 = vadd.f32 %v13212, 1.0
  %v13277 = vadd.f32 %v13213, 1.0
  %v13278 = vadd.f32 %v13214, 1.0
  %v13279 = vadd.f32 %v13215, 1.0
  %v13280 = vadd.f32 %v13216, 1.0
  %v13281 = vadd.f32 %v13217, 1.0
  %v13282 = vadd.f32 %v13218, 1.0
  %v13283 = vadd.f32 %v13219, 1.0
  %v13284 = vadd.f32 %v13220, 1.0
  %v13285 = vadd.f32 %v13221, 1.0
  %v13286 = vadd.f32 %v13222, 1.0
  %v13287 = vadd.f32 %v13223, 1.0
  %v13288 = vadd.f32 %v13224, 1.0
  %v13289 = vadd.f32 %v13225, 1.0
  %v13290 = vadd.f32 %v13226, 1.0
  %v13291 = vadd.f32 %v13227, 1.0
  %v13292 = vadd.f32 %v13228, 1.0
  %v13293 = vadd.f32 %v13229, 1.0
  %v13294 = vadd.f32 %v13230, 1.0
  %v13295 = vadd.f32 %v13231, 1.0
  %v13296 = vadd.f32 %v13232, 1.0
  %v13297 = vadd.f32 %v13233, 1.0
  %v13298 = vadd.f32 %v13234, 1.0
  %v13299 = vadd.f32 %v13235, 1.0
  %v13300 = vadd.f32 %v13236, 1.0
  %v13301 = vadd.f32 %v13237, 1.0
  %v13302 = vadd.f32 %v13238, 1.0
  %v13303 = vadd.f32 %v13239, 1.0
  %v13304 = vadd.f32 %v13240, 1.0
  %v13305 = vadd.f32 %v13241, 1.0
  %v13306 = vadd.f32 %v13242, 1.0
  %v13307 = vadd.f32 %v13243, 1.0
  %v13308 = vadd.f32 %v13244, 1.0
  %v13309 = vadd.f32 %v13245, 1.0
  %v13310 = vadd.f32 %v13246, 1.0
  %v13311 = vadd.f32 %v13247, 1.0
  %v13312 = vadd.f32 %v13248, 1.0
  %v13313 = vadd.f32 %v13249, 1.0
  %v13314 = vadd.f32 %v13250, 1.0
  %v13315 = vadd.f32 %v13251, 1.0
  %v13316 = vadd.f32 %v13252, 1.0
  %v13317 = vadd.f32 %v13253, 1.0
  %v13318 = vadd.f32 %v13254, 1.0
  %v13319 = vadd.f32 %v13255, 1.0
  %v13320 = vadd.f32 %v13256, 1.0
  %v13321 = vadd.f32 %v13257, 1.0
  %v13322 = vadd.f32 %v13258, 1.0
  %v13323 = vadd.f32 %v13259, 1.0
  %v13324 = vadd.f32 %v13260, 1.0
  %v13325 = vadd.f32 %v13261, 1.0
  %v13326 = vadd.f32 %v13262, 1.0
  %v13327 = vadd.f32 %v13263, 1.0
  %v13328 = vadd.f32 %v13264, 1.0
  %v13329 = vadd.f32 %v13265, 1.0
  %v13330 = vadd.f32 %v13266, 1.0
  %v13331 = vadd.f32 %v13267, 1.0
  %v13332 = vadd.f32 %v13268, 1.0
  %v13333 = vadd.f32 %v13269, 1.0
  %v13334 = vadd.f32 %v13270, 1.0
  %v13335 = vadd.f32 %v13271, 1.0
  %v13336 = vadd.f32 %v13272, 1.0
  %v13337 = vadd.f32 %v13273, 1.0
  %v13338 = vadd.f32 %v13274, 1.0
  %v13339 = vmul.f32 %v13083, %v13275
  %v13340 = vmul.f32 %v13084, %v13276
  %v13341 = vmul.f32 %v13085, %v13277
  %v13342 = vmul.f32 %v13086, %v13278
  %v13343 = vmul.f32 %v13087, %v13279
  %v13344 = vmul.f32 %v13088, %v13280
  %v13345 = vmul.f32 %v13089, %v13281
  %v13346 = vmul.f32 %v13090, %v13282
  %v13347 = vmul.f32 %v13091, %v13283
  %v13348 = vmul.f32 %v13092, %v13284
  %v13349 = vmul.f32 %v13093, %v13285
  %v13350 = vmul.f32 %v13094, %v13286
  %v13351 = vmul.f32 %v13095, %v13287
  %v13352 = vmul.f32 %v13096, %v13288
  %v13353 = vmul.f32 %v13097, %v13289
  %v13354 = vmul.f32 %v13098, %v13290
  %v13355 = vmul.f32 %v13099, %v13291
  %v13356 = vmul.f32 %v13100, %v13292
  %v13357 = vmul.f32 %v13101, %v13293
  %v13358 = vmul.f32 %v13102, %v13294
  %v13359 = vmul.f32 %v13103, %v13295
  %v13360 = vmul.f32 %v13104, %v13296
  %v13361 = vmul.f32 %v13105, %v13297
  %v13362 = vmul.f32 %v13106, %v13298
  %v13363 = vmul.f32 %v13107, %v13299
  %v13364 = vmul.f32 %v13108, %v13300
  %v13365 = vmul.f32 %v13109, %v13301
  %v13366 = vmul.f32 %v13110, %v13302
  %v13367 = vmul.f32 %v13111, %v13303
  %v13368 = vmul.f32 %v13112, %v13304
  %v13369 = vmul.f32 %v13113, %v13305
  %v13370 = vmul.f32 %v13114, %v13306
  %v13371 = vmul.f32 %v13115, %v13307
  %v13372 = vmul.f32 %v13116, %v13308
  %v13373 = vmul.f32 %v13117, %v13309
  %v13374 = vmul.f32 %v13118, %v13310
  %v13375 = vmul.f32 %v13119, %v13311
  %v13376 = vmul.f32 %v13120, %v13312
  %v13377 = vmul.f32 %v13121, %v13313
  %v13378 = vmul.f32 %v13122, %v13314
  %v13379 = vmul.f32 %v13123, %v13315
  %v13380 = vmul.f32 %v13124, %v13316
  %v13381 = vmul.f32 %v13125, %v13317
  %v13382 = vmul.f32 %v13126, %v13318
  %v13383 = vmul.f32 %v13127, %v13319
  %v13384 = vmul.f32 %v13128, %v13320
  %v13385 = vmul.f32 %v13129, %v13321
  %v13386 = vmul.f32 %v13130, %v13322
  %v13387 = vmul.f32 %v13131, %v13323
  %v13388 = vmul.f32 %v13132, %v13324
  %v13389 = vmul.f32 %v13133, %v13325
  %v13390 = vmul.f32 %v13134, %v13326
  %v13391 = vmul.f32 %v13135, %v13327
  %v13392 = vmul.f32 %v13136, %v13328
  %v13393 = vmul.f32 %v13137, %v13329
  %v13394 = vmul.f32 %v13138, %v13330
  %v13395 = vmul.f32 %v13139, %v13331
  %v13396 = vmul.f32 %v13140, %v13332
  %v13397 = vmul.f32 %v13141, %v13333
  %v13398 = vmul.f32 %v13142, %v13334
  %v13399 = vmul.f32 %v13143, %v13335
  %v13400 = vmul.f32 %v13144, %v13336
  %v13401 = vmul.f32 %v13145, %v13337
  %v13402 = vmul.f32 %v13146, %v13338
  %v13403 = vpack.c.bf16 %v13340, %v13339
  %v13404 = vpack.c.bf16 %v13342, %v13341
  %v13405 = vpack.c.bf16 %v13344, %v13343
  %v13406 = vpack.c.bf16 %v13346, %v13345
  %v13407 = vpack.c.bf16 %v13348, %v13347
  %v13408 = vpack.c.bf16 %v13350, %v13349
  %v13409 = vpack.c.bf16 %v13352, %v13351
  %v13410 = vpack.c.bf16 %v13354, %v13353
  %v13411 = vpack.c.bf16 %v13356, %v13355
  %v13412 = vpack.c.bf16 %v13358, %v13357
  %v13413 = vpack.c.bf16 %v13360, %v13359
  %v13414 = vpack.c.bf16 %v13362, %v13361
  %v13415 = vpack.c.bf16 %v13364, %v13363
  %v13416 = vpack.c.bf16 %v13366, %v13365
  %v13417 = vpack.c.bf16 %v13368, %v13367
  %v13418 = vpack.c.bf16 %v13370, %v13369
  %v13419 = vpack.c.bf16 %v13372, %v13371
  %v13420 = vpack.c.bf16 %v13374, %v13373
  %v13421 = vpack.c.bf16 %v13376, %v13375
  %v13422 = vpack.c.bf16 %v13378, %v13377
  %v13423 = vpack.c.bf16 %v13380, %v13379
  %v13424 = vpack.c.bf16 %v13382, %v13381
  %v13425 = vpack.c.bf16 %v13384, %v13383
  %v13426 = vpack.c.bf16 %v13386, %v13385
  %v13427 = vpack.c.bf16 %v13388, %v13387
  %v13428 = vpack.c.bf16 %v13390, %v13389
  %v13429 = vpack.c.bf16 %v13392, %v13391
  %v13430 = vpack.c.bf16 %v13394, %v13393
  %v13431 = vpack.c.bf16 %v13396, %v13395
  %v13432 = vpack.c.bf16 %v13398, %v13397
  %v13433 = vpack.c.bf16 %v13400, %v13399
  %v13434 = vpack.c.bf16 %v13402, %v13401
  %v13435 = vld [vmem:[%s4] sm:$0xf]
  %v13436 = vld [vmem:[%s4 + $0x4] sm:$0xf]
  %v13437 = vld [vmem:[%s5] sm:$0x1]
  %v13439 = vlaneseq
  %v13440 = vshrl.u32 %v13439, 7
  %v13441 = vsub.s32 0, %v13440
  %v13442 = vrot.slane %v13437, %v13441
  %v13446 = vunpack.c.l.b16 %v13435
  %v13447 = vunpack.c.l.b16 %v13436
  %v13448 = vpack.c.b16 %v13447, %v13446
  %v13451 = vsel %vm5699, %v13403, 0
  %v13454 = vsel %vm5699, %v13404, 0
  %v13457 = vsel %vm5699, %v13405, 0
  %v13460 = vsel %vm5699, %v13406, 0
  %v13463 = vsel %vm5699, %v13407, 0
  %v13466 = vsel %vm5699, %v13408, 0
  %v13469 = vsel %vm5699, %v13409, 0
  %v13472 = vsel %vm5699, %v13410, 0
  %v13475 = vsel %vm5699, %v13411, 0
  %v13478 = vsel %vm5699, %v13412, 0
  %v13481 = vsel %vm5699, %v13413, 0
  %v13484 = vsel %vm5699, %v13414, 0
  %v13487 = vsel %vm5699, %v13415, 0
  %v13490 = vsel %vm5699, %v13416, 0
  %v13493 = vsel %vm5699, %v13417, 0
  %v13496 = vsel %vm5699, %v13418, 0
  %v13499 = vsel %vm5699, %v13419, 0
  %v13502 = vsel %vm5699, %v13420, 0
  %v13505 = vsel %vm5699, %v13421, 0
  %v13508 = vsel %vm5699, %v13422, 0
  %v13511 = vsel %vm5699, %v13423, 0
  %v13514 = vsel %vm5699, %v13424, 0
  %v13517 = vsel %vm5699, %v13425, 0
  %v13520 = vsel %vm5699, %v13426, 0
  %v13523 = vsel %vm5699, %v13427, 0
  %v13526 = vsel %vm5699, %v13428, 0
  %v13529 = vsel %vm5699, %v13429, 0
  %v13532 = vsel %vm5699, %v13430, 0
  %v13535 = vsel %vm5699, %v13431, 0
  %v13538 = vsel %vm5699, %v13432, 0
  %v13541 = vsel %vm5699, %v13433, 0
  %v13544 = vsel %vm5699, %v13434, 0
  %13546 = vmatprep.subr.bf16.mxu0 0
  %13547 = vmatpush1.bf16.msra.mxu0 %v13448
  %13548 = vmatprep.subr.bf16.mxu0 0
  %13549 = vmatpush1.bf16.msra.mxu0 0
  %13550 = vmatprep.subr.bf16.mxu0 0
  %13551 = vmatpush1.bf16.msra.mxu0 0
  %13552 = vmatprep.subr.bf16.mxu0 0
  %13553 = vmatpush1.bf16.msra.mxu0 0
  %13554 = vmatprep.subr.bf16.mxu0 0
  %13555 = vmatpush1.bf16.msra.mxu0 0
  %13556 = vmatprep.subr.bf16.mxu0 0
  %13557 = vmatpush1.bf16.msra.mxu0 0
  %13558 = vmatprep.subr.bf16.mxu0 0
  %13559 = vmatpush1.bf16.msra.mxu0 0
  %13560 = vmatprep.subr.bf16.mxu0 0
  %13561 = vmatpush1.bf16.msra.mxu0 0
  %13562 = vmatprep.subr.bf16.mxu0 0
  %13563 = vmatpush1.bf16.msra.mxu0 0
  %13564 = vmatprep.subr.bf16.mxu0 0
  %13565 = vmatpush1.bf16.msra.mxu0 0
  %13566 = vmatprep.subr.bf16.mxu0 0
  %13567 = vmatpush1.bf16.msra.mxu0 0
  %13568 = vmatprep.subr.bf16.mxu0 0
  %13569 = vmatpush1.bf16.msra.mxu0 0
  %13570 = vmatprep.subr.bf16.mxu0 0
  %13571 = vmatpush1.bf16.msra.mxu0 0
  %13572 = vmatprep.subr.bf16.mxu0 0
  %13573 = vmatpush1.bf16.msra.mxu0 0
  %13574 = vmatprep.subr.bf16.mxu0 0
  %13575 = vmatpush1.bf16.msra.mxu0 0
  %13576 = vmatprep.subr.bf16.mxu0 0
  %13577 = vmatpush1.bf16.msra.mxu0 0
  %13578 = vmatprep.mubr.bf16.mxu0 0
  %13579 = vmatmul.mubr.bf16.gmra.mrb[0].mxu0 %v13451
  %v13580 = vpop.f32.mrb[0].mxu0
  %v13581 = vadd.f32 %v13442, %v13580
  %v13582 = vpop.f32.mrb[0].mxu0
  %v13583 = vpop.f32.mrb[0].mxu0
  %v13584 = vadd.f32 %v13442, %v13583
  %v13585 = vpop.f32.mrb[0].mxu0
  %13586 = vmatprep.mubr.bf16.mxu0 0
  %13587 = vmatmul.mubr.bf16.gmra.mrb[0].mxu0 %v13454
  %v13588 = vpop.f32.mrb[0].mxu0
  %v13589 = vadd.f32 %v13442, %v13588
  %v13590 = vpop.f32.mrb[0].mxu0
  %v13591 = vpop.f32.mrb[0].mxu0
  %v13592 = vadd.f32 %v13442, %v13591
  %v13593 = vpop.f32.mrb[0].mxu0
  %13594 = vmatprep.mubr.bf16.mxu0 0
  %13595 = vmatmul.mubr.bf16.gmra.mrb[0].mxu0 %v13457
  %v13596 = vpop.f32.mrb[0].mxu0
  %v13597 = vadd.f32 %v13442, %v13596
  %v13598 = vpop.f32.mrb[0].mxu0
  %v13599 = vpop.f32.mrb[0].mxu0
  %v13600 = vadd.f32 %v13442, %v13599
  %v13601 = vpop.f32.mrb[0].mxu0
  %13602 = vmatprep.mubr.bf16.mxu0 0
  %13603 = vmatmul.mubr.bf16.gmra.mrb[0].mxu0 %v13460
  %v13604 = vpop.f32.mrb[0].mxu0
  %v13605 = vadd.f32 %v13442, %v13604
  %v13606 = vpop.f32.mrb[0].mxu0
  %v13607 = vpop.f32.mrb[0].mxu0
  %v13608 = vadd.f32 %v13442, %v13607
  %v13609 = vpop.f32.mrb[0].mxu0
  %13610 = vmatprep.mubr.bf16.mxu0 0
  %13611 = vmatmul.mubr.bf16.gmra.mrb[0].mxu0 %v13463
  %v13612 = vpop.f32.mrb[0].mxu0
  %v13613 = vadd.f32 %v13442, %v13612
  %v13614 = vpop.f32.mrb[0].mxu0
  %v13615 = vpop.f32.mrb[0].mxu0
  %v13616 = vadd.f32 %v13442, %v13615
  %v13617 = vpop.f32.mrb[0].mxu0
  %13618 = vmatprep.mubr.bf16.mxu0 0
  %13619 = vmatmul.mubr.bf16.gmra.mrb[0].mxu0 %v13466
  %v13620 = vpop.f32.mrb[0].mxu0
  %v13621 = vadd.f32 %v13442, %v13620
  %v13622 = vpop.f32.mrb[0].mxu0
  %v13623 = vpop.f32.mrb[0].mxu0
  %v13624 = vadd.f32 %v13442, %v13623
  %v13625 = vpop.f32.mrb[0].mxu0
  %13626 = vmatprep.mubr.bf16.mxu0 0
  %13627 = vmatmul.mubr.bf16.gmra.mrb[0].mxu0 %v13469
  %v13628 = vpop.f32.mrb[0].mxu0
  %v13629 = vadd.f32 %v13442, %v13628
  %v13630 = vpop.f32.mrb[0].mxu0
  %v13631 = vpop.f32.mrb[0].mxu0
  %v13632 = vadd.f32 %v13442, %v13631
  %v13633 = vpop.f32.mrb[0].mxu0
  %13634 = vmatprep.mubr.bf16.mxu0 0
  %13635 = vmatmul.mubr.bf16.gmra.mrb[0].mxu0 %v13472
  %v13636 = vpop.f32.mrb[0].mxu0
  %v13637 = vadd.f32 %v13442, %v13636
  %v13638 = vpop.f32.mrb[0].mxu0
  %v13639 = vpop.f32.mrb[0].mxu0
  %v13640 = vadd.f32 %v13442, %v13639
  %v13641 = vpop.f32.mrb[0].mxu0
  %13642 = vmatprep.mubr.bf16.mxu0 0
  %13643 = vmatmul.mubr.bf16.gmra.mrb[0].mxu0 %v13475
  %v13644 = vpop.f32.mrb[0].mxu0
  %v13645 = vadd.f32 %v13442, %v13644
  %v13646 = vpop.f32.mrb[0].mxu0
  %v13647 = vpop.f32.mrb[0].mxu0
  %v13648 = vadd.f32 %v13442, %v13647
  %v13649 = vpop.f32.mrb[0].mxu0
  %13650 = vmatprep.mubr.bf16.mxu0 0
  %13651 = vmatmul.mubr.bf16.gmra.mrb[0].mxu0 %v13478
  %v13652 = vpop.f32.mrb[0].mxu0
  %v13653 = vadd.f32 %v13442, %v13652
  %v13654 = vpop.f32.mrb[0].mxu0
  %v13655 = vpop.f32.mrb[0].mxu0
  %v13656 = vadd.f32 %v13442, %v13655
  %v13657 = vpop.f32.mrb[0].mxu0
  %13658 = vmatprep.mubr.bf16.mxu0 0
  %13659 = vmatmul.mubr.bf16.gmra.mrb[0].mxu0 %v13481
  %v13660 = vpop.f32.mrb[0].mxu0
  %v13661 = vadd.f32 %v13442, %v13660
  %v13662 = vpop.f32.mrb[0].mxu0
  %v13663 = vpop.f32.mrb[0].mxu0
  %v13664 = vadd.f32 %v13442, %v13663
  %v13665 = vpop.f32.mrb[0].mxu0
  %13666 = vmatprep.mubr.bf16.mxu0 0
  %13667 = vmatmul.mubr.bf16.gmra.mrb[0].mxu0 %v13484
  %v13668 = vpop.f32.mrb[0].mxu0
  %v13669 = vadd.f32 %v13442, %v13668
  %v13670 = vpop.f32.mrb[0].mxu0
  %v13671 = vpop.f32.mrb[0].mxu0
  %v13672 = vadd.f32 %v13442, %v13671
  %v13673 = vpop.f32.mrb[0].mxu0
  %13674 = vmatprep.mubr.bf16.mxu0 0
  %13675 = vmatmul.mubr.bf16.gmra.mrb[0].mxu0 %v13487
  %v13676 = vpop.f32.mrb[0].mxu0
  %v13677 = vadd.f32 %v13442, %v13676
  %v13678 = vpop.f32.mrb[0].mxu0
  %v13679 = vpop.f32.mrb[0].mxu0
  %v13680 = vadd.f32 %v13442, %v13679
  %v13681 = vpop.f32.mrb[0].mxu0
  %13682 = vmatprep.mubr.bf16.mxu0 0
  %13683 = vmatmul.mubr.bf16.gmra.mrb[0].mxu0 %v13490
  %v13684 = vpop.f32.mrb[0].mxu0
  %v13685 = vadd.f32 %v13442, %v13684
  %v13686 = vpop.f32.mrb[0].mxu0
  %v13687 = vpop.f32.mrb[0].mxu0
  %v13688 = vadd.f32 %v13442, %v13687
  %v13689 = vpop.f32.mrb[0].mxu0
  %13690 = vmatprep.mubr.bf16.mxu0 0
  %13691 = vmatmul.mubr.bf16.gmra.mrb[0].mxu0 %v13493
  %v13692 = vpop.f32.mrb[0].mxu0
  %v13693 = vadd.f32 %v13442, %v13692
  %v13694 = vpop.f32.mrb[0].mxu0
  %v13695 = vpop.f32.mrb[0].mxu0
  %v13696 = vadd.f32 %v13442, %v13695
  %v13697 = vpop.f32.mrb[0].mxu0
  %13698 = vmatprep.mubr.bf16.mxu0 0
  %13699 = vmatmul.mubr.bf16.gmra.mrb[0].mxu0 %v13496
  %v13700 = vpop.f32.mrb[0].mxu0
  %v13701 = vadd.f32 %v13442, %v13700
  %v13702 = vpop.f32.mrb[0].mxu0
  %v13703 = vpop.f32.mrb[0].mxu0
  %v13704 = vadd.f32 %v13442, %v13703
  %v13705 = vpop.f32.mrb[0].mxu0
  %13706 = vmatprep.mubr.bf16.mxu0 0
  %13707 = vmatmul.mubr.bf16.gmra.mrb[0].mxu0 %v13499
  %v13708 = vpop.f32.mrb[0].mxu0
  %v13709 = vadd.f32 %v13442, %v13708
  %v13710 = vpop.f32.mrb[0].mxu0
  %v13711 = vpop.f32.mrb[0].mxu0
  %v13712 = vadd.f32 %v13442, %v13711
  %v13713 = vpop.f32.mrb[0].mxu0
  %13714 = vmatprep.mubr.bf16.mxu0 0
  %13715 = vmatmul.mubr.bf16.gmra.mrb[0].mxu0 %v13502
  %v13716 = vpop.f32.mrb[0].mxu0
  %v13717 = vadd.f32 %v13442, %v13716
  %v13718 = vpop.f32.mrb[0].mxu0
  %v13719 = vpop.f32.mrb[0].mxu0
  %v13720 = vadd.f32 %v13442, %v13719
  %v13721 = vpop.f32.mrb[0].mxu0
  %13722 = vmatprep.mubr.bf16.mxu0 0
  %13723 = vmatmul.mubr.bf16.gmra.mrb[0].mxu0 %v13505
  %v13724 = vpop.f32.mrb[0].mxu0
  %v13725 = vadd.f32 %v13442, %v13724
  %v13726 = vpop.f32.mrb[0].mxu0
  %v13727 = vpop.f32.mrb[0].mxu0
  %v13728 = vadd.f32 %v13442, %v13727
  %v13729 = vpop.f32.mrb[0].mxu0
  %13730 = vmatprep.mubr.bf16.mxu0 0
  %13731 = vmatmul.mubr.bf16.gmra.mrb[0].mxu0 %v13508
  %v13732 = vpop.f32.mrb[0].mxu0
  %v13733 = vadd.f32 %v13442, %v13732
  %v13734 = vpop.f32.mrb[0].mxu0
  %v13735 = vpop.f32.mrb[0].mxu0
  %v13736 = vadd.f32 %v13442, %v13735
  %v13737 = vpop.f32.mrb[0].mxu0
  %13738 = vmatprep.mubr.bf16.mxu0 0
  %13739 = vmatmul.mubr.bf16.gmra.mrb[0].mxu0 %v13511
  %v13740 = vpop.f32.mrb[0].mxu0
  %v13741 = vadd.f32 %v13442, %v13740
  %v13742 = vpop.f32.mrb[0].mxu0
  %v13743 = vpop.f32.mrb[0].mxu0
  %v13744 = vadd.f32 %v13442, %v13743
  %v13745 = vpop.f32.mrb[0].mxu0
  %13746 = vmatprep.mubr.bf16.mxu0 0
  %13747 = vmatmul.mubr.bf16.gmra.mrb[0].mxu0 %v13514
  %v13748 = vpop.f32.mrb[0].mxu0
  %v13749 = vadd.f32 %v13442, %v13748
  %v13750 = vpop.f32.mrb[0].mxu0
  %v13751 = vpop.f32.mrb[0].mxu0
  %v13752 = vadd.f32 %v13442, %v13751
  %v13753 = vpop.f32.mrb[0].mxu0
  %13754 = vmatprep.mubr.bf16.mxu0 0
  %13755 = vmatmul.mubr.bf16.gmra.mrb[0].mxu0 %v13517
  %v13756 = vpop.f32.mrb[0].mxu0
  %v13757 = vadd.f32 %v13442, %v13756
  %v13758 = vpop.f32.mrb[0].mxu0
  %v13759 = vpop.f32.mrb[0].mxu0
  %v13760 = vadd.f32 %v13442, %v13759
  %v13761 = vpop.f32.mrb[0].mxu0
  %13762 = vmatprep.mubr.bf16.mxu0 0
  %13763 = vmatmul.mubr.bf16.gmra.mrb[0].mxu0 %v13520
  %v13764 = vpop.f32.mrb[0].mxu0
  %v13765 = vadd.f32 %v13442, %v13764
  %v13766 = vpop.f32.mrb[0].mxu0
  %v13767 = vpop.f32.mrb[0].mxu0
  %v13768 = vadd.f32 %v13442, %v13767
  %v13769 = vpop.f32.mrb[0].mxu0
  %13770 = vmatprep.mubr.bf16.mxu0 0
  %13771 = vmatmul.mubr.bf16.gmra.mrb[0].mxu0 %v13523
  %v13772 = vpop.f32.mrb[0].mxu0
  %v13773 = vadd.f32 %v13442, %v13772
  %v13774 = vpop.f32.mrb[0].mxu0
  %v13775 = vpop.f32.mrb[0].mxu0
  %v13776 = vadd.f32 %v13442, %v13775
  %v13777 = vpop.f32.mrb[0].mxu0
  %13778 = vmatprep.mubr.bf16.mxu0 0
  %13779 = vmatmul.mubr.bf16.gmra.mrb[0].mxu0 %v13526
  %v13780 = vpop.f32.mrb[0].mxu0
  %v13781 = vadd.f32 %v13442, %v13780
  %v13782 = vpop.f32.mrb[0].mxu0
  %v13783 = vpop.f32.mrb[0].mxu0
  %v13784 = vadd.f32 %v13442, %v13783
  %v13785 = vpop.f32.mrb[0].mxu0
  %13786 = vmatprep.mubr.bf16.mxu0 0
  %13787 = vmatmul.mubr.bf16.gmra.mrb[0].mxu0 %v13529
  %v13788 = vpop.f32.mrb[0].mxu0
  %v13789 = vadd.f32 %v13442, %v13788
  %v13790 = vpop.f32.mrb[0].mxu0
  %v13791 = vpop.f32.mrb[0].mxu0
  %v13792 = vadd.f32 %v13442, %v13791
  %v13793 = vpop.f32.mrb[0].mxu0
  %13794 = vmatprep.mubr.bf16.mxu0 0
  %13795 = vmatmul.mubr.bf16.gmra.mrb[0].mxu0 %v13532
  %v13796 = vpop.f32.mrb[0].mxu0
  %v13797 = vadd.f32 %v13442, %v13796
  %v13798 = vpop.f32.mrb[0].mxu0
  %v13799 = vpop.f32.mrb[0].mxu0
  %v13800 = vadd.f32 %v13442, %v13799
  %v13801 = vpop.f32.mrb[0].mxu0
  %13802 = vmatprep.mubr.bf16.mxu0 0
  %13803 = vmatmul.mubr.bf16.gmra.mrb[0].mxu0 %v13535
  %v13804 = vpop.f32.mrb[0].mxu0
  %v13805 = vadd.f32 %v13442, %v13804
  %v13806 = vpop.f32.mrb[0].mxu0
  %v13807 = vpop.f32.mrb[0].mxu0
  %v13808 = vadd.f32 %v13442, %v13807
  %v13809 = vpop.f32.mrb[0].mxu0
  %13810 = vmatprep.mubr.bf16.mxu0 0
  %13811 = vmatmul.mubr.bf16.gmra.mrb[0].mxu0 %v13538
  %v13812 = vpop.f32.mrb[0].mxu0
  %v13813 = vadd.f32 %v13442, %v13812
  %v13814 = vpop.f32.mrb[0].mxu0
  %v13815 = vpop.f32.mrb[0].mxu0
  %v13816 = vadd.f32 %v13442, %v13815
  %v13817 = vpop.f32.mrb[0].mxu0
  %13818 = vmatprep.mubr.bf16.mxu0 0
  %13819 = vmatmul.mubr.bf16.gmra.mrb[0].mxu0 %v13541
  %v13820 = vpop.f32.mrb[0].mxu0
  %v13821 = vadd.f32 %v13442, %v13820
  %v13822 = vpop.f32.mrb[0].mxu0
  %v13823 = vpop.f32.mrb[0].mxu0
  %v13824 = vadd.f32 %v13442, %v13823
  %v13825 = vpop.f32.mrb[0].mxu0
  %13826 = vmatprep.mubr.bf16.mxu0 0
  %13827 = vmatmul.mubr.bf16.gmra.mrb[0].mxu0 %v13544
  %v13828 = vpop.f32.mrb[0].mxu0
  %v13829 = vadd.f32 %v13442, %v13828
  %v13830 = vpop.f32.mrb[0].mxu0
  %v13831 = vpop.f32.mrb[0].mxu0
  %v13832 = vadd.f32 %v13442, %v13831
  %v13833 = vpop.f32.mrb[0].mxu0
  %13834 = vdwg.mxu0
  %v13867 = vrot.slane %v13589, 7
  %vm13868 = vcmask 1041409
  %v13869 = vsel %vm13868, %v13867, %v13581
  %v13870 = vrot.slane %v13597, 6
  %vm13871 = vcmask 1042434
  %v13872 = vsel %vm13871, %v13870, %v13869
  %v13873 = vrot.slane %v13605, 5
  %vm13874 = vcmask 1043459
  %v13875 = vsel %vm13874, %v13873, %v13872
  %v13876 = vrot.slane %v13613, 4
  %vm13877 = vcmask 1044484
  %v13878 = vsel %vm13877, %v13876, %v13875
  %v13879 = vrot.slane %v13621, 3
  %vm13880 = vcmask 1045509
  %v13881 = vsel %vm13880, %v13879, %v13878
  %v13882 = vrot.slane %v13629, 2
  %vm13883 = vcmask 1046534
  %v13884 = vsel %vm13883, %v13882, %v13881
  %v13885 = vrot.slane %v13637, 1
  %vm13886 = vcmask 1047559
  %v13887 = vsel %vm13886, %v13885, %v13884
  %v13888 = vrot.slane %v13653, 7
  %v13889 = vsel %vm13868, %v13888, %v13645
  %v13890 = vrot.slane %v13661, 6
  %v13891 = vsel %vm13871, %v13890, %v13889
  %v13892 = vrot.slane %v13669, 5
  %v13893 = vsel %vm13874, %v13892, %v13891
  %v13894 = vrot.slane %v13677, 4
  %v13895 = vsel %vm13877, %v13894, %v13893
  %v13896 = vrot.slane %v13685, 3
  %v13897 = vsel %vm13880, %v13896, %v13895
  %v13898 = vrot.slane %v13693, 2
  %v13899 = vsel %vm13883, %v13898, %v13897
  %v13900 = vrot.slane %v13701, 1
  %v13901 = vsel %vm13886, %v13900, %v13899
  %v13902 = vrot.slane %v13717, 7
  %v13903 = vsel %vm13868, %v13902, %v13709
  %v13904 = vrot.slane %v13725, 6
  %v13905 = vsel %vm13871, %v13904, %v13903
  %v13906 = vrot.slane %v13733, 5
  %v13907 = vsel %vm13874, %v13906, %v13905
  %v13908 = vrot.slane %v13741, 4
  %v13909 = vsel %vm13877, %v13908, %v13907
  %v13910 = vrot.slane %v13749, 3
  %v13911 = vsel %vm13880, %v13910, %v13909
  %v13912 = vrot.slane %v13757, 2
  %v13913 = vsel %vm13883, %v13912, %v13911
  %v13914 = vrot.slane %v13765, 1
  %v13915 = vsel %vm13886, %v13914, %v13913
  %v13916 = vrot.slane %v13781, 7
  %v13917 = vsel %vm13868, %v13916, %v13773
  %v13918 = vrot.slane %v13789, 6
  %v13919 = vsel %vm13871, %v13918, %v13917
  %v13920 = vrot.slane %v13797, 5
  %v13921 = vsel %vm13874, %v13920, %v13919
  %v13922 = vrot.slane %v13805, 4
  %v13923 = vsel %vm13877, %v13922, %v13921
  %v13924 = vrot.slane %v13813, 3
  %v13925 = vsel %vm13880, %v13924, %v13923
  %v13926 = vrot.slane %v13821, 2
  %v13927 = vsel %vm13883, %v13926, %v13925
  %v13928 = vrot.slane %v13829, 1
  %v13929 = vsel %vm13886, %v13928, %v13927
  %v13934 = vrot.slane %v13581, 1
  %v13935 = vsel %vm13868, %v13589, %v13934
  %v13936 = vrot.slane %v13597, 7
  %v13937 = vsel %vm13871, %v13936, %v13935
  %v13938 = vrot.slane %v13605, 6
  %v13939 = vsel %vm13874, %v13938, %v13937
  %v13940 = vrot.slane %v13613, 5
  %v13941 = vsel %vm13877, %v13940, %v13939
  %v13942 = vrot.slane %v13621, 4
  %v13943 = vsel %vm13880, %v13942, %v13941
  %v13944 = vrot.slane %v13629, 3
  %v13945 = vsel %vm13883, %v13944, %v13943
  %v13946 = vrot.slane %v13637, 2
  %v13947 = vsel %vm13886, %v13946, %v13945
  %v13948 = vrot.slane %v13645, 1
  %v13949 = vsel %vm13868, %v13653, %v13948
  %v13950 = vrot.slane %v13661, 7
  %v13951 = vsel %vm13871, %v13950, %v13949
  %v13952 = vrot.slane %v13669, 6
  %v13953 = vsel %vm13874, %v13952, %v13951
  %v13954 = vrot.slane %v13677, 5
  %v13955 = vsel %vm13877, %v13954, %v13953
  %v13956 = vrot.slane %v13685, 4
  %v13957 = vsel %vm13880, %v13956, %v13955
  %v13958 = vrot.slane %v13693, 3
  %v13959 = vsel %vm13883, %v13958, %v13957
  %v13960 = vrot.slane %v13701, 2
  %v13961 = vsel %vm13886, %v13960, %v13959
  %v13962 = vrot.slane %v13709, 1
  %v13963 = vsel %vm13868, %v13717, %v13962
  %v13964 = vrot.slane %v13725, 7
  %v13965 = vsel %vm13871, %v13964, %v13963
  %v13966 = vrot.slane %v13733, 6
  %v13967 = vsel %vm13874, %v13966, %v13965
  %v13968 = vrot.slane %v13741, 5
  %v13969 = vsel %vm13877, %v13968, %v13967
  %v13970 = vrot.slane %v13749, 4
  %v13971 = vsel %vm13880, %v13970, %v13969
  %v13972 = vrot.slane %v13757, 3
  %v13973 = vsel %vm13883, %v13972, %v13971
  %v13974 = vrot.slane %v13765, 2
  %v13975 = vsel %vm13886, %v13974, %v13973
  %v13976 = vrot.slane %v13773, 1
  %v13977 = vsel %vm13868, %v13781, %v13976
  %v13978 = vrot.slane %v13789, 7
  %v13979 = vsel %vm13871, %v13978, %v13977
  %v13980 = vrot.slane %v13797, 6
  %v13981 = vsel %vm13874, %v13980, %v13979
  %v13982 = vrot.slane %v13805, 5
  %v13983 = vsel %vm13877, %v13982, %v13981
  %v13984 = vrot.slane %v13813, 4
  %v13985 = vsel %vm13880, %v13984, %v13983
  %v13986 = vrot.slane %v13821, 3
  %v13987 = vsel %vm13883, %v13986, %v13985
  %v13988 = vrot.slane %v13829, 2
  %v13989 = vsel %vm13886, %v13988, %v13987
  %13990 = vrot.lane.b32.xlu0 %v13947, 8
  %v13991 = vpop.permute.xlu0 %13990
  %13992 = vrot.lane.b32.xlu0 %v13961, 8
  %v13993 = vpop.permute.xlu0 %13992
  %13994 = vrot.lane.b32.xlu0 %v13975, 8
  %v13995 = vpop.permute.xlu0 %13994
  %13996 = vrot.lane.b32.xlu0 %v13989, 8
  %v13997 = vpop.permute.xlu0 %13996
  %v14002 = vrot.slane %v13581, 2
  %v14003 = vrot.slane %v13589, 1
  %v14004 = vsel %vm13868, %v14003, %v14002
  %v14005 = vsel %vm13871, %v13597, %v14004
  %v14006 = vrot.slane %v13605, 7
  %v14007 = vsel %vm13874, %v14006, %v14005
  %v14008 = vrot.slane %v13613, 6
  %v14009 = vsel %vm13877, %v14008, %v14007
  %v14010 = vrot.slane %v13621, 5
  %v14011 = vsel %vm13880, %v14010, %v14009
  %v14012 = vrot.slane %v13629, 4
  %v14013 = vsel %vm13883, %v14012, %v14011
  %v14014 = vrot.slane %v13637, 3
  %v14015 = vsel %vm13886, %v14014, %v14013
  %v14016 = vrot.slane %v13645, 2
  %v14017 = vrot.slane %v13653, 1
  %v14018 = vsel %vm13868, %v14017, %v14016
  %v14019 = vsel %vm13871, %v13661, %v14018
  %v14020 = vrot.slane %v13669, 7
  %v14021 = vsel %vm13874, %v14020, %v14019
  %v14022 = vrot.slane %v13677, 6
  %v14023 = vsel %vm13877, %v14022, %v14021
  %v14024 = vrot.slane %v13685, 5
  %v14025 = vsel %vm13880, %v14024, %v14023
  %v14026 = vrot.slane %v13693, 4
  %v14027 = vsel %vm13883, %v14026, %v14025
  %v14028 = vrot.slane %v13701, 3
  %v14029 = vsel %vm13886, %v14028, %v14027
  %v14030 = vrot.slane %v13709, 2
  %v14031 = vrot.slane %v13717, 1
  %v14032 = vsel %vm13868, %v14031, %v14030
  %v14033 = vsel %vm13871, %v13725, %v14032
  %v14034 = vrot.slane %v13733, 7
  %v14035 = vsel %vm13874, %v14034, %v14033
  %v14036 = vrot.slane %v13741, 6
  %v14037 = vsel %vm13877, %v14036, %v14035
  %v14038 = vrot.slane %v13749, 5
  %v14039 = vsel %vm13880, %v14038, %v14037
  %v14040 = vrot.slane %v13757, 4
  %v14041 = vsel %vm13883, %v14040, %v14039
  %v14042 = vrot.slane %v13765, 3
  %v14043 = vsel %vm13886, %v14042, %v14041
  %v14044 = vrot.slane %v13773, 2
  %v14045 = vrot.slane %v13781, 1
  %v14046 = vsel %vm13868, %v14045, %v14044
  %v14047 = vsel %vm13871, %v13789, %v14046
  %v14048 = vrot.slane %v13797, 7
  %v14049 = vsel %vm13874, %v14048, %v14047
  %v14050 = vrot.slane %v13805, 6
  %v14051 = vsel %vm13877, %v14050, %v14049
  %v14052 = vrot.slane %v13813, 5
  %v14053 = vsel %vm13880, %v14052, %v14051
  %v14054 = vrot.slane %v13821, 4
  %v14055 = vsel %vm13883, %v14054, %v14053
  %v14056 = vrot.slane %v13829, 3
  %v14057 = vsel %vm13886, %v14056, %v14055
  %14058 = vrot.lane.b32.xlu0 %v14015, 16
  %v14059 = vpop.permute.xlu0 %14058
  %14060 = vrot.lane.b32.xlu0 %v14029, 16
  %v14061 = vpop.permute.xlu0 %14060
  %14062 = vrot.lane.b32.xlu0 %v14043, 16
  %v14063 = vpop.permute.xlu0 %14062
  %14064 = vrot.lane.b32.xlu0 %v14057, 16
  %v14065 = vpop.permute.xlu0 %14064
  %v14070 = vrot.slane %v13581, 3
  %v14071 = vrot.slane %v13589, 2
  %v14072 = vsel %vm13868, %v14071, %v14070
  %v14073 = vrot.slane %v13597, 1
  %v14074 = vsel %vm13871, %v14073, %v14072
  %v14075 = vsel %vm13874, %v13605, %v14074
  %v14076 = vrot.slane %v13613, 7
  %v14077 = vsel %vm13877, %v14076, %v14075
  %v14078 = vrot.slane %v13621, 6
  %v14079 = vsel %vm13880, %v14078, %v14077
  %v14080 = vrot.slane %v13629, 5
  %v14081 = vsel %vm13883, %v14080, %v14079
  %v14082 = vrot.slane %v13637, 4
  %v14083 = vsel %vm13886, %v14082, %v14081
  %v14084 = vrot.slane %v13645, 3
  %v14085 = vrot.slane %v13653, 2
  %v14086 = vsel %vm13868, %v14085, %v14084
  %v14087 = vrot.slane %v13661, 1
  %v14088 = vsel %vm13871, %v14087, %v14086
  %v14089 = vsel %vm13874, %v13669, %v14088
  %v14090 = vrot.slane %v13677, 7
  %v14091 = vsel %vm13877, %v14090, %v14089
  %v14092 = vrot.slane %v13685, 6
  %v14093 = vsel %vm13880, %v14092, %v14091
  %v14094 = vrot.slane %v13693, 5
  %v14095 = vsel %vm13883, %v14094, %v14093
  %v14096 = vrot.slane %v13701, 4
  %v14097 = vsel %vm13886, %v14096, %v14095
  %v14098 = vrot.slane %v13709, 3
  %v14099 = vrot.slane %v13717, 2
  %v14100 = vsel %vm13868, %v14099, %v14098
  %v14101 = vrot.slane %v13725, 1
  %v14102 = vsel %vm13871, %v14101, %v14100
  %v14103 = vsel %vm13874, %v13733, %v14102
  %v14104 = vrot.slane %v13741, 7
  %v14105 = vsel %vm13877, %v14104, %v14103
  %v14106 = vrot.slane %v13749, 6
  %v14107 = vsel %vm13880, %v14106, %v14105
  %v14108 = vrot.slane %v13757, 5
  %v14109 = vsel %vm13883, %v14108, %v14107
  %v14110 = vrot.slane %v13765, 4
  %v14111 = vsel %vm13886, %v14110, %v14109
  %v14112 = vrot.slane %v13773, 3
  %v14113 = vrot.slane %v13781, 2
  %v14114 = vsel %vm13868, %v14113, %v14112
  %v14115 = vrot.slane %v13789, 1
  %v14116 = vsel %vm13871, %v14115, %v14114
  %v14117 = vsel %vm13874, %v13797, %v14116
  %v14118 = vrot.slane %v13805, 7
  %v14119 = vsel %vm13877, %v14118, %v14117
  %v14120 = vrot.slane %v13813, 6
  %v14121 = vsel %vm13880, %v14120, %v14119
  %v14122 = vrot.slane %v13821, 5
  %v14123 = vsel %vm13883, %v14122, %v14121
  %v14124 = vrot.slane %v13829, 4
  %v14125 = vsel %vm13886, %v14124, %v14123
  %14126 = vrot.lane.b32.xlu0 %v14083, 24
  %v14127 = vpop.permute.xlu0 %14126
  %14128 = vrot.lane.b32.xlu0 %v14097, 24
  %v14129 = vpop.permute.xlu0 %14128
  %14130 = vrot.lane.b32.xlu0 %v14111, 24
  %v14131 = vpop.permute.xlu0 %14130
  %14132 = vrot.lane.b32.xlu0 %v14125, 24
  %v14133 = vpop.permute.xlu0 %14132
  %v14138 = vrot.slane %v13581, 4
  %v14139 = vrot.slane %v13589, 3
  %v14140 = vsel %vm13868, %v14139, %v14138
  %v14141 = vrot.slane %v13597, 2
  %v14142 = vsel %vm13871, %v14141, %v14140
  %v14143 = vrot.slane %v13605, 1
  %v14144 = vsel %vm13874, %v14143, %v14142
  %v14145 = vsel %vm13877, %v13613, %v14144
  %v14146 = vrot.slane %v13621, 7
  %v14147 = vsel %vm13880, %v14146, %v14145
  %v14148 = vrot.slane %v13629, 6
  %v14149 = vsel %vm13883, %v14148, %v14147
  %v14150 = vrot.slane %v13637, 5
  %v14151 = vsel %vm13886, %v14150, %v14149
  %v14152 = vrot.slane %v13645, 4
  %v14153 = vrot.slane %v13653, 3
  %v14154 = vsel %vm13868, %v14153, %v14152
  %v14155 = vrot.slane %v13661, 2
  %v14156 = vsel %vm13871, %v14155, %v14154
  %v14157 = vrot.slane %v13669, 1
  %v14158 = vsel %vm13874, %v14157, %v14156
  %v14159 = vsel %vm13877, %v13677, %v14158
  %v14160 = vrot.slane %v13685, 7
  %v14161 = vsel %vm13880, %v14160, %v14159
  %v14162 = vrot.slane %v13693, 6
  %v14163 = vsel %vm13883, %v14162, %v14161
  %v14164 = vrot.slane %v13701, 5
  %v14165 = vsel %vm13886, %v14164, %v14163
  %v14166 = vrot.slane %v13709, 4
  %v14167 = vrot.slane %v13717, 3
  %v14168 = vsel %vm13868, %v14167, %v14166
  %v14169 = vrot.slane %v13725, 2
  %v14170 = vsel %vm13871, %v14169, %v14168
  %v14171 = vrot.slane %v13733, 1
  %v14172 = vsel %vm13874, %v14171, %v14170
  %v14173 = vsel %vm13877, %v13741, %v14172
  %v14174 = vrot.slane %v13749, 7
  %v14175 = vsel %vm13880, %v14174, %v14173
  %v14176 = vrot.slane %v13757, 6
  %v14177 = vsel %vm13883, %v14176, %v14175
  %v14178 = vrot.slane %v13765, 5
  %v14179 = vsel %vm13886, %v14178, %v14177
  %v14180 = vrot.slane %v13773, 4
  %v14181 = vrot.slane %v13781, 3
  %v14182 = vsel %vm13868, %v14181, %v14180
  %v14183 = vrot.slane %v13789, 2
  %v14184 = vsel %vm13871, %v14183, %v14182
  %v14185 = vrot.slane %v13797, 1
  %v14186 = vsel %vm13874, %v14185, %v14184
  %v14187 = vsel %vm13877, %v13805, %v14186
  %v14188 = vrot.slane %v13813, 7
  %v14189 = vsel %vm13880, %v14188, %v14187
  %v14190 = vrot.slane %v13821, 6
  %v14191 = vsel %vm13883, %v14190, %v14189
  %v14192 = vrot.slane %v13829, 5
  %v14193 = vsel %vm13886, %v14192, %v14191
  %14194 = vrot.lane.b32.xlu0 %v14151, 32
  %v14195 = vpop.permute.xlu0 %14194
  %14196 = vrot.lane.b32.xlu0 %v14165, 32
  %v14197 = vpop.permute.xlu0 %14196
  %14198 = vrot.lane.b32.xlu0 %v14179, 32
  %v14199 = vpop.permute.xlu0 %14198
  %14200 = vrot.lane.b32.xlu0 %v14193, 32
  %v14201 = vpop.permute.xlu0 %14200
  %v14206 = vrot.slane %v13581, 5
  %v14207 = vrot.slane %v13589, 4
  %v14208 = vsel %vm13868, %v14207, %v14206
  %v14209 = vrot.slane %v13597, 3
  %v14210 = vsel %vm13871, %v14209, %v14208
  %v14211 = vrot.slane %v13605, 2
  %v14212 = vsel %vm13874, %v14211, %v14210
  %v14213 = vrot.slane %v13613, 1
  %v14214 = vsel %vm13877, %v14213, %v14212
  %v14215 = vsel %vm13880, %v13621, %v14214
  %v14216 = vrot.slane %v13629, 7
  %v14217 = vsel %vm13883, %v14216, %v14215
  %v14218 = vrot.slane %v13637, 6
  %v14219 = vsel %vm13886, %v14218, %v14217
  %v14220 = vrot.slane %v13645, 5
  %v14221 = vrot.slane %v13653, 4
  %v14222 = vsel %vm13868, %v14221, %v14220
  %v14223 = vrot.slane %v13661, 3
  %v14224 = vsel %vm13871, %v14223, %v14222
  %v14225 = vrot.slane %v13669, 2
  %v14226 = vsel %vm13874, %v14225, %v14224
  %v14227 = vrot.slane %v13677, 1
  %v14228 = vsel %vm13877, %v14227, %v14226
  %v14229 = vsel %vm13880, %v13685, %v14228
  %v14230 = vrot.slane %v13693, 7
  %v14231 = vsel %vm13883, %v14230, %v14229
  %v14232 = vrot.slane %v13701, 6
  %v14233 = vsel %vm13886, %v14232, %v14231
  %v14234 = vrot.slane %v13709, 5
  %v14235 = vrot.slane %v13717, 4
  %v14236 = vsel %vm13868, %v14235, %v14234
  %v14237 = vrot.slane %v13725, 3
  %v14238 = vsel %vm13871, %v14237, %v14236
  %v14239 = vrot.slane %v13733, 2
  %v14240 = vsel %vm13874, %v14239, %v14238
  %v14241 = vrot.slane %v13741, 1
  %v14242 = vsel %vm13877, %v14241, %v14240
  %v14243 = vsel %vm13880, %v13749, %v14242
  %v14244 = vrot.slane %v13757, 7
  %v14245 = vsel %vm13883, %v14244, %v14243
  %v14246 = vrot.slane %v13765, 6
  %v14247 = vsel %vm13886, %v14246, %v14245
  %v14248 = vrot.slane %v13773, 5
  %v14249 = vrot.slane %v13781, 4
  %v14250 = vsel %vm13868, %v14249, %v14248
  %v14251 = vrot.slane %v13789, 3
  %v14252 = vsel %vm13871, %v14251, %v14250
  %v14253 = vrot.slane %v13797, 2
  %v14254 = vsel %vm13874, %v14253, %v14252
  %v14255 = vrot.slane %v13805, 1
  %v14256 = vsel %vm13877, %v14255, %v14254
  %v14257 = vsel %vm13880, %v13813, %v14256
  %v14258 = vrot.slane %v13821, 7
  %v14259 = vsel %vm13883, %v14258, %v14257
  %v14260 = vrot.slane %v13829, 6
  %v14261 = vsel %vm13886, %v14260, %v14259
  %14262 = vrot.lane.b32.xlu0 %v14219, 40
  %v14263 = vpop.permute.xlu0 %14262
  %14264 = vrot.lane.b32.xlu0 %v14233, 40
  %v14265 = vpop.permute.xlu0 %14264
  %14266 = vrot.lane.b32.xlu0 %v14247, 40
  %v14267 = vpop.permute.xlu0 %14266
  %14268 = vrot.lane.b32.xlu0 %v14261, 40
  %v14269 = vpop.permute.xlu0 %14268
  %v14274 = vrot.slane %v13581, 6
  %v14275 = vrot.slane %v13589, 5
  %v14276 = vsel %vm13868, %v14275, %v14274
  %v14277 = vrot.slane %v13597, 4
  %v14278 = vsel %vm13871, %v14277, %v14276
  %v14279 = vrot.slane %v13605, 3
  %v14280 = vsel %vm13874, %v14279, %v14278
  %v14281 = vrot.slane %v13613, 2
  %v14282 = vsel %vm13877, %v14281, %v14280
  %v14283 = vrot.slane %v13621, 1
  %v14284 = vsel %vm13880, %v14283, %v14282
  %v14285 = vsel %vm13883, %v13629, %v14284
  %v14286 = vrot.slane %v13637, 7
  %v14287 = vsel %vm13886, %v14286, %v14285
  %v14288 = vrot.slane %v13645, 6
  %v14289 = vrot.slane %v13653, 5
  %v14290 = vsel %vm13868, %v14289, %v14288
  %v14291 = vrot.slane %v13661, 4
  %v14292 = vsel %vm13871, %v14291, %v14290
  %v14293 = vrot.slane %v13669, 3
  %v14294 = vsel %vm13874, %v14293, %v14292
  %v14295 = vrot.slane %v13677, 2
  %v14296 = vsel %vm13877, %v14295, %v14294
  %v14297 = vrot.slane %v13685, 1
  %v14298 = vsel %vm13880, %v14297, %v14296
  %v14299 = vsel %vm13883, %v13693, %v14298
  %v14300 = vrot.slane %v13701, 7
  %v14301 = vsel %vm13886, %v14300, %v14299
  %v14302 = vrot.slane %v13709, 6
  %v14303 = vrot.slane %v13717, 5
  %v14304 = vsel %vm13868, %v14303, %v14302
  %v14305 = vrot.slane %v13725, 4
  %v14306 = vsel %vm13871, %v14305, %v14304
  %v14307 = vrot.slane %v13733, 3
  %v14308 = vsel %vm13874, %v14307, %v14306
  %v14309 = vrot.slane %v13741, 2
  %v14310 = vsel %vm13877, %v14309, %v14308
  %v14311 = vrot.slane %v13749, 1
  %v14312 = vsel %vm13880, %v14311, %v14310
  %v14313 = vsel %vm13883, %v13757, %v14312
  %v14314 = vrot.slane %v13765, 7
  %v14315 = vsel %vm13886, %v14314, %v14313
  %v14316 = vrot.slane %v13773, 6
  %v14317 = vrot.slane %v13781, 5
  %v14318 = vsel %vm13868, %v14317, %v14316
  %v14319 = vrot.slane %v13789, 4
  %v14320 = vsel %vm13871, %v14319, %v14318
  %v14321 = vrot.slane %v13797, 3
  %v14322 = vsel %vm13874, %v14321, %v14320
  %v14323 = vrot.slane %v13805, 2
  %v14324 = vsel %vm13877, %v14323, %v14322
  %v14325 = vrot.slane %v13813, 1
  %v14326 = vsel %vm13880, %v14325, %v14324
  %v14327 = vsel %vm13883, %v13821, %v14326
  %v14328 = vrot.slane %v13829, 7
  %v14329 = vsel %vm13886, %v14328, %v14327
  %14330 = vrot.lane.b32.xlu0 %v14287, 48
  %v14331 = vpop.permute.xlu0 %14330
  %14332 = vrot.lane.b32.xlu0 %v14301, 48
  %v14333 = vpop.permute.xlu0 %14332
  %14334 = vrot.lane.b32.xlu0 %v14315, 48
  %v14335 = vpop.permute.xlu0 %14334
  %14336 = vrot.lane.b32.xlu0 %v14329, 48
  %v14337 = vpop.permute.xlu0 %14336
  %v14342 = vrot.slane %v13581, 7
  %v14343 = vrot.slane %v13589, 6
  %v14344 = vsel %vm13868, %v14343, %v14342
  %v14345 = vrot.slane %v13597, 5
  %v14346 = vsel %vm13871, %v14345, %v14344
  %v14347 = vrot.slane %v13605, 4
  %v14348 = vsel %vm13874, %v14347, %v14346
  %v14349 = vrot.slane %v13613, 3
  %v14350 = vsel %vm13877, %v14349, %v14348
  %v14351 = vrot.slane %v13621, 2
  %v14352 = vsel %vm13880, %v14351, %v14350
  %v14353 = vrot.slane %v13629, 1
  %v14354 = vsel %vm13883, %v14353, %v14352
  %v14355 = vsel %vm13886, %v13637, %v14354
  %v14356 = vrot.slane %v13645, 7
  %v14357 = vrot.slane %v13653, 6
  %v14358 = vsel %vm13868, %v14357, %v14356
  %v14359 = vrot.slane %v13661, 5
  %v14360 = vsel %vm13871, %v14359, %v14358
  %v14361 = vrot.slane %v13669, 4
  %v14362 = vsel %vm13874, %v14361, %v14360
  %v14363 = vrot.slane %v13677, 3
  %v14364 = vsel %vm13877, %v14363, %v14362
  %v14365 = vrot.slane %v13685, 2
  %v14366 = vsel %vm13880, %v14365, %v14364
  %v14367 = vrot.slane %v13693, 1
  %v14368 = vsel %vm13883, %v14367, %v14366
  %v14369 = vsel %vm13886, %v13701, %v14368
  %v14370 = vrot.slane %v13709, 7
  %v14371 = vrot.slane %v13717, 6
  %v14372 = vsel %vm13868, %v14371, %v14370
  %v14373 = vrot.slane %v13725, 5
  %v14374 = vsel %vm13871, %v14373, %v14372
  %v14375 = vrot.slane %v13733, 4
  %v14376 = vsel %vm13874, %v14375, %v14374
  %v14377 = vrot.slane %v13741, 3
  %v14378 = vsel %vm13877, %v14377, %v14376
  %v14379 = vrot.slane %v13749, 2
  %v14380 = vsel %vm13880, %v14379, %v14378
  %v14381 = vrot.slane %v13757, 1
  %v14382 = vsel %vm13883, %v14381, %v14380
  %v14383 = vsel %vm13886, %v13765, %v14382
  %v14384 = vrot.slane %v13773, 7
  %v14385 = vrot.slane %v13781, 6
  %v14386 = vsel %vm13868, %v14385, %v14384
  %v14387 = vrot.slane %v13789, 5
  %v14388 = vsel %vm13871, %v14387, %v14386
  %v14389 = vrot.slane %v13797, 4
  %v14390 = vsel %vm13874, %v14389, %v14388
  %v14391 = vrot.slane %v13805, 3
  %v14392 = vsel %vm13877, %v14391, %v14390
  %v14393 = vrot.slane %v13813, 2
  %v14394 = vsel %vm13880, %v14393, %v14392
  %v14395 = vrot.slane %v13821, 1
  %v14396 = vsel %vm13883, %v14395, %v14394
  %v14397 = vsel %vm13886, %v13829, %v14396
  %14398 = vrot.lane.b32.xlu0 %v14355, 56
  %v14399 = vpop.permute.xlu0 %14398
  %14400 = vrot.lane.b32.xlu0 %v14369, 56
  %v14401 = vpop.permute.xlu0 %14400
  %14402 = vrot.lane.b32.xlu0 %v14383, 56
  %v14403 = vpop.permute.xlu0 %14402
  %14404 = vrot.lane.b32.xlu0 %v14397, 56
  %v14405 = vpop.permute.xlu0 %14404
  %v14442 = vrot.slane %v13592, 7
  %v14443 = vsel %vm13868, %v14442, %v13584
  %v14444 = vrot.slane %v13600, 6
  %v14445 = vsel %vm13871, %v14444, %v14443
  %v14446 = vrot.slane %v13608, 5
  %v14447 = vsel %vm13874, %v14446, %v14445
  %v14448 = vrot.slane %v13616, 4
  %v14449 = vsel %vm13877, %v14448, %v14447
  %v14450 = vrot.slane %v13624, 3
  %v14451 = vsel %vm13880, %v14450, %v14449
  %v14452 = vrot.slane %v13632, 2
  %v14453 = vsel %vm13883, %v14452, %v14451
  %v14454 = vrot.slane %v13640, 1
  %v14455 = vsel %vm13886, %v14454, %v14453
  %v14456 = vrot.slane %v13656, 7
  %v14457 = vsel %vm13868, %v14456, %v13648
  %v14458 = vrot.slane %v13664, 6
  %v14459 = vsel %vm13871, %v14458, %v14457
  %v14460 = vrot.slane %v13672, 5
  %v14461 = vsel %vm13874, %v14460, %v14459
  %v14462 = vrot.slane %v13680, 4
  %v14463 = vsel %vm13877, %v14462, %v14461
  %v14464 = vrot.slane %v13688, 3
  %v14465 = vsel %vm13880, %v14464, %v14463
  %v14466 = vrot.slane %v13696, 2
  %v14467 = vsel %vm13883, %v14466, %v14465
  %v14468 = vrot.slane %v13704, 1
  %v14469 = vsel %vm13886, %v14468, %v14467
  %v14470 = vrot.slane %v13720, 7
  %v14471 = vsel %vm13868, %v14470, %v13712
  %v14472 = vrot.slane %v13728, 6
  %v14473 = vsel %vm13871, %v14472, %v14471
  %v14474 = vrot.slane %v13736, 5
  %v14475 = vsel %vm13874, %v14474, %v14473
  %v14476 = vrot.slane %v13744, 4
  %v14477 = vsel %vm13877, %v14476, %v14475
  %v14478 = vrot.slane %v13752, 3
  %v14479 = vsel %vm13880, %v14478, %v14477
  %v14480 = vrot.slane %v13760, 2
  %v14481 = vsel %vm13883, %v14480, %v14479
  %v14482 = vrot.slane %v13768, 1
  %v14483 = vsel %vm13886, %v14482, %v14481
  %v14484 = vrot.slane %v13784, 7
  %v14485 = vsel %vm13868, %v14484, %v13776
  %v14486 = vrot.slane %v13792, 6
  %v14487 = vsel %vm13871, %v14486, %v14485
  %v14488 = vrot.slane %v13800, 5
  %v14489 = vsel %vm13874, %v14488, %v14487
  %v14490 = vrot.slane %v13808, 4
  %v14491 = vsel %vm13877, %v14490, %v14489
  %v14492 = vrot.slane %v13816, 3
  %v14493 = vsel %vm13880, %v14492, %v14491
  %v14494 = vrot.slane %v13824, 2
  %v14495 = vsel %vm13883, %v14494, %v14493
  %v14496 = vrot.slane %v13832, 1
  %v14497 = vsel %vm13886, %v14496, %v14495
  %14498 = vrot.lane.b32.xlu0 %v14455, 64
  %v14499 = vpop.permute.xlu0 %14498
  %14500 = vrot.lane.b32.xlu0 %v14469, 64
  %v14501 = vpop.permute.xlu0 %14500
  %14502 = vrot.lane.b32.xlu0 %v14483, 64
  %v14503 = vpop.permute.xlu0 %14502
  %14504 = vrot.lane.b32.xlu0 %v14497, 64
  %v14505 = vpop.permute.xlu0 %14504
  %v14510 = vrot.slane %v13584, 1
  %v14511 = vsel %vm13868, %v13592, %v14510
  %v14512 = vrot.slane %v13600, 7
  %v14513 = vsel %vm13871, %v14512, %v14511
  %v14514 = vrot.slane %v13608, 6
  %v14515 = vsel %vm13874, %v14514, %v14513
  %v14516 = vrot.slane %v13616, 5
  %v14517 = vsel %vm13877, %v14516, %v14515
  %v14518 = vrot.slane %v13624, 4
  %v14519 = vsel %vm13880, %v14518, %v14517
  %v14520 = vrot.slane %v13632, 3
  %v14521 = vsel %vm13883, %v14520, %v14519
  %v14522 = vrot.slane %v13640, 2
  %v14523 = vsel %vm13886, %v14522, %v14521
  %v14524 = vrot.slane %v13648, 1
  %v14525 = vsel %vm13868, %v13656, %v14524
  %v14526 = vrot.slane %v13664, 7
  %v14527 = vsel %vm13871, %v14526, %v14525
  %v14528 = vrot.slane %v13672, 6
  %v14529 = vsel %vm13874, %v14528, %v14527
  %v14530 = vrot.slane %v13680, 5
  %v14531 = vsel %vm13877, %v14530, %v14529
  %v14532 = vrot.slane %v13688, 4
  %v14533 = vsel %vm13880, %v14532, %v14531
  %v14534 = vrot.slane %v13696, 3
  %v14535 = vsel %vm13883, %v14534, %v14533
  %v14536 = vrot.slane %v13704, 2
  %v14537 = vsel %vm13886, %v14536, %v14535
  %v14538 = vrot.slane %v13712, 1
  %v14539 = vsel %vm13868, %v13720, %v14538
  %v14540 = vrot.slane %v13728, 7
  %v14541 = vsel %vm13871, %v14540, %v14539
  %v14542 = vrot.slane %v13736, 6
  %v14543 = vsel %vm13874, %v14542, %v14541
  %v14544 = vrot.slane %v13744, 5
  %v14545 = vsel %vm13877, %v14544, %v14543
  %v14546 = vrot.slane %v13752, 4
  %v14547 = vsel %vm13880, %v14546, %v14545
  %v14548 = vrot.slane %v13760, 3
  %v14549 = vsel %vm13883, %v14548, %v14547
  %v14550 = vrot.slane %v13768, 2
  %v14551 = vsel %vm13886, %v14550, %v14549
  %v14552 = vrot.slane %v13776, 1
  %v14553 = vsel %vm13868, %v13784, %v14552
  %v14554 = vrot.slane %v13792, 7
  %v14555 = vsel %vm13871, %v14554, %v14553
  %v14556 = vrot.slane %v13800, 6
  %v14557 = vsel %vm13874, %v14556, %v14555
  %v14558 = vrot.slane %v13808, 5
  %v14559 = vsel %vm13877, %v14558, %v14557
  %v14560 = vrot.slane %v13816, 4
  %v14561 = vsel %vm13880, %v14560, %v14559
  %v14562 = vrot.slane %v13824, 3
  %v14563 = vsel %vm13883, %v14562, %v14561
  %v14564 = vrot.slane %v13832, 2
  %v14565 = vsel %vm13886, %v14564, %v14563
  %14566 = vrot.lane.b32.xlu0 %v14523, 72
  %v14567 = vpop.permute.xlu0 %14566
  %14568 = vrot.lane.b32.xlu0 %v14537, 72
  %v14569 = vpop.permute.xlu0 %14568
  %14570 = vrot.lane.b32.xlu0 %v14551, 72
  %v14571 = vpop.permute.xlu0 %14570
  %14572 = vrot.lane.b32.xlu0 %v14565, 72
  %v14573 = vpop.permute.xlu0 %14572
  %v14578 = vrot.slane %v13584, 2
  %v14579 = vrot.slane %v13592, 1
  %v14580 = vsel %vm13868, %v14579, %v14578
  %v14581 = vsel %vm13871, %v13600, %v14580
  %v14582 = vrot.slane %v13608, 7
  %v14583 = vsel %vm13874, %v14582, %v14581
  %v14584 = vrot.slane %v13616, 6
  %v14585 = vsel %vm13877, %v14584, %v14583
  %v14586 = vrot.slane %v13624, 5
  %v14587 = vsel %vm13880, %v14586, %v14585
  %v14588 = vrot.slane %v13632, 4
  %v14589 = vsel %vm13883, %v14588, %v14587
  %v14590 = vrot.slane %v13640, 3
  %v14591 = vsel %vm13886, %v14590, %v14589
  %v14592 = vrot.slane %v13648, 2
  %v14593 = vrot.slane %v13656, 1
  %v14594 = vsel %vm13868, %v14593, %v14592
  %v14595 = vsel %vm13871, %v13664, %v14594
  %v14596 = vrot.slane %v13672, 7
  %v14597 = vsel %vm13874, %v14596, %v14595
  %v14598 = vrot.slane %v13680, 6
  %v14599 = vsel %vm13877, %v14598, %v14597
  %v14600 = vrot.slane %v13688, 5
  %v14601 = vsel %vm13880, %v14600, %v14599
  %v14602 = vrot.slane %v13696, 4
  %v14603 = vsel %vm13883, %v14602, %v14601
  %v14604 = vrot.slane %v13704, 3
  %v14605 = vsel %vm13886, %v14604, %v14603
  %v14606 = vrot.slane %v13712, 2
  %v14607 = vrot.slane %v13720, 1
  %v14608 = vsel %vm13868, %v14607, %v14606
  %v14609 = vsel %vm13871, %v13728, %v14608
  %v14610 = vrot.slane %v13736, 7
  %v14611 = vsel %vm13874, %v14610, %v14609
  %v14612 = vrot.slane %v13744, 6
  %v14613 = vsel %vm13877, %v14612, %v14611
  %v14614 = vrot.slane %v13752, 5
  %v14615 = vsel %vm13880, %v14614, %v14613
  %v14616 = vrot.slane %v13760, 4
  %v14617 = vsel %vm13883, %v14616, %v14615
  %v14618 = vrot.slane %v13768, 3
  %v14619 = vsel %vm13886, %v14618, %v14617
  %v14620 = vrot.slane %v13776, 2
  %v14621 = vrot.slane %v13784, 1
  %v14622 = vsel %vm13868, %v14621, %v14620
  %v14623 = vsel %vm13871, %v13792, %v14622
  %v14624 = vrot.slane %v13800, 7
  %v14625 = vsel %vm13874, %v14624, %v14623
  %v14626 = vrot.slane %v13808, 6
  %v14627 = vsel %vm13877, %v14626, %v14625
  %v14628 = vrot.slane %v13816, 5
  %v14629 = vsel %vm13880, %v14628, %v14627
  %v14630 = vrot.slane %v13824, 4
  %v14631 = vsel %vm13883, %v14630, %v14629
  %v14632 = vrot.slane %v13832, 3
  %v14633 = vsel %vm13886, %v14632, %v14631
  %14634 = vrot.lane.b32.xlu0 %v14591, 80
  %v14635 = vpop.permute.xlu0 %14634
  %14636 = vrot.lane.b32.xlu0 %v14605, 80
  %v14637 = vpop.permute.xlu0 %14636
  %14638 = vrot.lane.b32.xlu0 %v14619, 80
  %v14639 = vpop.permute.xlu0 %14638
  %14640 = vrot.lane.b32.xlu0 %v14633, 80
  %v14641 = vpop.permute.xlu0 %14640
  %v14646 = vrot.slane %v13584, 3
  %v14647 = vrot.slane %v13592, 2
  %v14648 = vsel %vm13868, %v14647, %v14646
  %v14649 = vrot.slane %v13600, 1
  %v14650 = vsel %vm13871, %v14649, %v14648
  %v14651 = vsel %vm13874, %v13608, %v14650
  %v14652 = vrot.slane %v13616, 7
  %v14653 = vsel %vm13877, %v14652, %v14651
  %v14654 = vrot.slane %v13624, 6
  %v14655 = vsel %vm13880, %v14654, %v14653
  %v14656 = vrot.slane %v13632, 5
  %v14657 = vsel %vm13883, %v14656, %v14655
  %v14658 = vrot.slane %v13640, 4
  %v14659 = vsel %vm13886, %v14658, %v14657
  %v14660 = vrot.slane %v13648, 3
  %v14661 = vrot.slane %v13656, 2
  %v14662 = vsel %vm13868, %v14661, %v14660
  %v14663 = vrot.slane %v13664, 1
  %v14664 = vsel %vm13871, %v14663, %v14662
  %v14665 = vsel %vm13874, %v13672, %v14664
  %v14666 = vrot.slane %v13680, 7
  %v14667 = vsel %vm13877, %v14666, %v14665
  %v14668 = vrot.slane %v13688, 6
  %v14669 = vsel %vm13880, %v14668, %v14667
  %v14670 = vrot.slane %v13696, 5
  %v14671 = vsel %vm13883, %v14670, %v14669
  %v14672 = vrot.slane %v13704, 4
  %v14673 = vsel %vm13886, %v14672, %v14671
  %v14674 = vrot.slane %v13712, 3
  %v14675 = vrot.slane %v13720, 2
  %v14676 = vsel %vm13868, %v14675, %v14674
  %v14677 = vrot.slane %v13728, 1
  %v14678 = vsel %vm13871, %v14677, %v14676
  %v14679 = vsel %vm13874, %v13736, %v14678
  %v14680 = vrot.slane %v13744, 7
  %v14681 = vsel %vm13877, %v14680, %v14679
  %v14682 = vrot.slane %v13752, 6
  %v14683 = vsel %vm13880, %v14682, %v14681
  %v14684 = vrot.slane %v13760, 5
  %v14685 = vsel %vm13883, %v14684, %v14683
  %v14686 = vrot.slane %v13768, 4
  %v14687 = vsel %vm13886, %v14686, %v14685
  %v14688 = vrot.slane %v13776, 3
  %v14689 = vrot.slane %v13784, 2
  %v14690 = vsel %vm13868, %v14689, %v14688
  %v14691 = vrot.slane %v13792, 1
  %v14692 = vsel %vm13871, %v14691, %v14690
  %v14693 = vsel %vm13874, %v13800, %v14692
  %v14694 = vrot.slane %v13808, 7
  %v14695 = vsel %vm13877, %v14694, %v14693
  %v14696 = vrot.slane %v13816, 6
  %v14697 = vsel %vm13880, %v14696, %v14695
  %v14698 = vrot.slane %v13824, 5
  %v14699 = vsel %vm13883, %v14698, %v14697
  %v14700 = vrot.slane %v13832, 4
  %v14701 = vsel %vm13886, %v14700, %v14699
  %14702 = vrot.lane.b32.xlu0 %v14659, 88
  %v14703 = vpop.permute.xlu0 %14702
  %14704 = vrot.lane.b32.xlu0 %v14673, 88
  %v14705 = vpop.permute.xlu0 %14704
  %14706 = vrot.lane.b32.xlu0 %v14687, 88
  %v14707 = vpop.permute.xlu0 %14706
  %14708 = vrot.lane.b32.xlu0 %v14701, 88
  %v14709 = vpop.permute.xlu0 %14708
  %v14714 = vrot.slane %v13584, 4
  %v14715 = vrot.slane %v13592, 3
  %v14716 = vsel %vm13868, %v14715, %v14714
  %v14717 = vrot.slane %v13600, 2
  %v14718 = vsel %vm13871, %v14717, %v14716
  %v14719 = vrot.slane %v13608, 1
  %v14720 = vsel %vm13874, %v14719, %v14718
  %v14721 = vsel %vm13877, %v13616, %v14720
  %v14722 = vrot.slane %v13624, 7
  %v14723 = vsel %vm13880, %v14722, %v14721
  %v14724 = vrot.slane %v13632, 6
  %v14725 = vsel %vm13883, %v14724, %v14723
  %v14726 = vrot.slane %v13640, 5
  %v14727 = vsel %vm13886, %v14726, %v14725
  %v14728 = vrot.slane %v13648, 4
  %v14729 = vrot.slane %v13656, 3
  %v14730 = vsel %vm13868, %v14729, %v14728
  %v14731 = vrot.slane %v13664, 2
  %v14732 = vsel %vm13871, %v14731, %v14730
  %v14733 = vrot.slane %v13672, 1
  %v14734 = vsel %vm13874, %v14733, %v14732
  %v14735 = vsel %vm13877, %v13680, %v14734
  %v14736 = vrot.slane %v13688, 7
  %v14737 = vsel %vm13880, %v14736, %v14735
  %v14738 = vrot.slane %v13696, 6
  %v14739 = vsel %vm13883, %v14738, %v14737
  %v14740 = vrot.slane %v13704, 5
  %v14741 = vsel %vm13886, %v14740, %v14739
  %v14742 = vrot.slane %v13712, 4
  %v14743 = vrot.slane %v13720, 3
  %v14744 = vsel %vm13868, %v14743, %v14742
  %v14745 = vrot.slane %v13728, 2
  %v14746 = vsel %vm13871, %v14745, %v14744
  %v14747 = vrot.slane %v13736, 1
  %v14748 = vsel %vm13874, %v14747, %v14746
  %v14749 = vsel %vm13877, %v13744, %v14748
  %v14750 = vrot.slane %v13752, 7
  %v14751 = vsel %vm13880, %v14750, %v14749
  %v14752 = vrot.slane %v13760, 6
  %v14753 = vsel %vm13883, %v14752, %v14751
  %v14754 = vrot.slane %v13768, 5
  %v14755 = vsel %vm13886, %v14754, %v14753
  %v14756 = vrot.slane %v13776, 4
  %v14757 = vrot.slane %v13784, 3
  %v14758 = vsel %vm13868, %v14757, %v14756
  %v14759 = vrot.slane %v13792, 2
  %v14760 = vsel %vm13871, %v14759, %v14758
  %v14761 = vrot.slane %v13800, 1
  %v14762 = vsel %vm13874, %v14761, %v14760
  %v14763 = vsel %vm13877, %v13808, %v14762
  %v14764 = vrot.slane %v13816, 7
  %v14765 = vsel %vm13880, %v14764, %v14763
  %v14766 = vrot.slane %v13824, 6
  %v14767 = vsel %vm13883, %v14766, %v14765
  %v14768 = vrot.slane %v13832, 5
  %v14769 = vsel %vm13886, %v14768, %v14767
  %14770 = vrot.lane.b32.xlu0 %v14727, 96
  %v14771 = vpop.permute.xlu0 %14770
  %14772 = vrot.lane.b32.xlu0 %v14741, 96
  %v14773 = vpop.permute.xlu0 %14772
  %14774 = vrot.lane.b32.xlu0 %v14755, 96
  %v14775 = vpop.permute.xlu0 %14774
  %14776 = vrot.lane.b32.xlu0 %v14769, 96
  %v14777 = vpop.permute.xlu0 %14776
  %v14782 = vrot.slane %v13584, 5
  %v14783 = vrot.slane %v13592, 4
  %v14784 = vsel %vm13868, %v14783, %v14782
  %v14785 = vrot.slane %v13600, 3
  %v14786 = vsel %vm13871, %v14785, %v14784
  %v14787 = vrot.slane %v13608, 2
  %v14788 = vsel %vm13874, %v14787, %v14786
  %v14789 = vrot.slane %v13616, 1
  %v14790 = vsel %vm13877, %v14789, %v14788
  %v14791 = vsel %vm13880, %v13624, %v14790
  %v14792 = vrot.slane %v13632, 7
  %v14793 = vsel %vm13883, %v14792, %v14791
  %v14794 = vrot.slane %v13640, 6
  %v14795 = vsel %vm13886, %v14794, %v14793
  %v14796 = vrot.slane %v13648, 5
  %v14797 = vrot.slane %v13656, 4
  %v14798 = vsel %vm13868, %v14797, %v14796
  %v14799 = vrot.slane %v13664, 3
  %v14800 = vsel %vm13871, %v14799, %v14798
  %v14801 = vrot.slane %v13672, 2
  %v14802 = vsel %vm13874, %v14801, %v14800
  %v14803 = vrot.slane %v13680, 1
  %v14804 = vsel %vm13877, %v14803, %v14802
  %v14805 = vsel %vm13880, %v13688, %v14804
  %v14806 = vrot.slane %v13696, 7
  %v14807 = vsel %vm13883, %v14806, %v14805
  %v14808 = vrot.slane %v13704, 6
  %v14809 = vsel %vm13886, %v14808, %v14807
  %v14810 = vrot.slane %v13712, 5
  %v14811 = vrot.slane %v13720, 4
  %v14812 = vsel %vm13868, %v14811, %v14810
  %v14813 = vrot.slane %v13728, 3
  %v14814 = vsel %vm13871, %v14813, %v14812
  %v14815 = vrot.slane %v13736, 2
  %v14816 = vsel %vm13874, %v14815, %v14814
  %v14817 = vrot.slane %v13744, 1
  %v14818 = vsel %vm13877, %v14817, %v14816
  %v14819 = vsel %vm13880, %v13752, %v14818
  %v14820 = vrot.slane %v13760, 7
  %v14821 = vsel %vm13883, %v14820, %v14819
  %v14822 = vrot.slane %v13768, 6
  %v14823 = vsel %vm13886, %v14822, %v14821
  %v14824 = vrot.slane %v13776, 5
  %v14825 = vrot.slane %v13784, 4
  %v14826 = vsel %vm13868, %v14825, %v14824
  %v14827 = vrot.slane %v13792, 3
  %v14828 = vsel %vm13871, %v14827, %v14826
  %v14829 = vrot.slane %v13800, 2
  %v14830 = vsel %vm13874, %v14829, %v14828
  %v14831 = vrot.slane %v13808, 1
  %v14832 = vsel %vm13877, %v14831, %v14830
  %v14833 = vsel %vm13880, %v13816, %v14832
  %v14834 = vrot.slane %v13824, 7
  %v14835 = vsel %vm13883, %v14834, %v14833
  %v14836 = vrot.slane %v13832, 6
  %v14837 = vsel %vm13886, %v14836, %v14835
  %14838 = vrot.lane.b32.xlu0 %v14795, 104
  %v14839 = vpop.permute.xlu0 %14838
  %14840 = vrot.lane.b32.xlu0 %v14809, 104
  %v14841 = vpop.permute.xlu0 %14840
  %14842 = vrot.lane.b32.xlu0 %v14823, 104
  %v14843 = vpop.permute.xlu0 %14842
  %14844 = vrot.lane.b32.xlu0 %v14837, 104
  %v14845 = vpop.permute.xlu0 %14844
  %v14850 = vrot.slane %v13584, 6
  %v14851 = vrot.slane %v13592, 5
  %v14852 = vsel %vm13868, %v14851, %v14850
  %v14853 = vrot.slane %v13600, 4
  %v14854 = vsel %vm13871, %v14853, %v14852
  %v14855 = vrot.slane %v13608, 3
  %v14856 = vsel %vm13874, %v14855, %v14854
  %v14857 = vrot.slane %v13616, 2
  %v14858 = vsel %vm13877, %v14857, %v14856
  %v14859 = vrot.slane %v13624, 1
  %v14860 = vsel %vm13880, %v14859, %v14858
  %v14861 = vsel %vm13883, %v13632, %v14860
  %v14862 = vrot.slane %v13640, 7
  %v14863 = vsel %vm13886, %v14862, %v14861
  %v14864 = vrot.slane %v13648, 6
  %v14865 = vrot.slane %v13656, 5
  %v14866 = vsel %vm13868, %v14865, %v14864
  %v14867 = vrot.slane %v13664, 4
  %v14868 = vsel %vm13871, %v14867, %v14866
  %v14869 = vrot.slane %v13672, 3
  %v14870 = vsel %vm13874, %v14869, %v14868
  %v14871 = vrot.slane %v13680, 2
  %v14872 = vsel %vm13877, %v14871, %v14870
  %v14873 = vrot.slane %v13688, 1
  %v14874 = vsel %vm13880, %v14873, %v14872
  %v14875 = vsel %vm13883, %v13696, %v14874
  %v14876 = vrot.slane %v13704, 7
  %v14877 = vsel %vm13886, %v14876, %v14875
  %v14878 = vrot.slane %v13712, 6
  %v14879 = vrot.slane %v13720, 5
  %v14880 = vsel %vm13868, %v14879, %v14878
  %v14881 = vrot.slane %v13728, 4
  %v14882 = vsel %vm13871, %v14881, %v14880
  %v14883 = vrot.slane %v13736, 3
  %v14884 = vsel %vm13874, %v14883, %v14882
  %v14885 = vrot.slane %v13744, 2
  %v14886 = vsel %vm13877, %v14885, %v14884
  %v14887 = vrot.slane %v13752, 1
  %v14888 = vsel %vm13880, %v14887, %v14886
  %v14889 = vsel %vm13883, %v13760, %v14888
  %v14890 = vrot.slane %v13768, 7
  %v14891 = vsel %vm13886, %v14890, %v14889
  %v14892 = vrot.slane %v13776, 6
  %v14893 = vrot.slane %v13784, 5
  %v14894 = vsel %vm13868, %v14893, %v14892
  %v14895 = vrot.slane %v13792, 4
  %v14896 = vsel %vm13871, %v14895, %v14894
  %v14897 = vrot.slane %v13800, 3
  %v14898 = vsel %vm13874, %v14897, %v14896
  %v14899 = vrot.slane %v13808, 2
  %v14900 = vsel %vm13877, %v14899, %v14898
  %v14901 = vrot.slane %v13816, 1
  %v14902 = vsel %vm13880, %v14901, %v14900
  %v14903 = vsel %vm13883, %v13824, %v14902
  %v14904 = vrot.slane %v13832, 7
  %v14905 = vsel %vm13886, %v14904, %v14903
  %14906 = vrot.lane.b32.xlu0 %v14863, 112
  %v14907 = vpop.permute.xlu0 %14906
  %14908 = vrot.lane.b32.xlu0 %v14877, 112
  %v14909 = vpop.permute.xlu0 %14908
  %14910 = vrot.lane.b32.xlu0 %v14891, 112
  %v14911 = vpop.permute.xlu0 %14910
  %14912 = vrot.lane.b32.xlu0 %v14905, 112
  %v14913 = vpop.permute.xlu0 %14912
  %v14918 = vrot.slane %v13584, 7
  %v14919 = vrot.slane %v13592, 6
  %v14920 = vsel %vm13868, %v14919, %v14918
  %v14921 = vrot.slane %v13600, 5
  %v14922 = vsel %vm13871, %v14921, %v14920
  %v14923 = vrot.slane %v13608, 4
  %v14924 = vsel %vm13874, %v14923, %v14922
  %v14925 = vrot.slane %v13616, 3
  %v14926 = vsel %vm13877, %v14925, %v14924
  %v14927 = vrot.slane %v13624, 2
  %v14928 = vsel %vm13880, %v14927, %v14926
  %v14929 = vrot.slane %v13632, 1
  %v14930 = vsel %vm13883, %v14929, %v14928
  %v14931 = vsel %vm13886, %v13640, %v14930
  %v14932 = vrot.slane %v13648, 7
  %v14933 = vrot.slane %v13656, 6
  %v14934 = vsel %vm13868, %v14933, %v14932
  %v14935 = vrot.slane %v13664, 5
  %v14936 = vsel %vm13871, %v14935, %v14934
  %v14937 = vrot.slane %v13672, 4
  %v14938 = vsel %vm13874, %v14937, %v14936
  %v14939 = vrot.slane %v13680, 3
  %v14940 = vsel %vm13877, %v14939, %v14938
  %v14941 = vrot.slane %v13688, 2
  %v14942 = vsel %vm13880, %v14941, %v14940
  %v14943 = vrot.slane %v13696, 1
  %v14944 = vsel %vm13883, %v14943, %v14942
  %v14945 = vsel %vm13886, %v13704, %v14944
  %v14946 = vrot.slane %v13712, 7
  %v14947 = vrot.slane %v13720, 6
  %v14948 = vsel %vm13868, %v14947, %v14946
  %v14949 = vrot.slane %v13728, 5
  %v14950 = vsel %vm13871, %v14949, %v14948
  %v14951 = vrot.slane %v13736, 4
  %v14952 = vsel %vm13874, %v14951, %v14950
  %v14953 = vrot.slane %v13744, 3
  %v14954 = vsel %vm13877, %v14953, %v14952
  %v14955 = vrot.slane %v13752, 2
  %v14956 = vsel %vm13880, %v14955, %v14954
  %v14957 = vrot.slane %v13760, 1
  %v14958 = vsel %vm13883, %v14957, %v14956
  %v14959 = vsel %vm13886, %v13768, %v14958
  %v14960 = vrot.slane %v13776, 7
  %v14961 = vrot.slane %v13784, 6
  %v14962 = vsel %vm13868, %v14961, %v14960
  %v14963 = vrot.slane %v13792, 5
  %v14964 = vsel %vm13871, %v14963, %v14962
  %v14965 = vrot.slane %v13800, 4
  %v14966 = vsel %vm13874, %v14965, %v14964
  %v14967 = vrot.slane %v13808, 3
  %v14968 = vsel %vm13877, %v14967, %v14966
  %v14969 = vrot.slane %v13816, 2
  %v14970 = vsel %vm13880, %v14969, %v14968
  %v14971 = vrot.slane %v13824, 1
  %v14972 = vsel %vm13883, %v14971, %v14970
  %v14973 = vsel %vm13886, %v13832, %v14972
  %14974 = vrot.lane.b32.xlu0 %v14931, 120
  %v14975 = vpop.permute.xlu0 %14974
  %14976 = vrot.lane.b32.xlu0 %v14945, 120
  %v14977 = vpop.permute.xlu0 %14976
  %14978 = vrot.lane.b32.xlu0 %v14959, 120
  %v14979 = vpop.permute.xlu0 %14978
  %14980 = vrot.lane.b32.xlu0 %v14973, 120
  %v14981 = vpop.permute.xlu0 %14980
  %v14986 = vsel %vm5569, %v13887, %v13991
  %v14987 = vsel %vm5569, %v13901, %v13993
  %v14988 = vsel %vm5569, %v13915, %v13995
  %v14989 = vsel %vm5569, %v13929, %v13997
  %v14990 = vsel %vm5699, %v14986, %v14059
  %v14991 = vsel %vm5699, %v14987, %v14061
  %v14992 = vsel %vm5699, %v14988, %v14063
  %v14993 = vsel %vm5699, %v14989, %v14065
  %v14994 = vsel %vm5829, %v14990, %v14127
  %v14995 = vsel %vm5829, %v14991, %v14129
  %v14996 = vsel %vm5829, %v14992, %v14131
  %v14997 = vsel %vm5829, %v14993, %v14133
  %v14998 = vsel %vm5959, %v14994, %v14195
  %v14999 = vsel %vm5959, %v14995, %v14197
  %v15000 = vsel %vm5959, %v14996, %v14199
  %v15001 = vsel %vm5959, %v14997, %v14201
  %v15002 = vsel %vm6089, %v14998, %v14263
  %v15003 = vsel %vm6089, %v14999, %v14265
  %v15004 = vsel %vm6089, %v15000, %v14267
  %v15005 = vsel %vm6089, %v15001, %v14269
  %v15006 = vsel %vm6219, %v15002, %v14331
  %v15007 = vsel %vm6219, %v15003, %v14333
  %v15008 = vsel %vm6219, %v15004, %v14335
  %v15009 = vsel %vm6219, %v15005, %v14337
  %v15010 = vsel %vm6349, %v15006, %v14399
  %v15011 = vsel %vm6349, %v15007, %v14401
  %v15012 = vsel %vm6349, %v15008, %v14403
  %v15013 = vsel %vm6349, %v15009, %v14405
  %v15014 = vsel %vm12015, %v15010, %v14499
  %v15015 = vsel %vm12015, %v15011, %v14501
  %v15016 = vsel %vm12015, %v15012, %v14503
  %v15017 = vsel %vm12015, %v15013, %v14505
  %vm15018 = vcmask 588800
  %v15019 = vsel %vm15018, %v15014, %v14567
  %v15020 = vsel %vm15018, %v15015, %v14569
  %v15021 = vsel %vm15018, %v15016, %v14571
  %v15022 = vsel %vm15018, %v15017, %v14573
  %vm15023 = vcmask 654336
  %v15024 = vsel %vm15023, %v15019, %v14635
  %v15025 = vsel %vm15023, %v15020, %v14637
  %v15026 = vsel %vm15023, %v15021, %v14639
  %v15027 = vsel %vm15023, %v15022, %v14641
  %vm15028 = vcmask 719872
  %v15029 = vsel %vm15028, %v15024, %v14703
  %v15030 = vsel %vm15028, %v15025, %v14705
  %v15031 = vsel %vm15028, %v15026, %v14707
  %v15032 = vsel %vm15028, %v15027, %v14709
  %vm15033 = vcmask 785408
  %v15034 = vsel %vm15033, %v15029, %v14771
  %v15035 = vsel %vm15033, %v15030, %v14773
  %v15036 = vsel %vm15033, %v15031, %v14775
  %v15037 = vsel %vm15033, %v15032, %v14777
  %vm15038 = vcmask 850944
  %v15039 = vsel %vm15038, %v15034, %v14839
  %v15040 = vsel %vm15038, %v15035, %v14841
  %v15041 = vsel %vm15038, %v15036, %v14843
  %v15042 = vsel %vm15038, %v15037, %v14845
  %vm15043 = vcmask 916480
  %v15044 = vsel %vm15043, %v15039, %v14907
  %v15045 = vsel %vm15043, %v15040, %v14909
  %v15046 = vsel %vm15043, %v15041, %v14911
  %v15047 = vsel %vm15043, %v15042, %v14913
  %vm15048 = vcmask 982016
  %v15049 = vsel %vm15048, %v15044, %v14975
  %v15050 = vsel %vm15048, %v15045, %v14977
  %v15051 = vsel %vm15048, %v15046, %v14979
  %v15052 = vsel %vm15048, %v15047, %v14981
  %15053 = vst [vmem:[%s6] sm:$0xff] %v15049
  %15054 = vst [vmem:[%s6 + $0x8] sm:$0xff] %v15050
  %15055 = vst [vmem:[%s6 + $0x10] sm:$0xff] %v15051
  %15056 = vst [vmem:[%s6 + $0x18] sm:$0xff] %v15052
  // Predicated region
  $region26: #{multi_dilation_block.1} parent=0 // pred_check
    _
  $region27: #{multi_dilation_block.1} parent=0 // pred_check_branch
    %15058 = sbr.rel (0) target = $region29
  $region28: #{multi_dilation_block.1} parent=0 // pred_region
    _
  $region29: #{multi_dilation_block.1} parent=0 // pred_fallthru
    _
  // Predicated region
  $region30: #{multi_dilation_block.1} parent=0 // pred_check
    _
  $region31: #{multi_dilation_block.1} parent=0 // pred_check_branch
    %15060 = sbr.rel (0) target = $region33
  $region32: #{multi_dilation_block.1} parent=0 // pred_region
    _
  $region33: #{multi_dilation_block.1} parent=0 // pred_fallthru
    _

</llo_original>
